<compile_context>
chip_gen: v7x
topology: tpu7x:2x2x1
jax: 0.10.0
libtpu: 0.0.40
codegen_flags: <defaults>
</compile_context>

<pallas_src>
import functools

import jax
import jax.numpy as jnp
from jax import lax
from jax.experimental import pallas as pl
from jax.experimental.pallas import tpu as pltpu


def _round_up(x, m):
    return (x + m - 1) // m * m


# ============================ Pallas kernels ============================

def _gemm_bias_relu_kernel(a_ref, b_ref, bias_ref, o_ref):
    """o = relu(a @ b + bias).  Single block: all operands resident in VMEM."""
    y = jnp.dot(a_ref[...], b_ref[...], preferred_element_type=jnp.float32)
    o_ref[...] = jnp.maximum(y + bias_ref[...], 0.0)


def _gemm_gn_relu_kernel(a_ref, b_ref, bias_ref, gamma_ref, beta_ref,
                         gg_ref, bb_ref, o_ref, *, inv_cnt, eps):
    """o = relu(GroupNorm(a @ b + bias)).

    GroupNorm statistics are computed with block-mask matmuls:
      gg (N, N): 1 where two columns belong to the same (branch, group),
      bb (M, M): 1 where two rows belong to the same batch sample.
    bb @ ((a@b+bias) @ gg) broadcasts each (sample, group) sum back onto every
    element of that group, so the epilogue stays 2-D and lane-dense (no
    reshapes / cross-lane reductions).  Padded rows/cols are masked to zero.
    """
    y = jnp.dot(a_ref[...], b_ref[...], preferred_element_type=jnp.float32)
    y = y + bias_ref[...]
    gsum = jnp.dot(bb_ref[...],
                   jnp.dot(y, gg_ref[...], preferred_element_type=jnp.float32),
                   preferred_element_type=jnp.float32)
    gsq = jnp.dot(bb_ref[...],
                  jnp.dot(y * y, gg_ref[...], preferred_element_type=jnp.float32),
                  preferred_element_type=jnp.float32)
    mean = gsum * inv_cnt
    var = jnp.maximum(gsq * inv_cnt - mean * mean, 0.0)
    xn = (y - mean) * lax.rsqrt(var + eps)
    o_ref[...] = jnp.maximum(xn * gamma_ref[...] + beta_ref[...], 0.0)


def _refine_kernel(x_ref, cd_ref, cu_ref, bd_ref, bu_ref, o_ref, *, nb, p_num):
    """Whole refine down/up message-passing chain in ONE launch.

    x_ref:  (P*nb, F*H*W)  point-i chunk occupies rows [i*nb, (i+1)*nb)
    cd/cu:  (F*H*W, F*H*W) dense matrices equivalent to the shared 5x5
            conv_d / conv_u (stride 1, padding 2) on (c, y, x)-flattened vectors
    bd/bu:  (1, F*H*W)     conv biases broadcast over the flattened layout
    """
    cs = [x_ref[i * nb:(i + 1) * nb, :] for i in range(p_num)]
    for i in range(1, p_num):                       # down pass (conv_d)
        cs[i] = cs[i] + jnp.dot(cs[i - 1], cd_ref[...],
                                preferred_element_type=jnp.float32) + bd_ref[...]
    for i in range(p_num - 2, 0, -1):               # up pass (conv_u)
        cs[i] = cs[i] + jnp.dot(cs[i + 1], cu_ref[...],
                                preferred_element_type=jnp.float32) + bu_ref[...]
    for i in range(p_num):
        o_ref[i * nb:(i + 1) * nb, :] = cs[i]


def _dsnt_kernel(feat_ref, wrep_ref, b_ref, s_ref, grid_ref, hm_ref, coord_ref):
    """Fused grouped-1x1-conv + flat_softmax + DSNT for ALL heads at once.

    feat_ref: (G, F*HW)  per-(head, branch, batch, point) features, lane-dense
    wrep_ref: (G, F*HW)  head weights repeated over HW along lanes
    b_ref:    (G, 1)     head biases
    s_ref:    (F*HW, HW) stacked-identity matrix summing over the F axis
    grid_ref: (2, HW)    normalized x / y coordinate grids (dsntnn convention)
    """
    z = jnp.dot(feat_ref[...] * wrep_ref[...], s_ref[...],
                preferred_element_type=jnp.float32) + b_ref[...]      # (G, HW)
    m = jnp.max(z, axis=-1, keepdims=True)
    e = jnp.exp(z - m)
    p = e / jnp.sum(e, axis=-1, keepdims=True)                        # flat softmax
    xc = jnp.sum(p * grid_ref[0:1, :], axis=-1, keepdims=True)
    yc = jnp.sum(p * grid_ref[1:2, :], axis=-1, keepdims=True)
    hm_ref[...] = p
    coord_ref[...] = jnp.concatenate([xc, yc], axis=-1)


# ============================ Pallas wrappers ============================

_VMEM_SINGLE_BLOCK_BUDGET = 24 * 1024 * 1024   # stay well inside v7x's 64 MiB VMEM
_GEMM_PARAMS = pltpu.CompilerParams(vmem_limit_bytes=32 * 1024 * 1024)


def _check_single_block(*nbytes):
    if sum(nbytes) > _VMEM_SINGLE_BLOCK_BUDGET:
        # TODO(synk): reintroduce a K/M-tiled pipelined GEMM if shapes ever grow
        # beyond the single-block VMEM budget; at this model's sizes (<3 MB) the
        # grid-free form is strictly faster (no per-grid-step overhead).
        raise NotImplementedError("operands exceed single-block VMEM budget")


def _pad_cols(x, n_to):
    n = x.shape[-1]
    if n_to != n:
        x = jnp.pad(x, [(0, 0)] * (x.ndim - 1) + [(0, n_to - n)])
    return x


def gemm_bias_relu(a, w, bias):
    """relu(a @ w + bias); N padded to 128 (lane-dense stores), ONE Pallas launch."""
    M, K = a.shape
    _, N = w.shape
    Mp, Np = _round_up(M, 8), _round_up(N, 128)
    a = a.astype(jnp.bfloat16)
    w = _pad_cols(w.astype(jnp.bfloat16), Np)
    if Mp != M:
        a = jnp.pad(a, ((0, Mp - M), (0, 0)))
    bias = _pad_cols(bias.astype(jnp.float32).reshape(1, N), Np)
    _check_single_block(2 * (Mp * K + K * Np), 4 * Mp * Np)
    out = pl.pallas_call(
        _gemm_bias_relu_kernel,
        out_shape=jax.ShapeDtypeStruct((Mp, Np), jnp.float32),
        compiler_params=_GEMM_PARAMS,
    )(a, w, bias)
    return out[:M, :N]


def gemm_gn_relu(a, w, bias, gamma, beta, group_size, rows_per_sample, eps=1e-5):
    """relu(GroupNorm(a @ w + bias)); groups = consecutive `group_size` columns,
    samples = consecutive `rows_per_sample` rows.  ONE Pallas launch."""
    M, K = a.shape
    _, N = w.shape
    Mp, Np = _round_up(M, 8), _round_up(N, 128)
    a = a.astype(jnp.bfloat16)
    w = _pad_cols(w.astype(jnp.bfloat16), Np)
    if Mp != M:
        a = jnp.pad(a, ((0, Mp - M), (0, 0)))
    bias = _pad_cols(bias.astype(jnp.float32).reshape(1, N), Np)
    gamma = _pad_cols(gamma.astype(jnp.float32).reshape(1, N), Np)
    beta = _pad_cols(beta.astype(jnp.float32).reshape(1, N), Np)

    cid = jnp.arange(Np) // group_size
    cok = jnp.arange(Np) < N
    gg = ((cid[:, None] == cid[None, :]) & cok[:, None] & cok[None, :]).astype(jnp.float32)
    rid = jnp.arange(Mp) // rows_per_sample
    rok = jnp.arange(Mp) < M
    bb = ((rid[:, None] == rid[None, :]) & rok[:, None] & rok[None, :]).astype(jnp.float32)

    _check_single_block(2 * (Mp * K + K * Np), 4 * (3 * Mp * Np + Np * Np + Mp * Mp))
    kernel = functools.partial(_gemm_gn_relu_kernel,
                               inv_cnt=1.0 / float(group_size * rows_per_sample),
                               eps=eps)
    out = pl.pallas_call(
        kernel,
        out_shape=jax.ShapeDtypeStruct((Mp, Np), jnp.float32),
        compiler_params=_GEMM_PARAMS,
    )(a, w, bias, gamma, beta, gg, bb)
    return out[:M, :N]


# ============================ plain-JAX glue ============================

def _im2col(x, kh, kw, padding, dilation):
    """NCHW -> (B*Ho*Wo, kh*kw*C) bf16 patches (cast BEFORE materializing taps)."""
    B, C, H, W = x.shape
    d, p = dilation, padding
    Ho = H + 2 * p - d * (kh - 1)
    Wo = W + 2 * p - d * (kw - 1)
    xh = jnp.transpose(x, (0, 2, 3, 1)).astype(jnp.bfloat16)        # NHWC, bf16 first
    xp = jnp.pad(xh, ((0, 0), (p, p), (p, p), (0, 0)))
    taps = [xp[:, ky * d:ky * d + Ho, kx * d:kx * d + Wo, :]
            for ky in range(kh) for kx in range(kw)]
    patches = jnp.concatenate(taps, axis=-1)                        # (B,Ho,Wo,kh*kw*C)
    return patches.reshape(B * Ho * Wo, kh * kw * C), Ho, Wo


def _conv_weight_matrix(w):
    """(O, C, kh, kw) -> (kh*kw*C, O), matching _im2col's (ky, kx, c) ordering."""
    _, C, kh, kw = w.shape
    return jnp.transpose(w, (2, 3, 1, 0)).reshape(kh * kw * C, -1)


def _conv5x5_as_matrix(w, H, W):
    """(O, C, 5, 5) conv (stride 1, padding 2) as a dense (C*H*W, O*H*W) matrix M
    such that out_flat = x_flat @ M for (c, y, x)-flattened vectors."""
    O, C, kh, kw = w.shape
    ry, rx = jnp.arange(H), jnp.arange(W)
    dy = ry[:, None] - ry[None, :] + kh // 2       # dy[yi, yo] = yi - yo + 2
    dx = rx[:, None] - rx[None, :] + kw // 2
    vy = (dy >= 0) & (dy < kh)
    vx = (dx >= 0) & (dx < kw)
    ky = jnp.clip(dy, 0, kh - 1)
    kx = jnp.clip(dx, 0, kw - 1)
    wg = w[:, :, ky[:, :, None, None], kx[None, None, :, :]]        # (O,C,H,H,W,W)
    wg = wg * (vy[:, :, None, None] & vx[None, None, :, :]).astype(w.dtype)
    # -> M[(c, yi, xi), (o, yo, xo)]
    return jnp.transpose(wg, (1, 2, 4, 0, 3, 5)).reshape(C * H * W, O * H * W)


def lane_exist_forward(params, gf):
    B, C, H, W = gf.shape
    # Conv2d(512->32, 3x3, pad=4, dil=4, bias=False) with BatchNorm2d(eps=1e-3)
    # folded into weights/bias, ReLU fused in the Pallas GEMM epilogue.
    eps = 1e-3
    scale = params['le_bn_gamma'] * lax.rsqrt(params['le_bn_var'] + eps)
    w = params['le_conv1_w'] * scale[:, None, None, None]
    bias = params['le_bn_beta'] - scale * params['le_bn_mean']
    patches, Ho, Wo = _im2col(gf, 3, 3, padding=4, dilation=4)
    x = gemm_bias_relu(patches, _conv_weight_matrix(w), bias)       # (B*Ho*Wo, 32)
    x = x.reshape(B, Ho, Wo, 32)
    # Dropout2d(0.1) is identity at inference.  Remaining ops (1x1 conv N=5,
    # softmax, 2x2 maxpool, two tiny linears) are launch-overhead dominated as
    # Pallas calls; left to XLA fusion.
    w2 = params['le_conv2_w'].reshape(5, 32)
    y = jnp.dot(x, w2.T) + params['le_conv2_b']                     # (B,Ho,Wo,5)
    y = jax.nn.softmax(y, axis=-1)
    y = y.reshape(B, Ho // 2, 2, Wo // 2, 2, 5).max(axis=(2, 4))    # MaxPool2d(2,2)
    y = jnp.transpose(y, (0, 3, 1, 2)).reshape(B, -1)               # NCHW flatten
    y = jnp.dot(y, params['le_lin1_w'].T) + params['le_lin1_b']
    y = jnp.maximum(y, 0.0)
    y = jnp.dot(y, params['le_lin2_w'].T) + params['le_lin2_b']
    return jax.nn.sigmoid(y)


def fushion_forward(params, x, P=4, F=4):
    gf = x  # encoder == identity (see TODO at top)
    B, C, H, W = gf.shape
    HW = H * W
    names = ('L2', 'L1', 'R1', 'R2')
    n = len(names)

    pred_exist = lane_exist_forward(params, gf)

    # ---- four branch 3x3 convs + GroupNorm + ReLU: ONE Pallas GEMM ----
    patches, Ho, Wo = _im2col(gf, 3, 3, padding=1, dilation=1)
    w_all = jnp.concatenate([params[f'{nm}_conv_w'] for nm in names], axis=0)
    b_all = jnp.concatenate([params[f'{nm}_conv_b'] for nm in names], axis=0)
    g_all = jnp.concatenate([params[f'{nm}_gn_g'] for nm in names], axis=0)
    be_all = jnp.concatenate([params[f'{nm}_gn_b'] for nm in names], axis=0)
    y = gemm_gn_relu(patches, _conv_weight_matrix(w_all), b_all, g_all, be_all,
                     group_size=F, rows_per_sample=Ho * Wo)          # (B*HW, n*P*F)

    # grouped features (n, B, P, F, HW)
    feats_g = jnp.transpose(y.reshape(B, HW, n, P, F), (2, 0, 3, 4, 1))

    # ---- refine chain (shared conv_d / conv_u), ONE Pallas call ----
    cd = _conv5x5_as_matrix(params['conv_d_w'], H, W)
    cu = _conv5x5_as_matrix(params['conv_u_w'], H, W)
    bd = jnp.repeat(params['conv_d_b'], HW)[None, :]
    bu = jnp.repeat(params['conv_u_b'], HW)[None, :]
    nb = n * B
    chunks = jnp.transpose(feats_g, (2, 0, 1, 3, 4)).reshape(P * nb, F * HW)
    refined = pl.pallas_call(
        functools.partial(_refine_kernel, nb=nb, p_num=P),
        out_shape=jax.ShapeDtypeStruct((P * nb, F * HW), jnp.float32),
    )(chunks, cd, cu, bd, bu)
    feats_fin = jnp.transpose(refined.reshape(P, n, B, F * HW), (1, 2, 0, 3))

    # ---- middle + final heatmap heads + DSNT: ONE fused Pallas call ----
    G1 = n * B * P
    feat_mid = feats_g.reshape(G1, F * HW)
    feat_fin = feats_fin.reshape(G1, F * HW)

    def head_rows(wh, bh):   # (n,P,F)/(n,P) -> per-(branch, batch, point) rows
        wr = jnp.broadcast_to(wh[:, None], (n, B, P, F)).reshape(G1, F)
        wr = jnp.repeat(wr, HW, axis=1)                              # lane = f*HW+hw
        br = jnp.broadcast_to(bh[:, None], (n, B, P)).reshape(G1, 1)
        return wr, br

    mid_w = jnp.stack([params[f'mid_hm_{nm}_w'] for nm in names], axis=0)
    mid_b = jnp.stack([params[f'mid_hm_{nm}_b'] for nm in names], axis=0)
    fin_w = jnp.stack([params[f'fin_hm_{nm}_w'] for nm in names], axis=0)
    fin_b = jnp.stack([params[f'fin_hm_{nm}_b'] for nm in names], axis=0)
    wr_m, br_m = head_rows(mid_w, mid_b)
    wr_f, br_f = head_rows(fin_w, fin_b)

    feat_all = jnp.concatenate([feat_mid, feat_fin], axis=0)         # (2*G1, F*HW)
    wrep_all = jnp.concatenate([wr_m, wr_f], axis=0)
    bh_all = jnp.concatenate([br_m, br_f], axis=0)

    s_mat = jnp.tile(jnp.eye(HW, dtype=jnp.float32), (F, 1))         # (F*HW, HW)
    xs = (2.0 * jnp.arange(W, dtype=jnp.float32) + 1.0 - W) / W      # dsntnn linspace
    ys = (2.0 * jnp.arange(H, dtype=jnp.float32) + 1.0 - H) / H
    cgrid = jnp.stack([jnp.tile(xs, H), jnp.repeat(ys, W)], axis=0)  # (2, HW)

    hm_all, co_all = pl.pallas_call(
        _dsnt_kernel,
        out_shape=(jax.ShapeDtypeStruct((2 * G1, HW), jnp.float32),
                   jax.ShapeDtypeStruct((2 * G1, 2), jnp.float32)),
    )(feat_all, wrep_all, bh_all, s_mat, cgrid)

    mid_hm = hm_all[:G1].reshape(n, B, P, H, W)
    fin_hm = hm_all[G1:].reshape(n, B, P, H, W)
    mid_co = co_all[:G1].reshape(n, B, P, 2)
    fin_co = co_all[G1:].reshape(n, B, P, 2)

    # Branch index: 0=L2, 1=L1, 2=R1, 3=R2
    return (pred_exist,
            fin_co[3], fin_hm[3],     # R2 final
            fin_co[2], fin_hm[2],     # R1 final
            fin_co[1], fin_hm[1],     # L1 final
            fin_co[0], fin_hm[0],     # L2 final
            mid_co[3], mid_hm[3],     # R2 middle
            mid_co[2], mid_hm[2],     # R1 middle
            mid_co[1], mid_hm[1],     # L1 middle
            mid_co[0], mid_hm[0])     # L2 middle


# ============================ parameters ============================

def init_params(key, in_channels=512, P=4, F=4, H=8, W=8):
    keys = iter(jax.random.split(key, 64))

    def rnd(shape, scale=0.1):
        return (scale * jax.random.normal(next(keys), shape)).astype(jnp.float32)

    p = {}
    C = in_channels
    # Lane_exist
    p['le_conv1_w'] = rnd((32, C, 3, 3), 0.02)
    p['le_bn_gamma'] = rnd((32,), 0.1) + 1.0
    p['le_bn_beta'] = rnd((32,), 0.1)
    p['le_bn_mean'] = rnd((32,), 0.1)
    p['le_bn_var'] = jnp.abs(rnd((32,), 0.1)) + 1.0
    p['le_conv2_w'] = rnd((5, 32, 1, 1))
    p['le_conv2_b'] = rnd((5,))
    channel = 5 * (H // 2) * (W // 2)          # Lane_exist "Channel" for linear1
    p['le_lin1_w'] = rnd((128, channel))
    p['le_lin1_b'] = rnd((128,))
    p['le_lin2_w'] = rnd((4, 128))
    p['le_lin2_b'] = rnd((4,))
    # feature branches + heatmap heads
    for name in ('L2', 'L1', 'R1', 'R2'):
        p[f'{name}_conv_w'] = rnd((P * F, C, 3, 3), 0.02)
        p[f'{name}_conv_b'] = rnd((P * F,))
        p[f'{name}_gn_g'] = rnd((P * F,), 0.1) + 1.0
        p[f'{name}_gn_b'] = rnd((P * F,), 0.1)
        p[f'mid_hm_{name}_w'] = rnd((P, F))
        p[f'mid_hm_{name}_b'] = rnd((P,))
        p[f'fin_hm_{name}_w'] = rnd((P, F))
        p[f'fin_hm_{name}_b'] = rnd((P,))
    # shared conv_u / conv_d (5x5)
    p['conv_u_w'] = rnd((F, F, 5, 5), 0.05)
    p['conv_u_b'] = rnd((F,))
    p['conv_d_w'] = rnd((F, F, 5, 5), 0.05)
    p['conv_d_b'] = rnd((F,))
    return p


# ============================ main ============================

if __name__ == "__main__":
    key = jax.random.PRNGKey(0)
    kp, kx = jax.random.split(key)

    B, C, H, W = 2, 512, 8, 8      # x = 512-channel global feature (encoder is identity)
    P, F = 4, 4                    # point_number, point_feature_channels

    params = init_params(kp, in_channels=C, P=P, F=F, H=H, W=W)
    x = jax.random.normal(kx, (B, C, H, W), dtype=jnp.float32)

    fwd = jax.jit(functools.partial(fushion_forward, P=P, F=F))
    out = fwd(params, x)
    jax.block_until_ready(out)

    assert out[0].shape == (B, 4)                      # pred_exist (sigmoid)
    assert out[1].shape == (B, P, 2)                   # final_coors_r2
    assert out[2].shape == (B, P, H, W)                # final_normalized_heatmaps_r2
    assert out[-1].shape == (B, P, H, W)               # middle_normalized_heatmaps_l2
    assert len(out) == 17
    assert all(bool(jnp.all(jnp.isfinite(o))) for o in out)

    print("KERNEL_OK")
</pallas_src>

<mosaic_0001>
module attributes {stable_mosaic.version = 11 : i64} {
  func.func @_gemm_bias_relu_kernel(%arg0: memref<128x4608xbf16, #tpu.memory_space<vmem>>, %arg1: memref<4608x128xbf16, #tpu.memory_space<vmem>>, %arg2: memref<1x128xf32, #tpu.memory_space<vmem>>, %arg3: memref<128x128xf32, #tpu.memory_space<vmem>>) attributes {dimension_semantics = [], scalar_prefetch = 0 : i64, scratch_operands = 0 : i64, tpu.core_type = #tpu.core_type<tc>} {
    %c0 = arith.constant 0 : index
    %c0_0 = arith.constant 0 : index
    %0 = vector.load %arg0[%c0, %c0_0] : memref<128x4608xbf16, #tpu.memory_space<vmem>>, vector<128x4608xbf16>
    %c0_1 = arith.constant 0 : index
    %c0_2 = arith.constant 0 : index
    %1 = vector.load %arg1[%c0_1, %c0_2] : memref<4608x128xbf16, #tpu.memory_space<vmem>>, vector<4608x128xbf16>
    %cst = arith.constant dense<0.000000e+00> : vector<128x128xf32>
    %2 = tpu.matmul %0, %1, %cst {dimension_numbers = #tpu.dot_dimension_numbers<[1], [0], [0], [1], [0, 0, 1, 1], [], []>} : vector<128x4608xbf16>, vector<4608x128xbf16>, vector<128x128xf32> -> vector<128x128xf32>
    %c0_3 = arith.constant 0 : index
    %c0_4 = arith.constant 0 : index
    %3 = vector.load %arg2[%c0_3, %c0_4] : memref<1x128xf32, #tpu.memory_space<vmem>>, vector<1x128xf32>
    %4 = vector.broadcast %3 : vector<1x128xf32> to vector<128x128xf32>
    %5 = arith.addf %2, %4 : vector<128x128xf32>
    %cst_5 = arith.constant 0.000000e+00 : f32
    %6 = vector.broadcast %cst_5 : f32 to vector<128x128xf32>
    %7 = arith.maximumf %5, %6 : vector<128x128xf32>
    %c0_6 = arith.constant 0 : index
    %c0_7 = arith.constant 0 : index
    %8 = vector.load %arg3[%c0_6, %c0_7] : memref<128x128xf32, #tpu.memory_space<vmem>>, vector<128x128xf32>
    tpu.vector_store %arg3[%c0_6, %c0_7], %7 {strides = array<i32>} : memref<128x128xf32, #tpu.memory_space<vmem>>, vector<128x128xf32>,
    return
  }
}

module attributes {stable_mosaic.version = 11 : i64} {
  func.func @_gemm_gn_relu_kernel(%arg0: memref<128x4608xbf16, #tpu.memory_space<vmem>>, %arg1: memref<4608x128xbf16, #tpu.memory_space<vmem>>, %arg2: memref<1x128xf32, #tpu.memory_space<vmem>>, %arg3: memref<1x128xf32, #tpu.memory_space<vmem>>, %arg4: memref<1x128xf32, #tpu.memory_space<vmem>>, %arg5: memref<128x128xf32, #tpu.memory_space<vmem>>, %arg6: memref<128x128xf32, #tpu.memory_space<vmem>>, %arg7: memref<128x128xf32, #tpu.memory_space<vmem>>) attributes {dimension_semantics = [], scalar_prefetch = 0 : i64, scratch_operands = 0 : i64, tpu.core_type = #tpu.core_type<tc>} {
    %c0 = arith.constant 0 : index
    %c0_0 = arith.constant 0 : index
    %0 = vector.load %arg0[%c0, %c0_0] : memref<128x4608xbf16, #tpu.memory_space<vmem>>, vector<128x4608xbf16>
    %c0_1 = arith.constant 0 : index
    %c0_2 = arith.constant 0 : index
    %1 = vector.load %arg1[%c0_1, %c0_2] : memref<4608x128xbf16, #tpu.memory_space<vmem>>, vector<4608x128xbf16>
    %cst = arith.constant dense<0.000000e+00> : vector<128x128xf32>
    %2 = tpu.matmul %0, %1, %cst {dimension_numbers = #tpu.dot_dimension_numbers<[1], [0], [0], [1], [0, 0, 1, 1], [], []>} : vector<128x4608xbf16>, vector<4608x128xbf16>, vector<128x128xf32> -> vector<128x128xf32>
    %c0_3 = arith.constant 0 : index
    %c0_4 = arith.constant 0 : index
    %3 = vector.load %arg2[%c0_3, %c0_4] : memref<1x128xf32, #tpu.memory_space<vmem>>, vector<1x128xf32>
    %4 = vector.broadcast %3 : vector<1x128xf32> to vector<128x128xf32>
    %5 = arith.addf %2, %4 : vector<128x128xf32>
    %c0_5 = arith.constant 0 : index
    %c0_6 = arith.constant 0 : index
    %6 = vector.load %arg6[%c0_5, %c0_6] : memref<128x128xf32, #tpu.memory_space<vmem>>, vector<128x128xf32>
    %c0_7 = arith.constant 0 : index
    %c0_8 = arith.constant 0 : index
    %7 = vector.load %arg5[%c0_7, %c0_8] : memref<128x128xf32, #tpu.memory_space<vmem>>, vector<128x128xf32>
    %cst_9 = arith.constant dense<0.000000e+00> : vector<128x128xf32>
    %8 = tpu.matmul %5, %7, %cst_9 {dimension_numbers = #tpu.dot_dimension_numbers<[1], [0], [0], [1], [0, 0, 1, 1], [], []>} : vector<128x128xf32>, vector<128x128xf32>, vector<128x128xf32> -> vector<128x128xf32>
    %cst_10 = arith.constant dense<0.000000e+00> : vector<128x128xf32>
    %9 = tpu.matmul %6, %8, %cst_10 {dimension_numbers = #tpu.dot_dimension_numbers<[1], [0], [0], [1], [0, 0, 1, 1], [], []>} : vector<128x128xf32>, vector<128x128xf32>, vector<128x128xf32> -> vector<128x128xf32>
    %c0_11 = arith.constant 0 : index
    %c0_12 = arith.constant 0 : index
    %10 = vector.load %arg6[%c0_11, %c0_12] : memref<128x128xf32, #tpu.memory_space<vmem>>, vector<128x128xf32>
    %11 = arith.mulf %5, %5 : vector<128x128xf32>
    %c0_13 = arith.constant 0 : index
    %c0_14 = arith.constant 0 : index
    %12 = vector.load %arg5[%c0_13, %c0_14] : memref<128x128xf32, #tpu.memory_space<vmem>>, vector<128x128xf32>
    %cst_15 = arith.constant dense<0.000000e+00> : vector<128x128xf32>
    %13 = tpu.matmul %11, %12, %cst_15 {dimension_numbers = #tpu.dot_dimension_numbers<[1], [0], [0], [1], [0, 0, 1, 1], [], []>} : vector<128x128xf32>, vector<128x128xf32>, vector<128x128xf32> -> vector<128x128xf32>
    %cst_16 = arith.constant dense<0.000000e+00> : vector<128x128xf32>
    %14 = tpu.matmul %10, %13, %cst_16 {dimension_numbers = #tpu.dot_dimension_numbers<[1], [0], [0], [1], [0, 0, 1, 1], [], []>} : vector<128x128xf32>, vector<128x128xf32>, vector<128x128xf32> -> vector<128x128xf32>
    %cst_17 = arith.constant 3.906250e-03 : f32
    %15 = vector.broadcast %cst_17 : f32 to vector<128x128xf32>
    %16 = arith.mulf %9, %15 : vector<128x128xf32>
    %cst_18 = arith.constant 3.906250e-03 : f32
    %17 = vector.broadcast %cst_18 : f32 to vector<128x128xf32>
    %18 = arith.mulf %14, %17 : vector<128x128xf32>
    %19 = arith.mulf %16, %16 : vector<128x128xf32>
    %20 = arith.subf %18, %19 : vector<128x128xf32>
    %cst_19 = arith.constant 0.000000e+00 : f32
    %21 = vector.broadcast %cst_19 : f32 to vector<128x128xf32>
    %22 = arith.maximumf %20, %21 : vector<128x128xf32>
    %23 = arith.subf %5, %16 : vector<128x128xf32>
    %cst_20 = arith.constant 9.99999974E-6 : f32
    %24 = vector.broadcast %cst_20 : f32 to vector<128x128xf32>
    %25 = arith.addf %22, %24 : vector<128x128xf32>
    %26 = math.rsqrt %25 : vector<128x128xf32>
    %27 = arith.mulf %23, %26 : vector<128x128xf32>
    %c0_21 = arith.constant 0 : index
    %c0_22 = arith.constant 0 : index
    %28 = vector.load %arg3[%c0_21, %c0_22] : memref<1x128xf32, #tpu.memory_space<vmem>>, vector<1x128xf32>
    %29 = vector.broadcast %28 : vector<1x128xf32> to vector<128x128xf32>
    %30 = arith.mulf %27, %29 : vector<128x128xf32>
    %c0_23 = arith.constant 0 : index
    %c0_24 = arith.constant 0 : index
    %31 = vector.load %arg4[%c0_23, %c0_24] : memref<1x128xf32, #tpu.memory_space<vmem>>, vector<1x128xf32>
    %32 = vector.broadcast %31 : vector<1x128xf32> to vector<128x128xf32>
    %33 = arith.addf %30, %32 : vector<128x128xf32>
    %cst_25 = arith.constant 0.000000e+00 : f32
    %34 = vector.broadcast %cst_25 : f32 to vector<128x128xf32>
    %35 = arith.maximumf %33, %34 : vector<128x128xf32>
    %c0_26 = arith.constant 0 : index
    %c0_27 = arith.constant 0 : index
    %36 = vector.load %arg7[%c0_26, %c0_27] : memref<128x128xf32, #tpu.memory_space<vmem>>, vector<128x128xf32>
    tpu.vector_store %arg7[%c0_26, %c0_27], %35 {strides = array<i32>} : memref<128x128xf32, #tpu.memory_space<vmem>>, vector<128x128xf32>,
    return
  }
}

module attributes {stable_mosaic.version = 11 : i64} {
  func.func @_refine_kernel(%arg0: memref<32x256xf32, #tpu.memory_space<vmem>>, %arg1: memref<256x256xf32, #tpu.memory_space<vmem>>, %arg2: memref<256x256xf32, #tpu.memory_space<vmem>>, %arg3: memref<1x256xf32, #tpu.memory_space<vmem>>, %arg4: memref<1x256xf32, #tpu.memory_space<vmem>>, %arg5: memref<32x256xf32, #tpu.memory_space<vmem>>) attributes {dimension_semantics = [], scalar_prefetch = 0 : i64, scratch_operands = 0 : i64, tpu.core_type = #tpu.core_type<tc>} {
    %c0 = arith.constant 0 : index
    %c0_0 = arith.constant 0 : index
    %0 = vector.load %arg0[%c0, %c0_0] : memref<32x256xf32, #tpu.memory_space<vmem>>, vector<8x256xf32>
    %c8 = arith.constant 8 : index
    %c0_1 = arith.constant 0 : index
    %1 = vector.load %arg0[%c8, %c0_1] : memref<32x256xf32, #tpu.memory_space<vmem>>, vector<8x256xf32>
    %c16 = arith.constant 16 : index
    %c0_2 = arith.constant 0 : index
    %2 = vector.load %arg0[%c16, %c0_2] : memref<32x256xf32, #tpu.memory_space<vmem>>, vector<8x256xf32>
    %c24 = arith.constant 24 : index
    %c0_3 = arith.constant 0 : index
    %3 = vector.load %arg0[%c24, %c0_3] : memref<32x256xf32, #tpu.memory_space<vmem>>, vector<8x256xf32>
    %c0_4 = arith.constant 0 : index
    %c0_5 = arith.constant 0 : index
    %4 = vector.load %arg1[%c0_4, %c0_5] : memref<256x256xf32, #tpu.memory_space<vmem>>, vector<256x256xf32>
    %cst = arith.constant dense<0.000000e+00> : vector<8x256xf32>
    %5 = tpu.matmul %0, %4, %cst {dimension_numbers = #tpu.dot_dimension_numbers<[1], [0], [0], [1], [0, 0, 1, 1], [], []>} : vector<8x256xf32>, vector<256x256xf32>, vector<8x256xf32> -> vector<8x256xf32>
    %6 = arith.addf %1, %5 : vector<8x256xf32>
    %c0_6 = arith.constant 0 : index
    %c0_7 = arith.constant 0 : index
    %7 = vector.load %arg3[%c0_6, %c0_7] : memref<1x256xf32, #tpu.memory_space<vmem>>, vector<1x256xf32>
    %8 = vector.broadcast %7 : vector<1x256xf32> to vector<8x256xf32>
    %9 = arith.addf %6, %8 : vector<8x256xf32>
    %c0_8 = arith.constant 0 : index
    %c0_9 = arith.constant 0 : index
    %10 = vector.load %arg1[%c0_8, %c0_9] : memref<256x256xf32, #tpu.memory_space<vmem>>, vector<256x256xf32>
    %cst_10 = arith.constant dense<0.000000e+00> : vector<8x256xf32>
    %11 = tpu.matmul %9, %10, %cst_10 {dimension_numbers = #tpu.dot_dimension_numbers<[1], [0], [0], [1], [0, 0, 1, 1], [], []>} : vector<8x256xf32>, vector<256x256xf32>, vector<8x256xf32> -> vector<8x256xf32>
    %12 = arith.addf %2, %11 : vector<8x256xf32>
    %c0_11 = arith.constant 0 : index
    %c0_12 = arith.constant 0 : index
    %13 = vector.load %arg3[%c0_11, %c0_12] : memref<1x256xf32, #tpu.memory_space<vmem>>, vector<1x256xf32>
    %14 = vector.broadcast %13 : vector<1x256xf32> to vector<8x256xf32>
    %15 = arith.addf %12, %14 : vector<8x256xf32>
    %c0_13 = arith.constant 0 : index
    %c0_14 = arith.constant 0 : index
    %16 = vector.load %arg1[%c0_13, %c0_14] : memref<256x256xf32, #tpu.memory_space<vmem>>, vector<256x256xf32>
    %cst_15 = arith.constant dense<0.000000e+00> : vector<8x256xf32>
    %17 = tpu.matmul %15, %16, %cst_15 {dimension_numbers = #tpu.dot_dimension_numbers<[1], [0], [0], [1], [0, 0, 1, 1], [], []>} : vector<8x256xf32>, vector<256x256xf32>, vector<8x256xf32> -> vector<8x256xf32>
    %18 = arith.addf %3, %17 : vector<8x256xf32>
    %c0_16 = arith.constant 0 : index
    %c0_17 = arith.constant 0 : index
    %19 = vector.load %arg3[%c0_16, %c0_17] : memref<1x256xf32, #tpu.memory_space<vmem>>, vector<1x256xf32>
    %20 = vector.broadcast %19 : vector<1x256xf32> to vector<8x256xf32>
    %21 = arith.addf %18, %20 : vector<8x256xf32>
    %c0_18 = arith.constant 0 : index
    %c0_19 = arith.constant 0 : index
    %22 = vector.load %arg2[%c0_18, %c0_19] : memref<256x256xf32, #tpu.memory_space<vmem>>, vector<256x256xf32>
    %cst_20 = arith.constant dense<0.000000e+00> : vector<8x256xf32>
    %23 = tpu.matmul %21, %22, %cst_20 {dimension_numbers = #tpu.dot_dimension_numbers<[1], [0], [0], [1], [0, 0, 1, 1], [], []>} : vector<8x256xf32>, vector<256x256xf32>, vector<8x256xf32> -> vector<8x256xf32>
    %24 = arith.addf %15, %23 : vector<8x256xf32>
    %c0_21 = arith.constant 0 : index
    %c0_22 = arith.constant 0 : index
    %25 = vector.load %arg4[%c0_21, %c0_22] : memref<1x256xf32, #tpu.memory_space<vmem>>, vector<1x256xf32>
    %26 = vector.broadcast %25 : vector<1x256xf32> to vector<8x256xf32>
    %27 = arith.addf %24, %26 : vector<8x256xf32>
    %c0_23 = arith.constant 0 : index
    %c0_24 = arith.constant 0 : index
    %28 = vector.load %arg2[%c0_23, %c0_24] : memref<256x256xf32, #tpu.memory_space<vmem>>, vector<256x256xf32>
    %cst_25 = arith.constant dense<0.000000e+00> : vector<8x256xf32>
    %29 = tpu.matmul %27, %28, %cst_25 {dimension_numbers = #tpu.dot_dimension_numbers<[1], [0], [0], [1], [0, 0, 1, 1], [], []>} : vector<8x256xf32>, vector<256x256xf32>, vector<8x256xf32> -> vector<8x256xf32>
    %30 = arith.addf %9, %29 : vector<8x256xf32>
    %c0_26 = arith.constant 0 : index
    %c0_27 = arith.constant 0 : index
    %31 = vector.load %arg4[%c0_26, %c0_27] : memref<1x256xf32, #tpu.memory_space<vmem>>, vector<1x256xf32>
    %32 = vector.broadcast %31 : vector<1x256xf32> to vector<8x256xf32>
    %33 = arith.addf %30, %32 : vector<8x256xf32>
    %c0_28 = arith.constant 0 : index
    %c0_29 = arith.constant 0 : index
    %34 = vector.load %arg5[%c0_28, %c0_29] : memref<32x256xf32, #tpu.memory_space<vmem>>, vector<8x256xf32>
    tpu.vector_store %arg5[%c0_28, %c0_29], %0 {strides = array<i32>} : memref<32x256xf32, #tpu.memory_space<vmem>>, vector<8x256xf32>,
    %c8_30 = arith.constant 8 : index
    %c0_31 = arith.constant 0 : index
    %35 = vector.load %arg5[%c8_30, %c0_31] : memref<32x256xf32, #tpu.memory_space<vmem>>, vector<8x256xf32>
    tpu.vector_store %arg5[%c8_30, %c0_31], %33 {strides = array<i32>} : memref<32x256xf32, #tpu.memory_space<vmem>>, vector<8x256xf32>,
    %c16_32 = arith.constant 16 : index
    %c0_33 = arith.constant 0 : index
    %36 = vector.load %arg5[%c16_32, %c0_33] : memref<32x256xf32, #tpu.memory_space<vmem>>, vector<8x256xf32>
    tpu.vector_store %arg5[%c16_32, %c0_33], %27 {strides = array<i32>} : memref<32x256xf32, #tpu.memory_space<vmem>>, vector<8x256xf32>,
    %c24_34 = arith.constant 24 : index
    %c0_35 = arith.constant 0 : index
    %37 = vector.load %arg5[%c24_34, %c0_35] : memref<32x256xf32, #tpu.memory_space<vmem>>, vector<8x256xf32>
    tpu.vector_store %arg5[%c24_34, %c0_35], %21 {strides = array<i32>} : memref<32x256xf32, #tpu.memory_space<vmem>>, vector<8x256xf32>,
    return
  }
}

module attributes {stable_mosaic.version = 11 : i64} {
  func.func @_dsnt_kernel(%arg0: memref<64x256xf32, #tpu.memory_space<vmem>>, %arg1: memref<64x256xf32, #tpu.memory_space<vmem>>, %arg2: memref<64x1xf32, #tpu.memory_space<vmem>>, %arg3: memref<256x64xf32, #tpu.memory_space<vmem>>, %arg4: memref<2x64xf32, #tpu.memory_space<vmem>>, %arg5: memref<64x64xf32, #tpu.memory_space<vmem>>, %arg6: memref<64x2xf32, #tpu.memory_space<vmem>>) attributes {dimension_semantics = [], scalar_prefetch = 0 : i64, scratch_operands = 0 : i64, tpu.core_type = #tpu.core_type<tc>} {
    %c0 = arith.constant 0 : index
    %c0_0 = arith.constant 0 : index
    %0 = vector.load %arg0[%c0, %c0_0] : memref<64x256xf32, #tpu.memory_space<vmem>>, vector<64x256xf32>
    %c0_1 = arith.constant 0 : index
    %c0_2 = arith.constant 0 : index
    %1 = vector.load %arg1[%c0_1, %c0_2] : memref<64x256xf32, #tpu.memory_space<vmem>>, vector<64x256xf32>
    %2 = arith.mulf %0, %1 : vector<64x256xf32>
    %c0_3 = arith.constant 0 : index
    %c0_4 = arith.constant 0 : index
    %3 = vector.load %arg3[%c0_3, %c0_4] : memref<256x64xf32, #tpu.memory_space<vmem>>, vector<256x64xf32>
    %cst = arith.constant dense<0.000000e+00> : vector<64x64xf32>
    %4 = tpu.matmul %2, %3, %cst {dimension_numbers = #tpu.dot_dimension_numbers<[1], [0], [0], [1], [0, 0, 1, 1], [], []>} : vector<64x256xf32>, vector<256x64xf32>, vector<64x64xf32> -> vector<64x64xf32>
    %c0_5 = arith.constant 0 : index
    %c0_6 = arith.constant 0 : index
    %5 = vector.load %arg2[%c0_5, %c0_6] : memref<64x1xf32, #tpu.memory_space<vmem>>, vector<64x1xf32>
    %6 = vector.broadcast %5 : vector<64x1xf32> to vector<64x64xf32>
    %7 = arith.addf %4, %6 : vector<64x64xf32>
    %cst_7 = arith.constant dense<0xFF800000> : vector<64xf32>
    %8 = vector.multi_reduction <maximumf>, %7, %cst_7 [1] : vector<64x64xf32> to vector<64xf32>
    %9 = vector.shape_cast %8 : vector<64xf32> to vector<64x1xf32>
    %10 = vector.broadcast %9 : vector<64x1xf32> to vector<64x64xf32>
    %11 = arith.subf %7, %10 : vector<64x64xf32>
    %12 = math.exp %11 : vector<64x64xf32>
    %cst_8 = arith.constant dense<0.000000e+00> : vector<64xf32>
    %13 = vector.multi_reduction <add>, %12, %cst_8 [1] : vector<64x64xf32> to vector<64xf32>
    %14 = vector.shape_cast %13 : vector<64xf32> to vector<64x1xf32>
    %15 = vector.broadcast %14 : vector<64x1xf32> to vector<64x64xf32>
    %16 = arith.divf %12, %15 : vector<64x64xf32>
    %c0_9 = arith.constant 0 : index
    %c0_10 = arith.constant 0 : index
    %17 = vector.load %arg4[%c0_9, %c0_10] : memref<2x64xf32, #tpu.memory_space<vmem>>, vector<1x64xf32>
    %18 = vector.broadcast %17 : vector<1x64xf32> to vector<64x64xf32>
    %19 = arith.mulf %16, %18 : vector<64x64xf32>
    %cst_11 = arith.constant dense<0.000000e+00> : vector<64xf32>
    %20 = vector.multi_reduction <add>, %19, %cst_11 [1] : vector<64x64xf32> to vector<64xf32>
    %21 = vector.shape_cast %20 : vector<64xf32> to vector<64x1xf32>
    %c1 = arith.constant 1 : index
    %c0_12 = arith.constant 0 : index
    %22 = vector.load %arg4[%c1, %c0_12] : memref<2x64xf32, #tpu.memory_space<vmem>>, vector<1x64xf32>
    %23 = vector.broadcast %22 : vector<1x64xf32> to vector<64x64xf32>
    %24 = arith.mulf %16, %23 : vector<64x64xf32>
    %cst_13 = arith.constant dense<0.000000e+00> : vector<64xf32>
    %25 = vector.multi_reduction <add>, %24, %cst_13 [1] : vector<64x64xf32> to vector<64xf32>
    %26 = vector.shape_cast %25 : vector<64xf32> to vector<64x1xf32>
    %c0_14 = arith.constant 0 : index
    %c0_15 = arith.constant 0 : index
    %27 = vector.load %arg5[%c0_14, %c0_15] : memref<64x64xf32, #tpu.memory_space<vmem>>, vector<64x64xf32>
    tpu.vector_store %arg5[%c0_14, %c0_15], %16 {strides = array<i32>} : memref<64x64xf32, #tpu.memory_space<vmem>>, vector<64x64xf32>,
    %28 = tpu.concatenate %21, %26 in 1 : vector<64x1xf32>, vector<64x1xf32> -> vector<64x2xf32>
    %c0_16 = arith.constant 0 : index
    %c0_17 = arith.constant 0 : index
    %29 = vector.load %arg6[%c0_16, %c0_17] : memref<64x2xf32, #tpu.memory_space<vmem>>, vector<64x2xf32>
    tpu.vector_store %arg6[%c0_16, %c0_17], %28 {strides = array<i32>} : memref<64x2xf32, #tpu.memory_space<vmem>>, vector<64x2xf32>,
    return
  }
}

</mosaic_0001>

<llo_original>
// kernel: fushion_forward.4
$region0: #{fushion_forward.4}
  #allocation0 [shape = 'u32[]', space=smem, size = 0x4, offset = 0x4, fixed_abs, tag = 'smem constant byte address 0x4 - core index']
  #allocation1 [shape = 'u32[144,128]{1,0:T(1,128)}', space=vmem, size = 0x12000, scoped, tag = 'internal scratch']
  %s0 = inlined_call_operand.vmem [shape: bf16[128,4608], index: 0, kind: input, shape index: {}]
  %s1 = inlined_call_operand.vmem [shape: bf16[4608,128], index: 1, kind: input, shape index: {}]
  %s2 = inlined_call_operand.vmem [shape: f32[1,128], index: 2, kind: input, shape index: {}]
  %s3 = inlined_call_operand.vmem [shape: f32[128,128], index: 3, kind: output, shape index: {}]
  %s4 = sld [smem:[#allocation0]]
  $region22: #{fushion_forward.4} parent=0
    _
  %s6 = ssub.s32 1, %s4
  %s7 = scalar_select 0, %s6, %s4
  // Predicated region
  $region2: #{fushion_forward.4} parent=0 // pred_check
    _
  $region3: #{fushion_forward.4} parent=0 // pred_check_branch
    %9 = sbr.rel (0) target = $region5
  $region4: #{fushion_forward.4} parent=0 // pred_region
    _
  $region5: #{fushion_forward.4} parent=0 // pred_fallthru
    _
  // Predicated region
  $region6: #{fushion_forward.4} parent=0 // pred_check
    _
  $region7: #{fushion_forward.4} parent=0 // pred_check_branch
    %11 = sbr.rel (0) target = $region9
  $region8: #{fushion_forward.4} parent=0 // pred_region
    _
  $region9: #{fushion_forward.4} parent=0 // pred_fallthru
    _
  // Predicated region
  $region10: #{fushion_forward.4} parent=0 // pred_check
    _
  $region11: #{fushion_forward.4} parent=0 // pred_check_branch
    %13 = sbr.rel (0) target = $region13
  $region12: #{fushion_forward.4} parent=0 // pred_region
    _
  $region13: #{fushion_forward.4} parent=0 // pred_fallthru
    _
  %v15 = vld [vmem:[%s0] sm:$0xff]
  %v16 = vld [vmem:[%s0 + $0x8] sm:$0xff]
  %v17 = vld [vmem:[%s0 + $0x10] sm:$0xff]
  %v18 = vld [vmem:[%s0 + $0x18] sm:$0xff]
  %v19 = vld [vmem:[%s0 + $0x20] sm:$0xff]
  %v20 = vld [vmem:[%s0 + $0x28] sm:$0xff]
  %v21 = vld [vmem:[%s0 + $0x30] sm:$0xff]
  %v22 = vld [vmem:[%s0 + $0x38] sm:$0xff]
  %v23 = vld [vmem:[%s0 + $0x40] sm:$0xff]
  %v24 = vld [vmem:[%s0 + $0x48] sm:$0xff]
  %v25 = vld [vmem:[%s0 + $0x50] sm:$0xff]
  %v26 = vld [vmem:[%s0 + $0x58] sm:$0xff]
  %v27 = vld [vmem:[%s0 + $0x60] sm:$0xff]
  %v28 = vld [vmem:[%s0 + $0x68] sm:$0xff]
  %v29 = vld [vmem:[%s0 + $0x70] sm:$0xff]
  %v30 = vld [vmem:[%s0 + $0x78] sm:$0xff]
  %v31 = vld [vmem:[%s0 + $0x80] sm:$0xff]
  %v32 = vld [vmem:[%s0 + $0x88] sm:$0xff]
  %v33 = vld [vmem:[%s0 + $0x90] sm:$0xff]
  %v34 = vld [vmem:[%s0 + $0x98] sm:$0xff]
  %v35 = vld [vmem:[%s0 + $0xa0] sm:$0xff]
  %v36 = vld [vmem:[%s0 + $0xa8] sm:$0xff]
  %v37 = vld [vmem:[%s0 + $0xb0] sm:$0xff]
  %v38 = vld [vmem:[%s0 + $0xb8] sm:$0xff]
  %v39 = vld [vmem:[%s0 + $0xc0] sm:$0xff]
  %v40 = vld [vmem:[%s0 + $0xc8] sm:$0xff]
  %v41 = vld [vmem:[%s0 + $0xd0] sm:$0xff]
  %v42 = vld [vmem:[%s0 + $0xd8] sm:$0xff]
  %v43 = vld [vmem:[%s0 + $0xe0] sm:$0xff]
  %v44 = vld [vmem:[%s0 + $0xe8] sm:$0xff]
  %v45 = vld [vmem:[%s0 + $0xf0] sm:$0xff]
  %v46 = vld [vmem:[%s0 + $0xf8] sm:$0xff]
  %v47 = vld [vmem:[%s0 + $0x100] sm:$0xff]
  %v48 = vld [vmem:[%s0 + $0x108] sm:$0xff]
  %v49 = vld [vmem:[%s0 + $0x110] sm:$0xff]
  %v50 = vld [vmem:[%s0 + $0x118] sm:$0xff]
  %v51 = vld [vmem:[%s0 + $0x120] sm:$0xff]
  %v52 = vld [vmem:[%s0 + $0x128] sm:$0xff]
  %v53 = vld [vmem:[%s0 + $0x130] sm:$0xff]
  %v54 = vld [vmem:[%s0 + $0x138] sm:$0xff]
  %v55 = vld [vmem:[%s0 + $0x140] sm:$0xff]
  %v56 = vld [vmem:[%s0 + $0x148] sm:$0xff]
  %v57 = vld [vmem:[%s0 + $0x150] sm:$0xff]
  %v58 = vld [vmem:[%s0 + $0x158] sm:$0xff]
  %v59 = vld [vmem:[%s0 + $0x160] sm:$0xff]
  %v60 = vld [vmem:[%s0 + $0x168] sm:$0xff]
  %v61 = vld [vmem:[%s0 + $0x170] sm:$0xff]
  %v62 = vld [vmem:[%s0 + $0x178] sm:$0xff]
  %v63 = vld [vmem:[%s0 + $0x180] sm:$0xff]
  %v64 = vld [vmem:[%s0 + $0x188] sm:$0xff]
  %v65 = vld [vmem:[%s0 + $0x190] sm:$0xff]
  %v66 = vld [vmem:[%s0 + $0x198] sm:$0xff]
  %v67 = vld [vmem:[%s0 + $0x1a0] sm:$0xff]
  %v68 = vld [vmem:[%s0 + $0x1a8] sm:$0xff]
  %v69 = vld [vmem:[%s0 + $0x1b0] sm:$0xff]
  %v70 = vld [vmem:[%s0 + $0x1b8] sm:$0xff]
  %v71 = vld [vmem:[%s0 + $0x1c0] sm:$0xff]
  %v72 = vld [vmem:[%s0 + $0x1c8] sm:$0xff]
  %v73 = vld [vmem:[%s0 + $0x1d0] sm:$0xff]
  %v74 = vld [vmem:[%s0 + $0x1d8] sm:$0xff]
  %v75 = vld [vmem:[%s0 + $0x1e0] sm:$0xff]
  %v76 = vld [vmem:[%s0 + $0x1e8] sm:$0xff]
  %v77 = vld [vmem:[%s0 + $0x1f0] sm:$0xff]
  %v78 = vld [vmem:[%s0 + $0x1f8] sm:$0xff]
  %v79 = vld [vmem:[%s0 + $0x200] sm:$0xff]
  %v80 = vld [vmem:[%s0 + $0x208] sm:$0xff]
  %v81 = vld [vmem:[%s0 + $0x210] sm:$0xff]
  %v82 = vld [vmem:[%s0 + $0x218] sm:$0xff]
  %v83 = vld [vmem:[%s0 + $0x220] sm:$0xff]
  %v84 = vld [vmem:[%s0 + $0x228] sm:$0xff]
  %v85 = vld [vmem:[%s0 + $0x230] sm:$0xff]
  %v86 = vld [vmem:[%s0 + $0x238] sm:$0xff]
  %v87 = vld [vmem:[%s0 + $0x240] sm:$0xff]
  %v88 = vld [vmem:[%s0 + $0x248] sm:$0xff]
  %v89 = vld [vmem:[%s0 + $0x250] sm:$0xff]
  %v90 = vld [vmem:[%s0 + $0x258] sm:$0xff]
  %v91 = vld [vmem:[%s0 + $0x260] sm:$0xff]
  %v92 = vld [vmem:[%s0 + $0x268] sm:$0xff]
  %v93 = vld [vmem:[%s0 + $0x270] sm:$0xff]
  %v94 = vld [vmem:[%s0 + $0x278] sm:$0xff]
  %v95 = vld [vmem:[%s0 + $0x280] sm:$0xff]
  %v96 = vld [vmem:[%s0 + $0x288] sm:$0xff]
  %v97 = vld [vmem:[%s0 + $0x290] sm:$0xff]
  %v98 = vld [vmem:[%s0 + $0x298] sm:$0xff]
  %v99 = vld [vmem:[%s0 + $0x2a0] sm:$0xff]
  %v100 = vld [vmem:[%s0 + $0x2a8] sm:$0xff]
  %v101 = vld [vmem:[%s0 + $0x2b0] sm:$0xff]
  %v102 = vld [vmem:[%s0 + $0x2b8] sm:$0xff]
  %v103 = vld [vmem:[%s0 + $0x2c0] sm:$0xff]
  %v104 = vld [vmem:[%s0 + $0x2c8] sm:$0xff]
  %v105 = vld [vmem:[%s0 + $0x2d0] sm:$0xff]
  %v106 = vld [vmem:[%s0 + $0x2d8] sm:$0xff]
  %v107 = vld [vmem:[%s0 + $0x2e0] sm:$0xff]
  %v108 = vld [vmem:[%s0 + $0x2e8] sm:$0xff]
  %v109 = vld [vmem:[%s0 + $0x2f0] sm:$0xff]
  %v110 = vld [vmem:[%s0 + $0x2f8] sm:$0xff]
  %v111 = vld [vmem:[%s0 + $0x300] sm:$0xff]
  %v112 = vld [vmem:[%s0 + $0x308] sm:$0xff]
  %v113 = vld [vmem:[%s0 + $0x310] sm:$0xff]
  %v114 = vld [vmem:[%s0 + $0x318] sm:$0xff]
  %v115 = vld [vmem:[%s0 + $0x320] sm:$0xff]
  %v116 = vld [vmem:[%s0 + $0x328] sm:$0xff]
  %v117 = vld [vmem:[%s0 + $0x330] sm:$0xff]
  %v118 = vld [vmem:[%s0 + $0x338] sm:$0xff]
  %v119 = vld [vmem:[%s0 + $0x340] sm:$0xff]
  %v120 = vld [vmem:[%s0 + $0x348] sm:$0xff]
  %v121 = vld [vmem:[%s0 + $0x350] sm:$0xff]
  %v122 = vld [vmem:[%s0 + $0x358] sm:$0xff]
  %v123 = vld [vmem:[%s0 + $0x360] sm:$0xff]
  %v124 = vld [vmem:[%s0 + $0x368] sm:$0xff]
  %v125 = vld [vmem:[%s0 + $0x370] sm:$0xff]
  %v126 = vld [vmem:[%s0 + $0x378] sm:$0xff]
  %v127 = vld [vmem:[%s0 + $0x380] sm:$0xff]
  %v128 = vld [vmem:[%s0 + $0x388] sm:$0xff]
  %v129 = vld [vmem:[%s0 + $0x390] sm:$0xff]
  %v130 = vld [vmem:[%s0 + $0x398] sm:$0xff]
  %v131 = vld [vmem:[%s0 + $0x3a0] sm:$0xff]
  %v132 = vld [vmem:[%s0 + $0x3a8] sm:$0xff]
  %v133 = vld [vmem:[%s0 + $0x3b0] sm:$0xff]
  %v134 = vld [vmem:[%s0 + $0x3b8] sm:$0xff]
  %v135 = vld [vmem:[%s0 + $0x3c0] sm:$0xff]
  %v136 = vld [vmem:[%s0 + $0x3c8] sm:$0xff]
  %v137 = vld [vmem:[%s0 + $0x3d0] sm:$0xff]
  %v138 = vld [vmem:[%s0 + $0x3d8] sm:$0xff]
  %v139 = vld [vmem:[%s0 + $0x3e0] sm:$0xff]
  %v140 = vld [vmem:[%s0 + $0x3e8] sm:$0xff]
  %v141 = vld [vmem:[%s0 + $0x3f0] sm:$0xff]
  %v142 = vld [vmem:[%s0 + $0x3f8] sm:$0xff]
  %v143 = vld [vmem:[%s0 + $0x400] sm:$0xff]
  %v144 = vld [vmem:[%s0 + $0x408] sm:$0xff]
  %v145 = vld [vmem:[%s0 + $0x410] sm:$0xff]
  %v146 = vld [vmem:[%s0 + $0x418] sm:$0xff]
  %v147 = vld [vmem:[%s0 + $0x420] sm:$0xff]
  %v148 = vld [vmem:[%s0 + $0x428] sm:$0xff]
  %v149 = vld [vmem:[%s0 + $0x430] sm:$0xff]
  %v150 = vld [vmem:[%s0 + $0x438] sm:$0xff]
  %v151 = vld [vmem:[%s0 + $0x440] sm:$0xff]
  %v152 = vld [vmem:[%s0 + $0x448] sm:$0xff]
  %v153 = vld [vmem:[%s0 + $0x450] sm:$0xff]
  %v154 = vld [vmem:[%s0 + $0x458] sm:$0xff]
  %v155 = vld [vmem:[%s0 + $0x460] sm:$0xff]
  %v156 = vld [vmem:[%s0 + $0x468] sm:$0xff]
  %v157 = vld [vmem:[%s0 + $0x470] sm:$0xff]
  %v158 = vld [vmem:[%s0 + $0x478] sm:$0xff]
  %v159 = vld [vmem:[%s0 + $0x480] sm:$0xff]
  %v160 = vld [vmem:[%s0 + $0x488] sm:$0xff]
  %v161 = vld [vmem:[%s0 + $0x490] sm:$0xff]
  %v162 = vld [vmem:[%s0 + $0x498] sm:$0xff]
  %v163 = vld [vmem:[%s0 + $0x4a0] sm:$0xff]
  %v164 = vld [vmem:[%s0 + $0x4a8] sm:$0xff]
  %v165 = vld [vmem:[%s0 + $0x4b0] sm:$0xff]
  %v166 = vld [vmem:[%s0 + $0x4b8] sm:$0xff]
  %v167 = vld [vmem:[%s0 + $0x4c0] sm:$0xff]
  %v168 = vld [vmem:[%s0 + $0x4c8] sm:$0xff]
  %v169 = vld [vmem:[%s0 + $0x4d0] sm:$0xff]
  %v170 = vld [vmem:[%s0 + $0x4d8] sm:$0xff]
  %v171 = vld [vmem:[%s0 + $0x4e0] sm:$0xff]
  %v172 = vld [vmem:[%s0 + $0x4e8] sm:$0xff]
  %v173 = vld [vmem:[%s0 + $0x4f0] sm:$0xff]
  %v174 = vld [vmem:[%s0 + $0x4f8] sm:$0xff]
  %v175 = vld [vmem:[%s0 + $0x500] sm:$0xff]
  %v176 = vld [vmem:[%s0 + $0x508] sm:$0xff]
  %v177 = vld [vmem:[%s0 + $0x510] sm:$0xff]
  %v178 = vld [vmem:[%s0 + $0x518] sm:$0xff]
  %v179 = vld [vmem:[%s0 + $0x520] sm:$0xff]
  %v180 = vld [vmem:[%s0 + $0x528] sm:$0xff]
  %v181 = vld [vmem:[%s0 + $0x530] sm:$0xff]
  %v182 = vld [vmem:[%s0 + $0x538] sm:$0xff]
  %v183 = vld [vmem:[%s0 + $0x540] sm:$0xff]
  %v184 = vld [vmem:[%s0 + $0x548] sm:$0xff]
  %v185 = vld [vmem:[%s0 + $0x550] sm:$0xff]
  %v186 = vld [vmem:[%s0 + $0x558] sm:$0xff]
  %v187 = vld [vmem:[%s0 + $0x560] sm:$0xff]
  %v188 = vld [vmem:[%s0 + $0x568] sm:$0xff]
  %v189 = vld [vmem:[%s0 + $0x570] sm:$0xff]
  %v190 = vld [vmem:[%s0 + $0x578] sm:$0xff]
  %v191 = vld [vmem:[%s0 + $0x580] sm:$0xff]
  %v192 = vld [vmem:[%s0 + $0x588] sm:$0xff]
  %v193 = vld [vmem:[%s0 + $0x590] sm:$0xff]
  %v194 = vld [vmem:[%s0 + $0x598] sm:$0xff]
  %v195 = vld [vmem:[%s0 + $0x5a0] sm:$0xff]
  %v196 = vld [vmem:[%s0 + $0x5a8] sm:$0xff]
  %v197 = vld [vmem:[%s0 + $0x5b0] sm:$0xff]
  %v198 = vld [vmem:[%s0 + $0x5b8] sm:$0xff]
  %v199 = vld [vmem:[%s0 + $0x5c0] sm:$0xff]
  %v200 = vld [vmem:[%s0 + $0x5c8] sm:$0xff]
  %v201 = vld [vmem:[%s0 + $0x5d0] sm:$0xff]
  %v202 = vld [vmem:[%s0 + $0x5d8] sm:$0xff]
  %v203 = vld [vmem:[%s0 + $0x5e0] sm:$0xff]
  %v204 = vld [vmem:[%s0 + $0x5e8] sm:$0xff]
  %v205 = vld [vmem:[%s0 + $0x5f0] sm:$0xff]
  %v206 = vld [vmem:[%s0 + $0x5f8] sm:$0xff]
  %v207 = vld [vmem:[%s0 + $0x600] sm:$0xff]
  %v208 = vld [vmem:[%s0 + $0x608] sm:$0xff]
  %v209 = vld [vmem:[%s0 + $0x610] sm:$0xff]
  %v210 = vld [vmem:[%s0 + $0x618] sm:$0xff]
  %v211 = vld [vmem:[%s0 + $0x620] sm:$0xff]
  %v212 = vld [vmem:[%s0 + $0x628] sm:$0xff]
  %v213 = vld [vmem:[%s0 + $0x630] sm:$0xff]
  %v214 = vld [vmem:[%s0 + $0x638] sm:$0xff]
  %v215 = vld [vmem:[%s0 + $0x640] sm:$0xff]
  %v216 = vld [vmem:[%s0 + $0x648] sm:$0xff]
  %v217 = vld [vmem:[%s0 + $0x650] sm:$0xff]
  %v218 = vld [vmem:[%s0 + $0x658] sm:$0xff]
  %v219 = vld [vmem:[%s0 + $0x660] sm:$0xff]
  %v220 = vld [vmem:[%s0 + $0x668] sm:$0xff]
  %v221 = vld [vmem:[%s0 + $0x670] sm:$0xff]
  %v222 = vld [vmem:[%s0 + $0x678] sm:$0xff]
  %v223 = vld [vmem:[%s0 + $0x680] sm:$0xff]
  %v224 = vld [vmem:[%s0 + $0x688] sm:$0xff]
  %v225 = vld [vmem:[%s0 + $0x690] sm:$0xff]
  %v226 = vld [vmem:[%s0 + $0x698] sm:$0xff]
  %v227 = vld [vmem:[%s0 + $0x6a0] sm:$0xff]
  %v228 = vld [vmem:[%s0 + $0x6a8] sm:$0xff]
  %v229 = vld [vmem:[%s0 + $0x6b0] sm:$0xff]
  %v230 = vld [vmem:[%s0 + $0x6b8] sm:$0xff]
  %v231 = vld [vmem:[%s0 + $0x6c0] sm:$0xff]
  %v232 = vld [vmem:[%s0 + $0x6c8] sm:$0xff]
  %v233 = vld [vmem:[%s0 + $0x6d0] sm:$0xff]
  %v234 = vld [vmem:[%s0 + $0x6d8] sm:$0xff]
  %v235 = vld [vmem:[%s0 + $0x6e0] sm:$0xff]
  %v236 = vld [vmem:[%s0 + $0x6e8] sm:$0xff]
  %v237 = vld [vmem:[%s0 + $0x6f0] sm:$0xff]
  %v238 = vld [vmem:[%s0 + $0x6f8] sm:$0xff]
  %v239 = vld [vmem:[%s0 + $0x700] sm:$0xff]
  %v240 = vld [vmem:[%s0 + $0x708] sm:$0xff]
  %v241 = vld [vmem:[%s0 + $0x710] sm:$0xff]
  %v242 = vld [vmem:[%s0 + $0x718] sm:$0xff]
  %v243 = vld [vmem:[%s0 + $0x720] sm:$0xff]
  %v244 = vld [vmem:[%s0 + $0x728] sm:$0xff]
  %v245 = vld [vmem:[%s0 + $0x730] sm:$0xff]
  %v246 = vld [vmem:[%s0 + $0x738] sm:$0xff]
  %v247 = vld [vmem:[%s0 + $0x740] sm:$0xff]
  %v248 = vld [vmem:[%s0 + $0x748] sm:$0xff]
  %v249 = vld [vmem:[%s0 + $0x750] sm:$0xff]
  %v250 = vld [vmem:[%s0 + $0x758] sm:$0xff]
  %v251 = vld [vmem:[%s0 + $0x760] sm:$0xff]
  %v252 = vld [vmem:[%s0 + $0x768] sm:$0xff]
  %v253 = vld [vmem:[%s0 + $0x770] sm:$0xff]
  %v254 = vld [vmem:[%s0 + $0x778] sm:$0xff]
  %v255 = vld [vmem:[%s0 + $0x780] sm:$0xff]
  %v256 = vld [vmem:[%s0 + $0x788] sm:$0xff]
  %v257 = vld [vmem:[%s0 + $0x790] sm:$0xff]
  %v258 = vld [vmem:[%s0 + $0x798] sm:$0xff]
  %v259 = vld [vmem:[%s0 + $0x7a0] sm:$0xff]
  %v260 = vld [vmem:[%s0 + $0x7a8] sm:$0xff]
  %v261 = vld [vmem:[%s0 + $0x7b0] sm:$0xff]
  %v262 = vld [vmem:[%s0 + $0x7b8] sm:$0xff]
  %v263 = vld [vmem:[%s0 + $0x7c0] sm:$0xff]
  %v264 = vld [vmem:[%s0 + $0x7c8] sm:$0xff]
  %v265 = vld [vmem:[%s0 + $0x7d0] sm:$0xff]
  %v266 = vld [vmem:[%s0 + $0x7d8] sm:$0xff]
  %v267 = vld [vmem:[%s0 + $0x7e0] sm:$0xff]
  %v268 = vld [vmem:[%s0 + $0x7e8] sm:$0xff]
  %v269 = vld [vmem:[%s0 + $0x7f0] sm:$0xff]
  %v270 = vld [vmem:[%s0 + $0x7f8] sm:$0xff]
  %v271 = vld [vmem:[%s0 + $0x800] sm:$0xff]
  %v272 = vld [vmem:[%s0 + $0x808] sm:$0xff]
  %v273 = vld [vmem:[%s0 + $0x810] sm:$0xff]
  %v274 = vld [vmem:[%s0 + $0x818] sm:$0xff]
  %v275 = vld [vmem:[%s0 + $0x820] sm:$0xff]
  %v276 = vld [vmem:[%s0 + $0x828] sm:$0xff]
  %v277 = vld [vmem:[%s0 + $0x830] sm:$0xff]
  %v278 = vld [vmem:[%s0 + $0x838] sm:$0xff]
  %v279 = vld [vmem:[%s0 + $0x840] sm:$0xff]
  %v280 = vld [vmem:[%s0 + $0x848] sm:$0xff]
  %v281 = vld [vmem:[%s0 + $0x850] sm:$0xff]
  %v282 = vld [vmem:[%s0 + $0x858] sm:$0xff]
  %v283 = vld [vmem:[%s0 + $0x860] sm:$0xff]
  %v284 = vld [vmem:[%s0 + $0x868] sm:$0xff]
  %v285 = vld [vmem:[%s0 + $0x870] sm:$0xff]
  %v286 = vld [vmem:[%s0 + $0x878] sm:$0xff]
  %v287 = vld [vmem:[%s0 + $0x880] sm:$0xff]
  %v288 = vld [vmem:[%s0 + $0x888] sm:$0xff]
  %v289 = vld [vmem:[%s0 + $0x890] sm:$0xff]
  %v290 = vld [vmem:[%s0 + $0x898] sm:$0xff]
  %v291 = vld [vmem:[%s0 + $0x8a0] sm:$0xff]
  %v292 = vld [vmem:[%s0 + $0x8a8] sm:$0xff]
  %v293 = vld [vmem:[%s0 + $0x8b0] sm:$0xff]
  %v294 = vld [vmem:[%s0 + $0x8b8] sm:$0xff]
  %v295 = vld [vmem:[%s0 + $0x8c0] sm:$0xff]
  %v296 = vld [vmem:[%s0 + $0x8c8] sm:$0xff]
  %v297 = vld [vmem:[%s0 + $0x8d0] sm:$0xff]
  %v298 = vld [vmem:[%s0 + $0x8d8] sm:$0xff]
  %v299 = vld [vmem:[%s0 + $0x8e0] sm:$0xff]
  %v300 = vld [vmem:[%s0 + $0x8e8] sm:$0xff]
  %v301 = vld [vmem:[%s0 + $0x8f0] sm:$0xff]
  %v302 = vld [vmem:[%s0 + $0x8f8] sm:$0xff]
  %v303 = vld [vmem:[%s1] sm:$0xf]
  %v304 = vld [vmem:[%s1 + $0x4] sm:$0xf]
  %v305 = vld [vmem:[%s1 + $0x8] sm:$0xf]
  %v306 = vld [vmem:[%s1 + $0xc] sm:$0xf]
  %v307 = vld [vmem:[%s1 + $0x10] sm:$0xf]
  %v308 = vld [vmem:[%s1 + $0x14] sm:$0xf]
  %v309 = vld [vmem:[%s1 + $0x18] sm:$0xf]
  %v310 = vld [vmem:[%s1 + $0x1c] sm:$0xf]
  %v311 = vld [vmem:[%s1 + $0x20] sm:$0xf]
  %v312 = vld [vmem:[%s1 + $0x24] sm:$0xf]
  %v313 = vld [vmem:[%s1 + $0x28] sm:$0xf]
  %v314 = vld [vmem:[%s1 + $0x2c] sm:$0xf]
  %v315 = vld [vmem:[%s1 + $0x30] sm:$0xf]
  %v316 = vld [vmem:[%s1 + $0x34] sm:$0xf]
  %v317 = vld [vmem:[%s1 + $0x38] sm:$0xf]
  %v318 = vld [vmem:[%s1 + $0x3c] sm:$0xf]
  %v319 = vld [vmem:[%s1 + $0x40] sm:$0xf]
  %v320 = vld [vmem:[%s1 + $0x44] sm:$0xf]
  %v321 = vld [vmem:[%s1 + $0x48] sm:$0xf]
  %v322 = vld [vmem:[%s1 + $0x4c] sm:$0xf]
  %v323 = vld [vmem:[%s1 + $0x50] sm:$0xf]
  %v324 = vld [vmem:[%s1 + $0x54] sm:$0xf]
  %v325 = vld [vmem:[%s1 + $0x58] sm:$0xf]
  %v326 = vld [vmem:[%s1 + $0x5c] sm:$0xf]
  %v327 = vld [vmem:[%s1 + $0x60] sm:$0xf]
  %v328 = vld [vmem:[%s1 + $0x64] sm:$0xf]
  %v329 = vld [vmem:[%s1 + $0x68] sm:$0xf]
  %v330 = vld [vmem:[%s1 + $0x6c] sm:$0xf]
  %v331 = vld [vmem:[%s1 + $0x70] sm:$0xf]
  %v332 = vld [vmem:[%s1 + $0x74] sm:$0xf]
  %v333 = vld [vmem:[%s1 + $0x78] sm:$0xf]
  %v334 = vld [vmem:[%s1 + $0x7c] sm:$0xf]
  %v335 = vld [vmem:[%s1 + $0x80] sm:$0xf]
  %v336 = vld [vmem:[%s1 + $0x84] sm:$0xf]
  %v337 = vld [vmem:[%s1 + $0x88] sm:$0xf]
  %v338 = vld [vmem:[%s1 + $0x8c] sm:$0xf]
  %v339 = vld [vmem:[%s1 + $0x90] sm:$0xf]
  %v340 = vld [vmem:[%s1 + $0x94] sm:$0xf]
  %v341 = vld [vmem:[%s1 + $0x98] sm:$0xf]
  %v342 = vld [vmem:[%s1 + $0x9c] sm:$0xf]
  %v343 = vld [vmem:[%s1 + $0xa0] sm:$0xf]
  %v344 = vld [vmem:[%s1 + $0xa4] sm:$0xf]
  %v345 = vld [vmem:[%s1 + $0xa8] sm:$0xf]
  %v346 = vld [vmem:[%s1 + $0xac] sm:$0xf]
  %v347 = vld [vmem:[%s1 + $0xb0] sm:$0xf]
  %v348 = vld [vmem:[%s1 + $0xb4] sm:$0xf]
  %v349 = vld [vmem:[%s1 + $0xb8] sm:$0xf]
  %v350 = vld [vmem:[%s1 + $0xbc] sm:$0xf]
  %v351 = vld [vmem:[%s1 + $0xc0] sm:$0xf]
  %v352 = vld [vmem:[%s1 + $0xc4] sm:$0xf]
  %v353 = vld [vmem:[%s1 + $0xc8] sm:$0xf]
  %v354 = vld [vmem:[%s1 + $0xcc] sm:$0xf]
  %v355 = vld [vmem:[%s1 + $0xd0] sm:$0xf]
  %v356 = vld [vmem:[%s1 + $0xd4] sm:$0xf]
  %v357 = vld [vmem:[%s1 + $0xd8] sm:$0xf]
  %v358 = vld [vmem:[%s1 + $0xdc] sm:$0xf]
  %v359 = vld [vmem:[%s1 + $0xe0] sm:$0xf]
  %v360 = vld [vmem:[%s1 + $0xe4] sm:$0xf]
  %v361 = vld [vmem:[%s1 + $0xe8] sm:$0xf]
  %v362 = vld [vmem:[%s1 + $0xec] sm:$0xf]
  %v363 = vld [vmem:[%s1 + $0xf0] sm:$0xf]
  %v364 = vld [vmem:[%s1 + $0xf4] sm:$0xf]
  %v365 = vld [vmem:[%s1 + $0xf8] sm:$0xf]
  %v366 = vld [vmem:[%s1 + $0xfc] sm:$0xf]
  %v367 = vld [vmem:[%s1 + $0x100] sm:$0xf]
  %v368 = vld [vmem:[%s1 + $0x104] sm:$0xf]
  %v369 = vld [vmem:[%s1 + $0x108] sm:$0xf]
  %v370 = vld [vmem:[%s1 + $0x10c] sm:$0xf]
  %v371 = vld [vmem:[%s1 + $0x110] sm:$0xf]
  %v372 = vld [vmem:[%s1 + $0x114] sm:$0xf]
  %v373 = vld [vmem:[%s1 + $0x118] sm:$0xf]
  %v374 = vld [vmem:[%s1 + $0x11c] sm:$0xf]
  %v375 = vld [vmem:[%s1 + $0x120] sm:$0xf]
  %v376 = vld [vmem:[%s1 + $0x124] sm:$0xf]
  %v377 = vld [vmem:[%s1 + $0x128] sm:$0xf]
  %v378 = vld [vmem:[%s1 + $0x12c] sm:$0xf]
  %v379 = vld [vmem:[%s1 + $0x130] sm:$0xf]
  %v380 = vld [vmem:[%s1 + $0x134] sm:$0xf]
  %v381 = vld [vmem:[%s1 + $0x138] sm:$0xf]
  %v382 = vld [vmem:[%s1 + $0x13c] sm:$0xf]
  %v383 = vld [vmem:[%s1 + $0x140] sm:$0xf]
  %v384 = vld [vmem:[%s1 + $0x144] sm:$0xf]
  %v385 = vld [vmem:[%s1 + $0x148] sm:$0xf]
  %v386 = vld [vmem:[%s1 + $0x14c] sm:$0xf]
  %v387 = vld [vmem:[%s1 + $0x150] sm:$0xf]
  %v388 = vld [vmem:[%s1 + $0x154] sm:$0xf]
  %v389 = vld [vmem:[%s1 + $0x158] sm:$0xf]
  %v390 = vld [vmem:[%s1 + $0x15c] sm:$0xf]
  %v391 = vld [vmem:[%s1 + $0x160] sm:$0xf]
  %v392 = vld [vmem:[%s1 + $0x164] sm:$0xf]
  %v393 = vld [vmem:[%s1 + $0x168] sm:$0xf]
  %v394 = vld [vmem:[%s1 + $0x16c] sm:$0xf]
  %v395 = vld [vmem:[%s1 + $0x170] sm:$0xf]
  %v396 = vld [vmem:[%s1 + $0x174] sm:$0xf]
  %v397 = vld [vmem:[%s1 + $0x178] sm:$0xf]
  %v398 = vld [vmem:[%s1 + $0x17c] sm:$0xf]
  %v399 = vld [vmem:[%s1 + $0x180] sm:$0xf]
  %v400 = vld [vmem:[%s1 + $0x184] sm:$0xf]
  %v401 = vld [vmem:[%s1 + $0x188] sm:$0xf]
  %v402 = vld [vmem:[%s1 + $0x18c] sm:$0xf]
  %v403 = vld [vmem:[%s1 + $0x190] sm:$0xf]
  %v404 = vld [vmem:[%s1 + $0x194] sm:$0xf]
  %v405 = vld [vmem:[%s1 + $0x198] sm:$0xf]
  %v406 = vld [vmem:[%s1 + $0x19c] sm:$0xf]
  %v407 = vld [vmem:[%s1 + $0x1a0] sm:$0xf]
  %v408 = vld [vmem:[%s1 + $0x1a4] sm:$0xf]
  %v409 = vld [vmem:[%s1 + $0x1a8] sm:$0xf]
  %v410 = vld [vmem:[%s1 + $0x1ac] sm:$0xf]
  %v411 = vld [vmem:[%s1 + $0x1b0] sm:$0xf]
  %v412 = vld [vmem:[%s1 + $0x1b4] sm:$0xf]
  %v413 = vld [vmem:[%s1 + $0x1b8] sm:$0xf]
  %v414 = vld [vmem:[%s1 + $0x1bc] sm:$0xf]
  %v415 = vld [vmem:[%s1 + $0x1c0] sm:$0xf]
  %v416 = vld [vmem:[%s1 + $0x1c4] sm:$0xf]
  %v417 = vld [vmem:[%s1 + $0x1c8] sm:$0xf]
  %v418 = vld [vmem:[%s1 + $0x1cc] sm:$0xf]
  %v419 = vld [vmem:[%s1 + $0x1d0] sm:$0xf]
  %v420 = vld [vmem:[%s1 + $0x1d4] sm:$0xf]
  %v421 = vld [vmem:[%s1 + $0x1d8] sm:$0xf]
  %v422 = vld [vmem:[%s1 + $0x1dc] sm:$0xf]
  %v423 = vld [vmem:[%s1 + $0x1e0] sm:$0xf]
  %v424 = vld [vmem:[%s1 + $0x1e4] sm:$0xf]
  %v425 = vld [vmem:[%s1 + $0x1e8] sm:$0xf]
  %v426 = vld [vmem:[%s1 + $0x1ec] sm:$0xf]
  %v427 = vld [vmem:[%s1 + $0x1f0] sm:$0xf]
  %v428 = vld [vmem:[%s1 + $0x1f4] sm:$0xf]
  %v429 = vld [vmem:[%s1 + $0x1f8] sm:$0xf]
  %v430 = vld [vmem:[%s1 + $0x1fc] sm:$0xf]
  %v431 = vld [vmem:[%s1 + $0x200] sm:$0xf]
  %v432 = vld [vmem:[%s1 + $0x204] sm:$0xf]
  %v433 = vld [vmem:[%s1 + $0x208] sm:$0xf]
  %v434 = vld [vmem:[%s1 + $0x20c] sm:$0xf]
  %v435 = vld [vmem:[%s1 + $0x210] sm:$0xf]
  %v436 = vld [vmem:[%s1 + $0x214] sm:$0xf]
  %v437 = vld [vmem:[%s1 + $0x218] sm:$0xf]
  %v438 = vld [vmem:[%s1 + $0x21c] sm:$0xf]
  %v439 = vld [vmem:[%s1 + $0x220] sm:$0xf]
  %v440 = vld [vmem:[%s1 + $0x224] sm:$0xf]
  %v441 = vld [vmem:[%s1 + $0x228] sm:$0xf]
  %v442 = vld [vmem:[%s1 + $0x22c] sm:$0xf]
  %v443 = vld [vmem:[%s1 + $0x230] sm:$0xf]
  %v444 = vld [vmem:[%s1 + $0x234] sm:$0xf]
  %v445 = vld [vmem:[%s1 + $0x238] sm:$0xf]
  %v446 = vld [vmem:[%s1 + $0x23c] sm:$0xf]
  %v447 = vld [vmem:[%s1 + $0x240] sm:$0xf]
  %v448 = vld [vmem:[%s1 + $0x244] sm:$0xf]
  %v449 = vld [vmem:[%s1 + $0x248] sm:$0xf]
  %v450 = vld [vmem:[%s1 + $0x24c] sm:$0xf]
  %v451 = vld [vmem:[%s1 + $0x250] sm:$0xf]
  %v452 = vld [vmem:[%s1 + $0x254] sm:$0xf]
  %v453 = vld [vmem:[%s1 + $0x258] sm:$0xf]
  %v454 = vld [vmem:[%s1 + $0x25c] sm:$0xf]
  %v455 = vld [vmem:[%s1 + $0x260] sm:$0xf]
  %v456 = vld [vmem:[%s1 + $0x264] sm:$0xf]
  %v457 = vld [vmem:[%s1 + $0x268] sm:$0xf]
  %v458 = vld [vmem:[%s1 + $0x26c] sm:$0xf]
  %v459 = vld [vmem:[%s1 + $0x270] sm:$0xf]
  %v460 = vld [vmem:[%s1 + $0x274] sm:$0xf]
  %v461 = vld [vmem:[%s1 + $0x278] sm:$0xf]
  %v462 = vld [vmem:[%s1 + $0x27c] sm:$0xf]
  %v463 = vld [vmem:[%s1 + $0x280] sm:$0xf]
  %v464 = vld [vmem:[%s1 + $0x284] sm:$0xf]
  %v465 = vld [vmem:[%s1 + $0x288] sm:$0xf]
  %v466 = vld [vmem:[%s1 + $0x28c] sm:$0xf]
  %v467 = vld [vmem:[%s1 + $0x290] sm:$0xf]
  %v468 = vld [vmem:[%s1 + $0x294] sm:$0xf]
  %v469 = vld [vmem:[%s1 + $0x298] sm:$0xf]
  %v470 = vld [vmem:[%s1 + $0x29c] sm:$0xf]
  %v471 = vld [vmem:[%s1 + $0x2a0] sm:$0xf]
  %v472 = vld [vmem:[%s1 + $0x2a4] sm:$0xf]
  %v473 = vld [vmem:[%s1 + $0x2a8] sm:$0xf]
  %v474 = vld [vmem:[%s1 + $0x2ac] sm:$0xf]
  %v475 = vld [vmem:[%s1 + $0x2b0] sm:$0xf]
  %v476 = vld [vmem:[%s1 + $0x2b4] sm:$0xf]
  %v477 = vld [vmem:[%s1 + $0x2b8] sm:$0xf]
  %v478 = vld [vmem:[%s1 + $0x2bc] sm:$0xf]
  %v479 = vld [vmem:[%s1 + $0x2c0] sm:$0xf]
  %v480 = vld [vmem:[%s1 + $0x2c4] sm:$0xf]
  %v481 = vld [vmem:[%s1 + $0x2c8] sm:$0xf]
  %v482 = vld [vmem:[%s1 + $0x2cc] sm:$0xf]
  %v483 = vld [vmem:[%s1 + $0x2d0] sm:$0xf]
  %v484 = vld [vmem:[%s1 + $0x2d4] sm:$0xf]
  %v485 = vld [vmem:[%s1 + $0x2d8] sm:$0xf]
  %v486 = vld [vmem:[%s1 + $0x2dc] sm:$0xf]
  %v487 = vld [vmem:[%s1 + $0x2e0] sm:$0xf]
  %v488 = vld [vmem:[%s1 + $0x2e4] sm:$0xf]
  %v489 = vld [vmem:[%s1 + $0x2e8] sm:$0xf]
  %v490 = vld [vmem:[%s1 + $0x2ec] sm:$0xf]
  %v491 = vld [vmem:[%s1 + $0x2f0] sm:$0xf]
  %v492 = vld [vmem:[%s1 + $0x2f4] sm:$0xf]
  %v493 = vld [vmem:[%s1 + $0x2f8] sm:$0xf]
  %v494 = vld [vmem:[%s1 + $0x2fc] sm:$0xf]
  %v495 = vld [vmem:[%s1 + $0x300] sm:$0xf]
  %v496 = vld [vmem:[%s1 + $0x304] sm:$0xf]
  %v497 = vld [vmem:[%s1 + $0x308] sm:$0xf]
  %v498 = vld [vmem:[%s1 + $0x30c] sm:$0xf]
  %v499 = vld [vmem:[%s1 + $0x310] sm:$0xf]
  %v500 = vld [vmem:[%s1 + $0x314] sm:$0xf]
  %v501 = vld [vmem:[%s1 + $0x318] sm:$0xf]
  %v502 = vld [vmem:[%s1 + $0x31c] sm:$0xf]
  %v503 = vld [vmem:[%s1 + $0x320] sm:$0xf]
  %v504 = vld [vmem:[%s1 + $0x324] sm:$0xf]
  %v505 = vld [vmem:[%s1 + $0x328] sm:$0xf]
  %v506 = vld [vmem:[%s1 + $0x32c] sm:$0xf]
  %v507 = vld [vmem:[%s1 + $0x330] sm:$0xf]
  %v508 = vld [vmem:[%s1 + $0x334] sm:$0xf]
  %v509 = vld [vmem:[%s1 + $0x338] sm:$0xf]
  %v510 = vld [vmem:[%s1 + $0x33c] sm:$0xf]
  %v511 = vld [vmem:[%s1 + $0x340] sm:$0xf]
  %v512 = vld [vmem:[%s1 + $0x344] sm:$0xf]
  %v513 = vld [vmem:[%s1 + $0x348] sm:$0xf]
  %v514 = vld [vmem:[%s1 + $0x34c] sm:$0xf]
  %v515 = vld [vmem:[%s1 + $0x350] sm:$0xf]
  %v516 = vld [vmem:[%s1 + $0x354] sm:$0xf]
  %v517 = vld [vmem:[%s1 + $0x358] sm:$0xf]
  %v518 = vld [vmem:[%s1 + $0x35c] sm:$0xf]
  %v519 = vld [vmem:[%s1 + $0x360] sm:$0xf]
  %v520 = vld [vmem:[%s1 + $0x364] sm:$0xf]
  %v521 = vld [vmem:[%s1 + $0x368] sm:$0xf]
  %v522 = vld [vmem:[%s1 + $0x36c] sm:$0xf]
  %v523 = vld [vmem:[%s1 + $0x370] sm:$0xf]
  %v524 = vld [vmem:[%s1 + $0x374] sm:$0xf]
  %v525 = vld [vmem:[%s1 + $0x378] sm:$0xf]
  %v526 = vld [vmem:[%s1 + $0x37c] sm:$0xf]
  %v527 = vld [vmem:[%s1 + $0x380] sm:$0xf]
  %v528 = vld [vmem:[%s1 + $0x384] sm:$0xf]
  %v529 = vld [vmem:[%s1 + $0x388] sm:$0xf]
  %v530 = vld [vmem:[%s1 + $0x38c] sm:$0xf]
  %v531 = vld [vmem:[%s1 + $0x390] sm:$0xf]
  %v532 = vld [vmem:[%s1 + $0x394] sm:$0xf]
  %v533 = vld [vmem:[%s1 + $0x398] sm:$0xf]
  %v534 = vld [vmem:[%s1 + $0x39c] sm:$0xf]
  %v535 = vld [vmem:[%s1 + $0x3a0] sm:$0xf]
  %v536 = vld [vmem:[%s1 + $0x3a4] sm:$0xf]
  %v537 = vld [vmem:[%s1 + $0x3a8] sm:$0xf]
  %v538 = vld [vmem:[%s1 + $0x3ac] sm:$0xf]
  %v539 = vld [vmem:[%s1 + $0x3b0] sm:$0xf]
  %v540 = vld [vmem:[%s1 + $0x3b4] sm:$0xf]
  %v541 = vld [vmem:[%s1 + $0x3b8] sm:$0xf]
  %v542 = vld [vmem:[%s1 + $0x3bc] sm:$0xf]
  %v543 = vld [vmem:[%s1 + $0x3c0] sm:$0xf]
  %v544 = vld [vmem:[%s1 + $0x3c4] sm:$0xf]
  %v545 = vld [vmem:[%s1 + $0x3c8] sm:$0xf]
  %v546 = vld [vmem:[%s1 + $0x3cc] sm:$0xf]
  %v547 = vld [vmem:[%s1 + $0x3d0] sm:$0xf]
  %v548 = vld [vmem:[%s1 + $0x3d4] sm:$0xf]
  %v549 = vld [vmem:[%s1 + $0x3d8] sm:$0xf]
  %v550 = vld [vmem:[%s1 + $0x3dc] sm:$0xf]
  %v551 = vld [vmem:[%s1 + $0x3e0] sm:$0xf]
  %v552 = vld [vmem:[%s1 + $0x3e4] sm:$0xf]
  %v553 = vld [vmem:[%s1 + $0x3e8] sm:$0xf]
  %v554 = vld [vmem:[%s1 + $0x3ec] sm:$0xf]
  %v555 = vld [vmem:[%s1 + $0x3f0] sm:$0xf]
  %v556 = vld [vmem:[%s1 + $0x3f4] sm:$0xf]
  %v557 = vld [vmem:[%s1 + $0x3f8] sm:$0xf]
  %v558 = vld [vmem:[%s1 + $0x3fc] sm:$0xf]
  %v559 = vld [vmem:[%s1 + $0x400] sm:$0xf]
  %v560 = vld [vmem:[%s1 + $0x404] sm:$0xf]
  %v561 = vld [vmem:[%s1 + $0x408] sm:$0xf]
  %v562 = vld [vmem:[%s1 + $0x40c] sm:$0xf]
  %v563 = vld [vmem:[%s1 + $0x410] sm:$0xf]
  %v564 = vld [vmem:[%s1 + $0x414] sm:$0xf]
  %v565 = vld [vmem:[%s1 + $0x418] sm:$0xf]
  %v566 = vld [vmem:[%s1 + $0x41c] sm:$0xf]
  %v567 = vld [vmem:[%s1 + $0x420] sm:$0xf]
  %v568 = vld [vmem:[%s1 + $0x424] sm:$0xf]
  %v569 = vld [vmem:[%s1 + $0x428] sm:$0xf]
  %v570 = vld [vmem:[%s1 + $0x42c] sm:$0xf]
  %v571 = vld [vmem:[%s1 + $0x430] sm:$0xf]
  %v572 = vld [vmem:[%s1 + $0x434] sm:$0xf]
  %v573 = vld [vmem:[%s1 + $0x438] sm:$0xf]
  %v574 = vld [vmem:[%s1 + $0x43c] sm:$0xf]
  %v575 = vld [vmem:[%s1 + $0x440] sm:$0xf]
  %v576 = vld [vmem:[%s1 + $0x444] sm:$0xf]
  %v577 = vld [vmem:[%s1 + $0x448] sm:$0xf]
  %v578 = vld [vmem:[%s1 + $0x44c] sm:$0xf]
  %v579 = vld [vmem:[%s1 + $0x450] sm:$0xf]
  %v580 = vld [vmem:[%s1 + $0x454] sm:$0xf]
  %v581 = vld [vmem:[%s1 + $0x458] sm:$0xf]
  %v582 = vld [vmem:[%s1 + $0x45c] sm:$0xf]
  %v583 = vld [vmem:[%s1 + $0x460] sm:$0xf]
  %v584 = vld [vmem:[%s1 + $0x464] sm:$0xf]
  %v585 = vld [vmem:[%s1 + $0x468] sm:$0xf]
  %v586 = vld [vmem:[%s1 + $0x46c] sm:$0xf]
  %v587 = vld [vmem:[%s1 + $0x470] sm:$0xf]
  %v588 = vld [vmem:[%s1 + $0x474] sm:$0xf]
  %v589 = vld [vmem:[%s1 + $0x478] sm:$0xf]
  %v590 = vld [vmem:[%s1 + $0x47c] sm:$0xf]
  %v591 = vld [vmem:[%s1 + $0x480] sm:$0xf]
  %v592 = vld [vmem:[%s1 + $0x484] sm:$0xf]
  %v593 = vld [vmem:[%s1 + $0x488] sm:$0xf]
  %v594 = vld [vmem:[%s1 + $0x48c] sm:$0xf]
  %v595 = vld [vmem:[%s1 + $0x490] sm:$0xf]
  %v596 = vld [vmem:[%s1 + $0x494] sm:$0xf]
  %v597 = vld [vmem:[%s1 + $0x498] sm:$0xf]
  %v598 = vld [vmem:[%s1 + $0x49c] sm:$0xf]
  %v599 = vld [vmem:[%s1 + $0x4a0] sm:$0xf]
  %v600 = vld [vmem:[%s1 + $0x4a4] sm:$0xf]
  %v601 = vld [vmem:[%s1 + $0x4a8] sm:$0xf]
  %v602 = vld [vmem:[%s1 + $0x4ac] sm:$0xf]
  %v603 = vld [vmem:[%s1 + $0x4b0] sm:$0xf]
  %v604 = vld [vmem:[%s1 + $0x4b4] sm:$0xf]
  %v605 = vld [vmem:[%s1 + $0x4b8] sm:$0xf]
  %v606 = vld [vmem:[%s1 + $0x4bc] sm:$0xf]
  %v607 = vld [vmem:[%s1 + $0x4c0] sm:$0xf]
  %v608 = vld [vmem:[%s1 + $0x4c4] sm:$0xf]
  %v609 = vld [vmem:[%s1 + $0x4c8] sm:$0xf]
  %v610 = vld [vmem:[%s1 + $0x4cc] sm:$0xf]
  %v611 = vld [vmem:[%s1 + $0x4d0] sm:$0xf]
  %v612 = vld [vmem:[%s1 + $0x4d4] sm:$0xf]
  %v613 = vld [vmem:[%s1 + $0x4d8] sm:$0xf]
  %v614 = vld [vmem:[%s1 + $0x4dc] sm:$0xf]
  %v615 = vld [vmem:[%s1 + $0x4e0] sm:$0xf]
  %v616 = vld [vmem:[%s1 + $0x4e4] sm:$0xf]
  %v617 = vld [vmem:[%s1 + $0x4e8] sm:$0xf]
  %v618 = vld [vmem:[%s1 + $0x4ec] sm:$0xf]
  %v619 = vld [vmem:[%s1 + $0x4f0] sm:$0xf]
  %v620 = vld [vmem:[%s1 + $0x4f4] sm:$0xf]
  %v621 = vld [vmem:[%s1 + $0x4f8] sm:$0xf]
  %v622 = vld [vmem:[%s1 + $0x4fc] sm:$0xf]
  %v623 = vld [vmem:[%s1 + $0x500] sm:$0xf]
  %v624 = vld [vmem:[%s1 + $0x504] sm:$0xf]
  %v625 = vld [vmem:[%s1 + $0x508] sm:$0xf]
  %v626 = vld [vmem:[%s1 + $0x50c] sm:$0xf]
  %v627 = vld [vmem:[%s1 + $0x510] sm:$0xf]
  %v628 = vld [vmem:[%s1 + $0x514] sm:$0xf]
  %v629 = vld [vmem:[%s1 + $0x518] sm:$0xf]
  %v630 = vld [vmem:[%s1 + $0x51c] sm:$0xf]
  %v631 = vld [vmem:[%s1 + $0x520] sm:$0xf]
  %v632 = vld [vmem:[%s1 + $0x524] sm:$0xf]
  %v633 = vld [vmem:[%s1 + $0x528] sm:$0xf]
  %v634 = vld [vmem:[%s1 + $0x52c] sm:$0xf]
  %v635 = vld [vmem:[%s1 + $0x530] sm:$0xf]
  %v636 = vld [vmem:[%s1 + $0x534] sm:$0xf]
  %v637 = vld [vmem:[%s1 + $0x538] sm:$0xf]
  %v638 = vld [vmem:[%s1 + $0x53c] sm:$0xf]
  %v639 = vld [vmem:[%s1 + $0x540] sm:$0xf]
  %v640 = vld [vmem:[%s1 + $0x544] sm:$0xf]
  %v641 = vld [vmem:[%s1 + $0x548] sm:$0xf]
  %v642 = vld [vmem:[%s1 + $0x54c] sm:$0xf]
  %v643 = vld [vmem:[%s1 + $0x550] sm:$0xf]
  %v644 = vld [vmem:[%s1 + $0x554] sm:$0xf]
  %v645 = vld [vmem:[%s1 + $0x558] sm:$0xf]
  %v646 = vld [vmem:[%s1 + $0x55c] sm:$0xf]
  %v647 = vld [vmem:[%s1 + $0x560] sm:$0xf]
  %v648 = vld [vmem:[%s1 + $0x564] sm:$0xf]
  %v649 = vld [vmem:[%s1 + $0x568] sm:$0xf]
  %v650 = vld [vmem:[%s1 + $0x56c] sm:$0xf]
  %v651 = vld [vmem:[%s1 + $0x570] sm:$0xf]
  %v652 = vld [vmem:[%s1 + $0x574] sm:$0xf]
  %v653 = vld [vmem:[%s1 + $0x578] sm:$0xf]
  %v654 = vld [vmem:[%s1 + $0x57c] sm:$0xf]
  %v655 = vld [vmem:[%s1 + $0x580] sm:$0xf]
  %v656 = vld [vmem:[%s1 + $0x584] sm:$0xf]
  %v657 = vld [vmem:[%s1 + $0x588] sm:$0xf]
  %v658 = vld [vmem:[%s1 + $0x58c] sm:$0xf]
  %v659 = vld [vmem:[%s1 + $0x590] sm:$0xf]
  %v660 = vld [vmem:[%s1 + $0x594] sm:$0xf]
  %v661 = vld [vmem:[%s1 + $0x598] sm:$0xf]
  %v662 = vld [vmem:[%s1 + $0x59c] sm:$0xf]
  %v663 = vld [vmem:[%s1 + $0x5a0] sm:$0xf]
  %v664 = vld [vmem:[%s1 + $0x5a4] sm:$0xf]
  %v665 = vld [vmem:[%s1 + $0x5a8] sm:$0xf]
  %v666 = vld [vmem:[%s1 + $0x5ac] sm:$0xf]
  %v667 = vld [vmem:[%s1 + $0x5b0] sm:$0xf]
  %v668 = vld [vmem:[%s1 + $0x5b4] sm:$0xf]
  %v669 = vld [vmem:[%s1 + $0x5b8] sm:$0xf]
  %v670 = vld [vmem:[%s1 + $0x5bc] sm:$0xf]
  %v671 = vld [vmem:[%s1 + $0x5c0] sm:$0xf]
  %v672 = vld [vmem:[%s1 + $0x5c4] sm:$0xf]
  %v673 = vld [vmem:[%s1 + $0x5c8] sm:$0xf]
  %v674 = vld [vmem:[%s1 + $0x5cc] sm:$0xf]
  %v675 = vld [vmem:[%s1 + $0x5d0] sm:$0xf]
  %v676 = vld [vmem:[%s1 + $0x5d4] sm:$0xf]
  %v677 = vld [vmem:[%s1 + $0x5d8] sm:$0xf]
  %v678 = vld [vmem:[%s1 + $0x5dc] sm:$0xf]
  %v679 = vld [vmem:[%s1 + $0x5e0] sm:$0xf]
  %v680 = vld [vmem:[%s1 + $0x5e4] sm:$0xf]
  %v681 = vld [vmem:[%s1 + $0x5e8] sm:$0xf]
  %v682 = vld [vmem:[%s1 + $0x5ec] sm:$0xf]
  %v683 = vld [vmem:[%s1 + $0x5f0] sm:$0xf]
  %v684 = vld [vmem:[%s1 + $0x5f4] sm:$0xf]
  %v685 = vld [vmem:[%s1 + $0x5f8] sm:$0xf]
  %v686 = vld [vmem:[%s1 + $0x5fc] sm:$0xf]
  %v687 = vld [vmem:[%s1 + $0x600] sm:$0xf]
  %v688 = vld [vmem:[%s1 + $0x604] sm:$0xf]
  %v689 = vld [vmem:[%s1 + $0x608] sm:$0xf]
  %v690 = vld [vmem:[%s1 + $0x60c] sm:$0xf]
  %v691 = vld [vmem:[%s1 + $0x610] sm:$0xf]
  %v692 = vld [vmem:[%s1 + $0x614] sm:$0xf]
  %v693 = vld [vmem:[%s1 + $0x618] sm:$0xf]
  %v694 = vld [vmem:[%s1 + $0x61c] sm:$0xf]
  %v695 = vld [vmem:[%s1 + $0x620] sm:$0xf]
  %v696 = vld [vmem:[%s1 + $0x624] sm:$0xf]
  %v697 = vld [vmem:[%s1 + $0x628] sm:$0xf]
  %v698 = vld [vmem:[%s1 + $0x62c] sm:$0xf]
  %v699 = vld [vmem:[%s1 + $0x630] sm:$0xf]
  %v700 = vld [vmem:[%s1 + $0x634] sm:$0xf]
  %v701 = vld [vmem:[%s1 + $0x638] sm:$0xf]
  %v702 = vld [vmem:[%s1 + $0x63c] sm:$0xf]
  %v703 = vld [vmem:[%s1 + $0x640] sm:$0xf]
  %v704 = vld [vmem:[%s1 + $0x644] sm:$0xf]
  %v705 = vld [vmem:[%s1 + $0x648] sm:$0xf]
  %v706 = vld [vmem:[%s1 + $0x64c] sm:$0xf]
  %v707 = vld [vmem:[%s1 + $0x650] sm:$0xf]
  %v708 = vld [vmem:[%s1 + $0x654] sm:$0xf]
  %v709 = vld [vmem:[%s1 + $0x658] sm:$0xf]
  %v710 = vld [vmem:[%s1 + $0x65c] sm:$0xf]
  %v711 = vld [vmem:[%s1 + $0x660] sm:$0xf]
  %v712 = vld [vmem:[%s1 + $0x664] sm:$0xf]
  %v713 = vld [vmem:[%s1 + $0x668] sm:$0xf]
  %v714 = vld [vmem:[%s1 + $0x66c] sm:$0xf]
  %v715 = vld [vmem:[%s1 + $0x670] sm:$0xf]
  %v716 = vld [vmem:[%s1 + $0x674] sm:$0xf]
  %v717 = vld [vmem:[%s1 + $0x678] sm:$0xf]
  %v718 = vld [vmem:[%s1 + $0x67c] sm:$0xf]
  %v719 = vld [vmem:[%s1 + $0x680] sm:$0xf]
  %v720 = vld [vmem:[%s1 + $0x684] sm:$0xf]
  %v721 = vld [vmem:[%s1 + $0x688] sm:$0xf]
  %v722 = vld [vmem:[%s1 + $0x68c] sm:$0xf]
  %v723 = vld [vmem:[%s1 + $0x690] sm:$0xf]
  %v724 = vld [vmem:[%s1 + $0x694] sm:$0xf]
  %v725 = vld [vmem:[%s1 + $0x698] sm:$0xf]
  %v726 = vld [vmem:[%s1 + $0x69c] sm:$0xf]
  %v727 = vld [vmem:[%s1 + $0x6a0] sm:$0xf]
  %v728 = vld [vmem:[%s1 + $0x6a4] sm:$0xf]
  %v729 = vld [vmem:[%s1 + $0x6a8] sm:$0xf]
  %v730 = vld [vmem:[%s1 + $0x6ac] sm:$0xf]
  %v731 = vld [vmem:[%s1 + $0x6b0] sm:$0xf]
  %v732 = vld [vmem:[%s1 + $0x6b4] sm:$0xf]
  %v733 = vld [vmem:[%s1 + $0x6b8] sm:$0xf]
  %v734 = vld [vmem:[%s1 + $0x6bc] sm:$0xf]
  %v735 = vld [vmem:[%s1 + $0x6c0] sm:$0xf]
  %v736 = vld [vmem:[%s1 + $0x6c4] sm:$0xf]
  %v737 = vld [vmem:[%s1 + $0x6c8] sm:$0xf]
  %v738 = vld [vmem:[%s1 + $0x6cc] sm:$0xf]
  %v739 = vld [vmem:[%s1 + $0x6d0] sm:$0xf]
  %v740 = vld [vmem:[%s1 + $0x6d4] sm:$0xf]
  %v741 = vld [vmem:[%s1 + $0x6d8] sm:$0xf]
  %v742 = vld [vmem:[%s1 + $0x6dc] sm:$0xf]
  %v743 = vld [vmem:[%s1 + $0x6e0] sm:$0xf]
  %v744 = vld [vmem:[%s1 + $0x6e4] sm:$0xf]
  %v745 = vld [vmem:[%s1 + $0x6e8] sm:$0xf]
  %v746 = vld [vmem:[%s1 + $0x6ec] sm:$0xf]
  %v747 = vld [vmem:[%s1 + $0x6f0] sm:$0xf]
  %v748 = vld [vmem:[%s1 + $0x6f4] sm:$0xf]
  %v749 = vld [vmem:[%s1 + $0x6f8] sm:$0xf]
  %v750 = vld [vmem:[%s1 + $0x6fc] sm:$0xf]
  %v751 = vld [vmem:[%s1 + $0x700] sm:$0xf]
  %v752 = vld [vmem:[%s1 + $0x704] sm:$0xf]
  %v753 = vld [vmem:[%s1 + $0x708] sm:$0xf]
  %v754 = vld [vmem:[%s1 + $0x70c] sm:$0xf]
  %v755 = vld [vmem:[%s1 + $0x710] sm:$0xf]
  %v756 = vld [vmem:[%s1 + $0x714] sm:$0xf]
  %v757 = vld [vmem:[%s1 + $0x718] sm:$0xf]
  %v758 = vld [vmem:[%s1 + $0x71c] sm:$0xf]
  %v759 = vld [vmem:[%s1 + $0x720] sm:$0xf]
  %v760 = vld [vmem:[%s1 + $0x724] sm:$0xf]
  %v761 = vld [vmem:[%s1 + $0x728] sm:$0xf]
  %v762 = vld [vmem:[%s1 + $0x72c] sm:$0xf]
  %v763 = vld [vmem:[%s1 + $0x730] sm:$0xf]
  %v764 = vld [vmem:[%s1 + $0x734] sm:$0xf]
  %v765 = vld [vmem:[%s1 + $0x738] sm:$0xf]
  %v766 = vld [vmem:[%s1 + $0x73c] sm:$0xf]
  %v767 = vld [vmem:[%s1 + $0x740] sm:$0xf]
  %v768 = vld [vmem:[%s1 + $0x744] sm:$0xf]
  %v769 = vld [vmem:[%s1 + $0x748] sm:$0xf]
  %v770 = vld [vmem:[%s1 + $0x74c] sm:$0xf]
  %v771 = vld [vmem:[%s1 + $0x750] sm:$0xf]
  %v772 = vld [vmem:[%s1 + $0x754] sm:$0xf]
  %v773 = vld [vmem:[%s1 + $0x758] sm:$0xf]
  %v774 = vld [vmem:[%s1 + $0x75c] sm:$0xf]
  %v775 = vld [vmem:[%s1 + $0x760] sm:$0xf]
  %v776 = vld [vmem:[%s1 + $0x764] sm:$0xf]
  %v777 = vld [vmem:[%s1 + $0x768] sm:$0xf]
  %v778 = vld [vmem:[%s1 + $0x76c] sm:$0xf]
  %v779 = vld [vmem:[%s1 + $0x770] sm:$0xf]
  %v780 = vld [vmem:[%s1 + $0x774] sm:$0xf]
  %v781 = vld [vmem:[%s1 + $0x778] sm:$0xf]
  %v782 = vld [vmem:[%s1 + $0x77c] sm:$0xf]
  %v783 = vld [vmem:[%s1 + $0x780] sm:$0xf]
  %v784 = vld [vmem:[%s1 + $0x784] sm:$0xf]
  %v785 = vld [vmem:[%s1 + $0x788] sm:$0xf]
  %v786 = vld [vmem:[%s1 + $0x78c] sm:$0xf]
  %v787 = vld [vmem:[%s1 + $0x790] sm:$0xf]
  %v788 = vld [vmem:[%s1 + $0x794] sm:$0xf]
  %v789 = vld [vmem:[%s1 + $0x798] sm:$0xf]
  %v790 = vld [vmem:[%s1 + $0x79c] sm:$0xf]
  %v791 = vld [vmem:[%s1 + $0x7a0] sm:$0xf]
  %v792 = vld [vmem:[%s1 + $0x7a4] sm:$0xf]
  %v793 = vld [vmem:[%s1 + $0x7a8] sm:$0xf]
  %v794 = vld [vmem:[%s1 + $0x7ac] sm:$0xf]
  %v795 = vld [vmem:[%s1 + $0x7b0] sm:$0xf]
  %v796 = vld [vmem:[%s1 + $0x7b4] sm:$0xf]
  %v797 = vld [vmem:[%s1 + $0x7b8] sm:$0xf]
  %v798 = vld [vmem:[%s1 + $0x7bc] sm:$0xf]
  %v799 = vld [vmem:[%s1 + $0x7c0] sm:$0xf]
  %v800 = vld [vmem:[%s1 + $0x7c4] sm:$0xf]
  %v801 = vld [vmem:[%s1 + $0x7c8] sm:$0xf]
  %v802 = vld [vmem:[%s1 + $0x7cc] sm:$0xf]
  %v803 = vld [vmem:[%s1 + $0x7d0] sm:$0xf]
  %v804 = vld [vmem:[%s1 + $0x7d4] sm:$0xf]
  %v805 = vld [vmem:[%s1 + $0x7d8] sm:$0xf]
  %v806 = vld [vmem:[%s1 + $0x7dc] sm:$0xf]
  %v807 = vld [vmem:[%s1 + $0x7e0] sm:$0xf]
  %v808 = vld [vmem:[%s1 + $0x7e4] sm:$0xf]
  %v809 = vld [vmem:[%s1 + $0x7e8] sm:$0xf]
  %v810 = vld [vmem:[%s1 + $0x7ec] sm:$0xf]
  %v811 = vld [vmem:[%s1 + $0x7f0] sm:$0xf]
  %v812 = vld [vmem:[%s1 + $0x7f4] sm:$0xf]
  %v813 = vld [vmem:[%s1 + $0x7f8] sm:$0xf]
  %v814 = vld [vmem:[%s1 + $0x7fc] sm:$0xf]
  %v815 = vld [vmem:[%s1 + $0x800] sm:$0xf]
  %v816 = vld [vmem:[%s1 + $0x804] sm:$0xf]
  %v817 = vld [vmem:[%s1 + $0x808] sm:$0xf]
  %v818 = vld [vmem:[%s1 + $0x80c] sm:$0xf]
  %v819 = vld [vmem:[%s1 + $0x810] sm:$0xf]
  %v820 = vld [vmem:[%s1 + $0x814] sm:$0xf]
  %v821 = vld [vmem:[%s1 + $0x818] sm:$0xf]
  %v822 = vld [vmem:[%s1 + $0x81c] sm:$0xf]
  %v823 = vld [vmem:[%s1 + $0x820] sm:$0xf]
  %v824 = vld [vmem:[%s1 + $0x824] sm:$0xf]
  %v825 = vld [vmem:[%s1 + $0x828] sm:$0xf]
  %v826 = vld [vmem:[%s1 + $0x82c] sm:$0xf]
  %v827 = vld [vmem:[%s1 + $0x830] sm:$0xf]
  %v828 = vld [vmem:[%s1 + $0x834] sm:$0xf]
  %v829 = vld [vmem:[%s1 + $0x838] sm:$0xf]
  %v830 = vld [vmem:[%s1 + $0x83c] sm:$0xf]
  %v831 = vld [vmem:[%s1 + $0x840] sm:$0xf]
  %v832 = vld [vmem:[%s1 + $0x844] sm:$0xf]
  %v833 = vld [vmem:[%s1 + $0x848] sm:$0xf]
  %v834 = vld [vmem:[%s1 + $0x84c] sm:$0xf]
  %v835 = vld [vmem:[%s1 + $0x850] sm:$0xf]
  %v836 = vld [vmem:[%s1 + $0x854] sm:$0xf]
  %v837 = vld [vmem:[%s1 + $0x858] sm:$0xf]
  %v838 = vld [vmem:[%s1 + $0x85c] sm:$0xf]
  %v839 = vld [vmem:[%s1 + $0x860] sm:$0xf]
  %v840 = vld [vmem:[%s1 + $0x864] sm:$0xf]
  %v841 = vld [vmem:[%s1 + $0x868] sm:$0xf]
  %v842 = vld [vmem:[%s1 + $0x86c] sm:$0xf]
  %v843 = vld [vmem:[%s1 + $0x870] sm:$0xf]
  %v844 = vld [vmem:[%s1 + $0x874] sm:$0xf]
  %v845 = vld [vmem:[%s1 + $0x878] sm:$0xf]
  %v846 = vld [vmem:[%s1 + $0x87c] sm:$0xf]
  %v847 = vld [vmem:[%s1 + $0x880] sm:$0xf]
  %v848 = vld [vmem:[%s1 + $0x884] sm:$0xf]
  %v849 = vld [vmem:[%s1 + $0x888] sm:$0xf]
  %v850 = vld [vmem:[%s1 + $0x88c] sm:$0xf]
  %v851 = vld [vmem:[%s1 + $0x890] sm:$0xf]
  %v852 = vld [vmem:[%s1 + $0x894] sm:$0xf]
  %v853 = vld [vmem:[%s1 + $0x898] sm:$0xf]
  %v854 = vld [vmem:[%s1 + $0x89c] sm:$0xf]
  %v855 = vld [vmem:[%s1 + $0x8a0] sm:$0xf]
  %v856 = vld [vmem:[%s1 + $0x8a4] sm:$0xf]
  %v857 = vld [vmem:[%s1 + $0x8a8] sm:$0xf]
  %v858 = vld [vmem:[%s1 + $0x8ac] sm:$0xf]
  %v859 = vld [vmem:[%s1 + $0x8b0] sm:$0xf]
  %v860 = vld [vmem:[%s1 + $0x8b4] sm:$0xf]
  %v861 = vld [vmem:[%s1 + $0x8b8] sm:$0xf]
  %v862 = vld [vmem:[%s1 + $0x8bc] sm:$0xf]
  %v863 = vld [vmem:[%s1 + $0x8c0] sm:$0xf]
  %v864 = vld [vmem:[%s1 + $0x8c4] sm:$0xf]
  %v865 = vld [vmem:[%s1 + $0x8c8] sm:$0xf]
  %v866 = vld [vmem:[%s1 + $0x8cc] sm:$0xf]
  %v867 = vld [vmem:[%s1 + $0x8d0] sm:$0xf]
  %v868 = vld [vmem:[%s1 + $0x8d4] sm:$0xf]
  %v869 = vld [vmem:[%s1 + $0x8d8] sm:$0xf]
  %v870 = vld [vmem:[%s1 + $0x8dc] sm:$0xf]
  %v871 = vld [vmem:[%s1 + $0x8e0] sm:$0xf]
  %v872 = vld [vmem:[%s1 + $0x8e4] sm:$0xf]
  %v873 = vld [vmem:[%s1 + $0x8e8] sm:$0xf]
  %v874 = vld [vmem:[%s1 + $0x8ec] sm:$0xf]
  %v875 = vld [vmem:[%s1 + $0x8f0] sm:$0xf]
  %v876 = vld [vmem:[%s1 + $0x8f4] sm:$0xf]
  %v877 = vld [vmem:[%s1 + $0x8f8] sm:$0xf]
  %v878 = vld [vmem:[%s1 + $0x8fc] sm:$0xf]
  %v879 = vld [vmem:[%s2] sm:$0x1]
  %v881 = vlaneseq
  %v882 = vshrl.u32 %v881, 7
  %v883 = vsub.s32 0, %v882
  %v884 = vrot.slane %v879, %v883
  %v1174 = vunpack.c.l.b16 %v15
  %v1175 = vunpack.c.h.b16 %v15
  %v1176 = vunpack.c.l.b16 %v16
  %v1177 = vunpack.c.h.b16 %v16
  %v1178 = vunpack.c.l.b16 %v17
  %v1179 = vunpack.c.h.b16 %v17
  %v1180 = vunpack.c.l.b16 %v18
  %v1181 = vunpack.c.h.b16 %v18
  %v1182 = vunpack.c.l.b16 %v19
  %v1183 = vunpack.c.h.b16 %v19
  %v1184 = vunpack.c.l.b16 %v20
  %v1185 = vunpack.c.h.b16 %v20
  %v1186 = vunpack.c.l.b16 %v21
  %v1187 = vunpack.c.h.b16 %v21
  %v1188 = vunpack.c.l.b16 %v22
  %v1189 = vunpack.c.h.b16 %v22
  %v1190 = vunpack.c.l.b16 %v23
  %v1191 = vunpack.c.h.b16 %v23
  %v1192 = vunpack.c.l.b16 %v24
  %v1193 = vunpack.c.h.b16 %v24
  %v1194 = vunpack.c.l.b16 %v25
  %v1195 = vunpack.c.h.b16 %v25
  %v1196 = vunpack.c.l.b16 %v26
  %v1197 = vunpack.c.h.b16 %v26
  %v1198 = vunpack.c.l.b16 %v27
  %v1199 = vunpack.c.h.b16 %v27
  %v1200 = vunpack.c.l.b16 %v28
  %v1201 = vunpack.c.h.b16 %v28
  %v1202 = vunpack.c.l.b16 %v29
  %v1203 = vunpack.c.h.b16 %v29
  %v1204 = vunpack.c.l.b16 %v30
  %v1205 = vunpack.c.h.b16 %v30
  %v1206 = vunpack.c.l.b16 %v31
  %v1207 = vunpack.c.h.b16 %v31
  %v1208 = vunpack.c.l.b16 %v32
  %v1209 = vunpack.c.h.b16 %v32
  %v1210 = vunpack.c.l.b16 %v33
  %v1211 = vunpack.c.h.b16 %v33
  %v1212 = vunpack.c.l.b16 %v34
  %v1213 = vunpack.c.h.b16 %v34
  %v1214 = vunpack.c.l.b16 %v35
  %v1215 = vunpack.c.h.b16 %v35
  %v1216 = vunpack.c.l.b16 %v36
  %v1217 = vunpack.c.h.b16 %v36
  %v1218 = vunpack.c.l.b16 %v37
  %v1219 = vunpack.c.h.b16 %v37
  %v1220 = vunpack.c.l.b16 %v38
  %v1221 = vunpack.c.h.b16 %v38
  %v1222 = vunpack.c.l.b16 %v39
  %v1223 = vunpack.c.h.b16 %v39
  %v1224 = vunpack.c.l.b16 %v40
  %v1225 = vunpack.c.h.b16 %v40
  %v1226 = vunpack.c.l.b16 %v41
  %v1227 = vunpack.c.h.b16 %v41
  %v1228 = vunpack.c.l.b16 %v42
  %v1229 = vunpack.c.h.b16 %v42
  %v1230 = vunpack.c.l.b16 %v43
  %v1231 = vunpack.c.h.b16 %v43
  %v1232 = vunpack.c.l.b16 %v44
  %v1233 = vunpack.c.h.b16 %v44
  %v1234 = vunpack.c.l.b16 %v45
  %v1235 = vunpack.c.h.b16 %v45
  %v1236 = vunpack.c.l.b16 %v46
  %v1237 = vunpack.c.h.b16 %v46
  %v1238 = vunpack.c.l.b16 %v47
  %v1239 = vunpack.c.h.b16 %v47
  %v1240 = vunpack.c.l.b16 %v48
  %v1241 = vunpack.c.h.b16 %v48
  %v1242 = vunpack.c.l.b16 %v49
  %v1243 = vunpack.c.h.b16 %v49
  %v1244 = vunpack.c.l.b16 %v50
  %v1245 = vunpack.c.h.b16 %v50
  %v1246 = vunpack.c.l.b16 %v51
  %v1247 = vunpack.c.h.b16 %v51
  %v1248 = vunpack.c.l.b16 %v52
  %v1249 = vunpack.c.h.b16 %v52
  %v1250 = vunpack.c.l.b16 %v53
  %v1251 = vunpack.c.h.b16 %v53
  %v1252 = vunpack.c.l.b16 %v54
  %v1253 = vunpack.c.h.b16 %v54
  %v1254 = vunpack.c.l.b16 %v55
  %v1255 = vunpack.c.h.b16 %v55
  %v1256 = vunpack.c.l.b16 %v56
  %v1257 = vunpack.c.h.b16 %v56
  %v1258 = vunpack.c.l.b16 %v57
  %v1259 = vunpack.c.h.b16 %v57
  %v1260 = vunpack.c.l.b16 %v58
  %v1261 = vunpack.c.h.b16 %v58
  %v1262 = vunpack.c.l.b16 %v59
  %v1263 = vunpack.c.h.b16 %v59
  %v1264 = vunpack.c.l.b16 %v60
  %v1265 = vunpack.c.h.b16 %v60
  %v1266 = vunpack.c.l.b16 %v61
  %v1267 = vunpack.c.h.b16 %v61
  %v1268 = vunpack.c.l.b16 %v62
  %v1269 = vunpack.c.h.b16 %v62
  %v1270 = vunpack.c.l.b16 %v63
  %v1271 = vunpack.c.h.b16 %v63
  %v1272 = vunpack.c.l.b16 %v64
  %v1273 = vunpack.c.h.b16 %v64
  %v1274 = vunpack.c.l.b16 %v65
  %v1275 = vunpack.c.h.b16 %v65
  %v1276 = vunpack.c.l.b16 %v66
  %v1277 = vunpack.c.h.b16 %v66
  %v1278 = vunpack.c.l.b16 %v67
  %v1279 = vunpack.c.h.b16 %v67
  %v1280 = vunpack.c.l.b16 %v68
  %v1281 = vunpack.c.h.b16 %v68
  %v1282 = vunpack.c.l.b16 %v69
  %v1283 = vunpack.c.h.b16 %v69
  %v1284 = vunpack.c.l.b16 %v70
  %v1285 = vunpack.c.h.b16 %v70
  %v1286 = vunpack.c.l.b16 %v71
  %v1287 = vunpack.c.h.b16 %v71
  %v1288 = vunpack.c.l.b16 %v72
  %v1289 = vunpack.c.h.b16 %v72
  %v1290 = vunpack.c.l.b16 %v73
  %v1291 = vunpack.c.h.b16 %v73
  %v1292 = vunpack.c.l.b16 %v74
  %v1293 = vunpack.c.h.b16 %v74
  %v1294 = vunpack.c.l.b16 %v75
  %v1295 = vunpack.c.h.b16 %v75
  %v1296 = vunpack.c.l.b16 %v76
  %v1297 = vunpack.c.h.b16 %v76
  %v1298 = vunpack.c.l.b16 %v77
  %v1299 = vunpack.c.h.b16 %v77
  %v1300 = vunpack.c.l.b16 %v78
  %v1301 = vunpack.c.h.b16 %v78
  %v1302 = vunpack.c.l.b16 %v79
  %v1303 = vunpack.c.h.b16 %v79
  %v1304 = vunpack.c.l.b16 %v80
  %v1305 = vunpack.c.h.b16 %v80
  %v1306 = vunpack.c.l.b16 %v81
  %v1307 = vunpack.c.h.b16 %v81
  %v1308 = vunpack.c.l.b16 %v82
  %v1309 = vunpack.c.h.b16 %v82
  %v1310 = vunpack.c.l.b16 %v83
  %v1311 = vunpack.c.h.b16 %v83
  %v1312 = vunpack.c.l.b16 %v84
  %v1313 = vunpack.c.h.b16 %v84
  %v1314 = vunpack.c.l.b16 %v85
  %v1315 = vunpack.c.h.b16 %v85
  %v1316 = vunpack.c.l.b16 %v86
  %v1317 = vunpack.c.h.b16 %v86
  %v1318 = vunpack.c.l.b16 %v87
  %v1319 = vunpack.c.h.b16 %v87
  %v1320 = vunpack.c.l.b16 %v88
  %v1321 = vunpack.c.h.b16 %v88
  %v1322 = vunpack.c.l.b16 %v89
  %v1323 = vunpack.c.h.b16 %v89
  %v1324 = vunpack.c.l.b16 %v90
  %v1325 = vunpack.c.h.b16 %v90
  %v1326 = vunpack.c.l.b16 %v91
  %v1327 = vunpack.c.h.b16 %v91
  %v1328 = vunpack.c.l.b16 %v92
  %v1329 = vunpack.c.h.b16 %v92
  %v1330 = vunpack.c.l.b16 %v93
  %v1331 = vunpack.c.h.b16 %v93
  %v1332 = vunpack.c.l.b16 %v94
  %v1333 = vunpack.c.h.b16 %v94
  %v1334 = vunpack.c.l.b16 %v95
  %v1335 = vunpack.c.h.b16 %v95
  %v1336 = vunpack.c.l.b16 %v96
  %v1337 = vunpack.c.h.b16 %v96
  %v1338 = vunpack.c.l.b16 %v97
  %v1339 = vunpack.c.h.b16 %v97
  %v1340 = vunpack.c.l.b16 %v98
  %v1341 = vunpack.c.h.b16 %v98
  %v1342 = vunpack.c.l.b16 %v99
  %v1343 = vunpack.c.h.b16 %v99
  %v1344 = vunpack.c.l.b16 %v100
  %v1345 = vunpack.c.h.b16 %v100
  %v1346 = vunpack.c.l.b16 %v101
  %v1347 = vunpack.c.h.b16 %v101
  %v1348 = vunpack.c.l.b16 %v102
  %v1349 = vunpack.c.h.b16 %v102
  %v1350 = vunpack.c.l.b16 %v103
  %v1351 = vunpack.c.h.b16 %v103
  %v1352 = vunpack.c.l.b16 %v104
  %v1353 = vunpack.c.h.b16 %v104
  %v1354 = vunpack.c.l.b16 %v105
  %v1355 = vunpack.c.h.b16 %v105
  %v1356 = vunpack.c.l.b16 %v106
  %v1357 = vunpack.c.h.b16 %v106
  %v1358 = vunpack.c.l.b16 %v107
  %v1359 = vunpack.c.h.b16 %v107
  %v1360 = vunpack.c.l.b16 %v108
  %v1361 = vunpack.c.h.b16 %v108
  %v1362 = vunpack.c.l.b16 %v109
  %v1363 = vunpack.c.h.b16 %v109
  %v1364 = vunpack.c.l.b16 %v110
  %v1365 = vunpack.c.h.b16 %v110
  %v1366 = vunpack.c.l.b16 %v111
  %v1367 = vunpack.c.h.b16 %v111
  %v1368 = vunpack.c.l.b16 %v112
  %v1369 = vunpack.c.h.b16 %v112
  %v1370 = vunpack.c.l.b16 %v113
  %v1371 = vunpack.c.h.b16 %v113
  %v1372 = vunpack.c.l.b16 %v114
  %v1373 = vunpack.c.h.b16 %v114
  %v1374 = vunpack.c.l.b16 %v115
  %v1375 = vunpack.c.h.b16 %v115
  %v1376 = vunpack.c.l.b16 %v116
  %v1377 = vunpack.c.h.b16 %v116
  %v1378 = vunpack.c.l.b16 %v117
  %v1379 = vunpack.c.h.b16 %v117
  %v1380 = vunpack.c.l.b16 %v118
  %v1381 = vunpack.c.h.b16 %v118
  %v1382 = vunpack.c.l.b16 %v119
  %v1383 = vunpack.c.h.b16 %v119
  %v1384 = vunpack.c.l.b16 %v120
  %v1385 = vunpack.c.h.b16 %v120
  %v1386 = vunpack.c.l.b16 %v121
  %v1387 = vunpack.c.h.b16 %v121
  %v1388 = vunpack.c.l.b16 %v122
  %v1389 = vunpack.c.h.b16 %v122
  %v1390 = vunpack.c.l.b16 %v123
  %v1391 = vunpack.c.h.b16 %v123
  %v1392 = vunpack.c.l.b16 %v124
  %v1393 = vunpack.c.h.b16 %v124
  %v1394 = vunpack.c.l.b16 %v125
  %v1395 = vunpack.c.h.b16 %v125
  %v1396 = vunpack.c.l.b16 %v126
  %v1397 = vunpack.c.h.b16 %v126
  %v1398 = vunpack.c.l.b16 %v127
  %v1399 = vunpack.c.h.b16 %v127
  %v1400 = vunpack.c.l.b16 %v128
  %v1401 = vunpack.c.h.b16 %v128
  %v1402 = vunpack.c.l.b16 %v129
  %v1403 = vunpack.c.h.b16 %v129
  %v1404 = vunpack.c.l.b16 %v130
  %v1405 = vunpack.c.h.b16 %v130
  %v1406 = vunpack.c.l.b16 %v131
  %v1407 = vunpack.c.h.b16 %v131
  %v1408 = vunpack.c.l.b16 %v132
  %v1409 = vunpack.c.h.b16 %v132
  %v1410 = vunpack.c.l.b16 %v133
  %v1411 = vunpack.c.h.b16 %v133
  %v1412 = vunpack.c.l.b16 %v134
  %v1413 = vunpack.c.h.b16 %v134
  %v1414 = vunpack.c.l.b16 %v135
  %v1415 = vunpack.c.h.b16 %v135
  %v1416 = vunpack.c.l.b16 %v136
  %v1417 = vunpack.c.h.b16 %v136
  %v1418 = vunpack.c.l.b16 %v137
  %v1419 = vunpack.c.h.b16 %v137
  %v1420 = vunpack.c.l.b16 %v138
  %v1421 = vunpack.c.h.b16 %v138
  %v1422 = vunpack.c.l.b16 %v139
  %v1423 = vunpack.c.h.b16 %v139
  %v1424 = vunpack.c.l.b16 %v140
  %v1425 = vunpack.c.h.b16 %v140
  %v1426 = vunpack.c.l.b16 %v141
  %v1427 = vunpack.c.h.b16 %v141
  %v1428 = vunpack.c.l.b16 %v142
  %v1429 = vunpack.c.h.b16 %v142
  %v1430 = vunpack.c.l.b16 %v143
  %v1431 = vunpack.c.h.b16 %v143
  %v1432 = vunpack.c.l.b16 %v144
  %v1433 = vunpack.c.h.b16 %v144
  %v1434 = vunpack.c.l.b16 %v145
  %v1435 = vunpack.c.h.b16 %v145
  %v1436 = vunpack.c.l.b16 %v146
  %v1437 = vunpack.c.h.b16 %v146
  %v1438 = vunpack.c.l.b16 %v147
  %v1439 = vunpack.c.h.b16 %v147
  %v1440 = vunpack.c.l.b16 %v148
  %v1441 = vunpack.c.h.b16 %v148
  %v1442 = vunpack.c.l.b16 %v149
  %v1443 = vunpack.c.h.b16 %v149
  %v1444 = vunpack.c.l.b16 %v150
  %v1445 = vunpack.c.h.b16 %v150
  %v1446 = vunpack.c.l.b16 %v151
  %v1447 = vunpack.c.h.b16 %v151
  %v1448 = vunpack.c.l.b16 %v152
  %v1449 = vunpack.c.h.b16 %v152
  %v1450 = vunpack.c.l.b16 %v153
  %v1451 = vunpack.c.h.b16 %v153
  %v1452 = vunpack.c.l.b16 %v154
  %v1453 = vunpack.c.h.b16 %v154
  %v1454 = vunpack.c.l.b16 %v155
  %v1455 = vunpack.c.h.b16 %v155
  %v1456 = vunpack.c.l.b16 %v156
  %v1457 = vunpack.c.h.b16 %v156
  %v1458 = vunpack.c.l.b16 %v157
  %v1459 = vunpack.c.h.b16 %v157
  %v1460 = vunpack.c.l.b16 %v158
  %v1461 = vunpack.c.h.b16 %v158
  %v1462 = vunpack.c.l.b16 %v159
  %v1463 = vunpack.c.h.b16 %v159
  %v1464 = vunpack.c.l.b16 %v160
  %v1465 = vunpack.c.h.b16 %v160
  %v1466 = vunpack.c.l.b16 %v161
  %v1467 = vunpack.c.h.b16 %v161
  %v1468 = vunpack.c.l.b16 %v162
  %v1469 = vunpack.c.h.b16 %v162
  %v1470 = vunpack.c.l.b16 %v163
  %v1471 = vunpack.c.h.b16 %v163
  %v1472 = vunpack.c.l.b16 %v164
  %v1473 = vunpack.c.h.b16 %v164
  %v1474 = vunpack.c.l.b16 %v165
  %v1475 = vunpack.c.h.b16 %v165
  %v1476 = vunpack.c.l.b16 %v166
  %v1477 = vunpack.c.h.b16 %v166
  %v1478 = vunpack.c.l.b16 %v167
  %v1479 = vunpack.c.h.b16 %v167
  %v1480 = vunpack.c.l.b16 %v168
  %v1481 = vunpack.c.h.b16 %v168
  %v1482 = vunpack.c.l.b16 %v169
  %v1483 = vunpack.c.h.b16 %v169
  %v1484 = vunpack.c.l.b16 %v170
  %v1485 = vunpack.c.h.b16 %v170
  %v1486 = vunpack.c.l.b16 %v171
  %v1487 = vunpack.c.h.b16 %v171
  %v1488 = vunpack.c.l.b16 %v172
  %v1489 = vunpack.c.h.b16 %v172
  %v1490 = vunpack.c.l.b16 %v173
  %v1491 = vunpack.c.h.b16 %v173
  %v1492 = vunpack.c.l.b16 %v174
  %v1493 = vunpack.c.h.b16 %v174
  %v1494 = vunpack.c.l.b16 %v175
  %v1495 = vunpack.c.h.b16 %v175
  %v1496 = vunpack.c.l.b16 %v176
  %v1497 = vunpack.c.h.b16 %v176
  %v1498 = vunpack.c.l.b16 %v177
  %v1499 = vunpack.c.h.b16 %v177
  %v1500 = vunpack.c.l.b16 %v178
  %v1501 = vunpack.c.h.b16 %v178
  %v1502 = vunpack.c.l.b16 %v179
  %v1503 = vunpack.c.h.b16 %v179
  %v1504 = vunpack.c.l.b16 %v180
  %v1505 = vunpack.c.h.b16 %v180
  %v1506 = vunpack.c.l.b16 %v181
  %v1507 = vunpack.c.h.b16 %v181
  %v1508 = vunpack.c.l.b16 %v182
  %v1509 = vunpack.c.h.b16 %v182
  %v1510 = vunpack.c.l.b16 %v183
  %v1511 = vunpack.c.h.b16 %v183
  %v1512 = vunpack.c.l.b16 %v184
  %v1513 = vunpack.c.h.b16 %v184
  %v1514 = vunpack.c.l.b16 %v185
  %v1515 = vunpack.c.h.b16 %v185
  %v1516 = vunpack.c.l.b16 %v186
  %v1517 = vunpack.c.h.b16 %v186
  %v1518 = vunpack.c.l.b16 %v187
  %v1519 = vunpack.c.h.b16 %v187
  %v1520 = vunpack.c.l.b16 %v188
  %v1521 = vunpack.c.h.b16 %v188
  %v1522 = vunpack.c.l.b16 %v189
  %v1523 = vunpack.c.h.b16 %v189
  %v1524 = vunpack.c.l.b16 %v190
  %v1525 = vunpack.c.h.b16 %v190
  %v1526 = vunpack.c.l.b16 %v191
  %v1527 = vunpack.c.h.b16 %v191
  %v1528 = vunpack.c.l.b16 %v192
  %v1529 = vunpack.c.h.b16 %v192
  %v1530 = vunpack.c.l.b16 %v193
  %v1531 = vunpack.c.h.b16 %v193
  %v1532 = vunpack.c.l.b16 %v194
  %v1533 = vunpack.c.h.b16 %v194
  %v1534 = vunpack.c.l.b16 %v195
  %v1535 = vunpack.c.h.b16 %v195
  %v1536 = vunpack.c.l.b16 %v196
  %v1537 = vunpack.c.h.b16 %v196
  %v1538 = vunpack.c.l.b16 %v197
  %v1539 = vunpack.c.h.b16 %v197
  %v1540 = vunpack.c.l.b16 %v198
  %v1541 = vunpack.c.h.b16 %v198
  %v1542 = vunpack.c.l.b16 %v199
  %v1543 = vunpack.c.h.b16 %v199
  %v1544 = vunpack.c.l.b16 %v200
  %v1545 = vunpack.c.h.b16 %v200
  %v1546 = vunpack.c.l.b16 %v201
  %v1547 = vunpack.c.h.b16 %v201
  %v1548 = vunpack.c.l.b16 %v202
  %v1549 = vunpack.c.h.b16 %v202
  %v1550 = vunpack.c.l.b16 %v203
  %v1551 = vunpack.c.h.b16 %v203
  %v1552 = vunpack.c.l.b16 %v204
  %v1553 = vunpack.c.h.b16 %v204
  %v1554 = vunpack.c.l.b16 %v205
  %v1555 = vunpack.c.h.b16 %v205
  %v1556 = vunpack.c.l.b16 %v206
  %v1557 = vunpack.c.h.b16 %v206
  %v1558 = vunpack.c.l.b16 %v207
  %v1559 = vunpack.c.h.b16 %v207
  %v1560 = vunpack.c.l.b16 %v208
  %v1561 = vunpack.c.h.b16 %v208
  %v1562 = vunpack.c.l.b16 %v209
  %v1563 = vunpack.c.h.b16 %v209
  %v1564 = vunpack.c.l.b16 %v210
  %v1565 = vunpack.c.h.b16 %v210
  %v1566 = vunpack.c.l.b16 %v211
  %v1567 = vunpack.c.h.b16 %v211
  %v1568 = vunpack.c.l.b16 %v212
  %v1569 = vunpack.c.h.b16 %v212
  %v1570 = vunpack.c.l.b16 %v213
  %v1571 = vunpack.c.h.b16 %v213
  %v1572 = vunpack.c.l.b16 %v214
  %v1573 = vunpack.c.h.b16 %v214
  %v1574 = vunpack.c.l.b16 %v215
  %v1575 = vunpack.c.h.b16 %v215
  %v1576 = vunpack.c.l.b16 %v216
  %v1577 = vunpack.c.h.b16 %v216
  %v1578 = vunpack.c.l.b16 %v217
  %v1579 = vunpack.c.h.b16 %v217
  %v1580 = vunpack.c.l.b16 %v218
  %v1581 = vunpack.c.h.b16 %v218
  %v1582 = vunpack.c.l.b16 %v219
  %v1583 = vunpack.c.h.b16 %v219
  %v1584 = vunpack.c.l.b16 %v220
  %v1585 = vunpack.c.h.b16 %v220
  %v1586 = vunpack.c.l.b16 %v221
  %v1587 = vunpack.c.h.b16 %v221
  %v1588 = vunpack.c.l.b16 %v222
  %v1589 = vunpack.c.h.b16 %v222
  %v1590 = vunpack.c.l.b16 %v223
  %v1591 = vunpack.c.h.b16 %v223
  %v1592 = vunpack.c.l.b16 %v224
  %v1593 = vunpack.c.h.b16 %v224
  %v1594 = vunpack.c.l.b16 %v225
  %v1595 = vunpack.c.h.b16 %v225
  %v1596 = vunpack.c.l.b16 %v226
  %v1597 = vunpack.c.h.b16 %v226
  %v1598 = vunpack.c.l.b16 %v227
  %v1599 = vunpack.c.h.b16 %v227
  %v1600 = vunpack.c.l.b16 %v228
  %v1601 = vunpack.c.h.b16 %v228
  %v1602 = vunpack.c.l.b16 %v229
  %v1603 = vunpack.c.h.b16 %v229
  %v1604 = vunpack.c.l.b16 %v230
  %v1605 = vunpack.c.h.b16 %v230
  %v1606 = vunpack.c.l.b16 %v231
  %v1607 = vunpack.c.h.b16 %v231
  %v1608 = vunpack.c.l.b16 %v232
  %v1609 = vunpack.c.h.b16 %v232
  %v1610 = vunpack.c.l.b16 %v233
  %v1611 = vunpack.c.h.b16 %v233
  %v1612 = vunpack.c.l.b16 %v234
  %v1613 = vunpack.c.h.b16 %v234
  %v1614 = vunpack.c.l.b16 %v235
  %v1615 = vunpack.c.h.b16 %v235
  %v1616 = vunpack.c.l.b16 %v236
  %v1617 = vunpack.c.h.b16 %v236
  %v1618 = vunpack.c.l.b16 %v237
  %v1619 = vunpack.c.h.b16 %v237
  %v1620 = vunpack.c.l.b16 %v238
  %v1621 = vunpack.c.h.b16 %v238
  %v1622 = vunpack.c.l.b16 %v239
  %v1623 = vunpack.c.h.b16 %v239
  %v1624 = vunpack.c.l.b16 %v240
  %v1625 = vunpack.c.h.b16 %v240
  %v1626 = vunpack.c.l.b16 %v241
  %v1627 = vunpack.c.h.b16 %v241
  %v1628 = vunpack.c.l.b16 %v242
  %v1629 = vunpack.c.h.b16 %v242
  %v1630 = vunpack.c.l.b16 %v243
  %v1631 = vunpack.c.h.b16 %v243
  %v1632 = vunpack.c.l.b16 %v244
  %v1633 = vunpack.c.h.b16 %v244
  %v1634 = vunpack.c.l.b16 %v245
  %v1635 = vunpack.c.h.b16 %v245
  %v1636 = vunpack.c.l.b16 %v246
  %v1637 = vunpack.c.h.b16 %v246
  %v1638 = vunpack.c.l.b16 %v247
  %v1639 = vunpack.c.h.b16 %v247
  %v1640 = vunpack.c.l.b16 %v248
  %v1641 = vunpack.c.h.b16 %v248
  %v1642 = vunpack.c.l.b16 %v249
  %v1643 = vunpack.c.h.b16 %v249
  %v1644 = vunpack.c.l.b16 %v250
  %v1645 = vunpack.c.h.b16 %v250
  %v1646 = vunpack.c.l.b16 %v251
  %v1647 = vunpack.c.h.b16 %v251
  %v1648 = vunpack.c.l.b16 %v252
  %v1649 = vunpack.c.h.b16 %v252
  %v1650 = vunpack.c.l.b16 %v253
  %v1651 = vunpack.c.h.b16 %v253
  %v1652 = vunpack.c.l.b16 %v254
  %v1653 = vunpack.c.h.b16 %v254
  %v1654 = vunpack.c.l.b16 %v255
  %v1655 = vunpack.c.h.b16 %v255
  %v1656 = vunpack.c.l.b16 %v256
  %v1657 = vunpack.c.h.b16 %v256
  %v1658 = vunpack.c.l.b16 %v257
  %v1659 = vunpack.c.h.b16 %v257
  %v1660 = vunpack.c.l.b16 %v258
  %v1661 = vunpack.c.h.b16 %v258
  %v1662 = vunpack.c.l.b16 %v259
  %v1663 = vunpack.c.h.b16 %v259
  %v1664 = vunpack.c.l.b16 %v260
  %v1665 = vunpack.c.h.b16 %v260
  %v1666 = vunpack.c.l.b16 %v261
  %v1667 = vunpack.c.h.b16 %v261
  %v1668 = vunpack.c.l.b16 %v262
  %v1669 = vunpack.c.h.b16 %v262
  %v1670 = vunpack.c.l.b16 %v263
  %v1671 = vunpack.c.h.b16 %v263
  %v1672 = vunpack.c.l.b16 %v264
  %v1673 = vunpack.c.h.b16 %v264
  %v1674 = vunpack.c.l.b16 %v265
  %v1675 = vunpack.c.h.b16 %v265
  %v1676 = vunpack.c.l.b16 %v266
  %v1677 = vunpack.c.h.b16 %v266
  %v1678 = vunpack.c.l.b16 %v267
  %v1679 = vunpack.c.h.b16 %v267
  %v1680 = vunpack.c.l.b16 %v268
  %v1681 = vunpack.c.h.b16 %v268
  %v1682 = vunpack.c.l.b16 %v269
  %v1683 = vunpack.c.h.b16 %v269
  %v1684 = vunpack.c.l.b16 %v270
  %v1685 = vunpack.c.h.b16 %v270
  %v1686 = vunpack.c.l.b16 %v271
  %v1687 = vunpack.c.h.b16 %v271
  %v1688 = vunpack.c.l.b16 %v272
  %v1689 = vunpack.c.h.b16 %v272
  %v1690 = vunpack.c.l.b16 %v273
  %v1691 = vunpack.c.h.b16 %v273
  %v1692 = vunpack.c.l.b16 %v274
  %v1693 = vunpack.c.h.b16 %v274
  %v1694 = vunpack.c.l.b16 %v275
  %v1695 = vunpack.c.h.b16 %v275
  %v1696 = vunpack.c.l.b16 %v276
  %v1697 = vunpack.c.h.b16 %v276
  %v1698 = vunpack.c.l.b16 %v277
  %v1699 = vunpack.c.h.b16 %v277
  %v1700 = vunpack.c.l.b16 %v278
  %v1701 = vunpack.c.h.b16 %v278
  %v1702 = vunpack.c.l.b16 %v279
  %v1703 = vunpack.c.h.b16 %v279
  %v1704 = vunpack.c.l.b16 %v280
  %v1705 = vunpack.c.h.b16 %v280
  %v1706 = vunpack.c.l.b16 %v281
  %v1707 = vunpack.c.h.b16 %v281
  %v1708 = vunpack.c.l.b16 %v282
  %v1709 = vunpack.c.h.b16 %v282
  %v1710 = vunpack.c.l.b16 %v283
  %v1711 = vunpack.c.h.b16 %v283
  %v1712 = vunpack.c.l.b16 %v284
  %v1713 = vunpack.c.h.b16 %v284
  %v1714 = vunpack.c.l.b16 %v285
  %v1715 = vunpack.c.h.b16 %v285
  %v1716 = vunpack.c.l.b16 %v286
  %v1717 = vunpack.c.h.b16 %v286
  %v1718 = vunpack.c.l.b16 %v287
  %v1719 = vunpack.c.h.b16 %v287
  %v1720 = vunpack.c.l.b16 %v288
  %v1721 = vunpack.c.h.b16 %v288
  %v1722 = vunpack.c.l.b16 %v289
  %v1723 = vunpack.c.h.b16 %v289
  %v1724 = vunpack.c.l.b16 %v290
  %v1725 = vunpack.c.h.b16 %v290
  %v1726 = vunpack.c.l.b16 %v291
  %v1727 = vunpack.c.h.b16 %v291
  %v1728 = vunpack.c.l.b16 %v292
  %v1729 = vunpack.c.h.b16 %v292
  %v1730 = vunpack.c.l.b16 %v293
  %v1731 = vunpack.c.h.b16 %v293
  %v1732 = vunpack.c.l.b16 %v294
  %v1733 = vunpack.c.h.b16 %v294
  %v1734 = vunpack.c.l.b16 %v295
  %v1735 = vunpack.c.h.b16 %v295
  %v1736 = vunpack.c.l.b16 %v296
  %v1737 = vunpack.c.h.b16 %v296
  %v1738 = vunpack.c.l.b16 %v297
  %v1739 = vunpack.c.h.b16 %v297
  %v1740 = vunpack.c.l.b16 %v298
  %v1741 = vunpack.c.h.b16 %v298
  %v1742 = vunpack.c.l.b16 %v299
  %v1743 = vunpack.c.h.b16 %v299
  %v1744 = vunpack.c.l.b16 %v300
  %v1745 = vunpack.c.h.b16 %v300
  %v1746 = vunpack.c.l.b16 %v301
  %v1747 = vunpack.c.h.b16 %v301
  %v1748 = vunpack.c.l.b16 %v302
  %v1749 = vunpack.c.h.b16 %v302
  %v1750 = vpack.c.b16 %v1210, %v1174
  %v1751 = vpack.c.b16 %v1211, %v1175
  %v1752 = vpack.c.b16 %v1212, %v1176
  %v1753 = vpack.c.b16 %v1213, %v1177
  %v1754 = vpack.c.b16 %v1214, %v1178
  %v1755 = vpack.c.b16 %v1215, %v1179
  %v1756 = vpack.c.b16 %v1216, %v1180
  %v1757 = vpack.c.b16 %v1217, %v1181
  %v1758 = vpack.c.b16 %v1218, %v1182
  %v1759 = vpack.c.b16 %v1219, %v1183
  %v1760 = vpack.c.b16 %v1220, %v1184
  %v1761 = vpack.c.b16 %v1221, %v1185
  %v1762 = vpack.c.b16 %v1222, %v1186
  %v1763 = vpack.c.b16 %v1223, %v1187
  %v1764 = vpack.c.b16 %v1224, %v1188
  %v1765 = vpack.c.b16 %v1225, %v1189
  %v1766 = vpack.c.b16 %v1226, %v1190
  %v1767 = vpack.c.b16 %v1227, %v1191
  %v1768 = vpack.c.b16 %v1228, %v1192
  %v1769 = vpack.c.b16 %v1229, %v1193
  %v1770 = vpack.c.b16 %v1230, %v1194
  %v1771 = vpack.c.b16 %v1231, %v1195
  %v1772 = vpack.c.b16 %v1232, %v1196
  %v1773 = vpack.c.b16 %v1233, %v1197
  %v1774 = vpack.c.b16 %v1234, %v1198
  %v1775 = vpack.c.b16 %v1235, %v1199
  %v1776 = vpack.c.b16 %v1236, %v1200
  %v1777 = vpack.c.b16 %v1237, %v1201
  %v1778 = vpack.c.b16 %v1238, %v1202
  %v1779 = vpack.c.b16 %v1239, %v1203
  %v1780 = vpack.c.b16 %v1240, %v1204
  %v1781 = vpack.c.b16 %v1241, %v1205
  %v1782 = vpack.c.b16 %v1242, %v1206
  %v1783 = vpack.c.b16 %v1243, %v1207
  %v1784 = vpack.c.b16 %v1244, %v1208
  %v1785 = vpack.c.b16 %v1245, %v1209
  %v1786 = vpack.c.b16 %v1282, %v1246
  %v1787 = vpack.c.b16 %v1283, %v1247
  %v1788 = vpack.c.b16 %v1284, %v1248
  %v1789 = vpack.c.b16 %v1285, %v1249
  %v1790 = vpack.c.b16 %v1286, %v1250
  %v1791 = vpack.c.b16 %v1287, %v1251
  %v1792 = vpack.c.b16 %v1288, %v1252
  %v1793 = vpack.c.b16 %v1289, %v1253
  %v1794 = vpack.c.b16 %v1290, %v1254
  %v1795 = vpack.c.b16 %v1291, %v1255
  %v1796 = vpack.c.b16 %v1292, %v1256
  %v1797 = vpack.c.b16 %v1293, %v1257
  %v1798 = vpack.c.b16 %v1294, %v1258
  %v1799 = vpack.c.b16 %v1295, %v1259
  %v1800 = vpack.c.b16 %v1296, %v1260
  %v1801 = vpack.c.b16 %v1297, %v1261
  %v1802 = vpack.c.b16 %v1298, %v1262
  %v1803 = vpack.c.b16 %v1299, %v1263
  %v1804 = vpack.c.b16 %v1300, %v1264
  %v1805 = vpack.c.b16 %v1301, %v1265
  %v1806 = vpack.c.b16 %v1302, %v1266
  %v1807 = vpack.c.b16 %v1303, %v1267
  %v1808 = vpack.c.b16 %v1304, %v1268
  %v1809 = vpack.c.b16 %v1305, %v1269
  %v1810 = vpack.c.b16 %v1306, %v1270
  %v1811 = vpack.c.b16 %v1307, %v1271
  %v1812 = vpack.c.b16 %v1308, %v1272
  %v1813 = vpack.c.b16 %v1309, %v1273
  %v1814 = vpack.c.b16 %v1310, %v1274
  %v1815 = vpack.c.b16 %v1311, %v1275
  %v1816 = vpack.c.b16 %v1312, %v1276
  %v1817 = vpack.c.b16 %v1313, %v1277
  %v1818 = vpack.c.b16 %v1314, %v1278
  %v1819 = vpack.c.b16 %v1315, %v1279
  %v1820 = vpack.c.b16 %v1316, %v1280
  %v1821 = vpack.c.b16 %v1317, %v1281
  %v1822 = vpack.c.b16 %v1354, %v1318
  %v1823 = vpack.c.b16 %v1355, %v1319
  %v1824 = vpack.c.b16 %v1356, %v1320
  %v1825 = vpack.c.b16 %v1357, %v1321
  %v1826 = vpack.c.b16 %v1358, %v1322
  %v1827 = vpack.c.b16 %v1359, %v1323
  %v1828 = vpack.c.b16 %v1360, %v1324
  %v1829 = vpack.c.b16 %v1361, %v1325
  %v1830 = vpack.c.b16 %v1362, %v1326
  %v1831 = vpack.c.b16 %v1363, %v1327
  %v1832 = vpack.c.b16 %v1364, %v1328
  %v1833 = vpack.c.b16 %v1365, %v1329
  %v1834 = vpack.c.b16 %v1366, %v1330
  %v1835 = vpack.c.b16 %v1367, %v1331
  %v1836 = vpack.c.b16 %v1368, %v1332
  %v1837 = vpack.c.b16 %v1369, %v1333
  %v1838 = vpack.c.b16 %v1370, %v1334
  %v1839 = vpack.c.b16 %v1371, %v1335
  %v1840 = vpack.c.b16 %v1372, %v1336
  %v1841 = vpack.c.b16 %v1373, %v1337
  %v1842 = vpack.c.b16 %v1374, %v1338
  %v1843 = vpack.c.b16 %v1375, %v1339
  %v1844 = vpack.c.b16 %v1376, %v1340
  %v1845 = vpack.c.b16 %v1377, %v1341
  %v1846 = vpack.c.b16 %v1378, %v1342
  %v1847 = vpack.c.b16 %v1379, %v1343
  %v1848 = vpack.c.b16 %v1380, %v1344
  %v1849 = vpack.c.b16 %v1381, %v1345
  %v1850 = vpack.c.b16 %v1382, %v1346
  %v1851 = vpack.c.b16 %v1383, %v1347
  %v1852 = vpack.c.b16 %v1384, %v1348
  %v1853 = vpack.c.b16 %v1385, %v1349
  %v1854 = vpack.c.b16 %v1386, %v1350
  %v1855 = vpack.c.b16 %v1387, %v1351
  %v1856 = vpack.c.b16 %v1388, %v1352
  %v1857 = vpack.c.b16 %v1389, %v1353
  %v1858 = vpack.c.b16 %v1426, %v1390
  %v1859 = vpack.c.b16 %v1427, %v1391
  %v1860 = vpack.c.b16 %v1428, %v1392
  %v1861 = vpack.c.b16 %v1429, %v1393
  %v1862 = vpack.c.b16 %v1430, %v1394
  %v1863 = vpack.c.b16 %v1431, %v1395
  %v1864 = vpack.c.b16 %v1432, %v1396
  %v1865 = vpack.c.b16 %v1433, %v1397
  %v1866 = vpack.c.b16 %v1434, %v1398
  %v1867 = vpack.c.b16 %v1435, %v1399
  %v1868 = vpack.c.b16 %v1436, %v1400
  %v1869 = vpack.c.b16 %v1437, %v1401
  %v1870 = vpack.c.b16 %v1438, %v1402
  %v1871 = vpack.c.b16 %v1439, %v1403
  %v1872 = vpack.c.b16 %v1440, %v1404
  %v1873 = vpack.c.b16 %v1441, %v1405
  %v1874 = vpack.c.b16 %v1442, %v1406
  %v1875 = vpack.c.b16 %v1443, %v1407
  %v1876 = vpack.c.b16 %v1444, %v1408
  %v1877 = vpack.c.b16 %v1445, %v1409
  %v1878 = vpack.c.b16 %v1446, %v1410
  %v1879 = vpack.c.b16 %v1447, %v1411
  %v1880 = vpack.c.b16 %v1448, %v1412
  %v1881 = vpack.c.b16 %v1449, %v1413
  %v1882 = vpack.c.b16 %v1450, %v1414
  %v1883 = vpack.c.b16 %v1451, %v1415
  %v1884 = vpack.c.b16 %v1452, %v1416
  %v1885 = vpack.c.b16 %v1453, %v1417
  %v1886 = vpack.c.b16 %v1454, %v1418
  %v1887 = vpack.c.b16 %v1455, %v1419
  %v1888 = vpack.c.b16 %v1456, %v1420
  %v1889 = vpack.c.b16 %v1457, %v1421
  %v1890 = vpack.c.b16 %v1458, %v1422
  %v1891 = vpack.c.b16 %v1459, %v1423
  %v1892 = vpack.c.b16 %v1460, %v1424
  %v1893 = vpack.c.b16 %v1461, %v1425
  %v1894 = vpack.c.b16 %v1498, %v1462
  %v1895 = vpack.c.b16 %v1499, %v1463
  %v1896 = vpack.c.b16 %v1500, %v1464
  %v1897 = vpack.c.b16 %v1501, %v1465
  %v1898 = vpack.c.b16 %v1502, %v1466
  %v1899 = vpack.c.b16 %v1503, %v1467
  %v1900 = vpack.c.b16 %v1504, %v1468
  %v1901 = vpack.c.b16 %v1505, %v1469
  %v1902 = vpack.c.b16 %v1506, %v1470
  %v1903 = vpack.c.b16 %v1507, %v1471
  %v1904 = vpack.c.b16 %v1508, %v1472
  %v1905 = vpack.c.b16 %v1509, %v1473
  %v1906 = vpack.c.b16 %v1510, %v1474
  %v1907 = vpack.c.b16 %v1511, %v1475
  %v1908 = vpack.c.b16 %v1512, %v1476
  %v1909 = vpack.c.b16 %v1513, %v1477
  %v1910 = vpack.c.b16 %v1514, %v1478
  %v1911 = vpack.c.b16 %v1515, %v1479
  %v1912 = vpack.c.b16 %v1516, %v1480
  %v1913 = vpack.c.b16 %v1517, %v1481
  %v1914 = vpack.c.b16 %v1518, %v1482
  %v1915 = vpack.c.b16 %v1519, %v1483
  %v1916 = vpack.c.b16 %v1520, %v1484
  %v1917 = vpack.c.b16 %v1521, %v1485
  %v1918 = vpack.c.b16 %v1522, %v1486
  %v1919 = vpack.c.b16 %v1523, %v1487
  %v1920 = vpack.c.b16 %v1524, %v1488
  %v1921 = vpack.c.b16 %v1525, %v1489
  %v1922 = vpack.c.b16 %v1526, %v1490
  %v1923 = vpack.c.b16 %v1527, %v1491
  %v1924 = vpack.c.b16 %v1528, %v1492
  %v1925 = vpack.c.b16 %v1529, %v1493
  %v1926 = vpack.c.b16 %v1530, %v1494
  %v1927 = vpack.c.b16 %v1531, %v1495
  %v1928 = vpack.c.b16 %v1532, %v1496
  %v1929 = vpack.c.b16 %v1533, %v1497
  %v1930 = vpack.c.b16 %v1570, %v1534
  %v1931 = vpack.c.b16 %v1571, %v1535
  %v1932 = vpack.c.b16 %v1572, %v1536
  %v1933 = vpack.c.b16 %v1573, %v1537
  %v1934 = vpack.c.b16 %v1574, %v1538
  %v1935 = vpack.c.b16 %v1575, %v1539
  %v1936 = vpack.c.b16 %v1576, %v1540
  %v1937 = vpack.c.b16 %v1577, %v1541
  %v1938 = vpack.c.b16 %v1578, %v1542
  %v1939 = vpack.c.b16 %v1579, %v1543
  %v1940 = vpack.c.b16 %v1580, %v1544
  %v1941 = vpack.c.b16 %v1581, %v1545
  %v1942 = vpack.c.b16 %v1582, %v1546
  %v1943 = vpack.c.b16 %v1583, %v1547
  %v1944 = vpack.c.b16 %v1584, %v1548
  %v1945 = vpack.c.b16 %v1585, %v1549
  %v1946 = vpack.c.b16 %v1586, %v1550
  %v1947 = vpack.c.b16 %v1587, %v1551
  %v1948 = vpack.c.b16 %v1588, %v1552
  %v1949 = vpack.c.b16 %v1589, %v1553
  %v1950 = vpack.c.b16 %v1590, %v1554
  %v1951 = vpack.c.b16 %v1591, %v1555
  %v1952 = vpack.c.b16 %v1592, %v1556
  %v1953 = vpack.c.b16 %v1593, %v1557
  %v1954 = vpack.c.b16 %v1594, %v1558
  %v1955 = vpack.c.b16 %v1595, %v1559
  %v1956 = vpack.c.b16 %v1596, %v1560
  %v1957 = vpack.c.b16 %v1597, %v1561
  %v1958 = vpack.c.b16 %v1598, %v1562
  %v1959 = vpack.c.b16 %v1599, %v1563
  %v1960 = vpack.c.b16 %v1600, %v1564
  %v1961 = vpack.c.b16 %v1601, %v1565
  %v1962 = vpack.c.b16 %v1602, %v1566
  %v1963 = vpack.c.b16 %v1603, %v1567
  %v1964 = vpack.c.b16 %v1604, %v1568
  %v1965 = vpack.c.b16 %v1605, %v1569
  %v1966 = vpack.c.b16 %v1642, %v1606
  %v1967 = vpack.c.b16 %v1643, %v1607
  %v1968 = vpack.c.b16 %v1644, %v1608
  %v1969 = vpack.c.b16 %v1645, %v1609
  %v1970 = vpack.c.b16 %v1646, %v1610
  %v1971 = vpack.c.b16 %v1647, %v1611
  %v1972 = vpack.c.b16 %v1648, %v1612
  %v1973 = vpack.c.b16 %v1649, %v1613
  %v1974 = vpack.c.b16 %v1650, %v1614
  %v1975 = vpack.c.b16 %v1651, %v1615
  %v1976 = vpack.c.b16 %v1652, %v1616
  %v1977 = vpack.c.b16 %v1653, %v1617
  %v1978 = vpack.c.b16 %v1654, %v1618
  %v1979 = vpack.c.b16 %v1655, %v1619
  %v1980 = vpack.c.b16 %v1656, %v1620
  %v1981 = vpack.c.b16 %v1657, %v1621
  %v1982 = vpack.c.b16 %v1658, %v1622
  %v1983 = vpack.c.b16 %v1659, %v1623
  %v1984 = vpack.c.b16 %v1660, %v1624
  %v1985 = vpack.c.b16 %v1661, %v1625
  %v1986 = vpack.c.b16 %v1662, %v1626
  %v1987 = vpack.c.b16 %v1663, %v1627
  %v1988 = vpack.c.b16 %v1664, %v1628
  %v1989 = vpack.c.b16 %v1665, %v1629
  %v1990 = vpack.c.b16 %v1666, %v1630
  %v1991 = vpack.c.b16 %v1667, %v1631
  %v1992 = vpack.c.b16 %v1668, %v1632
  %v1993 = vpack.c.b16 %v1669, %v1633
  %v1994 = vpack.c.b16 %v1670, %v1634
  %v1995 = vpack.c.b16 %v1671, %v1635
  %v1996 = vpack.c.b16 %v1672, %v1636
  %v1997 = vpack.c.b16 %v1673, %v1637
  %v1998 = vpack.c.b16 %v1674, %v1638
  %v1999 = vpack.c.b16 %v1675, %v1639
  %v2000 = vpack.c.b16 %v1676, %v1640
  %v2001 = vpack.c.b16 %v1677, %v1641
  %v2002 = vpack.c.b16 %v1714, %v1678
  %v2003 = vpack.c.b16 %v1715, %v1679
  %v2004 = vpack.c.b16 %v1716, %v1680
  %v2005 = vpack.c.b16 %v1717, %v1681
  %v2006 = vpack.c.b16 %v1718, %v1682
  %v2007 = vpack.c.b16 %v1719, %v1683
  %v2008 = vpack.c.b16 %v1720, %v1684
  %v2009 = vpack.c.b16 %v1721, %v1685
  %v2010 = vpack.c.b16 %v1722, %v1686
  %v2011 = vpack.c.b16 %v1723, %v1687
  %v2012 = vpack.c.b16 %v1724, %v1688
  %v2013 = vpack.c.b16 %v1725, %v1689
  %v2014 = vpack.c.b16 %v1726, %v1690
  %v2015 = vpack.c.b16 %v1727, %v1691
  %v2016 = vpack.c.b16 %v1728, %v1692
  %v2017 = vpack.c.b16 %v1729, %v1693
  %v2018 = vpack.c.b16 %v1730, %v1694
  %v2019 = vpack.c.b16 %v1731, %v1695
  %v2020 = vpack.c.b16 %v1732, %v1696
  %v2021 = vpack.c.b16 %v1733, %v1697
  %v2022 = vpack.c.b16 %v1734, %v1698
  %v2023 = vpack.c.b16 %v1735, %v1699
  %v2024 = vpack.c.b16 %v1736, %v1700
  %v2025 = vpack.c.b16 %v1737, %v1701
  %v2026 = vpack.c.b16 %v1738, %v1702
  %v2027 = vpack.c.b16 %v1739, %v1703
  %v2028 = vpack.c.b16 %v1740, %v1704
  %v2029 = vpack.c.b16 %v1741, %v1705
  %v2030 = vpack.c.b16 %v1742, %v1706
  %v2031 = vpack.c.b16 %v1743, %v1707
  %v2032 = vpack.c.b16 %v1744, %v1708
  %v2033 = vpack.c.b16 %v1745, %v1709
  %v2034 = vpack.c.b16 %v1746, %v1710
  %v2035 = vpack.c.b16 %v1747, %v1711
  %v2036 = vpack.c.b16 %v1748, %v1712
  %v2037 = vpack.c.b16 %v1749, %v1713
  %v2902 = vunpack.c.l.b16 %v303
  %v2903 = vunpack.c.l.b16 %v304
  %v2904 = vunpack.c.l.b16 %v305
  %v2905 = vunpack.c.l.b16 %v306
  %v2906 = vunpack.c.l.b16 %v307
  %v2907 = vunpack.c.l.b16 %v308
  %v2908 = vunpack.c.l.b16 %v309
  %v2909 = vunpack.c.l.b16 %v310
  %v2910 = vunpack.c.l.b16 %v311
  %v2911 = vunpack.c.l.b16 %v312
  %v2912 = vunpack.c.l.b16 %v313
  %v2913 = vunpack.c.l.b16 %v314
  %v2914 = vunpack.c.l.b16 %v315
  %v2915 = vunpack.c.l.b16 %v316
  %v2916 = vunpack.c.l.b16 %v317
  %v2917 = vunpack.c.l.b16 %v318
  %v2918 = vunpack.c.l.b16 %v319
  %v2919 = vunpack.c.l.b16 %v320
  %v2920 = vunpack.c.l.b16 %v321
  %v2921 = vunpack.c.l.b16 %v322
  %v2922 = vunpack.c.l.b16 %v323
  %v2923 = vunpack.c.l.b16 %v324
  %v2924 = vunpack.c.l.b16 %v325
  %v2925 = vunpack.c.l.b16 %v326
  %v2926 = vunpack.c.l.b16 %v327
  %v2927 = vunpack.c.l.b16 %v328
  %v2928 = vunpack.c.l.b16 %v329
  %v2929 = vunpack.c.l.b16 %v330
  %v2930 = vunpack.c.l.b16 %v331
  %v2931 = vunpack.c.l.b16 %v332
  %v2932 = vunpack.c.l.b16 %v333
  %v2933 = vunpack.c.l.b16 %v334
  %v2934 = vunpack.c.l.b16 %v335
  %v2935 = vunpack.c.l.b16 %v336
  %v2936 = vunpack.c.l.b16 %v337
  %v2937 = vunpack.c.l.b16 %v338
  %v2938 = vunpack.c.l.b16 %v339
  %v2939 = vunpack.c.l.b16 %v340
  %v2940 = vunpack.c.l.b16 %v341
  %v2941 = vunpack.c.l.b16 %v342
  %v2942 = vunpack.c.l.b16 %v343
  %v2943 = vunpack.c.l.b16 %v344
  %v2944 = vunpack.c.l.b16 %v345
  %v2945 = vunpack.c.l.b16 %v346
  %v2946 = vunpack.c.l.b16 %v347
  %v2947 = vunpack.c.l.b16 %v348
  %v2948 = vunpack.c.l.b16 %v349
  %v2949 = vunpack.c.l.b16 %v350
  %v2950 = vunpack.c.l.b16 %v351
  %v2951 = vunpack.c.l.b16 %v352
  %v2952 = vunpack.c.l.b16 %v353
  %v2953 = vunpack.c.l.b16 %v354
  %v2954 = vunpack.c.l.b16 %v355
  %v2955 = vunpack.c.l.b16 %v356
  %v2956 = vunpack.c.l.b16 %v357
  %v2957 = vunpack.c.l.b16 %v358
  %v2958 = vunpack.c.l.b16 %v359
  %v2959 = vunpack.c.l.b16 %v360
  %v2960 = vunpack.c.l.b16 %v361
  %v2961 = vunpack.c.l.b16 %v362
  %v2962 = vunpack.c.l.b16 %v363
  %v2963 = vunpack.c.l.b16 %v364
  %v2964 = vunpack.c.l.b16 %v365
  %v2965 = vunpack.c.l.b16 %v366
  %v2966 = vunpack.c.l.b16 %v367
  %v2967 = vunpack.c.l.b16 %v368
  %v2968 = vunpack.c.l.b16 %v369
  %v2969 = vunpack.c.l.b16 %v370
  %v2970 = vunpack.c.l.b16 %v371
  %v2971 = vunpack.c.l.b16 %v372
  %v2972 = vunpack.c.l.b16 %v373
  %v2973 = vunpack.c.l.b16 %v374
  %v2974 = vunpack.c.l.b16 %v375
  %v2975 = vunpack.c.l.b16 %v376
  %v2976 = vunpack.c.l.b16 %v377
  %v2977 = vunpack.c.l.b16 %v378
  %v2978 = vunpack.c.l.b16 %v379
  %v2979 = vunpack.c.l.b16 %v380
  %v2980 = vunpack.c.l.b16 %v381
  %v2981 = vunpack.c.l.b16 %v382
  %v2982 = vunpack.c.l.b16 %v383
  %v2983 = vunpack.c.l.b16 %v384
  %v2984 = vunpack.c.l.b16 %v385
  %v2985 = vunpack.c.l.b16 %v386
  %v2986 = vunpack.c.l.b16 %v387
  %v2987 = vunpack.c.l.b16 %v388
  %v2988 = vunpack.c.l.b16 %v389
  %v2989 = vunpack.c.l.b16 %v390
  %v2990 = vunpack.c.l.b16 %v391
  %v2991 = vunpack.c.l.b16 %v392
  %v2992 = vunpack.c.l.b16 %v393
  %v2993 = vunpack.c.l.b16 %v394
  %v2994 = vunpack.c.l.b16 %v395
  %v2995 = vunpack.c.l.b16 %v396
  %v2996 = vunpack.c.l.b16 %v397
  %v2997 = vunpack.c.l.b16 %v398
  %v2998 = vunpack.c.l.b16 %v399
  %v2999 = vunpack.c.l.b16 %v400
  %v3000 = vunpack.c.l.b16 %v401
  %v3001 = vunpack.c.l.b16 %v402
  %v3002 = vunpack.c.l.b16 %v403
  %v3003 = vunpack.c.l.b16 %v404
  %v3004 = vunpack.c.l.b16 %v405
  %v3005 = vunpack.c.l.b16 %v406
  %v3006 = vunpack.c.l.b16 %v407
  %v3007 = vunpack.c.l.b16 %v408
  %v3008 = vunpack.c.l.b16 %v409
  %v3009 = vunpack.c.l.b16 %v410
  %v3010 = vunpack.c.l.b16 %v411
  %v3011 = vunpack.c.l.b16 %v412
  %v3012 = vunpack.c.l.b16 %v413
  %v3013 = vunpack.c.l.b16 %v414
  %v3014 = vunpack.c.l.b16 %v415
  %v3015 = vunpack.c.l.b16 %v416
  %v3016 = vunpack.c.l.b16 %v417
  %v3017 = vunpack.c.l.b16 %v418
  %v3018 = vunpack.c.l.b16 %v419
  %v3019 = vunpack.c.l.b16 %v420
  %v3020 = vunpack.c.l.b16 %v421
  %v3021 = vunpack.c.l.b16 %v422
  %v3022 = vunpack.c.l.b16 %v423
  %v3023 = vunpack.c.l.b16 %v424
  %v3024 = vunpack.c.l.b16 %v425
  %v3025 = vunpack.c.l.b16 %v426
  %v3026 = vunpack.c.l.b16 %v427
  %v3027 = vunpack.c.l.b16 %v428
  %v3028 = vunpack.c.l.b16 %v429
  %v3029 = vunpack.c.l.b16 %v430
  %v3030 = vunpack.c.l.b16 %v431
  %v3031 = vunpack.c.l.b16 %v432
  %v3032 = vunpack.c.l.b16 %v433
  %v3033 = vunpack.c.l.b16 %v434
  %v3034 = vunpack.c.l.b16 %v435
  %v3035 = vunpack.c.l.b16 %v436
  %v3036 = vunpack.c.l.b16 %v437
  %v3037 = vunpack.c.l.b16 %v438
  %v3038 = vunpack.c.l.b16 %v439
  %v3039 = vunpack.c.l.b16 %v440
  %v3040 = vunpack.c.l.b16 %v441
  %v3041 = vunpack.c.l.b16 %v442
  %v3042 = vunpack.c.l.b16 %v443
  %v3043 = vunpack.c.l.b16 %v444
  %v3044 = vunpack.c.l.b16 %v445
  %v3045 = vunpack.c.l.b16 %v446
  %v3046 = vunpack.c.l.b16 %v447
  %v3047 = vunpack.c.l.b16 %v448
  %v3048 = vunpack.c.l.b16 %v449
  %v3049 = vunpack.c.l.b16 %v450
  %v3050 = vunpack.c.l.b16 %v451
  %v3051 = vunpack.c.l.b16 %v452
  %v3052 = vunpack.c.l.b16 %v453
  %v3053 = vunpack.c.l.b16 %v454
  %v3054 = vunpack.c.l.b16 %v455
  %v3055 = vunpack.c.l.b16 %v456
  %v3056 = vunpack.c.l.b16 %v457
  %v3057 = vunpack.c.l.b16 %v458
  %v3058 = vunpack.c.l.b16 %v459
  %v3059 = vunpack.c.l.b16 %v460
  %v3060 = vunpack.c.l.b16 %v461
  %v3061 = vunpack.c.l.b16 %v462
  %v3062 = vunpack.c.l.b16 %v463
  %v3063 = vunpack.c.l.b16 %v464
  %v3064 = vunpack.c.l.b16 %v465
  %v3065 = vunpack.c.l.b16 %v466
  %v3066 = vunpack.c.l.b16 %v467
  %v3067 = vunpack.c.l.b16 %v468
  %v3068 = vunpack.c.l.b16 %v469
  %v3069 = vunpack.c.l.b16 %v470
  %v3070 = vunpack.c.l.b16 %v471
  %v3071 = vunpack.c.l.b16 %v472
  %v3072 = vunpack.c.l.b16 %v473
  %v3073 = vunpack.c.l.b16 %v474
  %v3074 = vunpack.c.l.b16 %v475
  %v3075 = vunpack.c.l.b16 %v476
  %v3076 = vunpack.c.l.b16 %v477
  %v3077 = vunpack.c.l.b16 %v478
  %v3078 = vunpack.c.l.b16 %v479
  %v3079 = vunpack.c.l.b16 %v480
  %v3080 = vunpack.c.l.b16 %v481
  %v3081 = vunpack.c.l.b16 %v482
  %v3082 = vunpack.c.l.b16 %v483
  %v3083 = vunpack.c.l.b16 %v484
  %v3084 = vunpack.c.l.b16 %v485
  %v3085 = vunpack.c.l.b16 %v486
  %v3086 = vunpack.c.l.b16 %v487
  %v3087 = vunpack.c.l.b16 %v488
  %v3088 = vunpack.c.l.b16 %v489
  %v3089 = vunpack.c.l.b16 %v490
  %v3090 = vunpack.c.l.b16 %v491
  %v3091 = vunpack.c.l.b16 %v492
  %v3092 = vunpack.c.l.b16 %v493
  %v3093 = vunpack.c.l.b16 %v494
  %v3094 = vunpack.c.l.b16 %v495
  %v3095 = vunpack.c.l.b16 %v496
  %v3096 = vunpack.c.l.b16 %v497
  %v3097 = vunpack.c.l.b16 %v498
  %v3098 = vunpack.c.l.b16 %v499
  %v3099 = vunpack.c.l.b16 %v500
  %v3100 = vunpack.c.l.b16 %v501
  %v3101 = vunpack.c.l.b16 %v502
  %v3102 = vunpack.c.l.b16 %v503
  %v3103 = vunpack.c.l.b16 %v504
  %v3104 = vunpack.c.l.b16 %v505
  %v3105 = vunpack.c.l.b16 %v506
  %v3106 = vunpack.c.l.b16 %v507
  %v3107 = vunpack.c.l.b16 %v508
  %v3108 = vunpack.c.l.b16 %v509
  %v3109 = vunpack.c.l.b16 %v510
  %v3110 = vunpack.c.l.b16 %v511
  %v3111 = vunpack.c.l.b16 %v512
  %v3112 = vunpack.c.l.b16 %v513
  %v3113 = vunpack.c.l.b16 %v514
  %v3114 = vunpack.c.l.b16 %v515
  %v3115 = vunpack.c.l.b16 %v516
  %v3116 = vunpack.c.l.b16 %v517
  %v3117 = vunpack.c.l.b16 %v518
  %v3118 = vunpack.c.l.b16 %v519
  %v3119 = vunpack.c.l.b16 %v520
  %v3120 = vunpack.c.l.b16 %v521
  %v3121 = vunpack.c.l.b16 %v522
  %v3122 = vunpack.c.l.b16 %v523
  %v3123 = vunpack.c.l.b16 %v524
  %v3124 = vunpack.c.l.b16 %v525
  %v3125 = vunpack.c.l.b16 %v526
  %v3126 = vunpack.c.l.b16 %v527
  %v3127 = vunpack.c.l.b16 %v528
  %v3128 = vunpack.c.l.b16 %v529
  %v3129 = vunpack.c.l.b16 %v530
  %v3130 = vunpack.c.l.b16 %v531
  %v3131 = vunpack.c.l.b16 %v532
  %v3132 = vunpack.c.l.b16 %v533
  %v3133 = vunpack.c.l.b16 %v534
  %v3134 = vunpack.c.l.b16 %v535
  %v3135 = vunpack.c.l.b16 %v536
  %v3136 = vunpack.c.l.b16 %v537
  %v3137 = vunpack.c.l.b16 %v538
  %v3138 = vunpack.c.l.b16 %v539
  %v3139 = vunpack.c.l.b16 %v540
  %v3140 = vunpack.c.l.b16 %v541
  %v3141 = vunpack.c.l.b16 %v542
  %v3142 = vunpack.c.l.b16 %v543
  %v3143 = vunpack.c.l.b16 %v544
  %v3144 = vunpack.c.l.b16 %v545
  %v3145 = vunpack.c.l.b16 %v546
  %v3146 = vunpack.c.l.b16 %v547
  %v3147 = vunpack.c.l.b16 %v548
  %v3148 = vunpack.c.l.b16 %v549
  %v3149 = vunpack.c.l.b16 %v550
  %v3150 = vunpack.c.l.b16 %v551
  %v3151 = vunpack.c.l.b16 %v552
  %v3152 = vunpack.c.l.b16 %v553
  %v3153 = vunpack.c.l.b16 %v554
  %v3154 = vunpack.c.l.b16 %v555
  %v3155 = vunpack.c.l.b16 %v556
  %v3156 = vunpack.c.l.b16 %v557
  %v3157 = vunpack.c.l.b16 %v558
  %v3158 = vunpack.c.l.b16 %v559
  %v3159 = vunpack.c.l.b16 %v560
  %v3160 = vunpack.c.l.b16 %v561
  %v3161 = vunpack.c.l.b16 %v562
  %v3162 = vunpack.c.l.b16 %v563
  %v3163 = vunpack.c.l.b16 %v564
  %v3164 = vunpack.c.l.b16 %v565
  %v3165 = vunpack.c.l.b16 %v566
  %v3166 = vunpack.c.l.b16 %v567
  %v3167 = vunpack.c.l.b16 %v568
  %v3168 = vunpack.c.l.b16 %v569
  %v3169 = vunpack.c.l.b16 %v570
  %v3170 = vunpack.c.l.b16 %v571
  %v3171 = vunpack.c.l.b16 %v572
  %v3172 = vunpack.c.l.b16 %v573
  %v3173 = vunpack.c.l.b16 %v574
  %v3174 = vunpack.c.l.b16 %v575
  %v3175 = vunpack.c.l.b16 %v576
  %v3176 = vunpack.c.l.b16 %v577
  %v3177 = vunpack.c.l.b16 %v578
  %v3178 = vunpack.c.l.b16 %v579
  %v3179 = vunpack.c.l.b16 %v580
  %v3180 = vunpack.c.l.b16 %v581
  %v3181 = vunpack.c.l.b16 %v582
  %v3182 = vunpack.c.l.b16 %v583
  %v3183 = vunpack.c.l.b16 %v584
  %v3184 = vunpack.c.l.b16 %v585
  %v3185 = vunpack.c.l.b16 %v586
  %v3186 = vunpack.c.l.b16 %v587
  %v3187 = vunpack.c.l.b16 %v588
  %v3188 = vunpack.c.l.b16 %v589
  %v3189 = vunpack.c.l.b16 %v590
  %v3190 = vunpack.c.l.b16 %v591
  %v3191 = vunpack.c.l.b16 %v592
  %v3192 = vunpack.c.l.b16 %v593
  %v3193 = vunpack.c.l.b16 %v594
  %v3194 = vunpack.c.l.b16 %v595
  %v3195 = vunpack.c.l.b16 %v596
  %v3196 = vunpack.c.l.b16 %v597
  %v3197 = vunpack.c.l.b16 %v598
  %v3198 = vunpack.c.l.b16 %v599
  %v3199 = vunpack.c.l.b16 %v600
  %v3200 = vunpack.c.l.b16 %v601
  %v3201 = vunpack.c.l.b16 %v602
  %v3202 = vunpack.c.l.b16 %v603
  %v3203 = vunpack.c.l.b16 %v604
  %v3204 = vunpack.c.l.b16 %v605
  %v3205 = vunpack.c.l.b16 %v606
  %v3206 = vunpack.c.l.b16 %v607
  %v3207 = vunpack.c.l.b16 %v608
  %v3208 = vunpack.c.l.b16 %v609
  %v3209 = vunpack.c.l.b16 %v610
  %v3210 = vunpack.c.l.b16 %v611
  %v3211 = vunpack.c.l.b16 %v612
  %v3212 = vunpack.c.l.b16 %v613
  %v3213 = vunpack.c.l.b16 %v614
  %v3214 = vunpack.c.l.b16 %v615
  %v3215 = vunpack.c.l.b16 %v616
  %v3216 = vunpack.c.l.b16 %v617
  %v3217 = vunpack.c.l.b16 %v618
  %v3218 = vunpack.c.l.b16 %v619
  %v3219 = vunpack.c.l.b16 %v620
  %v3220 = vunpack.c.l.b16 %v621
  %v3221 = vunpack.c.l.b16 %v622
  %v3222 = vunpack.c.l.b16 %v623
  %v3223 = vunpack.c.l.b16 %v624
  %v3224 = vunpack.c.l.b16 %v625
  %v3225 = vunpack.c.l.b16 %v626
  %v3226 = vunpack.c.l.b16 %v627
  %v3227 = vunpack.c.l.b16 %v628
  %v3228 = vunpack.c.l.b16 %v629
  %v3229 = vunpack.c.l.b16 %v630
  %v3230 = vunpack.c.l.b16 %v631
  %v3231 = vunpack.c.l.b16 %v632
  %v3232 = vunpack.c.l.b16 %v633
  %v3233 = vunpack.c.l.b16 %v634
  %v3234 = vunpack.c.l.b16 %v635
  %v3235 = vunpack.c.l.b16 %v636
  %v3236 = vunpack.c.l.b16 %v637
  %v3237 = vunpack.c.l.b16 %v638
  %v3238 = vunpack.c.l.b16 %v639
  %v3239 = vunpack.c.l.b16 %v640
  %v3240 = vunpack.c.l.b16 %v641
  %v3241 = vunpack.c.l.b16 %v642
  %v3242 = vunpack.c.l.b16 %v643
  %v3243 = vunpack.c.l.b16 %v644
  %v3244 = vunpack.c.l.b16 %v645
  %v3245 = vunpack.c.l.b16 %v646
  %v3246 = vunpack.c.l.b16 %v647
  %v3247 = vunpack.c.l.b16 %v648
  %v3248 = vunpack.c.l.b16 %v649
  %v3249 = vunpack.c.l.b16 %v650
  %v3250 = vunpack.c.l.b16 %v651
  %v3251 = vunpack.c.l.b16 %v652
  %v3252 = vunpack.c.l.b16 %v653
  %v3253 = vunpack.c.l.b16 %v654
  %v3254 = vunpack.c.l.b16 %v655
  %v3255 = vunpack.c.l.b16 %v656
  %v3256 = vunpack.c.l.b16 %v657
  %v3257 = vunpack.c.l.b16 %v658
  %v3258 = vunpack.c.l.b16 %v659
  %v3259 = vunpack.c.l.b16 %v660
  %v3260 = vunpack.c.l.b16 %v661
  %v3261 = vunpack.c.l.b16 %v662
  %v3262 = vunpack.c.l.b16 %v663
  %v3263 = vunpack.c.l.b16 %v664
  %v3264 = vunpack.c.l.b16 %v665
  %v3265 = vunpack.c.l.b16 %v666
  %v3266 = vunpack.c.l.b16 %v667
  %v3267 = vunpack.c.l.b16 %v668
  %v3268 = vunpack.c.l.b16 %v669
  %v3269 = vunpack.c.l.b16 %v670
  %v3270 = vunpack.c.l.b16 %v671
  %v3271 = vunpack.c.l.b16 %v672
  %v3272 = vunpack.c.l.b16 %v673
  %v3273 = vunpack.c.l.b16 %v674
  %v3274 = vunpack.c.l.b16 %v675
  %v3275 = vunpack.c.l.b16 %v676
  %v3276 = vunpack.c.l.b16 %v677
  %v3277 = vunpack.c.l.b16 %v678
  %v3278 = vunpack.c.l.b16 %v679
  %v3279 = vunpack.c.l.b16 %v680
  %v3280 = vunpack.c.l.b16 %v681
  %v3281 = vunpack.c.l.b16 %v682
  %v3282 = vunpack.c.l.b16 %v683
  %v3283 = vunpack.c.l.b16 %v684
  %v3284 = vunpack.c.l.b16 %v685
  %v3285 = vunpack.c.l.b16 %v686
  %v3286 = vunpack.c.l.b16 %v687
  %v3287 = vunpack.c.l.b16 %v688
  %v3288 = vunpack.c.l.b16 %v689
  %v3289 = vunpack.c.l.b16 %v690
  %v3290 = vunpack.c.l.b16 %v691
  %v3291 = vunpack.c.l.b16 %v692
  %v3292 = vunpack.c.l.b16 %v693
  %v3293 = vunpack.c.l.b16 %v694
  %v3294 = vunpack.c.l.b16 %v695
  %v3295 = vunpack.c.l.b16 %v696
  %v3296 = vunpack.c.l.b16 %v697
  %v3297 = vunpack.c.l.b16 %v698
  %v3298 = vunpack.c.l.b16 %v699
  %v3299 = vunpack.c.l.b16 %v700
  %v3300 = vunpack.c.l.b16 %v701
  %v3301 = vunpack.c.l.b16 %v702
  %v3302 = vunpack.c.l.b16 %v703
  %v3303 = vunpack.c.l.b16 %v704
  %v3304 = vunpack.c.l.b16 %v705
  %v3305 = vunpack.c.l.b16 %v706
  %v3306 = vunpack.c.l.b16 %v707
  %v3307 = vunpack.c.l.b16 %v708
  %v3308 = vunpack.c.l.b16 %v709
  %v3309 = vunpack.c.l.b16 %v710
  %v3310 = vunpack.c.l.b16 %v711
  %v3311 = vunpack.c.l.b16 %v712
  %v3312 = vunpack.c.l.b16 %v713
  %v3313 = vunpack.c.l.b16 %v714
  %v3314 = vunpack.c.l.b16 %v715
  %v3315 = vunpack.c.l.b16 %v716
  %v3316 = vunpack.c.l.b16 %v717
  %v3317 = vunpack.c.l.b16 %v718
  %v3318 = vunpack.c.l.b16 %v719
  %v3319 = vunpack.c.l.b16 %v720
  %v3320 = vunpack.c.l.b16 %v721
  %v3321 = vunpack.c.l.b16 %v722
  %v3322 = vunpack.c.l.b16 %v723
  %v3323 = vunpack.c.l.b16 %v724
  %v3324 = vunpack.c.l.b16 %v725
  %v3325 = vunpack.c.l.b16 %v726
  %v3326 = vunpack.c.l.b16 %v727
  %v3327 = vunpack.c.l.b16 %v728
  %v3328 = vunpack.c.l.b16 %v729
  %v3329 = vunpack.c.l.b16 %v730
  %v3330 = vunpack.c.l.b16 %v731
  %v3331 = vunpack.c.l.b16 %v732
  %v3332 = vunpack.c.l.b16 %v733
  %v3333 = vunpack.c.l.b16 %v734
  %v3334 = vunpack.c.l.b16 %v735
  %v3335 = vunpack.c.l.b16 %v736
  %v3336 = vunpack.c.l.b16 %v737
  %v3337 = vunpack.c.l.b16 %v738
  %v3338 = vunpack.c.l.b16 %v739
  %v3339 = vunpack.c.l.b16 %v740
  %v3340 = vunpack.c.l.b16 %v741
  %v3341 = vunpack.c.l.b16 %v742
  %v3342 = vunpack.c.l.b16 %v743
  %v3343 = vunpack.c.l.b16 %v744
  %v3344 = vunpack.c.l.b16 %v745
  %v3345 = vunpack.c.l.b16 %v746
  %v3346 = vunpack.c.l.b16 %v747
  %v3347 = vunpack.c.l.b16 %v748
  %v3348 = vunpack.c.l.b16 %v749
  %v3349 = vunpack.c.l.b16 %v750
  %v3350 = vunpack.c.l.b16 %v751
  %v3351 = vunpack.c.l.b16 %v752
  %v3352 = vunpack.c.l.b16 %v753
  %v3353 = vunpack.c.l.b16 %v754
  %v3354 = vunpack.c.l.b16 %v755
  %v3355 = vunpack.c.l.b16 %v756
  %v3356 = vunpack.c.l.b16 %v757
  %v3357 = vunpack.c.l.b16 %v758
  %v3358 = vunpack.c.l.b16 %v759
  %v3359 = vunpack.c.l.b16 %v760
  %v3360 = vunpack.c.l.b16 %v761
  %v3361 = vunpack.c.l.b16 %v762
  %v3362 = vunpack.c.l.b16 %v763
  %v3363 = vunpack.c.l.b16 %v764
  %v3364 = vunpack.c.l.b16 %v765
  %v3365 = vunpack.c.l.b16 %v766
  %v3366 = vunpack.c.l.b16 %v767
  %v3367 = vunpack.c.l.b16 %v768
  %v3368 = vunpack.c.l.b16 %v769
  %v3369 = vunpack.c.l.b16 %v770
  %v3370 = vunpack.c.l.b16 %v771
  %v3371 = vunpack.c.l.b16 %v772
  %v3372 = vunpack.c.l.b16 %v773
  %v3373 = vunpack.c.l.b16 %v774
  %v3374 = vunpack.c.l.b16 %v775
  %v3375 = vunpack.c.l.b16 %v776
  %v3376 = vunpack.c.l.b16 %v777
  %v3377 = vunpack.c.l.b16 %v778
  %v3378 = vunpack.c.l.b16 %v779
  %v3379 = vunpack.c.l.b16 %v780
  %v3380 = vunpack.c.l.b16 %v781
  %v3381 = vunpack.c.l.b16 %v782
  %v3382 = vunpack.c.l.b16 %v783
  %v3383 = vunpack.c.l.b16 %v784
  %v3384 = vunpack.c.l.b16 %v785
  %v3385 = vunpack.c.l.b16 %v786
  %v3386 = vunpack.c.l.b16 %v787
  %v3387 = vunpack.c.l.b16 %v788
  %v3388 = vunpack.c.l.b16 %v789
  %v3389 = vunpack.c.l.b16 %v790
  %v3390 = vunpack.c.l.b16 %v791
  %v3391 = vunpack.c.l.b16 %v792
  %v3392 = vunpack.c.l.b16 %v793
  %v3393 = vunpack.c.l.b16 %v794
  %v3394 = vunpack.c.l.b16 %v795
  %v3395 = vunpack.c.l.b16 %v796
  %v3396 = vunpack.c.l.b16 %v797
  %v3397 = vunpack.c.l.b16 %v798
  %v3398 = vunpack.c.l.b16 %v799
  %v3399 = vunpack.c.l.b16 %v800
  %v3400 = vunpack.c.l.b16 %v801
  %v3401 = vunpack.c.l.b16 %v802
  %v3402 = vunpack.c.l.b16 %v803
  %v3403 = vunpack.c.l.b16 %v804
  %v3404 = vunpack.c.l.b16 %v805
  %v3405 = vunpack.c.l.b16 %v806
  %v3406 = vunpack.c.l.b16 %v807
  %v3407 = vunpack.c.l.b16 %v808
  %v3408 = vunpack.c.l.b16 %v809
  %v3409 = vunpack.c.l.b16 %v810
  %v3410 = vunpack.c.l.b16 %v811
  %v3411 = vunpack.c.l.b16 %v812
  %v3412 = vunpack.c.l.b16 %v813
  %v3413 = vunpack.c.l.b16 %v814
  %v3414 = vunpack.c.l.b16 %v815
  %v3415 = vunpack.c.l.b16 %v816
  %v3416 = vunpack.c.l.b16 %v817
  %v3417 = vunpack.c.l.b16 %v818
  %v3418 = vunpack.c.l.b16 %v819
  %v3419 = vunpack.c.l.b16 %v820
  %v3420 = vunpack.c.l.b16 %v821
  %v3421 = vunpack.c.l.b16 %v822
  %v3422 = vunpack.c.l.b16 %v823
  %v3423 = vunpack.c.l.b16 %v824
  %v3424 = vunpack.c.l.b16 %v825
  %v3425 = vunpack.c.l.b16 %v826
  %v3426 = vunpack.c.l.b16 %v827
  %v3427 = vunpack.c.l.b16 %v828
  %v3428 = vunpack.c.l.b16 %v829
  %v3429 = vunpack.c.l.b16 %v830
  %v3430 = vunpack.c.l.b16 %v831
  %v3431 = vunpack.c.l.b16 %v832
  %v3432 = vunpack.c.l.b16 %v833
  %v3433 = vunpack.c.l.b16 %v834
  %v3434 = vunpack.c.l.b16 %v835
  %v3435 = vunpack.c.l.b16 %v836
  %v3436 = vunpack.c.l.b16 %v837
  %v3437 = vunpack.c.l.b16 %v838
  %v3438 = vunpack.c.l.b16 %v839
  %v3439 = vunpack.c.l.b16 %v840
  %v3440 = vunpack.c.l.b16 %v841
  %v3441 = vunpack.c.l.b16 %v842
  %v3442 = vunpack.c.l.b16 %v843
  %v3443 = vunpack.c.l.b16 %v844
  %v3444 = vunpack.c.l.b16 %v845
  %v3445 = vunpack.c.l.b16 %v846
  %v3446 = vunpack.c.l.b16 %v847
  %v3447 = vunpack.c.l.b16 %v848
  %v3448 = vunpack.c.l.b16 %v849
  %v3449 = vunpack.c.l.b16 %v850
  %v3450 = vunpack.c.l.b16 %v851
  %v3451 = vunpack.c.l.b16 %v852
  %v3452 = vunpack.c.l.b16 %v853
  %v3453 = vunpack.c.l.b16 %v854
  %v3454 = vunpack.c.l.b16 %v855
  %v3455 = vunpack.c.l.b16 %v856
  %v3456 = vunpack.c.l.b16 %v857
  %v3457 = vunpack.c.l.b16 %v858
  %v3458 = vunpack.c.l.b16 %v859
  %v3459 = vunpack.c.l.b16 %v860
  %v3460 = vunpack.c.l.b16 %v861
  %v3461 = vunpack.c.l.b16 %v862
  %v3462 = vunpack.c.l.b16 %v863
  %v3463 = vunpack.c.l.b16 %v864
  %v3464 = vunpack.c.l.b16 %v865
  %v3465 = vunpack.c.l.b16 %v866
  %v3466 = vunpack.c.l.b16 %v867
  %v3467 = vunpack.c.l.b16 %v868
  %v3468 = vunpack.c.l.b16 %v869
  %v3469 = vunpack.c.l.b16 %v870
  %v3470 = vunpack.c.l.b16 %v871
  %v3471 = vunpack.c.l.b16 %v872
  %v3472 = vunpack.c.l.b16 %v873
  %v3473 = vunpack.c.l.b16 %v874
  %v3474 = vunpack.c.l.b16 %v875
  %v3475 = vunpack.c.l.b16 %v876
  %v3476 = vunpack.c.l.b16 %v877
  %v3477 = vunpack.c.l.b16 %v878
  %v3478 = vpack.c.b16 %v2903, %v2902
  %v3479 = vpack.c.b16 %v2905, %v2904
  %v3480 = vpack.c.b16 %v2907, %v2906
  %v3481 = vpack.c.b16 %v2909, %v2908
  %v3482 = vpack.c.b16 %v2911, %v2910
  %v3483 = vpack.c.b16 %v2913, %v2912
  %v3484 = vpack.c.b16 %v2915, %v2914
  %v3485 = vpack.c.b16 %v2917, %v2916
  %v3486 = vpack.c.b16 %v2919, %v2918
  %v3487 = vpack.c.b16 %v2921, %v2920
  %v3488 = vpack.c.b16 %v2923, %v2922
  %v3489 = vpack.c.b16 %v2925, %v2924
  %v3490 = vpack.c.b16 %v2927, %v2926
  %v3491 = vpack.c.b16 %v2929, %v2928
  %v3492 = vpack.c.b16 %v2931, %v2930
  %v3493 = vpack.c.b16 %v2933, %v2932
  %v3494 = vpack.c.b16 %v2935, %v2934
  %v3495 = vpack.c.b16 %v2937, %v2936
  %v3496 = vpack.c.b16 %v2939, %v2938
  %v3497 = vpack.c.b16 %v2941, %v2940
  %v3498 = vpack.c.b16 %v2943, %v2942
  %v3499 = vpack.c.b16 %v2945, %v2944
  %v3500 = vpack.c.b16 %v2947, %v2946
  %v3501 = vpack.c.b16 %v2949, %v2948
  %v3502 = vpack.c.b16 %v2951, %v2950
  %v3503 = vpack.c.b16 %v2953, %v2952
  %v3504 = vpack.c.b16 %v2955, %v2954
  %v3505 = vpack.c.b16 %v2957, %v2956
  %v3506 = vpack.c.b16 %v2959, %v2958
  %v3507 = vpack.c.b16 %v2961, %v2960
  %v3508 = vpack.c.b16 %v2963, %v2962
  %v3509 = vpack.c.b16 %v2965, %v2964
  %v3510 = vpack.c.b16 %v2967, %v2966
  %v3511 = vpack.c.b16 %v2969, %v2968
  %v3512 = vpack.c.b16 %v2971, %v2970
  %v3513 = vpack.c.b16 %v2973, %v2972
  %v3514 = vpack.c.b16 %v2975, %v2974
  %v3515 = vpack.c.b16 %v2977, %v2976
  %v3516 = vpack.c.b16 %v2979, %v2978
  %v3517 = vpack.c.b16 %v2981, %v2980
  %v3518 = vpack.c.b16 %v2983, %v2982
  %v3519 = vpack.c.b16 %v2985, %v2984
  %v3520 = vpack.c.b16 %v2987, %v2986
  %v3521 = vpack.c.b16 %v2989, %v2988
  %v3522 = vpack.c.b16 %v2991, %v2990
  %v3523 = vpack.c.b16 %v2993, %v2992
  %v3524 = vpack.c.b16 %v2995, %v2994
  %v3525 = vpack.c.b16 %v2997, %v2996
  %v3526 = vpack.c.b16 %v2999, %v2998
  %v3527 = vpack.c.b16 %v3001, %v3000
  %v3528 = vpack.c.b16 %v3003, %v3002
  %v3529 = vpack.c.b16 %v3005, %v3004
  %v3530 = vpack.c.b16 %v3007, %v3006
  %v3531 = vpack.c.b16 %v3009, %v3008
  %v3532 = vpack.c.b16 %v3011, %v3010
  %v3533 = vpack.c.b16 %v3013, %v3012
  %v3534 = vpack.c.b16 %v3015, %v3014
  %v3535 = vpack.c.b16 %v3017, %v3016
  %v3536 = vpack.c.b16 %v3019, %v3018
  %v3537 = vpack.c.b16 %v3021, %v3020
  %v3538 = vpack.c.b16 %v3023, %v3022
  %v3539 = vpack.c.b16 %v3025, %v3024
  %v3540 = vpack.c.b16 %v3027, %v3026
  %v3541 = vpack.c.b16 %v3029, %v3028
  %v3542 = vpack.c.b16 %v3031, %v3030
  %v3543 = vpack.c.b16 %v3033, %v3032
  %v3544 = vpack.c.b16 %v3035, %v3034
  %v3545 = vpack.c.b16 %v3037, %v3036
  %v3546 = vpack.c.b16 %v3039, %v3038
  %v3547 = vpack.c.b16 %v3041, %v3040
  %v3548 = vpack.c.b16 %v3043, %v3042
  %v3549 = vpack.c.b16 %v3045, %v3044
  %v3550 = vpack.c.b16 %v3047, %v3046
  %v3551 = vpack.c.b16 %v3049, %v3048
  %v3552 = vpack.c.b16 %v3051, %v3050
  %v3553 = vpack.c.b16 %v3053, %v3052
  %v3554 = vpack.c.b16 %v3055, %v3054
  %v3555 = vpack.c.b16 %v3057, %v3056
  %v3556 = vpack.c.b16 %v3059, %v3058
  %v3557 = vpack.c.b16 %v3061, %v3060
  %v3558 = vpack.c.b16 %v3063, %v3062
  %v3559 = vpack.c.b16 %v3065, %v3064
  %v3560 = vpack.c.b16 %v3067, %v3066
  %v3561 = vpack.c.b16 %v3069, %v3068
  %v3562 = vpack.c.b16 %v3071, %v3070
  %v3563 = vpack.c.b16 %v3073, %v3072
  %v3564 = vpack.c.b16 %v3075, %v3074
  %v3565 = vpack.c.b16 %v3077, %v3076
  %v3566 = vpack.c.b16 %v3079, %v3078
  %v3567 = vpack.c.b16 %v3081, %v3080
  %v3568 = vpack.c.b16 %v3083, %v3082
  %v3569 = vpack.c.b16 %v3085, %v3084
  %v3570 = vpack.c.b16 %v3087, %v3086
  %v3571 = vpack.c.b16 %v3089, %v3088
  %v3572 = vpack.c.b16 %v3091, %v3090
  %v3573 = vpack.c.b16 %v3093, %v3092
  %v3574 = vpack.c.b16 %v3095, %v3094
  %v3575 = vpack.c.b16 %v3097, %v3096
  %v3576 = vpack.c.b16 %v3099, %v3098
  %v3577 = vpack.c.b16 %v3101, %v3100
  %v3578 = vpack.c.b16 %v3103, %v3102
  %v3579 = vpack.c.b16 %v3105, %v3104
  %v3580 = vpack.c.b16 %v3107, %v3106
  %v3581 = vpack.c.b16 %v3109, %v3108
  %v3582 = vpack.c.b16 %v3111, %v3110
  %v3583 = vpack.c.b16 %v3113, %v3112
  %v3584 = vpack.c.b16 %v3115, %v3114
  %v3585 = vpack.c.b16 %v3117, %v3116
  %v3586 = vpack.c.b16 %v3119, %v3118
  %v3587 = vpack.c.b16 %v3121, %v3120
  %v3588 = vpack.c.b16 %v3123, %v3122
  %v3589 = vpack.c.b16 %v3125, %v3124
  %v3590 = vpack.c.b16 %v3127, %v3126
  %v3591 = vpack.c.b16 %v3129, %v3128
  %v3592 = vpack.c.b16 %v3131, %v3130
  %v3593 = vpack.c.b16 %v3133, %v3132
  %v3594 = vpack.c.b16 %v3135, %v3134
  %v3595 = vpack.c.b16 %v3137, %v3136
  %v3596 = vpack.c.b16 %v3139, %v3138
  %v3597 = vpack.c.b16 %v3141, %v3140
  %v3598 = vpack.c.b16 %v3143, %v3142
  %v3599 = vpack.c.b16 %v3145, %v3144
  %v3600 = vpack.c.b16 %v3147, %v3146
  %v3601 = vpack.c.b16 %v3149, %v3148
  %v3602 = vpack.c.b16 %v3151, %v3150
  %v3603 = vpack.c.b16 %v3153, %v3152
  %v3604 = vpack.c.b16 %v3155, %v3154
  %v3605 = vpack.c.b16 %v3157, %v3156
  %v3606 = vpack.c.b16 %v3159, %v3158
  %v3607 = vpack.c.b16 %v3161, %v3160
  %v3608 = vpack.c.b16 %v3163, %v3162
  %v3609 = vpack.c.b16 %v3165, %v3164
  %v3610 = vpack.c.b16 %v3167, %v3166
  %v3611 = vpack.c.b16 %v3169, %v3168
  %v3612 = vpack.c.b16 %v3171, %v3170
  %v3613 = vpack.c.b16 %v3173, %v3172
  %v3614 = vpack.c.b16 %v3175, %v3174
  %v3615 = vpack.c.b16 %v3177, %v3176
  %v3616 = vpack.c.b16 %v3179, %v3178
  %v3617 = vpack.c.b16 %v3181, %v3180
  %v3618 = vpack.c.b16 %v3183, %v3182
  %v3619 = vpack.c.b16 %v3185, %v3184
  %v3620 = vpack.c.b16 %v3187, %v3186
  %v3621 = vpack.c.b16 %v3189, %v3188
  %v3622 = vpack.c.b16 %v3191, %v3190
  %v3623 = vpack.c.b16 %v3193, %v3192
  %v3624 = vpack.c.b16 %v3195, %v3194
  %v3625 = vpack.c.b16 %v3197, %v3196
  %v3626 = vpack.c.b16 %v3199, %v3198
  %v3627 = vpack.c.b16 %v3201, %v3200
  %v3628 = vpack.c.b16 %v3203, %v3202
  %v3629 = vpack.c.b16 %v3205, %v3204
  %v3630 = vpack.c.b16 %v3207, %v3206
  %v3631 = vpack.c.b16 %v3209, %v3208
  %v3632 = vpack.c.b16 %v3211, %v3210
  %v3633 = vpack.c.b16 %v3213, %v3212
  %v3634 = vpack.c.b16 %v3215, %v3214
  %v3635 = vpack.c.b16 %v3217, %v3216
  %v3636 = vpack.c.b16 %v3219, %v3218
  %v3637 = vpack.c.b16 %v3221, %v3220
  %v3638 = vpack.c.b16 %v3223, %v3222
  %v3639 = vpack.c.b16 %v3225, %v3224
  %v3640 = vpack.c.b16 %v3227, %v3226
  %v3641 = vpack.c.b16 %v3229, %v3228
  %v3642 = vpack.c.b16 %v3231, %v3230
  %v3643 = vpack.c.b16 %v3233, %v3232
  %v3644 = vpack.c.b16 %v3235, %v3234
  %v3645 = vpack.c.b16 %v3237, %v3236
  %v3646 = vpack.c.b16 %v3239, %v3238
  %v3647 = vpack.c.b16 %v3241, %v3240
  %v3648 = vpack.c.b16 %v3243, %v3242
  %v3649 = vpack.c.b16 %v3245, %v3244
  %v3650 = vpack.c.b16 %v3247, %v3246
  %v3651 = vpack.c.b16 %v3249, %v3248
  %v3652 = vpack.c.b16 %v3251, %v3250
  %v3653 = vpack.c.b16 %v3253, %v3252
  %v3654 = vpack.c.b16 %v3255, %v3254
  %v3655 = vpack.c.b16 %v3257, %v3256
  %v3656 = vpack.c.b16 %v3259, %v3258
  %v3657 = vpack.c.b16 %v3261, %v3260
  %v3658 = vpack.c.b16 %v3263, %v3262
  %v3659 = vpack.c.b16 %v3265, %v3264
  %v3660 = vpack.c.b16 %v3267, %v3266
  %v3661 = vpack.c.b16 %v3269, %v3268
  %v3662 = vpack.c.b16 %v3271, %v3270
  %v3663 = vpack.c.b16 %v3273, %v3272
  %v3664 = vpack.c.b16 %v3275, %v3274
  %v3665 = vpack.c.b16 %v3277, %v3276
  %v3666 = vpack.c.b16 %v3279, %v3278
  %v3667 = vpack.c.b16 %v3281, %v3280
  %v3668 = vpack.c.b16 %v3283, %v3282
  %v3669 = vpack.c.b16 %v3285, %v3284
  %v3670 = vpack.c.b16 %v3287, %v3286
  %v3671 = vpack.c.b16 %v3289, %v3288
  %v3672 = vpack.c.b16 %v3291, %v3290
  %v3673 = vpack.c.b16 %v3293, %v3292
  %v3674 = vpack.c.b16 %v3295, %v3294
  %v3675 = vpack.c.b16 %v3297, %v3296
  %v3676 = vpack.c.b16 %v3299, %v3298
  %v3677 = vpack.c.b16 %v3301, %v3300
  %v3678 = vpack.c.b16 %v3303, %v3302
  %v3679 = vpack.c.b16 %v3305, %v3304
  %v3680 = vpack.c.b16 %v3307, %v3306
  %v3681 = vpack.c.b16 %v3309, %v3308
  %v3682 = vpack.c.b16 %v3311, %v3310
  %v3683 = vpack.c.b16 %v3313, %v3312
  %v3684 = vpack.c.b16 %v3315, %v3314
  %v3685 = vpack.c.b16 %v3317, %v3316
  %v3686 = vpack.c.b16 %v3319, %v3318
  %v3687 = vpack.c.b16 %v3321, %v3320
  %v3688 = vpack.c.b16 %v3323, %v3322
  %v3689 = vpack.c.b16 %v3325, %v3324
  %v3690 = vpack.c.b16 %v3327, %v3326
  %v3691 = vpack.c.b16 %v3329, %v3328
  %v3692 = vpack.c.b16 %v3331, %v3330
  %v3693 = vpack.c.b16 %v3333, %v3332
  %v3694 = vpack.c.b16 %v3335, %v3334
  %v3695 = vpack.c.b16 %v3337, %v3336
  %v3696 = vpack.c.b16 %v3339, %v3338
  %v3697 = vpack.c.b16 %v3341, %v3340
  %v3698 = vpack.c.b16 %v3343, %v3342
  %v3699 = vpack.c.b16 %v3345, %v3344
  %v3700 = vpack.c.b16 %v3347, %v3346
  %v3701 = vpack.c.b16 %v3349, %v3348
  %v3702 = vpack.c.b16 %v3351, %v3350
  %v3703 = vpack.c.b16 %v3353, %v3352
  %v3704 = vpack.c.b16 %v3355, %v3354
  %v3705 = vpack.c.b16 %v3357, %v3356
  %v3706 = vpack.c.b16 %v3359, %v3358
  %v3707 = vpack.c.b16 %v3361, %v3360
  %v3708 = vpack.c.b16 %v3363, %v3362
  %v3709 = vpack.c.b16 %v3365, %v3364
  %v3710 = vpack.c.b16 %v3367, %v3366
  %v3711 = vpack.c.b16 %v3369, %v3368
  %v3712 = vpack.c.b16 %v3371, %v3370
  %v3713 = vpack.c.b16 %v3373, %v3372
  %v3714 = vpack.c.b16 %v3375, %v3374
  %v3715 = vpack.c.b16 %v3377, %v3376
  %v3716 = vpack.c.b16 %v3379, %v3378
  %v3717 = vpack.c.b16 %v3381, %v3380
  %v3718 = vpack.c.b16 %v3383, %v3382
  %v3719 = vpack.c.b16 %v3385, %v3384
  %v3720 = vpack.c.b16 %v3387, %v3386
  %v3721 = vpack.c.b16 %v3389, %v3388
  %v3722 = vpack.c.b16 %v3391, %v3390
  %v3723 = vpack.c.b16 %v3393, %v3392
  %v3724 = vpack.c.b16 %v3395, %v3394
  %v3725 = vpack.c.b16 %v3397, %v3396
  %v3726 = vpack.c.b16 %v3399, %v3398
  %v3727 = vpack.c.b16 %v3401, %v3400
  %v3728 = vpack.c.b16 %v3403, %v3402
  %v3729 = vpack.c.b16 %v3405, %v3404
  %v3730 = vpack.c.b16 %v3407, %v3406
  %v3731 = vpack.c.b16 %v3409, %v3408
  %v3732 = vpack.c.b16 %v3411, %v3410
  %v3733 = vpack.c.b16 %v3413, %v3412
  %v3734 = vpack.c.b16 %v3415, %v3414
  %v3735 = vpack.c.b16 %v3417, %v3416
  %v3736 = vpack.c.b16 %v3419, %v3418
  %v3737 = vpack.c.b16 %v3421, %v3420
  %v3738 = vpack.c.b16 %v3423, %v3422
  %v3739 = vpack.c.b16 %v3425, %v3424
  %v3740 = vpack.c.b16 %v3427, %v3426
  %v3741 = vpack.c.b16 %v3429, %v3428
  %v3742 = vpack.c.b16 %v3431, %v3430
  %v3743 = vpack.c.b16 %v3433, %v3432
  %v3744 = vpack.c.b16 %v3435, %v3434
  %v3745 = vpack.c.b16 %v3437, %v3436
  %v3746 = vpack.c.b16 %v3439, %v3438
  %v3747 = vpack.c.b16 %v3441, %v3440
  %v3748 = vpack.c.b16 %v3443, %v3442
  %v3749 = vpack.c.b16 %v3445, %v3444
  %v3750 = vpack.c.b16 %v3447, %v3446
  %v3751 = vpack.c.b16 %v3449, %v3448
  %v3752 = vpack.c.b16 %v3451, %v3450
  %v3753 = vpack.c.b16 %v3453, %v3452
  %v3754 = vpack.c.b16 %v3455, %v3454
  %v3755 = vpack.c.b16 %v3457, %v3456
  %v3756 = vpack.c.b16 %v3459, %v3458
  %v3757 = vpack.c.b16 %v3461, %v3460
  %v3758 = vpack.c.b16 %v3463, %v3462
  %v3759 = vpack.c.b16 %v3465, %v3464
  %v3760 = vpack.c.b16 %v3467, %v3466
  %v3761 = vpack.c.b16 %v3469, %v3468
  %v3762 = vpack.c.b16 %v3471, %v3470
  %v3763 = vpack.c.b16 %v3473, %v3472
  %v3764 = vpack.c.b16 %v3475, %v3474
  %v3765 = vpack.c.b16 %v3477, %v3476
  %4054 = vmatprep.subr.bf16.mxu0 0
  %4055 = vmatpush1.bf16.msra.mxu0 %v3478
  %4056 = vmatprep.subr.bf16.mxu0 0
  %4057 = vmatpush1.bf16.msra.mxu0 %v3479
  %4058 = vmatprep.subr.bf16.mxu0 0
  %4059 = vmatpush1.bf16.msra.mxu0 %v3480
  %4060 = vmatprep.subr.bf16.mxu0 0
  %4061 = vmatpush1.bf16.msra.mxu0 %v3481
  %4062 = vmatprep.subr.bf16.mxu0 0
  %4063 = vmatpush1.bf16.msra.mxu0 %v3482
  %4064 = vmatprep.subr.bf16.mxu0 0
  %4065 = vmatpush1.bf16.msra.mxu0 %v3483
  %4066 = vmatprep.subr.bf16.mxu0 0
  %4067 = vmatpush1.bf16.msra.mxu0 %v3484
  %4068 = vmatprep.subr.bf16.mxu0 0
  %4069 = vmatpush1.bf16.msra.mxu0 %v3485
  %4070 = vmatprep.subr.bf16.mxu0 0
  %4071 = vmatpush1.bf16.msra.mxu0 %v3486
  %4072 = vmatprep.subr.bf16.mxu0 0
  %4073 = vmatpush1.bf16.msra.mxu0 %v3487
  %4074 = vmatprep.subr.bf16.mxu0 0
  %4075 = vmatpush1.bf16.msra.mxu0 %v3488
  %4076 = vmatprep.subr.bf16.mxu0 0
  %4077 = vmatpush1.bf16.msra.mxu0 %v3489
  %4078 = vmatprep.subr.bf16.mxu0 0
  %4079 = vmatpush1.bf16.msra.mxu0 %v3490
  %4080 = vmatprep.subr.bf16.mxu0 0
  %4081 = vmatpush1.bf16.msra.mxu0 %v3491
  %4082 = vmatprep.subr.bf16.mxu0 0
  %4083 = vmatpush1.bf16.msra.mxu0 %v3492
  %4084 = vmatprep.subr.bf16.mxu0 0
  %4085 = vmatpush1.bf16.msra.mxu0 %v3493
  %4086 = vmatprep.mubr.bf16.mxu0 %v1751
  %4087 = vmatmul.mubr.bf16.gmra.mrb[0].mxu0 %v1750
  %v4088 = vpop.f32.mrb[0].mxu0
  %v4089 = vadd.f32 %v884, %v4088
  %v4090 = vpop.f32.mrb[0].mxu0
  %v4091 = vpop.f32.mrb[0].mxu0
  %v4092 = vadd.f32 %v884, %v4091
  %v4093 = vpop.f32.mrb[0].mxu0
  %4094 = vmatprep.mubr.bf16.mxu0 %v1787
  %4095 = vmatmul.mubr.bf16.gmra.mrb[0].mxu0 %v1786
  %v4096 = vpop.f32.mrb[0].mxu0
  %v4097 = vadd.f32 %v884, %v4096
  %v4098 = vpop.f32.mrb[0].mxu0
  %v4099 = vpop.f32.mrb[0].mxu0
  %v4100 = vadd.f32 %v884, %v4099
  %v4101 = vpop.f32.mrb[0].mxu0
  %4102 = vmatprep.mubr.bf16.mxu0 %v1823
  %4103 = vmatmul.mubr.bf16.gmra.mrb[0].mxu0 %v1822
  %v4104 = vpop.f32.mrb[0].mxu0
  %v4105 = vadd.f32 %v884, %v4104
  %v4106 = vpop.f32.mrb[0].mxu0
  %v4107 = vpop.f32.mrb[0].mxu0
  %v4108 = vadd.f32 %v884, %v4107
  %v4109 = vpop.f32.mrb[0].mxu0
  %4110 = vmatprep.mubr.bf16.mxu0 %v1859
  %4111 = vmatmul.mubr.bf16.gmra.mrb[0].mxu0 %v1858
  %v4112 = vpop.f32.mrb[0].mxu0
  %v4113 = vadd.f32 %v884, %v4112
  %v4114 = vpop.f32.mrb[0].mxu0
  %v4115 = vpop.f32.mrb[0].mxu0
  %v4116 = vadd.f32 %v884, %v4115
  %v4117 = vpop.f32.mrb[0].mxu0
  %4118 = vmatprep.mubr.bf16.mxu0 %v1895
  %4119 = vmatmul.mubr.bf16.gmra.mrb[0].mxu0 %v1894
  %v4120 = vpop.f32.mrb[0].mxu0
  %v4121 = vadd.f32 %v884, %v4120
  %v4122 = vpop.f32.mrb[0].mxu0
  %v4123 = vpop.f32.mrb[0].mxu0
  %v4124 = vadd.f32 %v884, %v4123
  %v4125 = vpop.f32.mrb[0].mxu0
  %4126 = vmatprep.mubr.bf16.mxu0 %v1931
  %4127 = vmatmul.mubr.bf16.gmra.mrb[0].mxu0 %v1930
  %v4128 = vpop.f32.mrb[0].mxu0
  %v4129 = vadd.f32 %v884, %v4128
  %v4130 = vpop.f32.mrb[0].mxu0
  %v4131 = vpop.f32.mrb[0].mxu0
  %v4132 = vadd.f32 %v884, %v4131
  %v4133 = vpop.f32.mrb[0].mxu0
  %4134 = vmatprep.mubr.bf16.mxu0 %v1967
  %4135 = vmatmul.mubr.bf16.gmra.mrb[0].mxu0 %v1966
  %v4136 = vpop.f32.mrb[0].mxu0
  %v4137 = vadd.f32 %v884, %v4136
  %v4138 = vpop.f32.mrb[0].mxu0
  %v4139 = vpop.f32.mrb[0].mxu0
  %v4140 = vadd.f32 %v884, %v4139
  %v4141 = vpop.f32.mrb[0].mxu0
  %4142 = vmatprep.mubr.bf16.mxu0 %v2003
  %4143 = vmatmul.mubr.bf16.gmra.mrb[0].mxu0 %v2002
  %v4144 = vpop.f32.mrb[0].mxu0
  %v4145 = vadd.f32 %v884, %v4144
  %v4146 = vpop.f32.mrb[0].mxu0
  %v4147 = vpop.f32.mrb[0].mxu0
  %v4148 = vadd.f32 %v884, %v4147
  %v4149 = vpop.f32.mrb[0].mxu0
  %4150 = vdwg.mxu0
  %4151 = vmatprep.subr.bf16.mxu0 0
  %4152 = vmatpush1.bf16.msra.mxu0 %v3494
  %4153 = vmatprep.subr.bf16.mxu0 0
  %4154 = vmatpush1.bf16.msra.mxu0 %v3495
  %4155 = vmatprep.subr.bf16.mxu0 0
  %4156 = vmatpush1.bf16.msra.mxu0 %v3496
  %4157 = vmatprep.subr.bf16.mxu0 0
  %4158 = vmatpush1.bf16.msra.mxu0 %v3497
  %4159 = vmatprep.subr.bf16.mxu0 0
  %4160 = vmatpush1.bf16.msra.mxu0 %v3498
  %4161 = vmatprep.subr.bf16.mxu0 0
  %4162 = vmatpush1.bf16.msra.mxu0 %v3499
  %4163 = vmatprep.subr.bf16.mxu0 0
  %4164 = vmatpush1.bf16.msra.mxu0 %v3500
  %4165 = vmatprep.subr.bf16.mxu0 0
  %4166 = vmatpush1.bf16.msra.mxu0 %v3501
  %4167 = vmatprep.subr.bf16.mxu0 0
  %4168 = vmatpush1.bf16.msra.mxu0 %v3502
  %4169 = vmatprep.subr.bf16.mxu0 0
  %4170 = vmatpush1.bf16.msra.mxu0 %v3503
  %4171 = vmatprep.subr.bf16.mxu0 0
  %4172 = vmatpush1.bf16.msra.mxu0 %v3504
  %4173 = vmatprep.subr.bf16.mxu0 0
  %4174 = vmatpush1.bf16.msra.mxu0 %v3505
  %4175 = vmatprep.subr.bf16.mxu0 0
  %4176 = vmatpush1.bf16.msra.mxu0 %v3506
  %4177 = vmatprep.subr.bf16.mxu0 0
  %4178 = vmatpush1.bf16.msra.mxu0 %v3507
  %4179 = vmatprep.subr.bf16.mxu0 0
  %4180 = vmatpush1.bf16.msra.mxu0 %v3508
  %4181 = vmatprep.subr.bf16.mxu0 0
  %4182 = vmatpush1.bf16.msra.mxu0 %v3509
  %4183 = vmatprep.mubr.bf16.mxu0 %v1753
  %4184 = vmatmul.mubr.bf16.gmra.mrb[0].mxu0 %v1752
  %v4185 = vpop.f32.mrb[0].mxu0
  %v4186 = vadd.f32 %v4089, %v4185
  %v4187 = vpop.f32.mrb[0].mxu0
  %v4188 = vpop.f32.mrb[0].mxu0
  %v4189 = vadd.f32 %v4092, %v4188
  %v4190 = vpop.f32.mrb[0].mxu0
  %4191 = vmatprep.mubr.bf16.mxu0 %v1789
  %4192 = vmatmul.mubr.bf16.gmra.mrb[0].mxu0 %v1788
  %v4193 = vpop.f32.mrb[0].mxu0
  %v4194 = vadd.f32 %v4097, %v4193
  %v4195 = vpop.f32.mrb[0].mxu0
  %v4196 = vpop.f32.mrb[0].mxu0
  %v4197 = vadd.f32 %v4100, %v4196
  %v4198 = vpop.f32.mrb[0].mxu0
  %4199 = vmatprep.mubr.bf16.mxu0 %v1825
  %4200 = vmatmul.mubr.bf16.gmra.mrb[0].mxu0 %v1824
  %v4201 = vpop.f32.mrb[0].mxu0
  %v4202 = vadd.f32 %v4105, %v4201
  %v4203 = vpop.f32.mrb[0].mxu0
  %v4204 = vpop.f32.mrb[0].mxu0
  %v4205 = vadd.f32 %v4108, %v4204
  %v4206 = vpop.f32.mrb[0].mxu0
  %4207 = vmatprep.mubr.bf16.mxu0 %v1861
  %4208 = vmatmul.mubr.bf16.gmra.mrb[0].mxu0 %v1860
  %v4209 = vpop.f32.mrb[0].mxu0
  %v4210 = vadd.f32 %v4113, %v4209
  %v4211 = vpop.f32.mrb[0].mxu0
  %v4212 = vpop.f32.mrb[0].mxu0
  %v4213 = vadd.f32 %v4116, %v4212
  %v4214 = vpop.f32.mrb[0].mxu0
  %4215 = vmatprep.mubr.bf16.mxu0 %v1897
  %4216 = vmatmul.mubr.bf16.gmra.mrb[0].mxu0 %v1896
  %v4217 = vpop.f32.mrb[0].mxu0
  %v4218 = vadd.f32 %v4121, %v4217
  %v4219 = vpop.f32.mrb[0].mxu0
  %v4220 = vpop.f32.mrb[0].mxu0
  %v4221 = vadd.f32 %v4124, %v4220
  %v4222 = vpop.f32.mrb[0].mxu0
  %4223 = vmatprep.mubr.bf16.mxu0 %v1933
  %4224 = vmatmul.mubr.bf16.gmra.mrb[0].mxu0 %v1932
  %v4225 = vpop.f32.mrb[0].mxu0
  %v4226 = vadd.f32 %v4129, %v4225
  %v4227 = vpop.f32.mrb[0].mxu0
  %v4228 = vpop.f32.mrb[0].mxu0
  %v4229 = vadd.f32 %v4132, %v4228
  %v4230 = vpop.f32.mrb[0].mxu0
  %4231 = vmatprep.mubr.bf16.mxu0 %v1969
  %4232 = vmatmul.mubr.bf16.gmra.mrb[0].mxu0 %v1968
  %v4233 = vpop.f32.mrb[0].mxu0
  %v4234 = vadd.f32 %v4137, %v4233
  %v4235 = vpop.f32.mrb[0].mxu0
  %v4236 = vpop.f32.mrb[0].mxu0
  %v4237 = vadd.f32 %v4140, %v4236
  %v4238 = vpop.f32.mrb[0].mxu0
  %4239 = vmatprep.mubr.bf16.mxu0 %v2005
  %4240 = vmatmul.mubr.bf16.gmra.mrb[0].mxu0 %v2004
  %v4241 = vpop.f32.mrb[0].mxu0
  %v4242 = vadd.f32 %v4145, %v4241
  %v4243 = vpop.f32.mrb[0].mxu0
  %v4244 = vpop.f32.mrb[0].mxu0
  %v4245 = vadd.f32 %v4148, %v4244
  %v4246 = vpop.f32.mrb[0].mxu0
  %4247 = vdwg.mxu0
  %4248 = vmatprep.subr.bf16.mxu0 0
  %4249 = vmatpush1.bf16.msra.mxu0 %v3510
  %4250 = vmatprep.subr.bf16.mxu0 0
  %4251 = vmatpush1.bf16.msra.mxu0 %v3511
  %4252 = vmatprep.subr.bf16.mxu0 0
  %4253 = vmatpush1.bf16.msra.mxu0 %v3512
  %4254 = vmatprep.subr.bf16.mxu0 0
  %4255 = vmatpush1.bf16.msra.mxu0 %v3513
  %4256 = vmatprep.subr.bf16.mxu0 0
  %4257 = vmatpush1.bf16.msra.mxu0 %v3514
  %4258 = vmatprep.subr.bf16.mxu0 0
  %4259 = vmatpush1.bf16.msra.mxu0 %v3515
  %4260 = vmatprep.subr.bf16.mxu0 0
  %4261 = vmatpush1.bf16.msra.mxu0 %v3516
  %4262 = vmatprep.subr.bf16.mxu0 0
  %4263 = vmatpush1.bf16.msra.mxu0 %v3517
  %4264 = vmatprep.subr.bf16.mxu0 0
  %4265 = vmatpush1.bf16.msra.mxu0 %v3518
  %4266 = vmatprep.subr.bf16.mxu0 0
  %4267 = vmatpush1.bf16.msra.mxu0 %v3519
  %4268 = vmatprep.subr.bf16.mxu0 0
  %4269 = vmatpush1.bf16.msra.mxu0 %v3520
  %4270 = vmatprep.subr.bf16.mxu0 0
  %4271 = vmatpush1.bf16.msra.mxu0 %v3521
  %4272 = vmatprep.subr.bf16.mxu0 0
  %4273 = vmatpush1.bf16.msra.mxu0 %v3522
  %4274 = vmatprep.subr.bf16.mxu0 0
  %4275 = vmatpush1.bf16.msra.mxu0 %v3523
  %4276 = vmatprep.subr.bf16.mxu0 0
  %4277 = vmatpush1.bf16.msra.mxu0 %v3524
  %4278 = vmatprep.subr.bf16.mxu0 0
  %4279 = vmatpush1.bf16.msra.mxu0 %v3525
  %4280 = vmatprep.mubr.bf16.mxu0 %v1755
  %4281 = vmatmul.mubr.bf16.gmra.mrb[0].mxu0 %v1754
  %v4282 = vpop.f32.mrb[0].mxu0
  %v4283 = vadd.f32 %v4186, %v4282
  %v4284 = vpop.f32.mrb[0].mxu0
  %v4285 = vpop.f32.mrb[0].mxu0
  %v4286 = vadd.f32 %v4189, %v4285
  %v4287 = vpop.f32.mrb[0].mxu0
  %4288 = vmatprep.mubr.bf16.mxu0 %v1791
  %4289 = vmatmul.mubr.bf16.gmra.mrb[0].mxu0 %v1790
  %v4290 = vpop.f32.mrb[0].mxu0
  %v4291 = vadd.f32 %v4194, %v4290
  %v4292 = vpop.f32.mrb[0].mxu0
  %v4293 = vpop.f32.mrb[0].mxu0
  %v4294 = vadd.f32 %v4197, %v4293
  %v4295 = vpop.f32.mrb[0].mxu0
  %4296 = vmatprep.mubr.bf16.mxu0 %v1827
  %4297 = vmatmul.mubr.bf16.gmra.mrb[0].mxu0 %v1826
  %v4298 = vpop.f32.mrb[0].mxu0
  %v4299 = vadd.f32 %v4202, %v4298
  %v4300 = vpop.f32.mrb[0].mxu0
  %v4301 = vpop.f32.mrb[0].mxu0
  %v4302 = vadd.f32 %v4205, %v4301
  %v4303 = vpop.f32.mrb[0].mxu0
  %4304 = vmatprep.mubr.bf16.mxu0 %v1863
  %4305 = vmatmul.mubr.bf16.gmra.mrb[0].mxu0 %v1862
  %v4306 = vpop.f32.mrb[0].mxu0
  %v4307 = vadd.f32 %v4210, %v4306
  %v4308 = vpop.f32.mrb[0].mxu0
  %v4309 = vpop.f32.mrb[0].mxu0
  %v4310 = vadd.f32 %v4213, %v4309
  %v4311 = vpop.f32.mrb[0].mxu0
  %4312 = vmatprep.mubr.bf16.mxu0 %v1899
  %4313 = vmatmul.mubr.bf16.gmra.mrb[0].mxu0 %v1898
  %v4314 = vpop.f32.mrb[0].mxu0
  %v4315 = vadd.f32 %v4218, %v4314
  %v4316 = vpop.f32.mrb[0].mxu0
  %v4317 = vpop.f32.mrb[0].mxu0
  %v4318 = vadd.f32 %v4221, %v4317
  %v4319 = vpop.f32.mrb[0].mxu0
  %4320 = vmatprep.mubr.bf16.mxu0 %v1935
  %4321 = vmatmul.mubr.bf16.gmra.mrb[0].mxu0 %v1934
  %v4322 = vpop.f32.mrb[0].mxu0
  %v4323 = vadd.f32 %v4226, %v4322
  %v4324 = vpop.f32.mrb[0].mxu0
  %v4325 = vpop.f32.mrb[0].mxu0
  %v4326 = vadd.f32 %v4229, %v4325
  %v4327 = vpop.f32.mrb[0].mxu0
  %4328 = vmatprep.mubr.bf16.mxu0 %v1971
  %4329 = vmatmul.mubr.bf16.gmra.mrb[0].mxu0 %v1970
  %v4330 = vpop.f32.mrb[0].mxu0
  %v4331 = vadd.f32 %v4234, %v4330
  %v4332 = vpop.f32.mrb[0].mxu0
  %v4333 = vpop.f32.mrb[0].mxu0
  %v4334 = vadd.f32 %v4237, %v4333
  %v4335 = vpop.f32.mrb[0].mxu0
  %4336 = vmatprep.mubr.bf16.mxu0 %v2007
  %4337 = vmatmul.mubr.bf16.gmra.mrb[0].mxu0 %v2006
  %v4338 = vpop.f32.mrb[0].mxu0
  %v4339 = vadd.f32 %v4242, %v4338
  %v4340 = vpop.f32.mrb[0].mxu0
  %v4341 = vpop.f32.mrb[0].mxu0
  %v4342 = vadd.f32 %v4245, %v4341
  %v4343 = vpop.f32.mrb[0].mxu0
  %4344 = vdwg.mxu0
  %4345 = vmatprep.subr.bf16.mxu0 0
  %4346 = vmatpush1.bf16.msra.mxu0 %v3526
  %4347 = vmatprep.subr.bf16.mxu0 0
  %4348 = vmatpush1.bf16.msra.mxu0 %v3527
  %4349 = vmatprep.subr.bf16.mxu0 0
  %4350 = vmatpush1.bf16.msra.mxu0 %v3528
  %4351 = vmatprep.subr.bf16.mxu0 0
  %4352 = vmatpush1.bf16.msra.mxu0 %v3529
  %4353 = vmatprep.subr.bf16.mxu0 0
  %4354 = vmatpush1.bf16.msra.mxu0 %v3530
  %4355 = vmatprep.subr.bf16.mxu0 0
  %4356 = vmatpush1.bf16.msra.mxu0 %v3531
  %4357 = vmatprep.subr.bf16.mxu0 0
  %4358 = vmatpush1.bf16.msra.mxu0 %v3532
  %4359 = vmatprep.subr.bf16.mxu0 0
  %4360 = vmatpush1.bf16.msra.mxu0 %v3533
  %4361 = vmatprep.subr.bf16.mxu0 0
  %4362 = vmatpush1.bf16.msra.mxu0 %v3534
  %4363 = vmatprep.subr.bf16.mxu0 0
  %4364 = vmatpush1.bf16.msra.mxu0 %v3535
  %4365 = vmatprep.subr.bf16.mxu0 0
  %4366 = vmatpush1.bf16.msra.mxu0 %v3536
  %4367 = vmatprep.subr.bf16.mxu0 0
  %4368 = vmatpush1.bf16.msra.mxu0 %v3537
  %4369 = vmatprep.subr.bf16.mxu0 0
  %4370 = vmatpush1.bf16.msra.mxu0 %v3538
  %4371 = vmatprep.subr.bf16.mxu0 0
  %4372 = vmatpush1.bf16.msra.mxu0 %v3539
  %4373 = vmatprep.subr.bf16.mxu0 0
  %4374 = vmatpush1.bf16.msra.mxu0 %v3540
  %4375 = vmatprep.subr.bf16.mxu0 0
  %4376 = vmatpush1.bf16.msra.mxu0 %v3541
  %4377 = vmatprep.mubr.bf16.mxu0 %v1757
  %4378 = vmatmul.mubr.bf16.gmra.mrb[0].mxu0 %v1756
  %v4379 = vpop.f32.mrb[0].mxu0
  %v4380 = vadd.f32 %v4283, %v4379
  %v4381 = vpop.f32.mrb[0].mxu0
  %v4382 = vpop.f32.mrb[0].mxu0
  %v4383 = vadd.f32 %v4286, %v4382
  %v4384 = vpop.f32.mrb[0].mxu0
  %4385 = vmatprep.mubr.bf16.mxu0 %v1793
  %4386 = vmatmul.mubr.bf16.gmra.mrb[0].mxu0 %v1792
  %v4387 = vpop.f32.mrb[0].mxu0
  %v4388 = vadd.f32 %v4291, %v4387
  %v4389 = vpop.f32.mrb[0].mxu0
  %v4390 = vpop.f32.mrb[0].mxu0
  %v4391 = vadd.f32 %v4294, %v4390
  %v4392 = vpop.f32.mrb[0].mxu0
  %4393 = vmatprep.mubr.bf16.mxu0 %v1829
  %4394 = vmatmul.mubr.bf16.gmra.mrb[0].mxu0 %v1828
  %v4395 = vpop.f32.mrb[0].mxu0
  %v4396 = vadd.f32 %v4299, %v4395
  %v4397 = vpop.f32.mrb[0].mxu0
  %v4398 = vpop.f32.mrb[0].mxu0
  %v4399 = vadd.f32 %v4302, %v4398
  %v4400 = vpop.f32.mrb[0].mxu0
  %4401 = vmatprep.mubr.bf16.mxu0 %v1865
  %4402 = vmatmul.mubr.bf16.gmra.mrb[0].mxu0 %v1864
  %v4403 = vpop.f32.mrb[0].mxu0
  %v4404 = vadd.f32 %v4307, %v4403
  %v4405 = vpop.f32.mrb[0].mxu0
  %v4406 = vpop.f32.mrb[0].mxu0
  %v4407 = vadd.f32 %v4310, %v4406
  %v4408 = vpop.f32.mrb[0].mxu0
  %4409 = vmatprep.mubr.bf16.mxu0 %v1901
  %4410 = vmatmul.mubr.bf16.gmra.mrb[0].mxu0 %v1900
  %v4411 = vpop.f32.mrb[0].mxu0
  %v4412 = vadd.f32 %v4315, %v4411
  %v4413 = vpop.f32.mrb[0].mxu0
  %v4414 = vpop.f32.mrb[0].mxu0
  %v4415 = vadd.f32 %v4318, %v4414
  %v4416 = vpop.f32.mrb[0].mxu0
  %4417 = vmatprep.mubr.bf16.mxu0 %v1937
  %4418 = vmatmul.mubr.bf16.gmra.mrb[0].mxu0 %v1936
  %v4419 = vpop.f32.mrb[0].mxu0
  %v4420 = vadd.f32 %v4323, %v4419
  %v4421 = vpop.f32.mrb[0].mxu0
  %v4422 = vpop.f32.mrb[0].mxu0
  %v4423 = vadd.f32 %v4326, %v4422
  %v4424 = vpop.f32.mrb[0].mxu0
  %4425 = vmatprep.mubr.bf16.mxu0 %v1973
  %4426 = vmatmul.mubr.bf16.gmra.mrb[0].mxu0 %v1972
  %v4427 = vpop.f32.mrb[0].mxu0
  %v4428 = vadd.f32 %v4331, %v4427
  %v4429 = vpop.f32.mrb[0].mxu0
  %v4430 = vpop.f32.mrb[0].mxu0
  %v4431 = vadd.f32 %v4334, %v4430
  %v4432 = vpop.f32.mrb[0].mxu0
  %4433 = vmatprep.mubr.bf16.mxu0 %v2009
  %4434 = vmatmul.mubr.bf16.gmra.mrb[0].mxu0 %v2008
  %v4435 = vpop.f32.mrb[0].mxu0
  %v4436 = vadd.f32 %v4339, %v4435
  %v4437 = vpop.f32.mrb[0].mxu0
  %v4438 = vpop.f32.mrb[0].mxu0
  %v4439 = vadd.f32 %v4342, %v4438
  %v4440 = vpop.f32.mrb[0].mxu0
  %4441 = vdwg.mxu0
  %4442 = vmatprep.subr.bf16.mxu0 0
  %4443 = vmatpush1.bf16.msra.mxu0 %v3542
  %4444 = vmatprep.subr.bf16.mxu0 0
  %4445 = vmatpush1.bf16.msra.mxu0 %v3543
  %4446 = vmatprep.subr.bf16.mxu0 0
  %4447 = vmatpush1.bf16.msra.mxu0 %v3544
  %4448 = vmatprep.subr.bf16.mxu0 0
  %4449 = vmatpush1.bf16.msra.mxu0 %v3545
  %4450 = vmatprep.subr.bf16.mxu0 0
  %4451 = vmatpush1.bf16.msra.mxu0 %v3546
  %4452 = vmatprep.subr.bf16.mxu0 0
  %4453 = vmatpush1.bf16.msra.mxu0 %v3547
  %4454 = vmatprep.subr.bf16.mxu0 0
  %4455 = vmatpush1.bf16.msra.mxu0 %v3548
  %4456 = vmatprep.subr.bf16.mxu0 0
  %4457 = vmatpush1.bf16.msra.mxu0 %v3549
  %4458 = vmatprep.subr.bf16.mxu0 0
  %4459 = vmatpush1.bf16.msra.mxu0 %v3550
  %4460 = vmatprep.subr.bf16.mxu0 0
  %4461 = vmatpush1.bf16.msra.mxu0 %v3551
  %4462 = vmatprep.subr.bf16.mxu0 0
  %4463 = vmatpush1.bf16.msra.mxu0 %v3552
  %4464 = vmatprep.subr.bf16.mxu0 0
  %4465 = vmatpush1.bf16.msra.mxu0 %v3553
  %4466 = vmatprep.subr.bf16.mxu0 0
  %4467 = vmatpush1.bf16.msra.mxu0 %v3554
  %4468 = vmatprep.subr.bf16.mxu0 0
  %4469 = vmatpush1.bf16.msra.mxu0 %v3555
  %4470 = vmatprep.subr.bf16.mxu0 0
  %4471 = vmatpush1.bf16.msra.mxu0 %v3556
  %4472 = vmatprep.subr.bf16.mxu0 0
  %4473 = vmatpush1.bf16.msra.mxu0 %v3557
  %4474 = vmatprep.mubr.bf16.mxu0 %v1759
  %4475 = vmatmul.mubr.bf16.gmra.mrb[0].mxu0 %v1758
  %v4476 = vpop.f32.mrb[0].mxu0
  %v4477 = vadd.f32 %v4380, %v4476
  %v4478 = vpop.f32.mrb[0].mxu0
  %v4479 = vpop.f32.mrb[0].mxu0
  %v4480 = vadd.f32 %v4383, %v4479
  %v4481 = vpop.f32.mrb[0].mxu0
  %4482 = vmatprep.mubr.bf16.mxu0 %v1795
  %4483 = vmatmul.mubr.bf16.gmra.mrb[0].mxu0 %v1794
  %v4484 = vpop.f32.mrb[0].mxu0
  %v4485 = vadd.f32 %v4388, %v4484
  %v4486 = vpop.f32.mrb[0].mxu0
  %v4487 = vpop.f32.mrb[0].mxu0
  %v4488 = vadd.f32 %v4391, %v4487
  %v4489 = vpop.f32.mrb[0].mxu0
  %4490 = vmatprep.mubr.bf16.mxu0 %v1831
  %4491 = vmatmul.mubr.bf16.gmra.mrb[0].mxu0 %v1830
  %v4492 = vpop.f32.mrb[0].mxu0
  %v4493 = vadd.f32 %v4396, %v4492
  %v4494 = vpop.f32.mrb[0].mxu0
  %v4495 = vpop.f32.mrb[0].mxu0
  %v4496 = vadd.f32 %v4399, %v4495
  %v4497 = vpop.f32.mrb[0].mxu0
  %4498 = vmatprep.mubr.bf16.mxu0 %v1867
  %4499 = vmatmul.mubr.bf16.gmra.mrb[0].mxu0 %v1866
  %v4500 = vpop.f32.mrb[0].mxu0
  %v4501 = vadd.f32 %v4404, %v4500
  %v4502 = vpop.f32.mrb[0].mxu0
  %v4503 = vpop.f32.mrb[0].mxu0
  %v4504 = vadd.f32 %v4407, %v4503
  %v4505 = vpop.f32.mrb[0].mxu0
  %4506 = vmatprep.mubr.bf16.mxu0 %v1903
  %4507 = vmatmul.mubr.bf16.gmra.mrb[0].mxu0 %v1902
  %v4508 = vpop.f32.mrb[0].mxu0
  %v4509 = vadd.f32 %v4412, %v4508
  %v4510 = vpop.f32.mrb[0].mxu0
  %v4511 = vpop.f32.mrb[0].mxu0
  %v4512 = vadd.f32 %v4415, %v4511
  %v4513 = vpop.f32.mrb[0].mxu0
  %4514 = vmatprep.mubr.bf16.mxu0 %v1939
  %4515 = vmatmul.mubr.bf16.gmra.mrb[0].mxu0 %v1938
  %v4516 = vpop.f32.mrb[0].mxu0
  %v4517 = vadd.f32 %v4420, %v4516
  %v4518 = vpop.f32.mrb[0].mxu0
  %v4519 = vpop.f32.mrb[0].mxu0
  %v4520 = vadd.f32 %v4423, %v4519
  %v4521 = vpop.f32.mrb[0].mxu0
  %4522 = vmatprep.mubr.bf16.mxu0 %v1975
  %4523 = vmatmul.mubr.bf16.gmra.mrb[0].mxu0 %v1974
  %v4524 = vpop.f32.mrb[0].mxu0
  %v4525 = vadd.f32 %v4428, %v4524
  %v4526 = vpop.f32.mrb[0].mxu0
  %v4527 = vpop.f32.mrb[0].mxu0
  %v4528 = vadd.f32 %v4431, %v4527
  %v4529 = vpop.f32.mrb[0].mxu0
  %4530 = vmatprep.mubr.bf16.mxu0 %v2011
  %4531 = vmatmul.mubr.bf16.gmra.mrb[0].mxu0 %v2010
  %v4532 = vpop.f32.mrb[0].mxu0
  %v4533 = vadd.f32 %v4436, %v4532
  %v4534 = vpop.f32.mrb[0].mxu0
  %v4535 = vpop.f32.mrb[0].mxu0
  %v4536 = vadd.f32 %v4439, %v4535
  %v4537 = vpop.f32.mrb[0].mxu0
  %4538 = vdwg.mxu0
  %4539 = vmatprep.subr.bf16.mxu0 0
  %4540 = vmatpush1.bf16.msra.mxu0 %v3558
  %4541 = vmatprep.subr.bf16.mxu0 0
  %4542 = vmatpush1.bf16.msra.mxu0 %v3559
  %4543 = vmatprep.subr.bf16.mxu0 0
  %4544 = vmatpush1.bf16.msra.mxu0 %v3560
  %4545 = vmatprep.subr.bf16.mxu0 0
  %4546 = vmatpush1.bf16.msra.mxu0 %v3561
  %4547 = vmatprep.subr.bf16.mxu0 0
  %4548 = vmatpush1.bf16.msra.mxu0 %v3562
  %4549 = vmatprep.subr.bf16.mxu0 0
  %4550 = vmatpush1.bf16.msra.mxu0 %v3563
  %4551 = vmatprep.subr.bf16.mxu0 0
  %4552 = vmatpush1.bf16.msra.mxu0 %v3564
  %4553 = vmatprep.subr.bf16.mxu0 0
  %4554 = vmatpush1.bf16.msra.mxu0 %v3565
  %4555 = vmatprep.subr.bf16.mxu0 0
  %4556 = vmatpush1.bf16.msra.mxu0 %v3566
  %4557 = vmatprep.subr.bf16.mxu0 0
  %4558 = vmatpush1.bf16.msra.mxu0 %v3567
  %4559 = vmatprep.subr.bf16.mxu0 0
  %4560 = vmatpush1.bf16.msra.mxu0 %v3568
  %4561 = vmatprep.subr.bf16.mxu0 0
  %4562 = vmatpush1.bf16.msra.mxu0 %v3569
  %4563 = vmatprep.subr.bf16.mxu0 0
  %4564 = vmatpush1.bf16.msra.mxu0 %v3570
  %4565 = vmatprep.subr.bf16.mxu0 0
  %4566 = vmatpush1.bf16.msra.mxu0 %v3571
  %4567 = vmatprep.subr.bf16.mxu0 0
  %4568 = vmatpush1.bf16.msra.mxu0 %v3572
  %4569 = vmatprep.subr.bf16.mxu0 0
  %4570 = vmatpush1.bf16.msra.mxu0 %v3573
  %4571 = vmatprep.mubr.bf16.mxu0 %v1761
  %4572 = vmatmul.mubr.bf16.gmra.mrb[0].mxu0 %v1760
  %v4573 = vpop.f32.mrb[0].mxu0
  %v4574 = vadd.f32 %v4477, %v4573
  %v4575 = vpop.f32.mrb[0].mxu0
  %v4576 = vpop.f32.mrb[0].mxu0
  %v4577 = vadd.f32 %v4480, %v4576
  %v4578 = vpop.f32.mrb[0].mxu0
  %4579 = vmatprep.mubr.bf16.mxu0 %v1797
  %4580 = vmatmul.mubr.bf16.gmra.mrb[0].mxu0 %v1796
  %v4581 = vpop.f32.mrb[0].mxu0
  %v4582 = vadd.f32 %v4485, %v4581
  %v4583 = vpop.f32.mrb[0].mxu0
  %v4584 = vpop.f32.mrb[0].mxu0
  %v4585 = vadd.f32 %v4488, %v4584
  %v4586 = vpop.f32.mrb[0].mxu0
  %4587 = vmatprep.mubr.bf16.mxu0 %v1833
  %4588 = vmatmul.mubr.bf16.gmra.mrb[0].mxu0 %v1832
  %v4589 = vpop.f32.mrb[0].mxu0
  %v4590 = vadd.f32 %v4493, %v4589
  %v4591 = vpop.f32.mrb[0].mxu0
  %v4592 = vpop.f32.mrb[0].mxu0
  %v4593 = vadd.f32 %v4496, %v4592
  %v4594 = vpop.f32.mrb[0].mxu0
  %4595 = vmatprep.mubr.bf16.mxu0 %v1869
  %4596 = vmatmul.mubr.bf16.gmra.mrb[0].mxu0 %v1868
  %v4597 = vpop.f32.mrb[0].mxu0
  %v4598 = vadd.f32 %v4501, %v4597
  %v4599 = vpop.f32.mrb[0].mxu0
  %v4600 = vpop.f32.mrb[0].mxu0
  %v4601 = vadd.f32 %v4504, %v4600
  %v4602 = vpop.f32.mrb[0].mxu0
  %4603 = vmatprep.mubr.bf16.mxu0 %v1905
  %4604 = vmatmul.mubr.bf16.gmra.mrb[0].mxu0 %v1904
  %v4605 = vpop.f32.mrb[0].mxu0
  %v4606 = vadd.f32 %v4509, %v4605
  %v4607 = vpop.f32.mrb[0].mxu0
  %v4608 = vpop.f32.mrb[0].mxu0
  %v4609 = vadd.f32 %v4512, %v4608
  %v4610 = vpop.f32.mrb[0].mxu0
  %4611 = vmatprep.mubr.bf16.mxu0 %v1941
  %4612 = vmatmul.mubr.bf16.gmra.mrb[0].mxu0 %v1940
  %v4613 = vpop.f32.mrb[0].mxu0
  %v4614 = vadd.f32 %v4517, %v4613
  %v4615 = vpop.f32.mrb[0].mxu0
  %v4616 = vpop.f32.mrb[0].mxu0
  %v4617 = vadd.f32 %v4520, %v4616
  %v4618 = vpop.f32.mrb[0].mxu0
  %4619 = vmatprep.mubr.bf16.mxu0 %v1977
  %4620 = vmatmul.mubr.bf16.gmra.mrb[0].mxu0 %v1976
  %v4621 = vpop.f32.mrb[0].mxu0
  %v4622 = vadd.f32 %v4525, %v4621
  %v4623 = vpop.f32.mrb[0].mxu0
  %v4624 = vpop.f32.mrb[0].mxu0
  %v4625 = vadd.f32 %v4528, %v4624
  %v4626 = vpop.f32.mrb[0].mxu0
  %4627 = vmatprep.mubr.bf16.mxu0 %v2013
  %4628 = vmatmul.mubr.bf16.gmra.mrb[0].mxu0 %v2012
  %v4629 = vpop.f32.mrb[0].mxu0
  %v4630 = vadd.f32 %v4533, %v4629
  %v4631 = vpop.f32.mrb[0].mxu0
  %v4632 = vpop.f32.mrb[0].mxu0
  %v4633 = vadd.f32 %v4536, %v4632
  %v4634 = vpop.f32.mrb[0].mxu0
  %4635 = vdwg.mxu0
  %4636 = vmatprep.subr.bf16.mxu0 0
  %4637 = vmatpush1.bf16.msra.mxu0 %v3574
  %4638 = vmatprep.subr.bf16.mxu0 0
  %4639 = vmatpush1.bf16.msra.mxu0 %v3575
  %4640 = vmatprep.subr.bf16.mxu0 0
  %4641 = vmatpush1.bf16.msra.mxu0 %v3576
  %4642 = vmatprep.subr.bf16.mxu0 0
  %4643 = vmatpush1.bf16.msra.mxu0 %v3577
  %4644 = vmatprep.subr.bf16.mxu0 0
  %4645 = vmatpush1.bf16.msra.mxu0 %v3578
  %4646 = vmatprep.subr.bf16.mxu0 0
  %4647 = vmatpush1.bf16.msra.mxu0 %v3579
  %4648 = vmatprep.subr.bf16.mxu0 0
  %4649 = vmatpush1.bf16.msra.mxu0 %v3580
  %4650 = vmatprep.subr.bf16.mxu0 0
  %4651 = vmatpush1.bf16.msra.mxu0 %v3581
  %4652 = vmatprep.subr.bf16.mxu0 0
  %4653 = vmatpush1.bf16.msra.mxu0 %v3582
  %4654 = vmatprep.subr.bf16.mxu0 0
  %4655 = vmatpush1.bf16.msra.mxu0 %v3583
  %4656 = vmatprep.subr.bf16.mxu0 0
  %4657 = vmatpush1.bf16.msra.mxu0 %v3584
  %4658 = vmatprep.subr.bf16.mxu0 0
  %4659 = vmatpush1.bf16.msra.mxu0 %v3585
  %4660 = vmatprep.subr.bf16.mxu0 0
  %4661 = vmatpush1.bf16.msra.mxu0 %v3586
  %4662 = vmatprep.subr.bf16.mxu0 0
  %4663 = vmatpush1.bf16.msra.mxu0 %v3587
  %4664 = vmatprep.subr.bf16.mxu0 0
  %4665 = vmatpush1.bf16.msra.mxu0 %v3588
  %4666 = vmatprep.subr.bf16.mxu0 0
  %4667 = vmatpush1.bf16.msra.mxu0 %v3589
  %4668 = vmatprep.mubr.bf16.mxu0 %v1763
  %4669 = vmatmul.mubr.bf16.gmra.mrb[0].mxu0 %v1762
  %v4670 = vpop.f32.mrb[0].mxu0
  %v4671 = vadd.f32 %v4574, %v4670
  %v4672 = vpop.f32.mrb[0].mxu0
  %v4673 = vpop.f32.mrb[0].mxu0
  %v4674 = vadd.f32 %v4577, %v4673
  %v4675 = vpop.f32.mrb[0].mxu0
  %4676 = vmatprep.mubr.bf16.mxu0 %v1799
  %4677 = vmatmul.mubr.bf16.gmra.mrb[0].mxu0 %v1798
  %v4678 = vpop.f32.mrb[0].mxu0
  %v4679 = vadd.f32 %v4582, %v4678
  %v4680 = vpop.f32.mrb[0].mxu0
  %v4681 = vpop.f32.mrb[0].mxu0
  %v4682 = vadd.f32 %v4585, %v4681
  %v4683 = vpop.f32.mrb[0].mxu0
  %4684 = vmatprep.mubr.bf16.mxu0 %v1835
  %4685 = vmatmul.mubr.bf16.gmra.mrb[0].mxu0 %v1834
  %v4686 = vpop.f32.mrb[0].mxu0
  %v4687 = vadd.f32 %v4590, %v4686
  %v4688 = vpop.f32.mrb[0].mxu0
  %v4689 = vpop.f32.mrb[0].mxu0
  %v4690 = vadd.f32 %v4593, %v4689
  %v4691 = vpop.f32.mrb[0].mxu0
  %4692 = vmatprep.mubr.bf16.mxu0 %v1871
  %4693 = vmatmul.mubr.bf16.gmra.mrb[0].mxu0 %v1870
  %v4694 = vpop.f32.mrb[0].mxu0
  %v4695 = vadd.f32 %v4598, %v4694
  %v4696 = vpop.f32.mrb[0].mxu0
  %v4697 = vpop.f32.mrb[0].mxu0
  %v4698 = vadd.f32 %v4601, %v4697
  %v4699 = vpop.f32.mrb[0].mxu0
  %4700 = vmatprep.mubr.bf16.mxu0 %v1907
  %4701 = vmatmul.mubr.bf16.gmra.mrb[0].mxu0 %v1906
  %v4702 = vpop.f32.mrb[0].mxu0
  %v4703 = vadd.f32 %v4606, %v4702
  %v4704 = vpop.f32.mrb[0].mxu0
  %v4705 = vpop.f32.mrb[0].mxu0
  %v4706 = vadd.f32 %v4609, %v4705
  %v4707 = vpop.f32.mrb[0].mxu0
  %4708 = vmatprep.mubr.bf16.mxu0 %v1943
  %4709 = vmatmul.mubr.bf16.gmra.mrb[0].mxu0 %v1942
  %v4710 = vpop.f32.mrb[0].mxu0
  %v4711 = vadd.f32 %v4614, %v4710
  %v4712 = vpop.f32.mrb[0].mxu0
  %v4713 = vpop.f32.mrb[0].mxu0
  %v4714 = vadd.f32 %v4617, %v4713
  %v4715 = vpop.f32.mrb[0].mxu0
  %4716 = vmatprep.mubr.bf16.mxu0 %v1979
  %4717 = vmatmul.mubr.bf16.gmra.mrb[0].mxu0 %v1978
  %v4718 = vpop.f32.mrb[0].mxu0
  %v4719 = vadd.f32 %v4622, %v4718
  %v4720 = vpop.f32.mrb[0].mxu0
  %v4721 = vpop.f32.mrb[0].mxu0
  %v4722 = vadd.f32 %v4625, %v4721
  %v4723 = vpop.f32.mrb[0].mxu0
  %4724 = vmatprep.mubr.bf16.mxu0 %v2015
  %4725 = vmatmul.mubr.bf16.gmra.mrb[0].mxu0 %v2014
  %v4726 = vpop.f32.mrb[0].mxu0
  %v4727 = vadd.f32 %v4630, %v4726
  %v4728 = vpop.f32.mrb[0].mxu0
  %v4729 = vpop.f32.mrb[0].mxu0
  %v4730 = vadd.f32 %v4633, %v4729
  %v4731 = vpop.f32.mrb[0].mxu0
  %4732 = vdwg.mxu0
  %4733 = vmatprep.subr.bf16.mxu0 0
  %4734 = vmatpush1.bf16.msra.mxu0 %v3590
  %4735 = vmatprep.subr.bf16.mxu0 0
  %4736 = vmatpush1.bf16.msra.mxu0 %v3591
  %4737 = vmatprep.subr.bf16.mxu0 0
  %4738 = vmatpush1.bf16.msra.mxu0 %v3592
  %4739 = vmatprep.subr.bf16.mxu0 0
  %4740 = vmatpush1.bf16.msra.mxu0 %v3593
  %4741 = vmatprep.subr.bf16.mxu0 0
  %4742 = vmatpush1.bf16.msra.mxu0 %v3594
  %4743 = vmatprep.subr.bf16.mxu0 0
  %4744 = vmatpush1.bf16.msra.mxu0 %v3595
  %4745 = vmatprep.subr.bf16.mxu0 0
  %4746 = vmatpush1.bf16.msra.mxu0 %v3596
  %4747 = vmatprep.subr.bf16.mxu0 0
  %4748 = vmatpush1.bf16.msra.mxu0 %v3597
  %4749 = vmatprep.subr.bf16.mxu0 0
  %4750 = vmatpush1.bf16.msra.mxu0 %v3598
  %4751 = vmatprep.subr.bf16.mxu0 0
  %4752 = vmatpush1.bf16.msra.mxu0 %v3599
  %4753 = vmatprep.subr.bf16.mxu0 0
  %4754 = vmatpush1.bf16.msra.mxu0 %v3600
  %4755 = vmatprep.subr.bf16.mxu0 0
  %4756 = vmatpush1.bf16.msra.mxu0 %v3601
  %4757 = vmatprep.subr.bf16.mxu0 0
  %4758 = vmatpush1.bf16.msra.mxu0 %v3602
  %4759 = vmatprep.subr.bf16.mxu0 0
  %4760 = vmatpush1.bf16.msra.mxu0 %v3603
  %4761 = vmatprep.subr.bf16.mxu0 0
  %4762 = vmatpush1.bf16.msra.mxu0 %v3604
  %4763 = vmatprep.subr.bf16.mxu0 0
  %4764 = vmatpush1.bf16.msra.mxu0 %v3605
  %4765 = vmatprep.mubr.bf16.mxu0 %v1765
  %4766 = vmatmul.mubr.bf16.gmra.mrb[0].mxu0 %v1764
  %v4767 = vpop.f32.mrb[0].mxu0
  %v4768 = vadd.f32 %v4671, %v4767
  %v4769 = vpop.f32.mrb[0].mxu0
  %v4770 = vpop.f32.mrb[0].mxu0
  %v4771 = vadd.f32 %v4674, %v4770
  %v4772 = vpop.f32.mrb[0].mxu0
  %4773 = vmatprep.mubr.bf16.mxu0 %v1801
  %4774 = vmatmul.mubr.bf16.gmra.mrb[0].mxu0 %v1800
  %v4775 = vpop.f32.mrb[0].mxu0
  %v4776 = vadd.f32 %v4679, %v4775
  %v4777 = vpop.f32.mrb[0].mxu0
  %v4778 = vpop.f32.mrb[0].mxu0
  %v4779 = vadd.f32 %v4682, %v4778
  %v4780 = vpop.f32.mrb[0].mxu0
  %4781 = vmatprep.mubr.bf16.mxu0 %v1837
  %4782 = vmatmul.mubr.bf16.gmra.mrb[0].mxu0 %v1836
  %v4783 = vpop.f32.mrb[0].mxu0
  %v4784 = vadd.f32 %v4687, %v4783
  %v4785 = vpop.f32.mrb[0].mxu0
  %v4786 = vpop.f32.mrb[0].mxu0
  %v4787 = vadd.f32 %v4690, %v4786
  %v4788 = vpop.f32.mrb[0].mxu0
  %4789 = vmatprep.mubr.bf16.mxu0 %v1873
  %4790 = vmatmul.mubr.bf16.gmra.mrb[0].mxu0 %v1872
  %v4791 = vpop.f32.mrb[0].mxu0
  %v4792 = vadd.f32 %v4695, %v4791
  %v4793 = vpop.f32.mrb[0].mxu0
  %v4794 = vpop.f32.mrb[0].mxu0
  %v4795 = vadd.f32 %v4698, %v4794
  %v4796 = vpop.f32.mrb[0].mxu0
  %4797 = vmatprep.mubr.bf16.mxu0 %v1909
  %4798 = vmatmul.mubr.bf16.gmra.mrb[0].mxu0 %v1908
  %v4799 = vpop.f32.mrb[0].mxu0
  %v4800 = vadd.f32 %v4703, %v4799
  %v4801 = vpop.f32.mrb[0].mxu0
  %v4802 = vpop.f32.mrb[0].mxu0
  %v4803 = vadd.f32 %v4706, %v4802
  %v4804 = vpop.f32.mrb[0].mxu0
  %4805 = vmatprep.mubr.bf16.mxu0 %v1945
  %4806 = vmatmul.mubr.bf16.gmra.mrb[0].mxu0 %v1944
  %v4807 = vpop.f32.mrb[0].mxu0
  %v4808 = vadd.f32 %v4711, %v4807
  %v4809 = vpop.f32.mrb[0].mxu0
  %v4810 = vpop.f32.mrb[0].mxu0
  %v4811 = vadd.f32 %v4714, %v4810
  %v4812 = vpop.f32.mrb[0].mxu0
  %4813 = vmatprep.mubr.bf16.mxu0 %v1981
  %4814 = vmatmul.mubr.bf16.gmra.mrb[0].mxu0 %v1980
  %v4815 = vpop.f32.mrb[0].mxu0
  %v4816 = vadd.f32 %v4719, %v4815
  %v4817 = vpop.f32.mrb[0].mxu0
  %v4818 = vpop.f32.mrb[0].mxu0
  %v4819 = vadd.f32 %v4722, %v4818
  %v4820 = vpop.f32.mrb[0].mxu0
  %4821 = vmatprep.mubr.bf16.mxu0 %v2017
  %4822 = vmatmul.mubr.bf16.gmra.mrb[0].mxu0 %v2016
  %v4823 = vpop.f32.mrb[0].mxu0
  %v4824 = vadd.f32 %v4727, %v4823
  %v4825 = vpop.f32.mrb[0].mxu0
  %v4826 = vpop.f32.mrb[0].mxu0
  %v4827 = vadd.f32 %v4730, %v4826
  %v4828 = vpop.f32.mrb[0].mxu0
  %4829 = vdwg.mxu0
  %4830 = vmatprep.subr.bf16.mxu0 0
  %4831 = vmatpush1.bf16.msra.mxu0 %v3606
  %4832 = vmatprep.subr.bf16.mxu0 0
  %4833 = vmatpush1.bf16.msra.mxu0 %v3607
  %4834 = vmatprep.subr.bf16.mxu0 0
  %4835 = vmatpush1.bf16.msra.mxu0 %v3608
  %4836 = vmatprep.subr.bf16.mxu0 0
  %4837 = vmatpush1.bf16.msra.mxu0 %v3609
  %4838 = vmatprep.subr.bf16.mxu0 0
  %4839 = vmatpush1.bf16.msra.mxu0 %v3610
  %4840 = vmatprep.subr.bf16.mxu0 0
  %4841 = vmatpush1.bf16.msra.mxu0 %v3611
  %4842 = vmatprep.subr.bf16.mxu0 0
  %4843 = vmatpush1.bf16.msra.mxu0 %v3612
  %4844 = vmatprep.subr.bf16.mxu0 0
  %4845 = vmatpush1.bf16.msra.mxu0 %v3613
  %4846 = vmatprep.subr.bf16.mxu0 0
  %4847 = vmatpush1.bf16.msra.mxu0 %v3614
  %4848 = vmatprep.subr.bf16.mxu0 0
  %4849 = vmatpush1.bf16.msra.mxu0 %v3615
  %4850 = vmatprep.subr.bf16.mxu0 0
  %4851 = vmatpush1.bf16.msra.mxu0 %v3616
  %4852 = vmatprep.subr.bf16.mxu0 0
  %4853 = vmatpush1.bf16.msra.mxu0 %v3617
  %4854 = vmatprep.subr.bf16.mxu0 0
  %4855 = vmatpush1.bf16.msra.mxu0 %v3618
  %4856 = vmatprep.subr.bf16.mxu0 0
  %4857 = vmatpush1.bf16.msra.mxu0 %v3619
  %4858 = vmatprep.subr.bf16.mxu0 0
  %4859 = vmatpush1.bf16.msra.mxu0 %v3620
  %4860 = vmatprep.subr.bf16.mxu0 0
  %4861 = vmatpush1.bf16.msra.mxu0 %v3621
  %4862 = vmatprep.mubr.bf16.mxu0 %v1767
  %4863 = vmatmul.mubr.bf16.gmra.mrb[0].mxu0 %v1766
  %v4864 = vpop.f32.mrb[0].mxu0
  %v4865 = vadd.f32 %v4768, %v4864
  %v4866 = vpop.f32.mrb[0].mxu0
  %v4867 = vpop.f32.mrb[0].mxu0
  %v4868 = vadd.f32 %v4771, %v4867
  %v4869 = vpop.f32.mrb[0].mxu0
  %4870 = vmatprep.mubr.bf16.mxu0 %v1803
  %4871 = vmatmul.mubr.bf16.gmra.mrb[0].mxu0 %v1802
  %v4872 = vpop.f32.mrb[0].mxu0
  %v4873 = vadd.f32 %v4776, %v4872
  %v4874 = vpop.f32.mrb[0].mxu0
  %v4875 = vpop.f32.mrb[0].mxu0
  %v4876 = vadd.f32 %v4779, %v4875
  %v4877 = vpop.f32.mrb[0].mxu0
  %4878 = vmatprep.mubr.bf16.mxu0 %v1839
  %4879 = vmatmul.mubr.bf16.gmra.mrb[0].mxu0 %v1838
  %v4880 = vpop.f32.mrb[0].mxu0
  %v4881 = vadd.f32 %v4784, %v4880
  %v4882 = vpop.f32.mrb[0].mxu0
  %v4883 = vpop.f32.mrb[0].mxu0
  %v4884 = vadd.f32 %v4787, %v4883
  %v4885 = vpop.f32.mrb[0].mxu0
  %4886 = vmatprep.mubr.bf16.mxu0 %v1875
  %4887 = vmatmul.mubr.bf16.gmra.mrb[0].mxu0 %v1874
  %v4888 = vpop.f32.mrb[0].mxu0
  %v4889 = vadd.f32 %v4792, %v4888
  %v4890 = vpop.f32.mrb[0].mxu0
  %v4891 = vpop.f32.mrb[0].mxu0
  %v4892 = vadd.f32 %v4795, %v4891
  %v4893 = vpop.f32.mrb[0].mxu0
  %4894 = vmatprep.mubr.bf16.mxu0 %v1911
  %4895 = vmatmul.mubr.bf16.gmra.mrb[0].mxu0 %v1910
  %v4896 = vpop.f32.mrb[0].mxu0
  %v4897 = vadd.f32 %v4800, %v4896
  %v4898 = vpop.f32.mrb[0].mxu0
  %v4899 = vpop.f32.mrb[0].mxu0
  %v4900 = vadd.f32 %v4803, %v4899
  %v4901 = vpop.f32.mrb[0].mxu0
  %4902 = vmatprep.mubr.bf16.mxu0 %v1947
  %4903 = vmatmul.mubr.bf16.gmra.mrb[0].mxu0 %v1946
  %v4904 = vpop.f32.mrb[0].mxu0
  %v4905 = vadd.f32 %v4808, %v4904
  %v4906 = vpop.f32.mrb[0].mxu0
  %v4907 = vpop.f32.mrb[0].mxu0
  %v4908 = vadd.f32 %v4811, %v4907
  %v4909 = vpop.f32.mrb[0].mxu0
  %4910 = vmatprep.mubr.bf16.mxu0 %v1983
  %4911 = vmatmul.mubr.bf16.gmra.mrb[0].mxu0 %v1982
  %v4912 = vpop.f32.mrb[0].mxu0
  %v4913 = vadd.f32 %v4816, %v4912
  %v4914 = vpop.f32.mrb[0].mxu0
  %v4915 = vpop.f32.mrb[0].mxu0
  %v4916 = vadd.f32 %v4819, %v4915
  %v4917 = vpop.f32.mrb[0].mxu0
  %4918 = vmatprep.mubr.bf16.mxu0 %v2019
  %4919 = vmatmul.mubr.bf16.gmra.mrb[0].mxu0 %v2018
  %v4920 = vpop.f32.mrb[0].mxu0
  %v4921 = vadd.f32 %v4824, %v4920
  %v4922 = vpop.f32.mrb[0].mxu0
  %v4923 = vpop.f32.mrb[0].mxu0
  %v4924 = vadd.f32 %v4827, %v4923
  %v4925 = vpop.f32.mrb[0].mxu0
  %4926 = vdwg.mxu0
  %4927 = vmatprep.subr.bf16.mxu0 0
  %4928 = vmatpush1.bf16.msra.mxu0 %v3622
  %4929 = vmatprep.subr.bf16.mxu0 0
  %4930 = vmatpush1.bf16.msra.mxu0 %v3623
  %4931 = vmatprep.subr.bf16.mxu0 0
  %4932 = vmatpush1.bf16.msra.mxu0 %v3624
  %4933 = vmatprep.subr.bf16.mxu0 0
  %4934 = vmatpush1.bf16.msra.mxu0 %v3625
  %4935 = vmatprep.subr.bf16.mxu0 0
  %4936 = vmatpush1.bf16.msra.mxu0 %v3626
  %4937 = vmatprep.subr.bf16.mxu0 0
  %4938 = vmatpush1.bf16.msra.mxu0 %v3627
  %4939 = vmatprep.subr.bf16.mxu0 0
  %4940 = vmatpush1.bf16.msra.mxu0 %v3628
  %4941 = vmatprep.subr.bf16.mxu0 0
  %4942 = vmatpush1.bf16.msra.mxu0 %v3629
  %4943 = vmatprep.subr.bf16.mxu0 0
  %4944 = vmatpush1.bf16.msra.mxu0 %v3630
  %4945 = vmatprep.subr.bf16.mxu0 0
  %4946 = vmatpush1.bf16.msra.mxu0 %v3631
  %4947 = vmatprep.subr.bf16.mxu0 0
  %4948 = vmatpush1.bf16.msra.mxu0 %v3632
  %4949 = vmatprep.subr.bf16.mxu0 0
  %4950 = vmatpush1.bf16.msra.mxu0 %v3633
  %4951 = vmatprep.subr.bf16.mxu0 0
  %4952 = vmatpush1.bf16.msra.mxu0 %v3634
  %4953 = vmatprep.subr.bf16.mxu0 0
  %4954 = vmatpush1.bf16.msra.mxu0 %v3635
  %4955 = vmatprep.subr.bf16.mxu0 0
  %4956 = vmatpush1.bf16.msra.mxu0 %v3636
  %4957 = vmatprep.subr.bf16.mxu0 0
  %4958 = vmatpush1.bf16.msra.mxu0 %v3637
  %4959 = vmatprep.mubr.bf16.mxu0 %v1769
  %4960 = vmatmul.mubr.bf16.gmra.mrb[0].mxu0 %v1768
  %v4961 = vpop.f32.mrb[0].mxu0
  %v4962 = vadd.f32 %v4865, %v4961
  %v4963 = vpop.f32.mrb[0].mxu0
  %v4964 = vpop.f32.mrb[0].mxu0
  %v4965 = vadd.f32 %v4868, %v4964
  %v4966 = vpop.f32.mrb[0].mxu0
  %4967 = vmatprep.mubr.bf16.mxu0 %v1805
  %4968 = vmatmul.mubr.bf16.gmra.mrb[0].mxu0 %v1804
  %v4969 = vpop.f32.mrb[0].mxu0
  %v4970 = vadd.f32 %v4873, %v4969
  %v4971 = vpop.f32.mrb[0].mxu0
  %v4972 = vpop.f32.mrb[0].mxu0
  %v4973 = vadd.f32 %v4876, %v4972
  %v4974 = vpop.f32.mrb[0].mxu0
  %4975 = vmatprep.mubr.bf16.mxu0 %v1841
  %4976 = vmatmul.mubr.bf16.gmra.mrb[0].mxu0 %v1840
  %v4977 = vpop.f32.mrb[0].mxu0
  %v4978 = vadd.f32 %v4881, %v4977
  %v4979 = vpop.f32.mrb[0].mxu0
  %v4980 = vpop.f32.mrb[0].mxu0
  %v4981 = vadd.f32 %v4884, %v4980
  %v4982 = vpop.f32.mrb[0].mxu0
  %4983 = vmatprep.mubr.bf16.mxu0 %v1877
  %4984 = vmatmul.mubr.bf16.gmra.mrb[0].mxu0 %v1876
  %v4985 = vpop.f32.mrb[0].mxu0
  %v4986 = vadd.f32 %v4889, %v4985
  %v4987 = vpop.f32.mrb[0].mxu0
  %v4988 = vpop.f32.mrb[0].mxu0
  %v4989 = vadd.f32 %v4892, %v4988
  %v4990 = vpop.f32.mrb[0].mxu0
  %4991 = vmatprep.mubr.bf16.mxu0 %v1913
  %4992 = vmatmul.mubr.bf16.gmra.mrb[0].mxu0 %v1912
  %v4993 = vpop.f32.mrb[0].mxu0
  %v4994 = vadd.f32 %v4897, %v4993
  %v4995 = vpop.f32.mrb[0].mxu0
  %v4996 = vpop.f32.mrb[0].mxu0
  %v4997 = vadd.f32 %v4900, %v4996
  %v4998 = vpop.f32.mrb[0].mxu0
  %4999 = vmatprep.mubr.bf16.mxu0 %v1949
  %5000 = vmatmul.mubr.bf16.gmra.mrb[0].mxu0 %v1948
  %v5001 = vpop.f32.mrb[0].mxu0
  %v5002 = vadd.f32 %v4905, %v5001
  %v5003 = vpop.f32.mrb[0].mxu0
  %v5004 = vpop.f32.mrb[0].mxu0
  %v5005 = vadd.f32 %v4908, %v5004
  %v5006 = vpop.f32.mrb[0].mxu0
  %5007 = vmatprep.mubr.bf16.mxu0 %v1985
  %5008 = vmatmul.mubr.bf16.gmra.mrb[0].mxu0 %v1984
  %v5009 = vpop.f32.mrb[0].mxu0
  %v5010 = vadd.f32 %v4913, %v5009
  %v5011 = vpop.f32.mrb[0].mxu0
  %v5012 = vpop.f32.mrb[0].mxu0
  %v5013 = vadd.f32 %v4916, %v5012
  %v5014 = vpop.f32.mrb[0].mxu0
  %5015 = vmatprep.mubr.bf16.mxu0 %v2021
  %5016 = vmatmul.mubr.bf16.gmra.mrb[0].mxu0 %v2020
  %v5017 = vpop.f32.mrb[0].mxu0
  %v5018 = vadd.f32 %v4921, %v5017
  %v5019 = vpop.f32.mrb[0].mxu0
  %v5020 = vpop.f32.mrb[0].mxu0
  %v5021 = vadd.f32 %v4924, %v5020
  %v5022 = vpop.f32.mrb[0].mxu0
  %5023 = vdwg.mxu0
  %5024 = vmatprep.subr.bf16.mxu0 0
  %5025 = vmatpush1.bf16.msra.mxu0 %v3638
  %5026 = vmatprep.subr.bf16.mxu0 0
  %5027 = vmatpush1.bf16.msra.mxu0 %v3639
  %5028 = vmatprep.subr.bf16.mxu0 0
  %5029 = vmatpush1.bf16.msra.mxu0 %v3640
  %5030 = vmatprep.subr.bf16.mxu0 0
  %5031 = vmatpush1.bf16.msra.mxu0 %v3641
  %5032 = vmatprep.subr.bf16.mxu0 0
  %5033 = vmatpush1.bf16.msra.mxu0 %v3642
  %5034 = vmatprep.subr.bf16.mxu0 0
  %5035 = vmatpush1.bf16.msra.mxu0 %v3643
  %5036 = vmatprep.subr.bf16.mxu0 0
  %5037 = vmatpush1.bf16.msra.mxu0 %v3644
  %5038 = vmatprep.subr.bf16.mxu0 0
  %5039 = vmatpush1.bf16.msra.mxu0 %v3645
  %5040 = vmatprep.subr.bf16.mxu0 0
  %5041 = vmatpush1.bf16.msra.mxu0 %v3646
  %5042 = vmatprep.subr.bf16.mxu0 0
  %5043 = vmatpush1.bf16.msra.mxu0 %v3647
  %5044 = vmatprep.subr.bf16.mxu0 0
  %5045 = vmatpush1.bf16.msra.mxu0 %v3648
  %5046 = vmatprep.subr.bf16.mxu0 0
  %5047 = vmatpush1.bf16.msra.mxu0 %v3649
  %5048 = vmatprep.subr.bf16.mxu0 0
  %5049 = vmatpush1.bf16.msra.mxu0 %v3650
  %5050 = vmatprep.subr.bf16.mxu0 0
  %5051 = vmatpush1.bf16.msra.mxu0 %v3651
  %5052 = vmatprep.subr.bf16.mxu0 0
  %5053 = vmatpush1.bf16.msra.mxu0 %v3652
  %5054 = vmatprep.subr.bf16.mxu0 0
  %5055 = vmatpush1.bf16.msra.mxu0 %v3653
  %5056 = vmatprep.mubr.bf16.mxu0 %v1771
  %5057 = vmatmul.mubr.bf16.gmra.mrb[0].mxu0 %v1770
  %v5058 = vpop.f32.mrb[0].mxu0
  %v5059 = vadd.f32 %v4962, %v5058
  %v5060 = vpop.f32.mrb[0].mxu0
  %v5061 = vpop.f32.mrb[0].mxu0
  %v5062 = vadd.f32 %v4965, %v5061
  %v5063 = vpop.f32.mrb[0].mxu0
  %5064 = vmatprep.mubr.bf16.mxu0 %v1807
  %5065 = vmatmul.mubr.bf16.gmra.mrb[0].mxu0 %v1806
  %v5066 = vpop.f32.mrb[0].mxu0
  %v5067 = vadd.f32 %v4970, %v5066
  %v5068 = vpop.f32.mrb[0].mxu0
  %v5069 = vpop.f32.mrb[0].mxu0
  %v5070 = vadd.f32 %v4973, %v5069
  %v5071 = vpop.f32.mrb[0].mxu0
  %5072 = vmatprep.mubr.bf16.mxu0 %v1843
  %5073 = vmatmul.mubr.bf16.gmra.mrb[0].mxu0 %v1842
  %v5074 = vpop.f32.mrb[0].mxu0
  %v5075 = vadd.f32 %v4978, %v5074
  %v5076 = vpop.f32.mrb[0].mxu0
  %v5077 = vpop.f32.mrb[0].mxu0
  %v5078 = vadd.f32 %v4981, %v5077
  %v5079 = vpop.f32.mrb[0].mxu0
  %5080 = vmatprep.mubr.bf16.mxu0 %v1879
  %5081 = vmatmul.mubr.bf16.gmra.mrb[0].mxu0 %v1878
  %v5082 = vpop.f32.mrb[0].mxu0
  %v5083 = vadd.f32 %v4986, %v5082
  %v5084 = vpop.f32.mrb[0].mxu0
  %v5085 = vpop.f32.mrb[0].mxu0
  %v5086 = vadd.f32 %v4989, %v5085
  %v5087 = vpop.f32.mrb[0].mxu0
  %5088 = vmatprep.mubr.bf16.mxu0 %v1915
  %5089 = vmatmul.mubr.bf16.gmra.mrb[0].mxu0 %v1914
  %v5090 = vpop.f32.mrb[0].mxu0
  %v5091 = vadd.f32 %v4994, %v5090
  %v5092 = vpop.f32.mrb[0].mxu0
  %v5093 = vpop.f32.mrb[0].mxu0
  %v5094 = vadd.f32 %v4997, %v5093
  %v5095 = vpop.f32.mrb[0].mxu0
  %5096 = vmatprep.mubr.bf16.mxu0 %v1951
  %5097 = vmatmul.mubr.bf16.gmra.mrb[0].mxu0 %v1950
  %v5098 = vpop.f32.mrb[0].mxu0
  %v5099 = vadd.f32 %v5002, %v5098
  %v5100 = vpop.f32.mrb[0].mxu0
  %v5101 = vpop.f32.mrb[0].mxu0
  %v5102 = vadd.f32 %v5005, %v5101
  %v5103 = vpop.f32.mrb[0].mxu0
  %5104 = vmatprep.mubr.bf16.mxu0 %v1987
  %5105 = vmatmul.mubr.bf16.gmra.mrb[0].mxu0 %v1986
  %v5106 = vpop.f32.mrb[0].mxu0
  %v5107 = vadd.f32 %v5010, %v5106
  %v5108 = vpop.f32.mrb[0].mxu0
  %v5109 = vpop.f32.mrb[0].mxu0
  %v5110 = vadd.f32 %v5013, %v5109
  %v5111 = vpop.f32.mrb[0].mxu0
  %5112 = vmatprep.mubr.bf16.mxu0 %v2023
  %5113 = vmatmul.mubr.bf16.gmra.mrb[0].mxu0 %v2022
  %v5114 = vpop.f32.mrb[0].mxu0
  %v5115 = vadd.f32 %v5018, %v5114
  %v5116 = vpop.f32.mrb[0].mxu0
  %v5117 = vpop.f32.mrb[0].mxu0
  %v5118 = vadd.f32 %v5021, %v5117
  %v5119 = vpop.f32.mrb[0].mxu0
  %5120 = vdwg.mxu0
  %5121 = vmatprep.subr.bf16.mxu0 0
  %5122 = vmatpush1.bf16.msra.mxu0 %v3654
  %5123 = vmatprep.subr.bf16.mxu0 0
  %5124 = vmatpush1.bf16.msra.mxu0 %v3655
  %5125 = vmatprep.subr.bf16.mxu0 0
  %5126 = vmatpush1.bf16.msra.mxu0 %v3656
  %5127 = vmatprep.subr.bf16.mxu0 0
  %5128 = vmatpush1.bf16.msra.mxu0 %v3657
  %5129 = vmatprep.subr.bf16.mxu0 0
  %5130 = vmatpush1.bf16.msra.mxu0 %v3658
  %5131 = vmatprep.subr.bf16.mxu0 0
  %5132 = vmatpush1.bf16.msra.mxu0 %v3659
  %5133 = vmatprep.subr.bf16.mxu0 0
  %5134 = vmatpush1.bf16.msra.mxu0 %v3660
  %5135 = vmatprep.subr.bf16.mxu0 0
  %5136 = vmatpush1.bf16.msra.mxu0 %v3661
  %5137 = vmatprep.subr.bf16.mxu0 0
  %5138 = vmatpush1.bf16.msra.mxu0 %v3662
  %5139 = vmatprep.subr.bf16.mxu0 0
  %5140 = vmatpush1.bf16.msra.mxu0 %v3663
  %5141 = vmatprep.subr.bf16.mxu0 0
  %5142 = vmatpush1.bf16.msra.mxu0 %v3664
  %5143 = vmatprep.subr.bf16.mxu0 0
  %5144 = vmatpush1.bf16.msra.mxu0 %v3665
  %5145 = vmatprep.subr.bf16.mxu0 0
  %5146 = vmatpush1.bf16.msra.mxu0 %v3666
  %5147 = vmatprep.subr.bf16.mxu0 0
  %5148 = vmatpush1.bf16.msra.mxu0 %v3667
  %5149 = vmatprep.subr.bf16.mxu0 0
  %5150 = vmatpush1.bf16.msra.mxu0 %v3668
  %5151 = vmatprep.subr.bf16.mxu0 0
  %5152 = vmatpush1.bf16.msra.mxu0 %v3669
  %5153 = vmatprep.mubr.bf16.mxu0 %v1773
  %5154 = vmatmul.mubr.bf16.gmra.mrb[0].mxu0 %v1772
  %v5155 = vpop.f32.mrb[0].mxu0
  %v5156 = vadd.f32 %v5059, %v5155
  %v5157 = vpop.f32.mrb[0].mxu0
  %v5158 = vpop.f32.mrb[0].mxu0
  %v5159 = vadd.f32 %v5062, %v5158
  %v5160 = vpop.f32.mrb[0].mxu0
  %5161 = vmatprep.mubr.bf16.mxu0 %v1809
  %5162 = vmatmul.mubr.bf16.gmra.mrb[0].mxu0 %v1808
  %v5163 = vpop.f32.mrb[0].mxu0
  %v5164 = vadd.f32 %v5067, %v5163
  %v5165 = vpop.f32.mrb[0].mxu0
  %v5166 = vpop.f32.mrb[0].mxu0
  %v5167 = vadd.f32 %v5070, %v5166
  %v5168 = vpop.f32.mrb[0].mxu0
  %5169 = vmatprep.mubr.bf16.mxu0 %v1845
  %5170 = vmatmul.mubr.bf16.gmra.mrb[0].mxu0 %v1844
  %v5171 = vpop.f32.mrb[0].mxu0
  %v5172 = vadd.f32 %v5075, %v5171
  %v5173 = vpop.f32.mrb[0].mxu0
  %v5174 = vpop.f32.mrb[0].mxu0
  %v5175 = vadd.f32 %v5078, %v5174
  %v5176 = vpop.f32.mrb[0].mxu0
  %5177 = vmatprep.mubr.bf16.mxu0 %v1881
  %5178 = vmatmul.mubr.bf16.gmra.mrb[0].mxu0 %v1880
  %v5179 = vpop.f32.mrb[0].mxu0
  %v5180 = vadd.f32 %v5083, %v5179
  %v5181 = vpop.f32.mrb[0].mxu0
  %v5182 = vpop.f32.mrb[0].mxu0
  %v5183 = vadd.f32 %v5086, %v5182
  %v5184 = vpop.f32.mrb[0].mxu0
  %5185 = vmatprep.mubr.bf16.mxu0 %v1917
  %5186 = vmatmul.mubr.bf16.gmra.mrb[0].mxu0 %v1916
  %v5187 = vpop.f32.mrb[0].mxu0
  %v5188 = vadd.f32 %v5091, %v5187
  %v5189 = vpop.f32.mrb[0].mxu0
  %v5190 = vpop.f32.mrb[0].mxu0
  %v5191 = vadd.f32 %v5094, %v5190
  %v5192 = vpop.f32.mrb[0].mxu0
  %5193 = vmatprep.mubr.bf16.mxu0 %v1953
  %5194 = vmatmul.mubr.bf16.gmra.mrb[0].mxu0 %v1952
  %v5195 = vpop.f32.mrb[0].mxu0
  %v5196 = vadd.f32 %v5099, %v5195
  %v5197 = vpop.f32.mrb[0].mxu0
  %v5198 = vpop.f32.mrb[0].mxu0
  %v5199 = vadd.f32 %v5102, %v5198
  %v5200 = vpop.f32.mrb[0].mxu0
  %5201 = vmatprep.mubr.bf16.mxu0 %v1989
  %5202 = vmatmul.mubr.bf16.gmra.mrb[0].mxu0 %v1988
  %v5203 = vpop.f32.mrb[0].mxu0
  %v5204 = vadd.f32 %v5107, %v5203
  %v5205 = vpop.f32.mrb[0].mxu0
  %v5206 = vpop.f32.mrb[0].mxu0
  %v5207 = vadd.f32 %v5110, %v5206
  %v5208 = vpop.f32.mrb[0].mxu0
  %5209 = vmatprep.mubr.bf16.mxu0 %v2025
  %5210 = vmatmul.mubr.bf16.gmra.mrb[0].mxu0 %v2024
  %v5211 = vpop.f32.mrb[0].mxu0
  %v5212 = vadd.f32 %v5115, %v5211
  %v5213 = vpop.f32.mrb[0].mxu0
  %v5214 = vpop.f32.mrb[0].mxu0
  %v5215 = vadd.f32 %v5118, %v5214
  %v5216 = vpop.f32.mrb[0].mxu0
  %5217 = vdwg.mxu0
  %5218 = vmatprep.subr.bf16.mxu0 0
  %5219 = vmatpush1.bf16.msra.mxu0 %v3670
  %5220 = vmatprep.subr.bf16.mxu0 0
  %5221 = vmatpush1.bf16.msra.mxu0 %v3671
  %5222 = vmatprep.subr.bf16.mxu0 0
  %5223 = vmatpush1.bf16.msra.mxu0 %v3672
  %5224 = vmatprep.subr.bf16.mxu0 0
  %5225 = vmatpush1.bf16.msra.mxu0 %v3673
  %5226 = vmatprep.subr.bf16.mxu0 0
  %5227 = vmatpush1.bf16.msra.mxu0 %v3674
  %5228 = vmatprep.subr.bf16.mxu0 0
  %5229 = vmatpush1.bf16.msra.mxu0 %v3675
  %5230 = vmatprep.subr.bf16.mxu0 0
  %5231 = vmatpush1.bf16.msra.mxu0 %v3676
  %5232 = vmatprep.subr.bf16.mxu0 0
  %5233 = vmatpush1.bf16.msra.mxu0 %v3677
  %5234 = vmatprep.subr.bf16.mxu0 0
  %5235 = vmatpush1.bf16.msra.mxu0 %v3678
  %5236 = vmatprep.subr.bf16.mxu0 0
  %5237 = vmatpush1.bf16.msra.mxu0 %v3679
  %5238 = vmatprep.subr.bf16.mxu0 0
  %5239 = vmatpush1.bf16.msra.mxu0 %v3680
  %5240 = vmatprep.subr.bf16.mxu0 0
  %5241 = vmatpush1.bf16.msra.mxu0 %v3681
  %5242 = vmatprep.subr.bf16.mxu0 0
  %5243 = vmatpush1.bf16.msra.mxu0 %v3682
  %5244 = vmatprep.subr.bf16.mxu0 0
  %5245 = vmatpush1.bf16.msra.mxu0 %v3683
  %5246 = vmatprep.subr.bf16.mxu0 0
  %5247 = vmatpush1.bf16.msra.mxu0 %v3684
  %5248 = vmatprep.subr.bf16.mxu0 0
  %5249 = vmatpush1.bf16.msra.mxu0 %v3685
  %5250 = vmatprep.mubr.bf16.mxu0 %v1775
  %5251 = vmatmul.mubr.bf16.gmra.mrb[0].mxu0 %v1774
  %v5252 = vpop.f32.mrb[0].mxu0
  %v5253 = vadd.f32 %v5156, %v5252
  %v5254 = vpop.f32.mrb[0].mxu0
  %v5255 = vpop.f32.mrb[0].mxu0
  %v5256 = vadd.f32 %v5159, %v5255
  %v5257 = vpop.f32.mrb[0].mxu0
  %5258 = vmatprep.mubr.bf16.mxu0 %v1811
  %5259 = vmatmul.mubr.bf16.gmra.mrb[0].mxu0 %v1810
  %v5260 = vpop.f32.mrb[0].mxu0
  %v5261 = vadd.f32 %v5164, %v5260
  %v5262 = vpop.f32.mrb[0].mxu0
  %v5263 = vpop.f32.mrb[0].mxu0
  %v5264 = vadd.f32 %v5167, %v5263
  %v5265 = vpop.f32.mrb[0].mxu0
  %5266 = vmatprep.mubr.bf16.mxu0 %v1847
  %5267 = vmatmul.mubr.bf16.gmra.mrb[0].mxu0 %v1846
  %v5268 = vpop.f32.mrb[0].mxu0
  %v5269 = vadd.f32 %v5172, %v5268
  %v5270 = vpop.f32.mrb[0].mxu0
  %v5271 = vpop.f32.mrb[0].mxu0
  %v5272 = vadd.f32 %v5175, %v5271
  %v5273 = vpop.f32.mrb[0].mxu0
  %5274 = vmatprep.mubr.bf16.mxu0 %v1883
  %5275 = vmatmul.mubr.bf16.gmra.mrb[0].mxu0 %v1882
  %v5276 = vpop.f32.mrb[0].mxu0
  %v5277 = vadd.f32 %v5180, %v5276
  %v5278 = vpop.f32.mrb[0].mxu0
  %v5279 = vpop.f32.mrb[0].mxu0
  %v5280 = vadd.f32 %v5183, %v5279
  %v5281 = vpop.f32.mrb[0].mxu0
  %5282 = vmatprep.mubr.bf16.mxu0 %v1919
  %5283 = vmatmul.mubr.bf16.gmra.mrb[0].mxu0 %v1918
  %v5284 = vpop.f32.mrb[0].mxu0
  %v5285 = vadd.f32 %v5188, %v5284
  %v5286 = vpop.f32.mrb[0].mxu0
  %v5287 = vpop.f32.mrb[0].mxu0
  %v5288 = vadd.f32 %v5191, %v5287
  %v5289 = vpop.f32.mrb[0].mxu0
  %5290 = vmatprep.mubr.bf16.mxu0 %v1955
  %5291 = vmatmul.mubr.bf16.gmra.mrb[0].mxu0 %v1954
  %v5292 = vpop.f32.mrb[0].mxu0
  %v5293 = vadd.f32 %v5196, %v5292
  %v5294 = vpop.f32.mrb[0].mxu0
  %v5295 = vpop.f32.mrb[0].mxu0
  %v5296 = vadd.f32 %v5199, %v5295
  %v5297 = vpop.f32.mrb[0].mxu0
  %5298 = vmatprep.mubr.bf16.mxu0 %v1991
  %5299 = vmatmul.mubr.bf16.gmra.mrb[0].mxu0 %v1990
  %v5300 = vpop.f32.mrb[0].mxu0
  %v5301 = vadd.f32 %v5204, %v5300
  %v5302 = vpop.f32.mrb[0].mxu0
  %v5303 = vpop.f32.mrb[0].mxu0
  %v5304 = vadd.f32 %v5207, %v5303
  %v5305 = vpop.f32.mrb[0].mxu0
  %5306 = vmatprep.mubr.bf16.mxu0 %v2027
  %5307 = vmatmul.mubr.bf16.gmra.mrb[0].mxu0 %v2026
  %v5308 = vpop.f32.mrb[0].mxu0
  %v5309 = vadd.f32 %v5212, %v5308
  %v5310 = vpop.f32.mrb[0].mxu0
  %v5311 = vpop.f32.mrb[0].mxu0
  %v5312 = vadd.f32 %v5215, %v5311
  %v5313 = vpop.f32.mrb[0].mxu0
  %5314 = vdwg.mxu0
  %5315 = vmatprep.subr.bf16.mxu0 0
  %5316 = vmatpush1.bf16.msra.mxu0 %v3686
  %5317 = vmatprep.subr.bf16.mxu0 0
  %5318 = vmatpush1.bf16.msra.mxu0 %v3687
  %5319 = vmatprep.subr.bf16.mxu0 0
  %5320 = vmatpush1.bf16.msra.mxu0 %v3688
  %5321 = vmatprep.subr.bf16.mxu0 0
  %5322 = vmatpush1.bf16.msra.mxu0 %v3689
  %5323 = vmatprep.subr.bf16.mxu0 0
  %5324 = vmatpush1.bf16.msra.mxu0 %v3690
  %5325 = vmatprep.subr.bf16.mxu0 0
  %5326 = vmatpush1.bf16.msra.mxu0 %v3691
  %5327 = vmatprep.subr.bf16.mxu0 0
  %5328 = vmatpush1.bf16.msra.mxu0 %v3692
  %5329 = vmatprep.subr.bf16.mxu0 0
  %5330 = vmatpush1.bf16.msra.mxu0 %v3693
  %5331 = vmatprep.subr.bf16.mxu0 0
  %5332 = vmatpush1.bf16.msra.mxu0 %v3694
  %5333 = vmatprep.subr.bf16.mxu0 0
  %5334 = vmatpush1.bf16.msra.mxu0 %v3695
  %5335 = vmatprep.subr.bf16.mxu0 0
  %5336 = vmatpush1.bf16.msra.mxu0 %v3696
  %5337 = vmatprep.subr.bf16.mxu0 0
  %5338 = vmatpush1.bf16.msra.mxu0 %v3697
  %5339 = vmatprep.subr.bf16.mxu0 0
  %5340 = vmatpush1.bf16.msra.mxu0 %v3698
  %5341 = vmatprep.subr.bf16.mxu0 0
  %5342 = vmatpush1.bf16.msra.mxu0 %v3699
  %5343 = vmatprep.subr.bf16.mxu0 0
  %5344 = vmatpush1.bf16.msra.mxu0 %v3700
  %5345 = vmatprep.subr.bf16.mxu0 0
  %5346 = vmatpush1.bf16.msra.mxu0 %v3701
  %5347 = vmatprep.mubr.bf16.mxu0 %v1777
  %5348 = vmatmul.mubr.bf16.gmra.mrb[0].mxu0 %v1776
  %v5349 = vpop.f32.mrb[0].mxu0
  %v5350 = vadd.f32 %v5253, %v5349
  %v5351 = vpop.f32.mrb[0].mxu0
  %v5352 = vpop.f32.mrb[0].mxu0
  %v5353 = vadd.f32 %v5256, %v5352
  %v5354 = vpop.f32.mrb[0].mxu0
  %5355 = vmatprep.mubr.bf16.mxu0 %v1813
  %5356 = vmatmul.mubr.bf16.gmra.mrb[0].mxu0 %v1812
  %v5357 = vpop.f32.mrb[0].mxu0
  %v5358 = vadd.f32 %v5261, %v5357
  %v5359 = vpop.f32.mrb[0].mxu0
  %v5360 = vpop.f32.mrb[0].mxu0
  %v5361 = vadd.f32 %v5264, %v5360
  %v5362 = vpop.f32.mrb[0].mxu0
  %5363 = vmatprep.mubr.bf16.mxu0 %v1849
  %5364 = vmatmul.mubr.bf16.gmra.mrb[0].mxu0 %v1848
  %v5365 = vpop.f32.mrb[0].mxu0
  %v5366 = vadd.f32 %v5269, %v5365
  %v5367 = vpop.f32.mrb[0].mxu0
  %v5368 = vpop.f32.mrb[0].mxu0
  %v5369 = vadd.f32 %v5272, %v5368
  %v5370 = vpop.f32.mrb[0].mxu0
  %5371 = vmatprep.mubr.bf16.mxu0 %v1885
  %5372 = vmatmul.mubr.bf16.gmra.mrb[0].mxu0 %v1884
  %v5373 = vpop.f32.mrb[0].mxu0
  %v5374 = vadd.f32 %v5277, %v5373
  %v5375 = vpop.f32.mrb[0].mxu0
  %v5376 = vpop.f32.mrb[0].mxu0
  %v5377 = vadd.f32 %v5280, %v5376
  %v5378 = vpop.f32.mrb[0].mxu0
  %5379 = vmatprep.mubr.bf16.mxu0 %v1921
  %5380 = vmatmul.mubr.bf16.gmra.mrb[0].mxu0 %v1920
  %v5381 = vpop.f32.mrb[0].mxu0
  %v5382 = vadd.f32 %v5285, %v5381
  %v5383 = vpop.f32.mrb[0].mxu0
  %v5384 = vpop.f32.mrb[0].mxu0
  %v5385 = vadd.f32 %v5288, %v5384
  %v5386 = vpop.f32.mrb[0].mxu0
  %5387 = vmatprep.mubr.bf16.mxu0 %v1957
  %5388 = vmatmul.mubr.bf16.gmra.mrb[0].mxu0 %v1956
  %v5389 = vpop.f32.mrb[0].mxu0
  %v5390 = vadd.f32 %v5293, %v5389
  %v5391 = vpop.f32.mrb[0].mxu0
  %v5392 = vpop.f32.mrb[0].mxu0
  %v5393 = vadd.f32 %v5296, %v5392
  %v5394 = vpop.f32.mrb[0].mxu0
  %5395 = vmatprep.mubr.bf16.mxu0 %v1993
  %5396 = vmatmul.mubr.bf16.gmra.mrb[0].mxu0 %v1992
  %v5397 = vpop.f32.mrb[0].mxu0
  %v5398 = vadd.f32 %v5301, %v5397
  %v5399 = vpop.f32.mrb[0].mxu0
  %v5400 = vpop.f32.mrb[0].mxu0
  %v5401 = vadd.f32 %v5304, %v5400
  %v5402 = vpop.f32.mrb[0].mxu0
  %5403 = vmatprep.mubr.bf16.mxu0 %v2029
  %5404 = vmatmul.mubr.bf16.gmra.mrb[0].mxu0 %v2028
  %v5405 = vpop.f32.mrb[0].mxu0
  %v5406 = vadd.f32 %v5309, %v5405
  %v5407 = vpop.f32.mrb[0].mxu0
  %v5408 = vpop.f32.mrb[0].mxu0
  %v5409 = vadd.f32 %v5312, %v5408
  %v5410 = vpop.f32.mrb[0].mxu0
  %5411 = vdwg.mxu0
  %5412 = vmatprep.subr.bf16.mxu0 0
  %5413 = vmatpush1.bf16.msra.mxu0 %v3702
  %5414 = vmatprep.subr.bf16.mxu0 0
  %5415 = vmatpush1.bf16.msra.mxu0 %v3703
  %5416 = vmatprep.subr.bf16.mxu0 0
  %5417 = vmatpush1.bf16.msra.mxu0 %v3704
  %5418 = vmatprep.subr.bf16.mxu0 0
  %5419 = vmatpush1.bf16.msra.mxu0 %v3705
  %5420 = vmatprep.subr.bf16.mxu0 0
  %5421 = vmatpush1.bf16.msra.mxu0 %v3706
  %5422 = vmatprep.subr.bf16.mxu0 0
  %5423 = vmatpush1.bf16.msra.mxu0 %v3707
  %5424 = vmatprep.subr.bf16.mxu0 0
  %5425 = vmatpush1.bf16.msra.mxu0 %v3708
  %5426 = vmatprep.subr.bf16.mxu0 0
  %5427 = vmatpush1.bf16.msra.mxu0 %v3709
  %5428 = vmatprep.subr.bf16.mxu0 0
  %5429 = vmatpush1.bf16.msra.mxu0 %v3710
  %5430 = vmatprep.subr.bf16.mxu0 0
  %5431 = vmatpush1.bf16.msra.mxu0 %v3711
  %5432 = vmatprep.subr.bf16.mxu0 0
  %5433 = vmatpush1.bf16.msra.mxu0 %v3712
  %5434 = vmatprep.subr.bf16.mxu0 0
  %5435 = vmatpush1.bf16.msra.mxu0 %v3713
  %5436 = vmatprep.subr.bf16.mxu0 0
  %5437 = vmatpush1.bf16.msra.mxu0 %v3714
  %5438 = vmatprep.subr.bf16.mxu0 0
  %5439 = vmatpush1.bf16.msra.mxu0 %v3715
  %5440 = vmatprep.subr.bf16.mxu0 0
  %5441 = vmatpush1.bf16.msra.mxu0 %v3716
  %5442 = vmatprep.subr.bf16.mxu0 0
  %5443 = vmatpush1.bf16.msra.mxu0 %v3717
  %5444 = vmatprep.mubr.bf16.mxu0 %v1779
  %5445 = vmatmul.mubr.bf16.gmra.mrb[0].mxu0 %v1778
  %v5446 = vpop.f32.mrb[0].mxu0
  %v5447 = vadd.f32 %v5350, %v5446
  %v5448 = vpop.f32.mrb[0].mxu0
  %v5449 = vpop.f32.mrb[0].mxu0
  %v5450 = vadd.f32 %v5353, %v5449
  %v5451 = vpop.f32.mrb[0].mxu0
  %5452 = vmatprep.mubr.bf16.mxu0 %v1815
  %5453 = vmatmul.mubr.bf16.gmra.mrb[0].mxu0 %v1814
  %v5454 = vpop.f32.mrb[0].mxu0
  %v5455 = vadd.f32 %v5358, %v5454
  %v5456 = vpop.f32.mrb[0].mxu0
  %v5457 = vpop.f32.mrb[0].mxu0
  %v5458 = vadd.f32 %v5361, %v5457
  %v5459 = vpop.f32.mrb[0].mxu0
  %5460 = vmatprep.mubr.bf16.mxu0 %v1851
  %5461 = vmatmul.mubr.bf16.gmra.mrb[0].mxu0 %v1850
  %v5462 = vpop.f32.mrb[0].mxu0
  %v5463 = vadd.f32 %v5366, %v5462
  %v5464 = vpop.f32.mrb[0].mxu0
  %v5465 = vpop.f32.mrb[0].mxu0
  %v5466 = vadd.f32 %v5369, %v5465
  %v5467 = vpop.f32.mrb[0].mxu0
  %5468 = vmatprep.mubr.bf16.mxu0 %v1887
  %5469 = vmatmul.mubr.bf16.gmra.mrb[0].mxu0 %v1886
  %v5470 = vpop.f32.mrb[0].mxu0
  %v5471 = vadd.f32 %v5374, %v5470
  %v5472 = vpop.f32.mrb[0].mxu0
  %v5473 = vpop.f32.mrb[0].mxu0
  %v5474 = vadd.f32 %v5377, %v5473
  %v5475 = vpop.f32.mrb[0].mxu0
  %5476 = vmatprep.mubr.bf16.mxu0 %v1923
  %5477 = vmatmul.mubr.bf16.gmra.mrb[0].mxu0 %v1922
  %v5478 = vpop.f32.mrb[0].mxu0
  %v5479 = vadd.f32 %v5382, %v5478
  %v5480 = vpop.f32.mrb[0].mxu0
  %v5481 = vpop.f32.mrb[0].mxu0
  %v5482 = vadd.f32 %v5385, %v5481
  %v5483 = vpop.f32.mrb[0].mxu0
  %5484 = vmatprep.mubr.bf16.mxu0 %v1959
  %5485 = vmatmul.mubr.bf16.gmra.mrb[0].mxu0 %v1958
  %v5486 = vpop.f32.mrb[0].mxu0
  %v5487 = vadd.f32 %v5390, %v5486
  %v5488 = vpop.f32.mrb[0].mxu0
  %v5489 = vpop.f32.mrb[0].mxu0
  %v5490 = vadd.f32 %v5393, %v5489
  %v5491 = vpop.f32.mrb[0].mxu0
  %5492 = vmatprep.mubr.bf16.mxu0 %v1995
  %5493 = vmatmul.mubr.bf16.gmra.mrb[0].mxu0 %v1994
  %v5494 = vpop.f32.mrb[0].mxu0
  %v5495 = vadd.f32 %v5398, %v5494
  %v5496 = vpop.f32.mrb[0].mxu0
  %v5497 = vpop.f32.mrb[0].mxu0
  %v5498 = vadd.f32 %v5401, %v5497
  %v5499 = vpop.f32.mrb[0].mxu0
  %5500 = vmatprep.mubr.bf16.mxu0 %v2031
  %5501 = vmatmul.mubr.bf16.gmra.mrb[0].mxu0 %v2030
  %v5502 = vpop.f32.mrb[0].mxu0
  %v5503 = vadd.f32 %v5406, %v5502
  %v5504 = vpop.f32.mrb[0].mxu0
  %v5505 = vpop.f32.mrb[0].mxu0
  %v5506 = vadd.f32 %v5409, %v5505
  %v5507 = vpop.f32.mrb[0].mxu0
  %5508 = vdwg.mxu0
  %5509 = vmatprep.subr.bf16.mxu0 0
  %5510 = vmatpush1.bf16.msra.mxu0 %v3718
  %5511 = vmatprep.subr.bf16.mxu0 0
  %5512 = vmatpush1.bf16.msra.mxu0 %v3719
  %5513 = vmatprep.subr.bf16.mxu0 0
  %5514 = vmatpush1.bf16.msra.mxu0 %v3720
  %5515 = vmatprep.subr.bf16.mxu0 0
  %5516 = vmatpush1.bf16.msra.mxu0 %v3721
  %5517 = vmatprep.subr.bf16.mxu0 0
  %5518 = vmatpush1.bf16.msra.mxu0 %v3722
  %5519 = vmatprep.subr.bf16.mxu0 0
  %5520 = vmatpush1.bf16.msra.mxu0 %v3723
  %5521 = vmatprep.subr.bf16.mxu0 0
  %5522 = vmatpush1.bf16.msra.mxu0 %v3724
  %5523 = vmatprep.subr.bf16.mxu0 0
  %5524 = vmatpush1.bf16.msra.mxu0 %v3725
  %5525 = vmatprep.subr.bf16.mxu0 0
  %5526 = vmatpush1.bf16.msra.mxu0 %v3726
  %5527 = vmatprep.subr.bf16.mxu0 0
  %5528 = vmatpush1.bf16.msra.mxu0 %v3727
  %5529 = vmatprep.subr.bf16.mxu0 0
  %5530 = vmatpush1.bf16.msra.mxu0 %v3728
  %5531 = vmatprep.subr.bf16.mxu0 0
  %5532 = vmatpush1.bf16.msra.mxu0 %v3729
  %5533 = vmatprep.subr.bf16.mxu0 0
  %5534 = vmatpush1.bf16.msra.mxu0 %v3730
  %5535 = vmatprep.subr.bf16.mxu0 0
  %5536 = vmatpush1.bf16.msra.mxu0 %v3731
  %5537 = vmatprep.subr.bf16.mxu0 0
  %5538 = vmatpush1.bf16.msra.mxu0 %v3732
  %5539 = vmatprep.subr.bf16.mxu0 0
  %5540 = vmatpush1.bf16.msra.mxu0 %v3733
  %5541 = vmatprep.mubr.bf16.mxu0 %v1781
  %5542 = vmatmul.mubr.bf16.gmra.mrb[0].mxu0 %v1780
  %v5543 = vpop.f32.mrb[0].mxu0
  %v5544 = vadd.f32 %v5447, %v5543
  %v5545 = vpop.f32.mrb[0].mxu0
  %v5546 = vpop.f32.mrb[0].mxu0
  %v5547 = vadd.f32 %v5450, %v5546
  %v5548 = vpop.f32.mrb[0].mxu0
  %5549 = vmatprep.mubr.bf16.mxu0 %v1817
  %5550 = vmatmul.mubr.bf16.gmra.mrb[0].mxu0 %v1816
  %v5551 = vpop.f32.mrb[0].mxu0
  %v5552 = vadd.f32 %v5455, %v5551
  %v5553 = vpop.f32.mrb[0].mxu0
  %v5554 = vpop.f32.mrb[0].mxu0
  %v5555 = vadd.f32 %v5458, %v5554
  %v5556 = vpop.f32.mrb[0].mxu0
  %5557 = vmatprep.mubr.bf16.mxu0 %v1853
  %5558 = vmatmul.mubr.bf16.gmra.mrb[0].mxu0 %v1852
  %v5559 = vpop.f32.mrb[0].mxu0
  %v5560 = vadd.f32 %v5463, %v5559
  %v5561 = vpop.f32.mrb[0].mxu0
  %v5562 = vpop.f32.mrb[0].mxu0
  %v5563 = vadd.f32 %v5466, %v5562
  %v5564 = vpop.f32.mrb[0].mxu0
  %5565 = vmatprep.mubr.bf16.mxu0 %v1889
  %5566 = vmatmul.mubr.bf16.gmra.mrb[0].mxu0 %v1888
  %v5567 = vpop.f32.mrb[0].mxu0
  %v5568 = vadd.f32 %v5471, %v5567
  %v5569 = vpop.f32.mrb[0].mxu0
  %v5570 = vpop.f32.mrb[0].mxu0
  %v5571 = vadd.f32 %v5474, %v5570
  %v5572 = vpop.f32.mrb[0].mxu0
  %5573 = vmatprep.mubr.bf16.mxu0 %v1925
  %5574 = vmatmul.mubr.bf16.gmra.mrb[0].mxu0 %v1924
  %v5575 = vpop.f32.mrb[0].mxu0
  %v5576 = vadd.f32 %v5479, %v5575
  %v5577 = vpop.f32.mrb[0].mxu0
  %v5578 = vpop.f32.mrb[0].mxu0
  %v5579 = vadd.f32 %v5482, %v5578
  %v5580 = vpop.f32.mrb[0].mxu0
  %5581 = vmatprep.mubr.bf16.mxu0 %v1961
  %5582 = vmatmul.mubr.bf16.gmra.mrb[0].mxu0 %v1960
  %v5583 = vpop.f32.mrb[0].mxu0
  %v5584 = vadd.f32 %v5487, %v5583
  %v5585 = vpop.f32.mrb[0].mxu0
  %v5586 = vpop.f32.mrb[0].mxu0
  %v5587 = vadd.f32 %v5490, %v5586
  %v5588 = vpop.f32.mrb[0].mxu0
  %5589 = vmatprep.mubr.bf16.mxu0 %v1997
  %5590 = vmatmul.mubr.bf16.gmra.mrb[0].mxu0 %v1996
  %v5591 = vpop.f32.mrb[0].mxu0
  %v5592 = vadd.f32 %v5495, %v5591
  %v5593 = vpop.f32.mrb[0].mxu0
  %v5594 = vpop.f32.mrb[0].mxu0
  %v5595 = vadd.f32 %v5498, %v5594
  %v5596 = vpop.f32.mrb[0].mxu0
  %5597 = vmatprep.mubr.bf16.mxu0 %v2033
  %5598 = vmatmul.mubr.bf16.gmra.mrb[0].mxu0 %v2032
  %v5599 = vpop.f32.mrb[0].mxu0
  %v5600 = vadd.f32 %v5503, %v5599
  %v5601 = vpop.f32.mrb[0].mxu0
  %v5602 = vpop.f32.mrb[0].mxu0
  %v5603 = vadd.f32 %v5506, %v5602
  %v5604 = vpop.f32.mrb[0].mxu0
  %5605 = vdwg.mxu0
  %5606 = vmatprep.subr.bf16.mxu0 0
  %5607 = vmatpush1.bf16.msra.mxu0 %v3734
  %5608 = vmatprep.subr.bf16.mxu0 0
  %5609 = vmatpush1.bf16.msra.mxu0 %v3735
  %5610 = vmatprep.subr.bf16.mxu0 0
  %5611 = vmatpush1.bf16.msra.mxu0 %v3736
  %5612 = vmatprep.subr.bf16.mxu0 0
  %5613 = vmatpush1.bf16.msra.mxu0 %v3737
  %5614 = vmatprep.subr.bf16.mxu0 0
  %5615 = vmatpush1.bf16.msra.mxu0 %v3738
  %5616 = vmatprep.subr.bf16.mxu0 0
  %5617 = vmatpush1.bf16.msra.mxu0 %v3739
  %5618 = vmatprep.subr.bf16.mxu0 0
  %5619 = vmatpush1.bf16.msra.mxu0 %v3740
  %5620 = vmatprep.subr.bf16.mxu0 0
  %5621 = vmatpush1.bf16.msra.mxu0 %v3741
  %5622 = vmatprep.subr.bf16.mxu0 0
  %5623 = vmatpush1.bf16.msra.mxu0 %v3742
  %5624 = vmatprep.subr.bf16.mxu0 0
  %5625 = vmatpush1.bf16.msra.mxu0 %v3743
  %5626 = vmatprep.subr.bf16.mxu0 0
  %5627 = vmatpush1.bf16.msra.mxu0 %v3744
  %5628 = vmatprep.subr.bf16.mxu0 0
  %5629 = vmatpush1.bf16.msra.mxu0 %v3745
  %5630 = vmatprep.subr.bf16.mxu0 0
  %5631 = vmatpush1.bf16.msra.mxu0 %v3746
  %5632 = vmatprep.subr.bf16.mxu0 0
  %5633 = vmatpush1.bf16.msra.mxu0 %v3747
  %5634 = vmatprep.subr.bf16.mxu0 0
  %5635 = vmatpush1.bf16.msra.mxu0 %v3748
  %5636 = vmatprep.subr.bf16.mxu0 0
  %5637 = vmatpush1.bf16.msra.mxu0 %v3749
  %5638 = vmatprep.mubr.bf16.mxu0 %v1783
  %5639 = vmatmul.mubr.bf16.gmra.mrb[0].mxu0 %v1782
  %v5640 = vpop.f32.mrb[0].mxu0
  %v5641 = vadd.f32 %v5544, %v5640
  %v5642 = vpop.f32.mrb[0].mxu0
  %v5643 = vpop.f32.mrb[0].mxu0
  %v5644 = vadd.f32 %v5547, %v5643
  %v5645 = vpop.f32.mrb[0].mxu0
  %5646 = vmatprep.mubr.bf16.mxu0 %v1819
  %5647 = vmatmul.mubr.bf16.gmra.mrb[0].mxu0 %v1818
  %v5648 = vpop.f32.mrb[0].mxu0
  %v5649 = vadd.f32 %v5552, %v5648
  %v5650 = vpop.f32.mrb[0].mxu0
  %v5651 = vpop.f32.mrb[0].mxu0
  %v5652 = vadd.f32 %v5555, %v5651
  %v5653 = vpop.f32.mrb[0].mxu0
  %5654 = vmatprep.mubr.bf16.mxu0 %v1855
  %5655 = vmatmul.mubr.bf16.gmra.mrb[0].mxu0 %v1854
  %v5656 = vpop.f32.mrb[0].mxu0
  %v5657 = vadd.f32 %v5560, %v5656
  %v5658 = vpop.f32.mrb[0].mxu0
  %v5659 = vpop.f32.mrb[0].mxu0
  %v5660 = vadd.f32 %v5563, %v5659
  %v5661 = vpop.f32.mrb[0].mxu0
  %5662 = vmatprep.mubr.bf16.mxu0 %v1891
  %5663 = vmatmul.mubr.bf16.gmra.mrb[0].mxu0 %v1890
  %v5664 = vpop.f32.mrb[0].mxu0
  %v5665 = vadd.f32 %v5568, %v5664
  %v5666 = vpop.f32.mrb[0].mxu0
  %v5667 = vpop.f32.mrb[0].mxu0
  %v5668 = vadd.f32 %v5571, %v5667
  %v5669 = vpop.f32.mrb[0].mxu0
  %5670 = vmatprep.mubr.bf16.mxu0 %v1927
  %5671 = vmatmul.mubr.bf16.gmra.mrb[0].mxu0 %v1926
  %v5672 = vpop.f32.mrb[0].mxu0
  %v5673 = vadd.f32 %v5576, %v5672
  %v5674 = vpop.f32.mrb[0].mxu0
  %v5675 = vpop.f32.mrb[0].mxu0
  %v5676 = vadd.f32 %v5579, %v5675
  %v5677 = vpop.f32.mrb[0].mxu0
  %5678 = vmatprep.mubr.bf16.mxu0 %v1963
  %5679 = vmatmul.mubr.bf16.gmra.mrb[0].mxu0 %v1962
  %v5680 = vpop.f32.mrb[0].mxu0
  %v5681 = vadd.f32 %v5584, %v5680
  %v5682 = vpop.f32.mrb[0].mxu0
  %v5683 = vpop.f32.mrb[0].mxu0
  %v5684 = vadd.f32 %v5587, %v5683
  %v5685 = vpop.f32.mrb[0].mxu0
  %5686 = vmatprep.mubr.bf16.mxu0 %v1999
  %5687 = vmatmul.mubr.bf16.gmra.mrb[0].mxu0 %v1998
  %v5688 = vpop.f32.mrb[0].mxu0
  %v5689 = vadd.f32 %v5592, %v5688
  %v5690 = vpop.f32.mrb[0].mxu0
  %v5691 = vpop.f32.mrb[0].mxu0
  %v5692 = vadd.f32 %v5595, %v5691
  %v5693 = vpop.f32.mrb[0].mxu0
  %5694 = vmatprep.mubr.bf16.mxu0 %v2035
  %5695 = vmatmul.mubr.bf16.gmra.mrb[0].mxu0 %v2034
  %v5696 = vpop.f32.mrb[0].mxu0
  %v5697 = vadd.f32 %v5600, %v5696
  %v5698 = vpop.f32.mrb[0].mxu0
  %v5699 = vpop.f32.mrb[0].mxu0
  %v5700 = vadd.f32 %v5603, %v5699
  %v5701 = vpop.f32.mrb[0].mxu0
  %5702 = vdwg.mxu0
  %5703 = vmatprep.subr.bf16.mxu0 0
  %5704 = vmatpush1.bf16.msra.mxu0 %v3750
  %5705 = vmatprep.subr.bf16.mxu0 0
  %5706 = vmatpush1.bf16.msra.mxu0 %v3751
  %5707 = vmatprep.subr.bf16.mxu0 0
  %5708 = vmatpush1.bf16.msra.mxu0 %v3752
  %5709 = vmatprep.subr.bf16.mxu0 0
  %5710 = vmatpush1.bf16.msra.mxu0 %v3753
  %5711 = vmatprep.subr.bf16.mxu0 0
  %5712 = vmatpush1.bf16.msra.mxu0 %v3754
  %5713 = vmatprep.subr.bf16.mxu0 0
  %5714 = vmatpush1.bf16.msra.mxu0 %v3755
  %5715 = vmatprep.subr.bf16.mxu0 0
  %5716 = vmatpush1.bf16.msra.mxu0 %v3756
  %5717 = vmatprep.subr.bf16.mxu0 0
  %5718 = vmatpush1.bf16.msra.mxu0 %v3757
  %5719 = vmatprep.subr.bf16.mxu0 0
  %5720 = vmatpush1.bf16.msra.mxu0 %v3758
  %5721 = vmatprep.subr.bf16.mxu0 0
  %5722 = vmatpush1.bf16.msra.mxu0 %v3759
  %5723 = vmatprep.subr.bf16.mxu0 0
  %5724 = vmatpush1.bf16.msra.mxu0 %v3760
  %5725 = vmatprep.subr.bf16.mxu0 0
  %5726 = vmatpush1.bf16.msra.mxu0 %v3761
  %5727 = vmatprep.subr.bf16.mxu0 0
  %5728 = vmatpush1.bf16.msra.mxu0 %v3762
  %5729 = vmatprep.subr.bf16.mxu0 0
  %5730 = vmatpush1.bf16.msra.mxu0 %v3763
  %5731 = vmatprep.subr.bf16.mxu0 0
  %5732 = vmatpush1.bf16.msra.mxu0 %v3764
  %5733 = vmatprep.subr.bf16.mxu0 0
  %5734 = vmatpush1.bf16.msra.mxu0 %v3765
  %5735 = vmatprep.mubr.bf16.mxu0 %v1785
  %5736 = vmatmul.mubr.bf16.gmra.mrb[0].mxu0 %v1784
  %v5737 = vpop.f32.mrb[0].mxu0
  %v5738 = vadd.f32 %v5641, %v5737
  %v5739 = vpop.f32.mrb[0].mxu0
  %v5740 = vpop.f32.mrb[0].mxu0
  %v5741 = vadd.f32 %v5644, %v5740
  %v5742 = vpop.f32.mrb[0].mxu0
  %5743 = vmatprep.mubr.bf16.mxu0 %v1821
  %5744 = vmatmul.mubr.bf16.gmra.mrb[0].mxu0 %v1820
  %v5745 = vpop.f32.mrb[0].mxu0
  %v5746 = vadd.f32 %v5649, %v5745
  %v5747 = vpop.f32.mrb[0].mxu0
  %v5748 = vpop.f32.mrb[0].mxu0
  %v5749 = vadd.f32 %v5652, %v5748
  %v5750 = vpop.f32.mrb[0].mxu0
  %5751 = vmatprep.mubr.bf16.mxu0 %v1857
  %5752 = vmatmul.mubr.bf16.gmra.mrb[0].mxu0 %v1856
  %v5753 = vpop.f32.mrb[0].mxu0
  %v5754 = vadd.f32 %v5657, %v5753
  %v5755 = vpop.f32.mrb[0].mxu0
  %v5756 = vpop.f32.mrb[0].mxu0
  %v5757 = vadd.f32 %v5660, %v5756
  %v5758 = vpop.f32.mrb[0].mxu0
  %5759 = vmatprep.mubr.bf16.mxu0 %v1893
  %5760 = vmatmul.mubr.bf16.gmra.mrb[0].mxu0 %v1892
  %v5761 = vpop.f32.mrb[0].mxu0
  %v5762 = vadd.f32 %v5665, %v5761
  %v5763 = vpop.f32.mrb[0].mxu0
  %v5764 = vpop.f32.mrb[0].mxu0
  %v5765 = vadd.f32 %v5668, %v5764
  %v5766 = vpop.f32.mrb[0].mxu0
  %5767 = vmatprep.mubr.bf16.mxu0 %v1929
  %5768 = vmatmul.mubr.bf16.gmra.mrb[0].mxu0 %v1928
  %v5769 = vpop.f32.mrb[0].mxu0
  %v5770 = vadd.f32 %v5673, %v5769
  %v5771 = vpop.f32.mrb[0].mxu0
  %v5772 = vpop.f32.mrb[0].mxu0
  %v5773 = vadd.f32 %v5676, %v5772
  %v5774 = vpop.f32.mrb[0].mxu0
  %5775 = vmatprep.mubr.bf16.mxu0 %v1965
  %5776 = vmatmul.mubr.bf16.gmra.mrb[0].mxu0 %v1964
  %v5777 = vpop.f32.mrb[0].mxu0
  %v5778 = vadd.f32 %v5681, %v5777
  %v5779 = vpop.f32.mrb[0].mxu0
  %v5780 = vpop.f32.mrb[0].mxu0
  %v5781 = vadd.f32 %v5684, %v5780
  %v5782 = vpop.f32.mrb[0].mxu0
  %5783 = vmatprep.mubr.bf16.mxu0 %v2001
  %5784 = vmatmul.mubr.bf16.gmra.mrb[0].mxu0 %v2000
  %v5785 = vpop.f32.mrb[0].mxu0
  %v5786 = vadd.f32 %v5689, %v5785
  %v5787 = vpop.f32.mrb[0].mxu0
  %v5788 = vpop.f32.mrb[0].mxu0
  %v5789 = vadd.f32 %v5692, %v5788
  %v5790 = vpop.f32.mrb[0].mxu0
  %5791 = vmatprep.mubr.bf16.mxu0 %v2037
  %5792 = vmatmul.mubr.bf16.gmra.mrb[0].mxu0 %v2036
  %v5793 = vpop.f32.mrb[0].mxu0
  %v5794 = vadd.f32 %v5697, %v5793
  %v5795 = vpop.f32.mrb[0].mxu0
  %v5796 = vpop.f32.mrb[0].mxu0
  %v5797 = vadd.f32 %v5700, %v5796
  %v5798 = vpop.f32.mrb[0].mxu0
  %5799 = vdwg.mxu0
  %v5800 = vmax.f32 %v5738, 0.0
  %v5801 = vmax.f32 %v5741, 0.0
  %v5802 = vmax.f32 %v5746, 0.0
  %v5803 = vmax.f32 %v5749, 0.0
  %v5804 = vmax.f32 %v5754, 0.0
  %v5805 = vmax.f32 %v5757, 0.0
  %v5806 = vmax.f32 %v5762, 0.0
  %v5807 = vmax.f32 %v5765, 0.0
  %v5808 = vmax.f32 %v5770, 0.0
  %v5809 = vmax.f32 %v5773, 0.0
  %v5810 = vmax.f32 %v5778, 0.0
  %v5811 = vmax.f32 %v5781, 0.0
  %v5812 = vmax.f32 %v5786, 0.0
  %v5813 = vmax.f32 %v5789, 0.0
  %v5814 = vmax.f32 %v5794, 0.0
  %v5815 = vmax.f32 %v5797, 0.0
  %5816 = vst [vmem:[%s3] sm:$0xff] %v5800
  %5817 = vst [vmem:[%s3 + $0x8] sm:$0xff] %v5801
  %5818 = vst [vmem:[%s3 + $0x10] sm:$0xff] %v5802
  %5819 = vst [vmem:[%s3 + $0x18] sm:$0xff] %v5803
  %5820 = vst [vmem:[%s3 + $0x20] sm:$0xff] %v5804
  %5821 = vst [vmem:[%s3 + $0x28] sm:$0xff] %v5805
  %5822 = vst [vmem:[%s3 + $0x30] sm:$0xff] %v5806
  %5823 = vst [vmem:[%s3 + $0x38] sm:$0xff] %v5807
  %5824 = vst [vmem:[%s3 + $0x40] sm:$0xff] %v5808
  %5825 = vst [vmem:[%s3 + $0x48] sm:$0xff] %v5809
  %5826 = vst [vmem:[%s3 + $0x50] sm:$0xff] %v5810
  %5827 = vst [vmem:[%s3 + $0x58] sm:$0xff] %v5811
  %5828 = vst [vmem:[%s3 + $0x60] sm:$0xff] %v5812
  %5829 = vst [vmem:[%s3 + $0x68] sm:$0xff] %v5813
  %5830 = vst [vmem:[%s3 + $0x70] sm:$0xff] %v5814
  %5831 = vst [vmem:[%s3 + $0x78] sm:$0xff] %v5815
  // Predicated region
  $region14: #{fushion_forward.4} parent=0 // pred_check
    _
  $region15: #{fushion_forward.4} parent=0 // pred_check_branch
    %5833 = sbr.rel (0) target = $region17
  $region16: #{fushion_forward.4} parent=0 // pred_region
    _
  $region17: #{fushion_forward.4} parent=0 // pred_fallthru
    _
  // Predicated region
  $region18: #{fushion_forward.4} parent=0 // pred_check
    _
  $region19: #{fushion_forward.4} parent=0 // pred_check_branch
    %5835 = sbr.rel (0) target = $region21
  $region20: #{fushion_forward.4} parent=0 // pred_region
    _
  $region21: #{fushion_forward.4} parent=0 // pred_fallthru
    _

// kernel: fushion_forward.5
$region0: #{fushion_forward.5}
  #allocation0 [shape = 'u32[]', space=smem, size = 0x4, offset = 0x4, fixed_abs, tag = 'smem constant byte address 0x4 - core index']
  #allocation1 [shape = 'u32[144,128]{1,0:T(1,128)}', space=vmem, size = 0x12000, scoped, tag = 'internal scratch']
  %s0 = inlined_call_operand.vmem [shape: bf16[128,4608], index: 0, kind: input, shape index: {}]
  %s1 = inlined_call_operand.vmem [shape: bf16[4608,128], index: 1, kind: input, shape index: {}]
  %s2 = inlined_call_operand.vmem [shape: f32[1,128], index: 2, kind: input, shape index: {}]
  %s3 = inlined_call_operand.vmem [shape: f32[1,128], index: 3, kind: input, shape index: {}]
  %s4 = inlined_call_operand.vmem [shape: f32[1,128], index: 4, kind: input, shape index: {}]
  %s5 = inlined_call_operand.vmem [shape: f32[128,128], index: 5, kind: input, shape index: {}]
  %s6 = inlined_call_operand.vmem [shape: f32[128,128], index: 6, kind: input, shape index: {}]
  %s7 = inlined_call_operand.vmem [shape: f32[128,128], index: 7, kind: output, shape index: {}]
  %s8 = sld [smem:[#allocation0]]
  $region38: #{fushion_forward.5} parent=0
    _
  %s10 = ssub.s32 1, %s8
  %s11 = scalar_select 0, %s10, %s8
  // Predicated region
  $region2: #{fushion_forward.5} parent=0 // pred_check
    _
  $region3: #{fushion_forward.5} parent=0 // pred_check_branch
    %13 = sbr.rel (0) target = $region5
  $region4: #{fushion_forward.5} parent=0 // pred_region
    _
  $region5: #{fushion_forward.5} parent=0 // pred_fallthru
    _
  // Predicated region
  $region6: #{fushion_forward.5} parent=0 // pred_check
    _
  $region7: #{fushion_forward.5} parent=0 // pred_check_branch
    %15 = sbr.rel (0) target = $region9
  $region8: #{fushion_forward.5} parent=0 // pred_region
    _
  $region9: #{fushion_forward.5} parent=0 // pred_fallthru
    _
  // Predicated region
  $region10: #{fushion_forward.5} parent=0 // pred_check
    _
  $region11: #{fushion_forward.5} parent=0 // pred_check_branch
    %17 = sbr.rel (0) target = $region13
  $region12: #{fushion_forward.5} parent=0 // pred_region
    _
  $region13: #{fushion_forward.5} parent=0 // pred_fallthru
    _
  // Predicated region
  $region14: #{fushion_forward.5} parent=0 // pred_check
    _
  $region15: #{fushion_forward.5} parent=0 // pred_check_branch
    %19 = sbr.rel (0) target = $region17
  $region16: #{fushion_forward.5} parent=0 // pred_region
    _
  $region17: #{fushion_forward.5} parent=0 // pred_fallthru
    _
  // Predicated region
  $region18: #{fushion_forward.5} parent=0 // pred_check
    _
  $region19: #{fushion_forward.5} parent=0 // pred_check_branch
    %21 = sbr.rel (0) target = $region21
  $region20: #{fushion_forward.5} parent=0 // pred_region
    _
  $region21: #{fushion_forward.5} parent=0 // pred_fallthru
    _
  // Predicated region
  $region22: #{fushion_forward.5} parent=0 // pred_check
    _
  $region23: #{fushion_forward.5} parent=0 // pred_check_branch
    %23 = sbr.rel (0) target = $region25
  $region24: #{fushion_forward.5} parent=0 // pred_region
    _
  $region25: #{fushion_forward.5} parent=0 // pred_fallthru
    _
  // Predicated region
  $region26: #{fushion_forward.5} parent=0 // pred_check
    _
  $region27: #{fushion_forward.5} parent=0 // pred_check_branch
    %25 = sbr.rel (0) target = $region29
  $region28: #{fushion_forward.5} parent=0 // pred_region
    _
  $region29: #{fushion_forward.5} parent=0 // pred_fallthru
    _
  %v27 = vld [vmem:[%s0] sm:$0xff]
  %v28 = vld [vmem:[%s0 + $0x8] sm:$0xff]
  %v29 = vld [vmem:[%s0 + $0x10] sm:$0xff]
  %v30 = vld [vmem:[%s0 + $0x18] sm:$0xff]
  %v31 = vld [vmem:[%s0 + $0x20] sm:$0xff]
  %v32 = vld [vmem:[%s0 + $0x28] sm:$0xff]
  %v33 = vld [vmem:[%s0 + $0x30] sm:$0xff]
  %v34 = vld [vmem:[%s0 + $0x38] sm:$0xff]
  %v35 = vld [vmem:[%s0 + $0x40] sm:$0xff]
  %v36 = vld [vmem:[%s0 + $0x48] sm:$0xff]
  %v37 = vld [vmem:[%s0 + $0x50] sm:$0xff]
  %v38 = vld [vmem:[%s0 + $0x58] sm:$0xff]
  %v39 = vld [vmem:[%s0 + $0x60] sm:$0xff]
  %v40 = vld [vmem:[%s0 + $0x68] sm:$0xff]
  %v41 = vld [vmem:[%s0 + $0x70] sm:$0xff]
  %v42 = vld [vmem:[%s0 + $0x78] sm:$0xff]
  %v43 = vld [vmem:[%s0 + $0x80] sm:$0xff]
  %v44 = vld [vmem:[%s0 + $0x88] sm:$0xff]
  %v45 = vld [vmem:[%s0 + $0x90] sm:$0xff]
  %v46 = vld [vmem:[%s0 + $0x98] sm:$0xff]
  %v47 = vld [vmem:[%s0 + $0xa0] sm:$0xff]
  %v48 = vld [vmem:[%s0 + $0xa8] sm:$0xff]
  %v49 = vld [vmem:[%s0 + $0xb0] sm:$0xff]
  %v50 = vld [vmem:[%s0 + $0xb8] sm:$0xff]
  %v51 = vld [vmem:[%s0 + $0xc0] sm:$0xff]
  %v52 = vld [vmem:[%s0 + $0xc8] sm:$0xff]
  %v53 = vld [vmem:[%s0 + $0xd0] sm:$0xff]
  %v54 = vld [vmem:[%s0 + $0xd8] sm:$0xff]
  %v55 = vld [vmem:[%s0 + $0xe0] sm:$0xff]
  %v56 = vld [vmem:[%s0 + $0xe8] sm:$0xff]
  %v57 = vld [vmem:[%s0 + $0xf0] sm:$0xff]
  %v58 = vld [vmem:[%s0 + $0xf8] sm:$0xff]
  %v59 = vld [vmem:[%s0 + $0x100] sm:$0xff]
  %v60 = vld [vmem:[%s0 + $0x108] sm:$0xff]
  %v61 = vld [vmem:[%s0 + $0x110] sm:$0xff]
  %v62 = vld [vmem:[%s0 + $0x118] sm:$0xff]
  %v63 = vld [vmem:[%s0 + $0x120] sm:$0xff]
  %v64 = vld [vmem:[%s0 + $0x128] sm:$0xff]
  %v65 = vld [vmem:[%s0 + $0x130] sm:$0xff]
  %v66 = vld [vmem:[%s0 + $0x138] sm:$0xff]
  %v67 = vld [vmem:[%s0 + $0x140] sm:$0xff]
  %v68 = vld [vmem:[%s0 + $0x148] sm:$0xff]
  %v69 = vld [vmem:[%s0 + $0x150] sm:$0xff]
  %v70 = vld [vmem:[%s0 + $0x158] sm:$0xff]
  %v71 = vld [vmem:[%s0 + $0x160] sm:$0xff]
  %v72 = vld [vmem:[%s0 + $0x168] sm:$0xff]
  %v73 = vld [vmem:[%s0 + $0x170] sm:$0xff]
  %v74 = vld [vmem:[%s0 + $0x178] sm:$0xff]
  %v75 = vld [vmem:[%s0 + $0x180] sm:$0xff]
  %v76 = vld [vmem:[%s0 + $0x188] sm:$0xff]
  %v77 = vld [vmem:[%s0 + $0x190] sm:$0xff]
  %v78 = vld [vmem:[%s0 + $0x198] sm:$0xff]
  %v79 = vld [vmem:[%s0 + $0x1a0] sm:$0xff]
  %v80 = vld [vmem:[%s0 + $0x1a8] sm:$0xff]
  %v81 = vld [vmem:[%s0 + $0x1b0] sm:$0xff]
  %v82 = vld [vmem:[%s0 + $0x1b8] sm:$0xff]
  %v83 = vld [vmem:[%s0 + $0x1c0] sm:$0xff]
  %v84 = vld [vmem:[%s0 + $0x1c8] sm:$0xff]
  %v85 = vld [vmem:[%s0 + $0x1d0] sm:$0xff]
  %v86 = vld [vmem:[%s0 + $0x1d8] sm:$0xff]
  %v87 = vld [vmem:[%s0 + $0x1e0] sm:$0xff]
  %v88 = vld [vmem:[%s0 + $0x1e8] sm:$0xff]
  %v89 = vld [vmem:[%s0 + $0x1f0] sm:$0xff]
  %v90 = vld [vmem:[%s0 + $0x1f8] sm:$0xff]
  %v91 = vld [vmem:[%s0 + $0x200] sm:$0xff]
  %v92 = vld [vmem:[%s0 + $0x208] sm:$0xff]
  %v93 = vld [vmem:[%s0 + $0x210] sm:$0xff]
  %v94 = vld [vmem:[%s0 + $0x218] sm:$0xff]
  %v95 = vld [vmem:[%s0 + $0x220] sm:$0xff]
  %v96 = vld [vmem:[%s0 + $0x228] sm:$0xff]
  %v97 = vld [vmem:[%s0 + $0x230] sm:$0xff]
  %v98 = vld [vmem:[%s0 + $0x238] sm:$0xff]
  %v99 = vld [vmem:[%s0 + $0x240] sm:$0xff]
  %v100 = vld [vmem:[%s0 + $0x248] sm:$0xff]
  %v101 = vld [vmem:[%s0 + $0x250] sm:$0xff]
  %v102 = vld [vmem:[%s0 + $0x258] sm:$0xff]
  %v103 = vld [vmem:[%s0 + $0x260] sm:$0xff]
  %v104 = vld [vmem:[%s0 + $0x268] sm:$0xff]
  %v105 = vld [vmem:[%s0 + $0x270] sm:$0xff]
  %v106 = vld [vmem:[%s0 + $0x278] sm:$0xff]
  %v107 = vld [vmem:[%s0 + $0x280] sm:$0xff]
  %v108 = vld [vmem:[%s0 + $0x288] sm:$0xff]
  %v109 = vld [vmem:[%s0 + $0x290] sm:$0xff]
  %v110 = vld [vmem:[%s0 + $0x298] sm:$0xff]
  %v111 = vld [vmem:[%s0 + $0x2a0] sm:$0xff]
  %v112 = vld [vmem:[%s0 + $0x2a8] sm:$0xff]
  %v113 = vld [vmem:[%s0 + $0x2b0] sm:$0xff]
  %v114 = vld [vmem:[%s0 + $0x2b8] sm:$0xff]
  %v115 = vld [vmem:[%s0 + $0x2c0] sm:$0xff]
  %v116 = vld [vmem:[%s0 + $0x2c8] sm:$0xff]
  %v117 = vld [vmem:[%s0 + $0x2d0] sm:$0xff]
  %v118 = vld [vmem:[%s0 + $0x2d8] sm:$0xff]
  %v119 = vld [vmem:[%s0 + $0x2e0] sm:$0xff]
  %v120 = vld [vmem:[%s0 + $0x2e8] sm:$0xff]
  %v121 = vld [vmem:[%s0 + $0x2f0] sm:$0xff]
  %v122 = vld [vmem:[%s0 + $0x2f8] sm:$0xff]
  %v123 = vld [vmem:[%s0 + $0x300] sm:$0xff]
  %v124 = vld [vmem:[%s0 + $0x308] sm:$0xff]
  %v125 = vld [vmem:[%s0 + $0x310] sm:$0xff]
  %v126 = vld [vmem:[%s0 + $0x318] sm:$0xff]
  %v127 = vld [vmem:[%s0 + $0x320] sm:$0xff]
  %v128 = vld [vmem:[%s0 + $0x328] sm:$0xff]
  %v129 = vld [vmem:[%s0 + $0x330] sm:$0xff]
  %v130 = vld [vmem:[%s0 + $0x338] sm:$0xff]
  %v131 = vld [vmem:[%s0 + $0x340] sm:$0xff]
  %v132 = vld [vmem:[%s0 + $0x348] sm:$0xff]
  %v133 = vld [vmem:[%s0 + $0x350] sm:$0xff]
  %v134 = vld [vmem:[%s0 + $0x358] sm:$0xff]
  %v135 = vld [vmem:[%s0 + $0x360] sm:$0xff]
  %v136 = vld [vmem:[%s0 + $0x368] sm:$0xff]
  %v137 = vld [vmem:[%s0 + $0x370] sm:$0xff]
  %v138 = vld [vmem:[%s0 + $0x378] sm:$0xff]
  %v139 = vld [vmem:[%s0 + $0x380] sm:$0xff]
  %v140 = vld [vmem:[%s0 + $0x388] sm:$0xff]
  %v141 = vld [vmem:[%s0 + $0x390] sm:$0xff]
  %v142 = vld [vmem:[%s0 + $0x398] sm:$0xff]
  %v143 = vld [vmem:[%s0 + $0x3a0] sm:$0xff]
  %v144 = vld [vmem:[%s0 + $0x3a8] sm:$0xff]
  %v145 = vld [vmem:[%s0 + $0x3b0] sm:$0xff]
  %v146 = vld [vmem:[%s0 + $0x3b8] sm:$0xff]
  %v147 = vld [vmem:[%s0 + $0x3c0] sm:$0xff]
  %v148 = vld [vmem:[%s0 + $0x3c8] sm:$0xff]
  %v149 = vld [vmem:[%s0 + $0x3d0] sm:$0xff]
  %v150 = vld [vmem:[%s0 + $0x3d8] sm:$0xff]
  %v151 = vld [vmem:[%s0 + $0x3e0] sm:$0xff]
  %v152 = vld [vmem:[%s0 + $0x3e8] sm:$0xff]
  %v153 = vld [vmem:[%s0 + $0x3f0] sm:$0xff]
  %v154 = vld [vmem:[%s0 + $0x3f8] sm:$0xff]
  %v155 = vld [vmem:[%s0 + $0x400] sm:$0xff]
  %v156 = vld [vmem:[%s0 + $0x408] sm:$0xff]
  %v157 = vld [vmem:[%s0 + $0x410] sm:$0xff]
  %v158 = vld [vmem:[%s0 + $0x418] sm:$0xff]
  %v159 = vld [vmem:[%s0 + $0x420] sm:$0xff]
  %v160 = vld [vmem:[%s0 + $0x428] sm:$0xff]
  %v161 = vld [vmem:[%s0 + $0x430] sm:$0xff]
  %v162 = vld [vmem:[%s0 + $0x438] sm:$0xff]
  %v163 = vld [vmem:[%s0 + $0x440] sm:$0xff]
  %v164 = vld [vmem:[%s0 + $0x448] sm:$0xff]
  %v165 = vld [vmem:[%s0 + $0x450] sm:$0xff]
  %v166 = vld [vmem:[%s0 + $0x458] sm:$0xff]
  %v167 = vld [vmem:[%s0 + $0x460] sm:$0xff]
  %v168 = vld [vmem:[%s0 + $0x468] sm:$0xff]
  %v169 = vld [vmem:[%s0 + $0x470] sm:$0xff]
  %v170 = vld [vmem:[%s0 + $0x478] sm:$0xff]
  %v171 = vld [vmem:[%s0 + $0x480] sm:$0xff]
  %v172 = vld [vmem:[%s0 + $0x488] sm:$0xff]
  %v173 = vld [vmem:[%s0 + $0x490] sm:$0xff]
  %v174 = vld [vmem:[%s0 + $0x498] sm:$0xff]
  %v175 = vld [vmem:[%s0 + $0x4a0] sm:$0xff]
  %v176 = vld [vmem:[%s0 + $0x4a8] sm:$0xff]
  %v177 = vld [vmem:[%s0 + $0x4b0] sm:$0xff]
  %v178 = vld [vmem:[%s0 + $0x4b8] sm:$0xff]
  %v179 = vld [vmem:[%s0 + $0x4c0] sm:$0xff]
  %v180 = vld [vmem:[%s0 + $0x4c8] sm:$0xff]
  %v181 = vld [vmem:[%s0 + $0x4d0] sm:$0xff]
  %v182 = vld [vmem:[%s0 + $0x4d8] sm:$0xff]
  %v183 = vld [vmem:[%s0 + $0x4e0] sm:$0xff]
  %v184 = vld [vmem:[%s0 + $0x4e8] sm:$0xff]
  %v185 = vld [vmem:[%s0 + $0x4f0] sm:$0xff]
  %v186 = vld [vmem:[%s0 + $0x4f8] sm:$0xff]
  %v187 = vld [vmem:[%s0 + $0x500] sm:$0xff]
  %v188 = vld [vmem:[%s0 + $0x508] sm:$0xff]
  %v189 = vld [vmem:[%s0 + $0x510] sm:$0xff]
  %v190 = vld [vmem:[%s0 + $0x518] sm:$0xff]
  %v191 = vld [vmem:[%s0 + $0x520] sm:$0xff]
  %v192 = vld [vmem:[%s0 + $0x528] sm:$0xff]
  %v193 = vld [vmem:[%s0 + $0x530] sm:$0xff]
  %v194 = vld [vmem:[%s0 + $0x538] sm:$0xff]
  %v195 = vld [vmem:[%s0 + $0x540] sm:$0xff]
  %v196 = vld [vmem:[%s0 + $0x548] sm:$0xff]
  %v197 = vld [vmem:[%s0 + $0x550] sm:$0xff]
  %v198 = vld [vmem:[%s0 + $0x558] sm:$0xff]
  %v199 = vld [vmem:[%s0 + $0x560] sm:$0xff]
  %v200 = vld [vmem:[%s0 + $0x568] sm:$0xff]
  %v201 = vld [vmem:[%s0 + $0x570] sm:$0xff]
  %v202 = vld [vmem:[%s0 + $0x578] sm:$0xff]
  %v203 = vld [vmem:[%s0 + $0x580] sm:$0xff]
  %v204 = vld [vmem:[%s0 + $0x588] sm:$0xff]
  %v205 = vld [vmem:[%s0 + $0x590] sm:$0xff]
  %v206 = vld [vmem:[%s0 + $0x598] sm:$0xff]
  %v207 = vld [vmem:[%s0 + $0x5a0] sm:$0xff]
  %v208 = vld [vmem:[%s0 + $0x5a8] sm:$0xff]
  %v209 = vld [vmem:[%s0 + $0x5b0] sm:$0xff]
  %v210 = vld [vmem:[%s0 + $0x5b8] sm:$0xff]
  %v211 = vld [vmem:[%s0 + $0x5c0] sm:$0xff]
  %v212 = vld [vmem:[%s0 + $0x5c8] sm:$0xff]
  %v213 = vld [vmem:[%s0 + $0x5d0] sm:$0xff]
  %v214 = vld [vmem:[%s0 + $0x5d8] sm:$0xff]
  %v215 = vld [vmem:[%s0 + $0x5e0] sm:$0xff]
  %v216 = vld [vmem:[%s0 + $0x5e8] sm:$0xff]
  %v217 = vld [vmem:[%s0 + $0x5f0] sm:$0xff]
  %v218 = vld [vmem:[%s0 + $0x5f8] sm:$0xff]
  %v219 = vld [vmem:[%s0 + $0x600] sm:$0xff]
  %v220 = vld [vmem:[%s0 + $0x608] sm:$0xff]
  %v221 = vld [vmem:[%s0 + $0x610] sm:$0xff]
  %v222 = vld [vmem:[%s0 + $0x618] sm:$0xff]
  %v223 = vld [vmem:[%s0 + $0x620] sm:$0xff]
  %v224 = vld [vmem:[%s0 + $0x628] sm:$0xff]
  %v225 = vld [vmem:[%s0 + $0x630] sm:$0xff]
  %v226 = vld [vmem:[%s0 + $0x638] sm:$0xff]
  %v227 = vld [vmem:[%s0 + $0x640] sm:$0xff]
  %v228 = vld [vmem:[%s0 + $0x648] sm:$0xff]
  %v229 = vld [vmem:[%s0 + $0x650] sm:$0xff]
  %v230 = vld [vmem:[%s0 + $0x658] sm:$0xff]
  %v231 = vld [vmem:[%s0 + $0x660] sm:$0xff]
  %v232 = vld [vmem:[%s0 + $0x668] sm:$0xff]
  %v233 = vld [vmem:[%s0 + $0x670] sm:$0xff]
  %v234 = vld [vmem:[%s0 + $0x678] sm:$0xff]
  %v235 = vld [vmem:[%s0 + $0x680] sm:$0xff]
  %v236 = vld [vmem:[%s0 + $0x688] sm:$0xff]
  %v237 = vld [vmem:[%s0 + $0x690] sm:$0xff]
  %v238 = vld [vmem:[%s0 + $0x698] sm:$0xff]
  %v239 = vld [vmem:[%s0 + $0x6a0] sm:$0xff]
  %v240 = vld [vmem:[%s0 + $0x6a8] sm:$0xff]
  %v241 = vld [vmem:[%s0 + $0x6b0] sm:$0xff]
  %v242 = vld [vmem:[%s0 + $0x6b8] sm:$0xff]
  %v243 = vld [vmem:[%s0 + $0x6c0] sm:$0xff]
  %v244 = vld [vmem:[%s0 + $0x6c8] sm:$0xff]
  %v245 = vld [vmem:[%s0 + $0x6d0] sm:$0xff]
  %v246 = vld [vmem:[%s0 + $0x6d8] sm:$0xff]
  %v247 = vld [vmem:[%s0 + $0x6e0] sm:$0xff]
  %v248 = vld [vmem:[%s0 + $0x6e8] sm:$0xff]
  %v249 = vld [vmem:[%s0 + $0x6f0] sm:$0xff]
  %v250 = vld [vmem:[%s0 + $0x6f8] sm:$0xff]
  %v251 = vld [vmem:[%s0 + $0x700] sm:$0xff]
  %v252 = vld [vmem:[%s0 + $0x708] sm:$0xff]
  %v253 = vld [vmem:[%s0 + $0x710] sm:$0xff]
  %v254 = vld [vmem:[%s0 + $0x718] sm:$0xff]
  %v255 = vld [vmem:[%s0 + $0x720] sm:$0xff]
  %v256 = vld [vmem:[%s0 + $0x728] sm:$0xff]
  %v257 = vld [vmem:[%s0 + $0x730] sm:$0xff]
  %v258 = vld [vmem:[%s0 + $0x738] sm:$0xff]
  %v259 = vld [vmem:[%s0 + $0x740] sm:$0xff]
  %v260 = vld [vmem:[%s0 + $0x748] sm:$0xff]
  %v261 = vld [vmem:[%s0 + $0x750] sm:$0xff]
  %v262 = vld [vmem:[%s0 + $0x758] sm:$0xff]
  %v263 = vld [vmem:[%s0 + $0x760] sm:$0xff]
  %v264 = vld [vmem:[%s0 + $0x768] sm:$0xff]
  %v265 = vld [vmem:[%s0 + $0x770] sm:$0xff]
  %v266 = vld [vmem:[%s0 + $0x778] sm:$0xff]
  %v267 = vld [vmem:[%s0 + $0x780] sm:$0xff]
  %v268 = vld [vmem:[%s0 + $0x788] sm:$0xff]
  %v269 = vld [vmem:[%s0 + $0x790] sm:$0xff]
  %v270 = vld [vmem:[%s0 + $0x798] sm:$0xff]
  %v271 = vld [vmem:[%s0 + $0x7a0] sm:$0xff]
  %v272 = vld [vmem:[%s0 + $0x7a8] sm:$0xff]
  %v273 = vld [vmem:[%s0 + $0x7b0] sm:$0xff]
  %v274 = vld [vmem:[%s0 + $0x7b8] sm:$0xff]
  %v275 = vld [vmem:[%s0 + $0x7c0] sm:$0xff]
  %v276 = vld [vmem:[%s0 + $0x7c8] sm:$0xff]
  %v277 = vld [vmem:[%s0 + $0x7d0] sm:$0xff]
  %v278 = vld [vmem:[%s0 + $0x7d8] sm:$0xff]
  %v279 = vld [vmem:[%s0 + $0x7e0] sm:$0xff]
  %v280 = vld [vmem:[%s0 + $0x7e8] sm:$0xff]
  %v281 = vld [vmem:[%s0 + $0x7f0] sm:$0xff]
  %v282 = vld [vmem:[%s0 + $0x7f8] sm:$0xff]
  %v283 = vld [vmem:[%s0 + $0x800] sm:$0xff]
  %v284 = vld [vmem:[%s0 + $0x808] sm:$0xff]
  %v285 = vld [vmem:[%s0 + $0x810] sm:$0xff]
  %v286 = vld [vmem:[%s0 + $0x818] sm:$0xff]
  %v287 = vld [vmem:[%s0 + $0x820] sm:$0xff]
  %v288 = vld [vmem:[%s0 + $0x828] sm:$0xff]
  %v289 = vld [vmem:[%s0 + $0x830] sm:$0xff]
  %v290 = vld [vmem:[%s0 + $0x838] sm:$0xff]
  %v291 = vld [vmem:[%s0 + $0x840] sm:$0xff]
  %v292 = vld [vmem:[%s0 + $0x848] sm:$0xff]
  %v293 = vld [vmem:[%s0 + $0x850] sm:$0xff]
  %v294 = vld [vmem:[%s0 + $0x858] sm:$0xff]
  %v295 = vld [vmem:[%s0 + $0x860] sm:$0xff]
  %v296 = vld [vmem:[%s0 + $0x868] sm:$0xff]
  %v297 = vld [vmem:[%s0 + $0x870] sm:$0xff]
  %v298 = vld [vmem:[%s0 + $0x878] sm:$0xff]
  %v299 = vld [vmem:[%s0 + $0x880] sm:$0xff]
  %v300 = vld [vmem:[%s0 + $0x888] sm:$0xff]
  %v301 = vld [vmem:[%s0 + $0x890] sm:$0xff]
  %v302 = vld [vmem:[%s0 + $0x898] sm:$0xff]
  %v303 = vld [vmem:[%s0 + $0x8a0] sm:$0xff]
  %v304 = vld [vmem:[%s0 + $0x8a8] sm:$0xff]
  %v305 = vld [vmem:[%s0 + $0x8b0] sm:$0xff]
  %v306 = vld [vmem:[%s0 + $0x8b8] sm:$0xff]
  %v307 = vld [vmem:[%s0 + $0x8c0] sm:$0xff]
  %v308 = vld [vmem:[%s0 + $0x8c8] sm:$0xff]
  %v309 = vld [vmem:[%s0 + $0x8d0] sm:$0xff]
  %v310 = vld [vmem:[%s0 + $0x8d8] sm:$0xff]
  %v311 = vld [vmem:[%s0 + $0x8e0] sm:$0xff]
  %v312 = vld [vmem:[%s0 + $0x8e8] sm:$0xff]
  %v313 = vld [vmem:[%s0 + $0x8f0] sm:$0xff]
  %v314 = vld [vmem:[%s0 + $0x8f8] sm:$0xff]
  %v315 = vld [vmem:[%s1] sm:$0xf]
  %v316 = vld [vmem:[%s1 + $0x4] sm:$0xf]
  %v317 = vld [vmem:[%s1 + $0x8] sm:$0xf]
  %v318 = vld [vmem:[%s1 + $0xc] sm:$0xf]
  %v319 = vld [vmem:[%s1 + $0x10] sm:$0xf]
  %v320 = vld [vmem:[%s1 + $0x14] sm:$0xf]
  %v321 = vld [vmem:[%s1 + $0x18] sm:$0xf]
  %v322 = vld [vmem:[%s1 + $0x1c] sm:$0xf]
  %v323 = vld [vmem:[%s1 + $0x20] sm:$0xf]
  %v324 = vld [vmem:[%s1 + $0x24] sm:$0xf]
  %v325 = vld [vmem:[%s1 + $0x28] sm:$0xf]
  %v326 = vld [vmem:[%s1 + $0x2c] sm:$0xf]
  %v327 = vld [vmem:[%s1 + $0x30] sm:$0xf]
  %v328 = vld [vmem:[%s1 + $0x34] sm:$0xf]
  %v329 = vld [vmem:[%s1 + $0x38] sm:$0xf]
  %v330 = vld [vmem:[%s1 + $0x3c] sm:$0xf]
  %v331 = vld [vmem:[%s1 + $0x40] sm:$0xf]
  %v332 = vld [vmem:[%s1 + $0x44] sm:$0xf]
  %v333 = vld [vmem:[%s1 + $0x48] sm:$0xf]
  %v334 = vld [vmem:[%s1 + $0x4c] sm:$0xf]
  %v335 = vld [vmem:[%s1 + $0x50] sm:$0xf]
  %v336 = vld [vmem:[%s1 + $0x54] sm:$0xf]
  %v337 = vld [vmem:[%s1 + $0x58] sm:$0xf]
  %v338 = vld [vmem:[%s1 + $0x5c] sm:$0xf]
  %v339 = vld [vmem:[%s1 + $0x60] sm:$0xf]
  %v340 = vld [vmem:[%s1 + $0x64] sm:$0xf]
  %v341 = vld [vmem:[%s1 + $0x68] sm:$0xf]
  %v342 = vld [vmem:[%s1 + $0x6c] sm:$0xf]
  %v343 = vld [vmem:[%s1 + $0x70] sm:$0xf]
  %v344 = vld [vmem:[%s1 + $0x74] sm:$0xf]
  %v345 = vld [vmem:[%s1 + $0x78] sm:$0xf]
  %v346 = vld [vmem:[%s1 + $0x7c] sm:$0xf]
  %v347 = vld [vmem:[%s1 + $0x80] sm:$0xf]
  %v348 = vld [vmem:[%s1 + $0x84] sm:$0xf]
  %v349 = vld [vmem:[%s1 + $0x88] sm:$0xf]
  %v350 = vld [vmem:[%s1 + $0x8c] sm:$0xf]
  %v351 = vld [vmem:[%s1 + $0x90] sm:$0xf]
  %v352 = vld [vmem:[%s1 + $0x94] sm:$0xf]
  %v353 = vld [vmem:[%s1 + $0x98] sm:$0xf]
  %v354 = vld [vmem:[%s1 + $0x9c] sm:$0xf]
  %v355 = vld [vmem:[%s1 + $0xa0] sm:$0xf]
  %v356 = vld [vmem:[%s1 + $0xa4] sm:$0xf]
  %v357 = vld [vmem:[%s1 + $0xa8] sm:$0xf]
  %v358 = vld [vmem:[%s1 + $0xac] sm:$0xf]
  %v359 = vld [vmem:[%s1 + $0xb0] sm:$0xf]
  %v360 = vld [vmem:[%s1 + $0xb4] sm:$0xf]
  %v361 = vld [vmem:[%s1 + $0xb8] sm:$0xf]
  %v362 = vld [vmem:[%s1 + $0xbc] sm:$0xf]
  %v363 = vld [vmem:[%s1 + $0xc0] sm:$0xf]
  %v364 = vld [vmem:[%s1 + $0xc4] sm:$0xf]
  %v365 = vld [vmem:[%s1 + $0xc8] sm:$0xf]
  %v366 = vld [vmem:[%s1 + $0xcc] sm:$0xf]
  %v367 = vld [vmem:[%s1 + $0xd0] sm:$0xf]
  %v368 = vld [vmem:[%s1 + $0xd4] sm:$0xf]
  %v369 = vld [vmem:[%s1 + $0xd8] sm:$0xf]
  %v370 = vld [vmem:[%s1 + $0xdc] sm:$0xf]
  %v371 = vld [vmem:[%s1 + $0xe0] sm:$0xf]
  %v372 = vld [vmem:[%s1 + $0xe4] sm:$0xf]
  %v373 = vld [vmem:[%s1 + $0xe8] sm:$0xf]
  %v374 = vld [vmem:[%s1 + $0xec] sm:$0xf]
  %v375 = vld [vmem:[%s1 + $0xf0] sm:$0xf]
  %v376 = vld [vmem:[%s1 + $0xf4] sm:$0xf]
  %v377 = vld [vmem:[%s1 + $0xf8] sm:$0xf]
  %v378 = vld [vmem:[%s1 + $0xfc] sm:$0xf]
  %v379 = vld [vmem:[%s1 + $0x100] sm:$0xf]
  %v380 = vld [vmem:[%s1 + $0x104] sm:$0xf]
  %v381 = vld [vmem:[%s1 + $0x108] sm:$0xf]
  %v382 = vld [vmem:[%s1 + $0x10c] sm:$0xf]
  %v383 = vld [vmem:[%s1 + $0x110] sm:$0xf]
  %v384 = vld [vmem:[%s1 + $0x114] sm:$0xf]
  %v385 = vld [vmem:[%s1 + $0x118] sm:$0xf]
  %v386 = vld [vmem:[%s1 + $0x11c] sm:$0xf]
  %v387 = vld [vmem:[%s1 + $0x120] sm:$0xf]
  %v388 = vld [vmem:[%s1 + $0x124] sm:$0xf]
  %v389 = vld [vmem:[%s1 + $0x128] sm:$0xf]
  %v390 = vld [vmem:[%s1 + $0x12c] sm:$0xf]
  %v391 = vld [vmem:[%s1 + $0x130] sm:$0xf]
  %v392 = vld [vmem:[%s1 + $0x134] sm:$0xf]
  %v393 = vld [vmem:[%s1 + $0x138] sm:$0xf]
  %v394 = vld [vmem:[%s1 + $0x13c] sm:$0xf]
  %v395 = vld [vmem:[%s1 + $0x140] sm:$0xf]
  %v396 = vld [vmem:[%s1 + $0x144] sm:$0xf]
  %v397 = vld [vmem:[%s1 + $0x148] sm:$0xf]
  %v398 = vld [vmem:[%s1 + $0x14c] sm:$0xf]
  %v399 = vld [vmem:[%s1 + $0x150] sm:$0xf]
  %v400 = vld [vmem:[%s1 + $0x154] sm:$0xf]
  %v401 = vld [vmem:[%s1 + $0x158] sm:$0xf]
  %v402 = vld [vmem:[%s1 + $0x15c] sm:$0xf]
  %v403 = vld [vmem:[%s1 + $0x160] sm:$0xf]
  %v404 = vld [vmem:[%s1 + $0x164] sm:$0xf]
  %v405 = vld [vmem:[%s1 + $0x168] sm:$0xf]
  %v406 = vld [vmem:[%s1 + $0x16c] sm:$0xf]
  %v407 = vld [vmem:[%s1 + $0x170] sm:$0xf]
  %v408 = vld [vmem:[%s1 + $0x174] sm:$0xf]
  %v409 = vld [vmem:[%s1 + $0x178] sm:$0xf]
  %v410 = vld [vmem:[%s1 + $0x17c] sm:$0xf]
  %v411 = vld [vmem:[%s1 + $0x180] sm:$0xf]
  %v412 = vld [vmem:[%s1 + $0x184] sm:$0xf]
  %v413 = vld [vmem:[%s1 + $0x188] sm:$0xf]
  %v414 = vld [vmem:[%s1 + $0x18c] sm:$0xf]
  %v415 = vld [vmem:[%s1 + $0x190] sm:$0xf]
  %v416 = vld [vmem:[%s1 + $0x194] sm:$0xf]
  %v417 = vld [vmem:[%s1 + $0x198] sm:$0xf]
  %v418 = vld [vmem:[%s1 + $0x19c] sm:$0xf]
  %v419 = vld [vmem:[%s1 + $0x1a0] sm:$0xf]
  %v420 = vld [vmem:[%s1 + $0x1a4] sm:$0xf]
  %v421 = vld [vmem:[%s1 + $0x1a8] sm:$0xf]
  %v422 = vld [vmem:[%s1 + $0x1ac] sm:$0xf]
  %v423 = vld [vmem:[%s1 + $0x1b0] sm:$0xf]
  %v424 = vld [vmem:[%s1 + $0x1b4] sm:$0xf]
  %v425 = vld [vmem:[%s1 + $0x1b8] sm:$0xf]
  %v426 = vld [vmem:[%s1 + $0x1bc] sm:$0xf]
  %v427 = vld [vmem:[%s1 + $0x1c0] sm:$0xf]
  %v428 = vld [vmem:[%s1 + $0x1c4] sm:$0xf]
  %v429 = vld [vmem:[%s1 + $0x1c8] sm:$0xf]
  %v430 = vld [vmem:[%s1 + $0x1cc] sm:$0xf]
  %v431 = vld [vmem:[%s1 + $0x1d0] sm:$0xf]
  %v432 = vld [vmem:[%s1 + $0x1d4] sm:$0xf]
  %v433 = vld [vmem:[%s1 + $0x1d8] sm:$0xf]
  %v434 = vld [vmem:[%s1 + $0x1dc] sm:$0xf]
  %v435 = vld [vmem:[%s1 + $0x1e0] sm:$0xf]
  %v436 = vld [vmem:[%s1 + $0x1e4] sm:$0xf]
  %v437 = vld [vmem:[%s1 + $0x1e8] sm:$0xf]
  %v438 = vld [vmem:[%s1 + $0x1ec] sm:$0xf]
  %v439 = vld [vmem:[%s1 + $0x1f0] sm:$0xf]
  %v440 = vld [vmem:[%s1 + $0x1f4] sm:$0xf]
  %v441 = vld [vmem:[%s1 + $0x1f8] sm:$0xf]
  %v442 = vld [vmem:[%s1 + $0x1fc] sm:$0xf]
  %v443 = vld [vmem:[%s1 + $0x200] sm:$0xf]
  %v444 = vld [vmem:[%s1 + $0x204] sm:$0xf]
  %v445 = vld [vmem:[%s1 + $0x208] sm:$0xf]
  %v446 = vld [vmem:[%s1 + $0x20c] sm:$0xf]
  %v447 = vld [vmem:[%s1 + $0x210] sm:$0xf]
  %v448 = vld [vmem:[%s1 + $0x214] sm:$0xf]
  %v449 = vld [vmem:[%s1 + $0x218] sm:$0xf]
  %v450 = vld [vmem:[%s1 + $0x21c] sm:$0xf]
  %v451 = vld [vmem:[%s1 + $0x220] sm:$0xf]
  %v452 = vld [vmem:[%s1 + $0x224] sm:$0xf]
  %v453 = vld [vmem:[%s1 + $0x228] sm:$0xf]
  %v454 = vld [vmem:[%s1 + $0x22c] sm:$0xf]
  %v455 = vld [vmem:[%s1 + $0x230] sm:$0xf]
  %v456 = vld [vmem:[%s1 + $0x234] sm:$0xf]
  %v457 = vld [vmem:[%s1 + $0x238] sm:$0xf]
  %v458 = vld [vmem:[%s1 + $0x23c] sm:$0xf]
  %v459 = vld [vmem:[%s1 + $0x240] sm:$0xf]
  %v460 = vld [vmem:[%s1 + $0x244] sm:$0xf]
  %v461 = vld [vmem:[%s1 + $0x248] sm:$0xf]
  %v462 = vld [vmem:[%s1 + $0x24c] sm:$0xf]
  %v463 = vld [vmem:[%s1 + $0x250] sm:$0xf]
  %v464 = vld [vmem:[%s1 + $0x254] sm:$0xf]
  %v465 = vld [vmem:[%s1 + $0x258] sm:$0xf]
  %v466 = vld [vmem:[%s1 + $0x25c] sm:$0xf]
  %v467 = vld [vmem:[%s1 + $0x260] sm:$0xf]
  %v468 = vld [vmem:[%s1 + $0x264] sm:$0xf]
  %v469 = vld [vmem:[%s1 + $0x268] sm:$0xf]
  %v470 = vld [vmem:[%s1 + $0x26c] sm:$0xf]
  %v471 = vld [vmem:[%s1 + $0x270] sm:$0xf]
  %v472 = vld [vmem:[%s1 + $0x274] sm:$0xf]
  %v473 = vld [vmem:[%s1 + $0x278] sm:$0xf]
  %v474 = vld [vmem:[%s1 + $0x27c] sm:$0xf]
  %v475 = vld [vmem:[%s1 + $0x280] sm:$0xf]
  %v476 = vld [vmem:[%s1 + $0x284] sm:$0xf]
  %v477 = vld [vmem:[%s1 + $0x288] sm:$0xf]
  %v478 = vld [vmem:[%s1 + $0x28c] sm:$0xf]
  %v479 = vld [vmem:[%s1 + $0x290] sm:$0xf]
  %v480 = vld [vmem:[%s1 + $0x294] sm:$0xf]
  %v481 = vld [vmem:[%s1 + $0x298] sm:$0xf]
  %v482 = vld [vmem:[%s1 + $0x29c] sm:$0xf]
  %v483 = vld [vmem:[%s1 + $0x2a0] sm:$0xf]
  %v484 = vld [vmem:[%s1 + $0x2a4] sm:$0xf]
  %v485 = vld [vmem:[%s1 + $0x2a8] sm:$0xf]
  %v486 = vld [vmem:[%s1 + $0x2ac] sm:$0xf]
  %v487 = vld [vmem:[%s1 + $0x2b0] sm:$0xf]
  %v488 = vld [vmem:[%s1 + $0x2b4] sm:$0xf]
  %v489 = vld [vmem:[%s1 + $0x2b8] sm:$0xf]
  %v490 = vld [vmem:[%s1 + $0x2bc] sm:$0xf]
  %v491 = vld [vmem:[%s1 + $0x2c0] sm:$0xf]
  %v492 = vld [vmem:[%s1 + $0x2c4] sm:$0xf]
  %v493 = vld [vmem:[%s1 + $0x2c8] sm:$0xf]
  %v494 = vld [vmem:[%s1 + $0x2cc] sm:$0xf]
  %v495 = vld [vmem:[%s1 + $0x2d0] sm:$0xf]
  %v496 = vld [vmem:[%s1 + $0x2d4] sm:$0xf]
  %v497 = vld [vmem:[%s1 + $0x2d8] sm:$0xf]
  %v498 = vld [vmem:[%s1 + $0x2dc] sm:$0xf]
  %v499 = vld [vmem:[%s1 + $0x2e0] sm:$0xf]
  %v500 = vld [vmem:[%s1 + $0x2e4] sm:$0xf]
  %v501 = vld [vmem:[%s1 + $0x2e8] sm:$0xf]
  %v502 = vld [vmem:[%s1 + $0x2ec] sm:$0xf]
  %v503 = vld [vmem:[%s1 + $0x2f0] sm:$0xf]
  %v504 = vld [vmem:[%s1 + $0x2f4] sm:$0xf]
  %v505 = vld [vmem:[%s1 + $0x2f8] sm:$0xf]
  %v506 = vld [vmem:[%s1 + $0x2fc] sm:$0xf]
  %v507 = vld [vmem:[%s1 + $0x300] sm:$0xf]
  %v508 = vld [vmem:[%s1 + $0x304] sm:$0xf]
  %v509 = vld [vmem:[%s1 + $0x308] sm:$0xf]
  %v510 = vld [vmem:[%s1 + $0x30c] sm:$0xf]
  %v511 = vld [vmem:[%s1 + $0x310] sm:$0xf]
  %v512 = vld [vmem:[%s1 + $0x314] sm:$0xf]
  %v513 = vld [vmem:[%s1 + $0x318] sm:$0xf]
  %v514 = vld [vmem:[%s1 + $0x31c] sm:$0xf]
  %v515 = vld [vmem:[%s1 + $0x320] sm:$0xf]
  %v516 = vld [vmem:[%s1 + $0x324] sm:$0xf]
  %v517 = vld [vmem:[%s1 + $0x328] sm:$0xf]
  %v518 = vld [vmem:[%s1 + $0x32c] sm:$0xf]
  %v519 = vld [vmem:[%s1 + $0x330] sm:$0xf]
  %v520 = vld [vmem:[%s1 + $0x334] sm:$0xf]
  %v521 = vld [vmem:[%s1 + $0x338] sm:$0xf]
  %v522 = vld [vmem:[%s1 + $0x33c] sm:$0xf]
  %v523 = vld [vmem:[%s1 + $0x340] sm:$0xf]
  %v524 = vld [vmem:[%s1 + $0x344] sm:$0xf]
  %v525 = vld [vmem:[%s1 + $0x348] sm:$0xf]
  %v526 = vld [vmem:[%s1 + $0x34c] sm:$0xf]
  %v527 = vld [vmem:[%s1 + $0x350] sm:$0xf]
  %v528 = vld [vmem:[%s1 + $0x354] sm:$0xf]
  %v529 = vld [vmem:[%s1 + $0x358] sm:$0xf]
  %v530 = vld [vmem:[%s1 + $0x35c] sm:$0xf]
  %v531 = vld [vmem:[%s1 + $0x360] sm:$0xf]
  %v532 = vld [vmem:[%s1 + $0x364] sm:$0xf]
  %v533 = vld [vmem:[%s1 + $0x368] sm:$0xf]
  %v534 = vld [vmem:[%s1 + $0x36c] sm:$0xf]
  %v535 = vld [vmem:[%s1 + $0x370] sm:$0xf]
  %v536 = vld [vmem:[%s1 + $0x374] sm:$0xf]
  %v537 = vld [vmem:[%s1 + $0x378] sm:$0xf]
  %v538 = vld [vmem:[%s1 + $0x37c] sm:$0xf]
  %v539 = vld [vmem:[%s1 + $0x380] sm:$0xf]
  %v540 = vld [vmem:[%s1 + $0x384] sm:$0xf]
  %v541 = vld [vmem:[%s1 + $0x388] sm:$0xf]
  %v542 = vld [vmem:[%s1 + $0x38c] sm:$0xf]
  %v543 = vld [vmem:[%s1 + $0x390] sm:$0xf]
  %v544 = vld [vmem:[%s1 + $0x394] sm:$0xf]
  %v545 = vld [vmem:[%s1 + $0x398] sm:$0xf]
  %v546 = vld [vmem:[%s1 + $0x39c] sm:$0xf]
  %v547 = vld [vmem:[%s1 + $0x3a0] sm:$0xf]
  %v548 = vld [vmem:[%s1 + $0x3a4] sm:$0xf]
  %v549 = vld [vmem:[%s1 + $0x3a8] sm:$0xf]
  %v550 = vld [vmem:[%s1 + $0x3ac] sm:$0xf]
  %v551 = vld [vmem:[%s1 + $0x3b0] sm:$0xf]
  %v552 = vld [vmem:[%s1 + $0x3b4] sm:$0xf]
  %v553 = vld [vmem:[%s1 + $0x3b8] sm:$0xf]
  %v554 = vld [vmem:[%s1 + $0x3bc] sm:$0xf]
  %v555 = vld [vmem:[%s1 + $0x3c0] sm:$0xf]
  %v556 = vld [vmem:[%s1 + $0x3c4] sm:$0xf]
  %v557 = vld [vmem:[%s1 + $0x3c8] sm:$0xf]
  %v558 = vld [vmem:[%s1 + $0x3cc] sm:$0xf]
  %v559 = vld [vmem:[%s1 + $0x3d0] sm:$0xf]
  %v560 = vld [vmem:[%s1 + $0x3d4] sm:$0xf]
  %v561 = vld [vmem:[%s1 + $0x3d8] sm:$0xf]
  %v562 = vld [vmem:[%s1 + $0x3dc] sm:$0xf]
  %v563 = vld [vmem:[%s1 + $0x3e0] sm:$0xf]
  %v564 = vld [vmem:[%s1 + $0x3e4] sm:$0xf]
  %v565 = vld [vmem:[%s1 + $0x3e8] sm:$0xf]
  %v566 = vld [vmem:[%s1 + $0x3ec] sm:$0xf]
  %v567 = vld [vmem:[%s1 + $0x3f0] sm:$0xf]
  %v568 = vld [vmem:[%s1 + $0x3f4] sm:$0xf]
  %v569 = vld [vmem:[%s1 + $0x3f8] sm:$0xf]
  %v570 = vld [vmem:[%s1 + $0x3fc] sm:$0xf]
  %v571 = vld [vmem:[%s1 + $0x400] sm:$0xf]
  %v572 = vld [vmem:[%s1 + $0x404] sm:$0xf]
  %v573 = vld [vmem:[%s1 + $0x408] sm:$0xf]
  %v574 = vld [vmem:[%s1 + $0x40c] sm:$0xf]
  %v575 = vld [vmem:[%s1 + $0x410] sm:$0xf]
  %v576 = vld [vmem:[%s1 + $0x414] sm:$0xf]
  %v577 = vld [vmem:[%s1 + $0x418] sm:$0xf]
  %v578 = vld [vmem:[%s1 + $0x41c] sm:$0xf]
  %v579 = vld [vmem:[%s1 + $0x420] sm:$0xf]
  %v580 = vld [vmem:[%s1 + $0x424] sm:$0xf]
  %v581 = vld [vmem:[%s1 + $0x428] sm:$0xf]
  %v582 = vld [vmem:[%s1 + $0x42c] sm:$0xf]
  %v583 = vld [vmem:[%s1 + $0x430] sm:$0xf]
  %v584 = vld [vmem:[%s1 + $0x434] sm:$0xf]
  %v585 = vld [vmem:[%s1 + $0x438] sm:$0xf]
  %v586 = vld [vmem:[%s1 + $0x43c] sm:$0xf]
  %v587 = vld [vmem:[%s1 + $0x440] sm:$0xf]
  %v588 = vld [vmem:[%s1 + $0x444] sm:$0xf]
  %v589 = vld [vmem:[%s1 + $0x448] sm:$0xf]
  %v590 = vld [vmem:[%s1 + $0x44c] sm:$0xf]
  %v591 = vld [vmem:[%s1 + $0x450] sm:$0xf]
  %v592 = vld [vmem:[%s1 + $0x454] sm:$0xf]
  %v593 = vld [vmem:[%s1 + $0x458] sm:$0xf]
  %v594 = vld [vmem:[%s1 + $0x45c] sm:$0xf]
  %v595 = vld [vmem:[%s1 + $0x460] sm:$0xf]
  %v596 = vld [vmem:[%s1 + $0x464] sm:$0xf]
  %v597 = vld [vmem:[%s1 + $0x468] sm:$0xf]
  %v598 = vld [vmem:[%s1 + $0x46c] sm:$0xf]
  %v599 = vld [vmem:[%s1 + $0x470] sm:$0xf]
  %v600 = vld [vmem:[%s1 + $0x474] sm:$0xf]
  %v601 = vld [vmem:[%s1 + $0x478] sm:$0xf]
  %v602 = vld [vmem:[%s1 + $0x47c] sm:$0xf]
  %v603 = vld [vmem:[%s1 + $0x480] sm:$0xf]
  %v604 = vld [vmem:[%s1 + $0x484] sm:$0xf]
  %v605 = vld [vmem:[%s1 + $0x488] sm:$0xf]
  %v606 = vld [vmem:[%s1 + $0x48c] sm:$0xf]
  %v607 = vld [vmem:[%s1 + $0x490] sm:$0xf]
  %v608 = vld [vmem:[%s1 + $0x494] sm:$0xf]
  %v609 = vld [vmem:[%s1 + $0x498] sm:$0xf]
  %v610 = vld [vmem:[%s1 + $0x49c] sm:$0xf]
  %v611 = vld [vmem:[%s1 + $0x4a0] sm:$0xf]
  %v612 = vld [vmem:[%s1 + $0x4a4] sm:$0xf]
  %v613 = vld [vmem:[%s1 + $0x4a8] sm:$0xf]
  %v614 = vld [vmem:[%s1 + $0x4ac] sm:$0xf]
  %v615 = vld [vmem:[%s1 + $0x4b0] sm:$0xf]
  %v616 = vld [vmem:[%s1 + $0x4b4] sm:$0xf]
  %v617 = vld [vmem:[%s1 + $0x4b8] sm:$0xf]
  %v618 = vld [vmem:[%s1 + $0x4bc] sm:$0xf]
  %v619 = vld [vmem:[%s1 + $0x4c0] sm:$0xf]
  %v620 = vld [vmem:[%s1 + $0x4c4] sm:$0xf]
  %v621 = vld [vmem:[%s1 + $0x4c8] sm:$0xf]
  %v622 = vld [vmem:[%s1 + $0x4cc] sm:$0xf]
  %v623 = vld [vmem:[%s1 + $0x4d0] sm:$0xf]
  %v624 = vld [vmem:[%s1 + $0x4d4] sm:$0xf]
  %v625 = vld [vmem:[%s1 + $0x4d8] sm:$0xf]
  %v626 = vld [vmem:[%s1 + $0x4dc] sm:$0xf]
  %v627 = vld [vmem:[%s1 + $0x4e0] sm:$0xf]
  %v628 = vld [vmem:[%s1 + $0x4e4] sm:$0xf]
  %v629 = vld [vmem:[%s1 + $0x4e8] sm:$0xf]
  %v630 = vld [vmem:[%s1 + $0x4ec] sm:$0xf]
  %v631 = vld [vmem:[%s1 + $0x4f0] sm:$0xf]
  %v632 = vld [vmem:[%s1 + $0x4f4] sm:$0xf]
  %v633 = vld [vmem:[%s1 + $0x4f8] sm:$0xf]
  %v634 = vld [vmem:[%s1 + $0x4fc] sm:$0xf]
  %v635 = vld [vmem:[%s1 + $0x500] sm:$0xf]
  %v636 = vld [vmem:[%s1 + $0x504] sm:$0xf]
  %v637 = vld [vmem:[%s1 + $0x508] sm:$0xf]
  %v638 = vld [vmem:[%s1 + $0x50c] sm:$0xf]
  %v639 = vld [vmem:[%s1 + $0x510] sm:$0xf]
  %v640 = vld [vmem:[%s1 + $0x514] sm:$0xf]
  %v641 = vld [vmem:[%s1 + $0x518] sm:$0xf]
  %v642 = vld [vmem:[%s1 + $0x51c] sm:$0xf]
  %v643 = vld [vmem:[%s1 + $0x520] sm:$0xf]
  %v644 = vld [vmem:[%s1 + $0x524] sm:$0xf]
  %v645 = vld [vmem:[%s1 + $0x528] sm:$0xf]
  %v646 = vld [vmem:[%s1 + $0x52c] sm:$0xf]
  %v647 = vld [vmem:[%s1 + $0x530] sm:$0xf]
  %v648 = vld [vmem:[%s1 + $0x534] sm:$0xf]
  %v649 = vld [vmem:[%s1 + $0x538] sm:$0xf]
  %v650 = vld [vmem:[%s1 + $0x53c] sm:$0xf]
  %v651 = vld [vmem:[%s1 + $0x540] sm:$0xf]
  %v652 = vld [vmem:[%s1 + $0x544] sm:$0xf]
  %v653 = vld [vmem:[%s1 + $0x548] sm:$0xf]
  %v654 = vld [vmem:[%s1 + $0x54c] sm:$0xf]
  %v655 = vld [vmem:[%s1 + $0x550] sm:$0xf]
  %v656 = vld [vmem:[%s1 + $0x554] sm:$0xf]
  %v657 = vld [vmem:[%s1 + $0x558] sm:$0xf]
  %v658 = vld [vmem:[%s1 + $0x55c] sm:$0xf]
  %v659 = vld [vmem:[%s1 + $0x560] sm:$0xf]
  %v660 = vld [vmem:[%s1 + $0x564] sm:$0xf]
  %v661 = vld [vmem:[%s1 + $0x568] sm:$0xf]
  %v662 = vld [vmem:[%s1 + $0x56c] sm:$0xf]
  %v663 = vld [vmem:[%s1 + $0x570] sm:$0xf]
  %v664 = vld [vmem:[%s1 + $0x574] sm:$0xf]
  %v665 = vld [vmem:[%s1 + $0x578] sm:$0xf]
  %v666 = vld [vmem:[%s1 + $0x57c] sm:$0xf]
  %v667 = vld [vmem:[%s1 + $0x580] sm:$0xf]
  %v668 = vld [vmem:[%s1 + $0x584] sm:$0xf]
  %v669 = vld [vmem:[%s1 + $0x588] sm:$0xf]
  %v670 = vld [vmem:[%s1 + $0x58c] sm:$0xf]
  %v671 = vld [vmem:[%s1 + $0x590] sm:$0xf]
  %v672 = vld [vmem:[%s1 + $0x594] sm:$0xf]
  %v673 = vld [vmem:[%s1 + $0x598] sm:$0xf]
  %v674 = vld [vmem:[%s1 + $0x59c] sm:$0xf]
  %v675 = vld [vmem:[%s1 + $0x5a0] sm:$0xf]
  %v676 = vld [vmem:[%s1 + $0x5a4] sm:$0xf]
  %v677 = vld [vmem:[%s1 + $0x5a8] sm:$0xf]
  %v678 = vld [vmem:[%s1 + $0x5ac] sm:$0xf]
  %v679 = vld [vmem:[%s1 + $0x5b0] sm:$0xf]
  %v680 = vld [vmem:[%s1 + $0x5b4] sm:$0xf]
  %v681 = vld [vmem:[%s1 + $0x5b8] sm:$0xf]
  %v682 = vld [vmem:[%s1 + $0x5bc] sm:$0xf]
  %v683 = vld [vmem:[%s1 + $0x5c0] sm:$0xf]
  %v684 = vld [vmem:[%s1 + $0x5c4] sm:$0xf]
  %v685 = vld [vmem:[%s1 + $0x5c8] sm:$0xf]
  %v686 = vld [vmem:[%s1 + $0x5cc] sm:$0xf]
  %v687 = vld [vmem:[%s1 + $0x5d0] sm:$0xf]
  %v688 = vld [vmem:[%s1 + $0x5d4] sm:$0xf]
  %v689 = vld [vmem:[%s1 + $0x5d8] sm:$0xf]
  %v690 = vld [vmem:[%s1 + $0x5dc] sm:$0xf]
  %v691 = vld [vmem:[%s1 + $0x5e0] sm:$0xf]
  %v692 = vld [vmem:[%s1 + $0x5e4] sm:$0xf]
  %v693 = vld [vmem:[%s1 + $0x5e8] sm:$0xf]
  %v694 = vld [vmem:[%s1 + $0x5ec] sm:$0xf]
  %v695 = vld [vmem:[%s1 + $0x5f0] sm:$0xf]
  %v696 = vld [vmem:[%s1 + $0x5f4] sm:$0xf]
  %v697 = vld [vmem:[%s1 + $0x5f8] sm:$0xf]
  %v698 = vld [vmem:[%s1 + $0x5fc] sm:$0xf]
  %v699 = vld [vmem:[%s1 + $0x600] sm:$0xf]
  %v700 = vld [vmem:[%s1 + $0x604] sm:$0xf]
  %v701 = vld [vmem:[%s1 + $0x608] sm:$0xf]
  %v702 = vld [vmem:[%s1 + $0x60c] sm:$0xf]
  %v703 = vld [vmem:[%s1 + $0x610] sm:$0xf]
  %v704 = vld [vmem:[%s1 + $0x614] sm:$0xf]
  %v705 = vld [vmem:[%s1 + $0x618] sm:$0xf]
  %v706 = vld [vmem:[%s1 + $0x61c] sm:$0xf]
  %v707 = vld [vmem:[%s1 + $0x620] sm:$0xf]
  %v708 = vld [vmem:[%s1 + $0x624] sm:$0xf]
  %v709 = vld [vmem:[%s1 + $0x628] sm:$0xf]
  %v710 = vld [vmem:[%s1 + $0x62c] sm:$0xf]
  %v711 = vld [vmem:[%s1 + $0x630] sm:$0xf]
  %v712 = vld [vmem:[%s1 + $0x634] sm:$0xf]
  %v713 = vld [vmem:[%s1 + $0x638] sm:$0xf]
  %v714 = vld [vmem:[%s1 + $0x63c] sm:$0xf]
  %v715 = vld [vmem:[%s1 + $0x640] sm:$0xf]
  %v716 = vld [vmem:[%s1 + $0x644] sm:$0xf]
  %v717 = vld [vmem:[%s1 + $0x648] sm:$0xf]
  %v718 = vld [vmem:[%s1 + $0x64c] sm:$0xf]
  %v719 = vld [vmem:[%s1 + $0x650] sm:$0xf]
  %v720 = vld [vmem:[%s1 + $0x654] sm:$0xf]
  %v721 = vld [vmem:[%s1 + $0x658] sm:$0xf]
  %v722 = vld [vmem:[%s1 + $0x65c] sm:$0xf]
  %v723 = vld [vmem:[%s1 + $0x660] sm:$0xf]
  %v724 = vld [vmem:[%s1 + $0x664] sm:$0xf]
  %v725 = vld [vmem:[%s1 + $0x668] sm:$0xf]
  %v726 = vld [vmem:[%s1 + $0x66c] sm:$0xf]
  %v727 = vld [vmem:[%s1 + $0x670] sm:$0xf]
  %v728 = vld [vmem:[%s1 + $0x674] sm:$0xf]
  %v729 = vld [vmem:[%s1 + $0x678] sm:$0xf]
  %v730 = vld [vmem:[%s1 + $0x67c] sm:$0xf]
  %v731 = vld [vmem:[%s1 + $0x680] sm:$0xf]
  %v732 = vld [vmem:[%s1 + $0x684] sm:$0xf]
  %v733 = vld [vmem:[%s1 + $0x688] sm:$0xf]
  %v734 = vld [vmem:[%s1 + $0x68c] sm:$0xf]
  %v735 = vld [vmem:[%s1 + $0x690] sm:$0xf]
  %v736 = vld [vmem:[%s1 + $0x694] sm:$0xf]
  %v737 = vld [vmem:[%s1 + $0x698] sm:$0xf]
  %v738 = vld [vmem:[%s1 + $0x69c] sm:$0xf]
  %v739 = vld [vmem:[%s1 + $0x6a0] sm:$0xf]
  %v740 = vld [vmem:[%s1 + $0x6a4] sm:$0xf]
  %v741 = vld [vmem:[%s1 + $0x6a8] sm:$0xf]
  %v742 = vld [vmem:[%s1 + $0x6ac] sm:$0xf]
  %v743 = vld [vmem:[%s1 + $0x6b0] sm:$0xf]
  %v744 = vld [vmem:[%s1 + $0x6b4] sm:$0xf]
  %v745 = vld [vmem:[%s1 + $0x6b8] sm:$0xf]
  %v746 = vld [vmem:[%s1 + $0x6bc] sm:$0xf]
  %v747 = vld [vmem:[%s1 + $0x6c0] sm:$0xf]
  %v748 = vld [vmem:[%s1 + $0x6c4] sm:$0xf]
  %v749 = vld [vmem:[%s1 + $0x6c8] sm:$0xf]
  %v750 = vld [vmem:[%s1 + $0x6cc] sm:$0xf]
  %v751 = vld [vmem:[%s1 + $0x6d0] sm:$0xf]
  %v752 = vld [vmem:[%s1 + $0x6d4] sm:$0xf]
  %v753 = vld [vmem:[%s1 + $0x6d8] sm:$0xf]
  %v754 = vld [vmem:[%s1 + $0x6dc] sm:$0xf]
  %v755 = vld [vmem:[%s1 + $0x6e0] sm:$0xf]
  %v756 = vld [vmem:[%s1 + $0x6e4] sm:$0xf]
  %v757 = vld [vmem:[%s1 + $0x6e8] sm:$0xf]
  %v758 = vld [vmem:[%s1 + $0x6ec] sm:$0xf]
  %v759 = vld [vmem:[%s1 + $0x6f0] sm:$0xf]
  %v760 = vld [vmem:[%s1 + $0x6f4] sm:$0xf]
  %v761 = vld [vmem:[%s1 + $0x6f8] sm:$0xf]
  %v762 = vld [vmem:[%s1 + $0x6fc] sm:$0xf]
  %v763 = vld [vmem:[%s1 + $0x700] sm:$0xf]
  %v764 = vld [vmem:[%s1 + $0x704] sm:$0xf]
  %v765 = vld [vmem:[%s1 + $0x708] sm:$0xf]
  %v766 = vld [vmem:[%s1 + $0x70c] sm:$0xf]
  %v767 = vld [vmem:[%s1 + $0x710] sm:$0xf]
  %v768 = vld [vmem:[%s1 + $0x714] sm:$0xf]
  %v769 = vld [vmem:[%s1 + $0x718] sm:$0xf]
  %v770 = vld [vmem:[%s1 + $0x71c] sm:$0xf]
  %v771 = vld [vmem:[%s1 + $0x720] sm:$0xf]
  %v772 = vld [vmem:[%s1 + $0x724] sm:$0xf]
  %v773 = vld [vmem:[%s1 + $0x728] sm:$0xf]
  %v774 = vld [vmem:[%s1 + $0x72c] sm:$0xf]
  %v775 = vld [vmem:[%s1 + $0x730] sm:$0xf]
  %v776 = vld [vmem:[%s1 + $0x734] sm:$0xf]
  %v777 = vld [vmem:[%s1 + $0x738] sm:$0xf]
  %v778 = vld [vmem:[%s1 + $0x73c] sm:$0xf]
  %v779 = vld [vmem:[%s1 + $0x740] sm:$0xf]
  %v780 = vld [vmem:[%s1 + $0x744] sm:$0xf]
  %v781 = vld [vmem:[%s1 + $0x748] sm:$0xf]
  %v782 = vld [vmem:[%s1 + $0x74c] sm:$0xf]
  %v783 = vld [vmem:[%s1 + $0x750] sm:$0xf]
  %v784 = vld [vmem:[%s1 + $0x754] sm:$0xf]
  %v785 = vld [vmem:[%s1 + $0x758] sm:$0xf]
  %v786 = vld [vmem:[%s1 + $0x75c] sm:$0xf]
  %v787 = vld [vmem:[%s1 + $0x760] sm:$0xf]
  %v788 = vld [vmem:[%s1 + $0x764] sm:$0xf]
  %v789 = vld [vmem:[%s1 + $0x768] sm:$0xf]
  %v790 = vld [vmem:[%s1 + $0x76c] sm:$0xf]
  %v791 = vld [vmem:[%s1 + $0x770] sm:$0xf]
  %v792 = vld [vmem:[%s1 + $0x774] sm:$0xf]
  %v793 = vld [vmem:[%s1 + $0x778] sm:$0xf]
  %v794 = vld [vmem:[%s1 + $0x77c] sm:$0xf]
  %v795 = vld [vmem:[%s1 + $0x780] sm:$0xf]
  %v796 = vld [vmem:[%s1 + $0x784] sm:$0xf]
  %v797 = vld [vmem:[%s1 + $0x788] sm:$0xf]
  %v798 = vld [vmem:[%s1 + $0x78c] sm:$0xf]
  %v799 = vld [vmem:[%s1 + $0x790] sm:$0xf]
  %v800 = vld [vmem:[%s1 + $0x794] sm:$0xf]
  %v801 = vld [vmem:[%s1 + $0x798] sm:$0xf]
  %v802 = vld [vmem:[%s1 + $0x79c] sm:$0xf]
  %v803 = vld [vmem:[%s1 + $0x7a0] sm:$0xf]
  %v804 = vld [vmem:[%s1 + $0x7a4] sm:$0xf]
  %v805 = vld [vmem:[%s1 + $0x7a8] sm:$0xf]
  %v806 = vld [vmem:[%s1 + $0x7ac] sm:$0xf]
  %v807 = vld [vmem:[%s1 + $0x7b0] sm:$0xf]
  %v808 = vld [vmem:[%s1 + $0x7b4] sm:$0xf]
  %v809 = vld [vmem:[%s1 + $0x7b8] sm:$0xf]
  %v810 = vld [vmem:[%s1 + $0x7bc] sm:$0xf]
  %v811 = vld [vmem:[%s1 + $0x7c0] sm:$0xf]
  %v812 = vld [vmem:[%s1 + $0x7c4] sm:$0xf]
  %v813 = vld [vmem:[%s1 + $0x7c8] sm:$0xf]
  %v814 = vld [vmem:[%s1 + $0x7cc] sm:$0xf]
  %v815 = vld [vmem:[%s1 + $0x7d0] sm:$0xf]
  %v816 = vld [vmem:[%s1 + $0x7d4] sm:$0xf]
  %v817 = vld [vmem:[%s1 + $0x7d8] sm:$0xf]
  %v818 = vld [vmem:[%s1 + $0x7dc] sm:$0xf]
  %v819 = vld [vmem:[%s1 + $0x7e0] sm:$0xf]
  %v820 = vld [vmem:[%s1 + $0x7e4] sm:$0xf]
  %v821 = vld [vmem:[%s1 + $0x7e8] sm:$0xf]
  %v822 = vld [vmem:[%s1 + $0x7ec] sm:$0xf]
  %v823 = vld [vmem:[%s1 + $0x7f0] sm:$0xf]
  %v824 = vld [vmem:[%s1 + $0x7f4] sm:$0xf]
  %v825 = vld [vmem:[%s1 + $0x7f8] sm:$0xf]
  %v826 = vld [vmem:[%s1 + $0x7fc] sm:$0xf]
  %v827 = vld [vmem:[%s1 + $0x800] sm:$0xf]
  %v828 = vld [vmem:[%s1 + $0x804] sm:$0xf]
  %v829 = vld [vmem:[%s1 + $0x808] sm:$0xf]
  %v830 = vld [vmem:[%s1 + $0x80c] sm:$0xf]
  %v831 = vld [vmem:[%s1 + $0x810] sm:$0xf]
  %v832 = vld [vmem:[%s1 + $0x814] sm:$0xf]
  %v833 = vld [vmem:[%s1 + $0x818] sm:$0xf]
  %v834 = vld [vmem:[%s1 + $0x81c] sm:$0xf]
  %v835 = vld [vmem:[%s1 + $0x820] sm:$0xf]
  %v836 = vld [vmem:[%s1 + $0x824] sm:$0xf]
  %v837 = vld [vmem:[%s1 + $0x828] sm:$0xf]
  %v838 = vld [vmem:[%s1 + $0x82c] sm:$0xf]
  %v839 = vld [vmem:[%s1 + $0x830] sm:$0xf]
  %v840 = vld [vmem:[%s1 + $0x834] sm:$0xf]
  %v841 = vld [vmem:[%s1 + $0x838] sm:$0xf]
  %v842 = vld [vmem:[%s1 + $0x83c] sm:$0xf]
  %v843 = vld [vmem:[%s1 + $0x840] sm:$0xf]
  %v844 = vld [vmem:[%s1 + $0x844] sm:$0xf]
  %v845 = vld [vmem:[%s1 + $0x848] sm:$0xf]
  %v846 = vld [vmem:[%s1 + $0x84c] sm:$0xf]
  %v847 = vld [vmem:[%s1 + $0x850] sm:$0xf]
  %v848 = vld [vmem:[%s1 + $0x854] sm:$0xf]
  %v849 = vld [vmem:[%s1 + $0x858] sm:$0xf]
  %v850 = vld [vmem:[%s1 + $0x85c] sm:$0xf]
  %v851 = vld [vmem:[%s1 + $0x860] sm:$0xf]
  %v852 = vld [vmem:[%s1 + $0x864] sm:$0xf]
  %v853 = vld [vmem:[%s1 + $0x868] sm:$0xf]
  %v854 = vld [vmem:[%s1 + $0x86c] sm:$0xf]
  %v855 = vld [vmem:[%s1 + $0x870] sm:$0xf]
  %v856 = vld [vmem:[%s1 + $0x874] sm:$0xf]
  %v857 = vld [vmem:[%s1 + $0x878] sm:$0xf]
  %v858 = vld [vmem:[%s1 + $0x87c] sm:$0xf]
  %v859 = vld [vmem:[%s1 + $0x880] sm:$0xf]
  %v860 = vld [vmem:[%s1 + $0x884] sm:$0xf]
  %v861 = vld [vmem:[%s1 + $0x888] sm:$0xf]
  %v862 = vld [vmem:[%s1 + $0x88c] sm:$0xf]
  %v863 = vld [vmem:[%s1 + $0x890] sm:$0xf]
  %v864 = vld [vmem:[%s1 + $0x894] sm:$0xf]
  %v865 = vld [vmem:[%s1 + $0x898] sm:$0xf]
  %v866 = vld [vmem:[%s1 + $0x89c] sm:$0xf]
  %v867 = vld [vmem:[%s1 + $0x8a0] sm:$0xf]
  %v868 = vld [vmem:[%s1 + $0x8a4] sm:$0xf]
  %v869 = vld [vmem:[%s1 + $0x8a8] sm:$0xf]
  %v870 = vld [vmem:[%s1 + $0x8ac] sm:$0xf]
  %v871 = vld [vmem:[%s1 + $0x8b0] sm:$0xf]
  %v872 = vld [vmem:[%s1 + $0x8b4] sm:$0xf]
  %v873 = vld [vmem:[%s1 + $0x8b8] sm:$0xf]
  %v874 = vld [vmem:[%s1 + $0x8bc] sm:$0xf]
  %v875 = vld [vmem:[%s1 + $0x8c0] sm:$0xf]
  %v876 = vld [vmem:[%s1 + $0x8c4] sm:$0xf]
  %v877 = vld [vmem:[%s1 + $0x8c8] sm:$0xf]
  %v878 = vld [vmem:[%s1 + $0x8cc] sm:$0xf]
  %v879 = vld [vmem:[%s1 + $0x8d0] sm:$0xf]
  %v880 = vld [vmem:[%s1 + $0x8d4] sm:$0xf]
  %v881 = vld [vmem:[%s1 + $0x8d8] sm:$0xf]
  %v882 = vld [vmem:[%s1 + $0x8dc] sm:$0xf]
  %v883 = vld [vmem:[%s1 + $0x8e0] sm:$0xf]
  %v884 = vld [vmem:[%s1 + $0x8e4] sm:$0xf]
  %v885 = vld [vmem:[%s1 + $0x8e8] sm:$0xf]
  %v886 = vld [vmem:[%s1 + $0x8ec] sm:$0xf]
  %v887 = vld [vmem:[%s1 + $0x8f0] sm:$0xf]
  %v888 = vld [vmem:[%s1 + $0x8f4] sm:$0xf]
  %v889 = vld [vmem:[%s1 + $0x8f8] sm:$0xf]
  %v890 = vld [vmem:[%s1 + $0x8fc] sm:$0xf]
  %v891 = vld [vmem:[%s2] sm:$0x1]
  %v893 = vlaneseq
  %v894 = vshrl.u32 %v893, 7
  %v895 = vsub.s32 0, %v894
  %v896 = vrot.slane %v891, %v895
  %v1186 = vunpack.c.l.b16 %v27
  %v1187 = vunpack.c.h.b16 %v27
  %v1188 = vunpack.c.l.b16 %v28
  %v1189 = vunpack.c.h.b16 %v28
  %v1190 = vunpack.c.l.b16 %v29
  %v1191 = vunpack.c.h.b16 %v29
  %v1192 = vunpack.c.l.b16 %v30
  %v1193 = vunpack.c.h.b16 %v30
  %v1194 = vunpack.c.l.b16 %v31
  %v1195 = vunpack.c.h.b16 %v31
  %v1196 = vunpack.c.l.b16 %v32
  %v1197 = vunpack.c.h.b16 %v32
  %v1198 = vunpack.c.l.b16 %v33
  %v1199 = vunpack.c.h.b16 %v33
  %v1200 = vunpack.c.l.b16 %v34
  %v1201 = vunpack.c.h.b16 %v34
  %v1202 = vunpack.c.l.b16 %v35
  %v1203 = vunpack.c.h.b16 %v35
  %v1204 = vunpack.c.l.b16 %v36
  %v1205 = vunpack.c.h.b16 %v36
  %v1206 = vunpack.c.l.b16 %v37
  %v1207 = vunpack.c.h.b16 %v37
  %v1208 = vunpack.c.l.b16 %v38
  %v1209 = vunpack.c.h.b16 %v38
  %v1210 = vunpack.c.l.b16 %v39
  %v1211 = vunpack.c.h.b16 %v39
  %v1212 = vunpack.c.l.b16 %v40
  %v1213 = vunpack.c.h.b16 %v40
  %v1214 = vunpack.c.l.b16 %v41
  %v1215 = vunpack.c.h.b16 %v41
  %v1216 = vunpack.c.l.b16 %v42
  %v1217 = vunpack.c.h.b16 %v42
  %v1218 = vunpack.c.l.b16 %v43
  %v1219 = vunpack.c.h.b16 %v43
  %v1220 = vunpack.c.l.b16 %v44
  %v1221 = vunpack.c.h.b16 %v44
  %v1222 = vunpack.c.l.b16 %v45
  %v1223 = vunpack.c.h.b16 %v45
  %v1224 = vunpack.c.l.b16 %v46
  %v1225 = vunpack.c.h.b16 %v46
  %v1226 = vunpack.c.l.b16 %v47
  %v1227 = vunpack.c.h.b16 %v47
  %v1228 = vunpack.c.l.b16 %v48
  %v1229 = vunpack.c.h.b16 %v48
  %v1230 = vunpack.c.l.b16 %v49
  %v1231 = vunpack.c.h.b16 %v49
  %v1232 = vunpack.c.l.b16 %v50
  %v1233 = vunpack.c.h.b16 %v50
  %v1234 = vunpack.c.l.b16 %v51
  %v1235 = vunpack.c.h.b16 %v51
  %v1236 = vunpack.c.l.b16 %v52
  %v1237 = vunpack.c.h.b16 %v52
  %v1238 = vunpack.c.l.b16 %v53
  %v1239 = vunpack.c.h.b16 %v53
  %v1240 = vunpack.c.l.b16 %v54
  %v1241 = vunpack.c.h.b16 %v54
  %v1242 = vunpack.c.l.b16 %v55
  %v1243 = vunpack.c.h.b16 %v55
  %v1244 = vunpack.c.l.b16 %v56
  %v1245 = vunpack.c.h.b16 %v56
  %v1246 = vunpack.c.l.b16 %v57
  %v1247 = vunpack.c.h.b16 %v57
  %v1248 = vunpack.c.l.b16 %v58
  %v1249 = vunpack.c.h.b16 %v58
  %v1250 = vunpack.c.l.b16 %v59
  %v1251 = vunpack.c.h.b16 %v59
  %v1252 = vunpack.c.l.b16 %v60
  %v1253 = vunpack.c.h.b16 %v60
  %v1254 = vunpack.c.l.b16 %v61
  %v1255 = vunpack.c.h.b16 %v61
  %v1256 = vunpack.c.l.b16 %v62
  %v1257 = vunpack.c.h.b16 %v62
  %v1258 = vunpack.c.l.b16 %v63
  %v1259 = vunpack.c.h.b16 %v63
  %v1260 = vunpack.c.l.b16 %v64
  %v1261 = vunpack.c.h.b16 %v64
  %v1262 = vunpack.c.l.b16 %v65
  %v1263 = vunpack.c.h.b16 %v65
  %v1264 = vunpack.c.l.b16 %v66
  %v1265 = vunpack.c.h.b16 %v66
  %v1266 = vunpack.c.l.b16 %v67
  %v1267 = vunpack.c.h.b16 %v67
  %v1268 = vunpack.c.l.b16 %v68
  %v1269 = vunpack.c.h.b16 %v68
  %v1270 = vunpack.c.l.b16 %v69
  %v1271 = vunpack.c.h.b16 %v69
  %v1272 = vunpack.c.l.b16 %v70
  %v1273 = vunpack.c.h.b16 %v70
  %v1274 = vunpack.c.l.b16 %v71
  %v1275 = vunpack.c.h.b16 %v71
  %v1276 = vunpack.c.l.b16 %v72
  %v1277 = vunpack.c.h.b16 %v72
  %v1278 = vunpack.c.l.b16 %v73
  %v1279 = vunpack.c.h.b16 %v73
  %v1280 = vunpack.c.l.b16 %v74
  %v1281 = vunpack.c.h.b16 %v74
  %v1282 = vunpack.c.l.b16 %v75
  %v1283 = vunpack.c.h.b16 %v75
  %v1284 = vunpack.c.l.b16 %v76
  %v1285 = vunpack.c.h.b16 %v76
  %v1286 = vunpack.c.l.b16 %v77
  %v1287 = vunpack.c.h.b16 %v77
  %v1288 = vunpack.c.l.b16 %v78
  %v1289 = vunpack.c.h.b16 %v78
  %v1290 = vunpack.c.l.b16 %v79
  %v1291 = vunpack.c.h.b16 %v79
  %v1292 = vunpack.c.l.b16 %v80
  %v1293 = vunpack.c.h.b16 %v80
  %v1294 = vunpack.c.l.b16 %v81
  %v1295 = vunpack.c.h.b16 %v81
  %v1296 = vunpack.c.l.b16 %v82
  %v1297 = vunpack.c.h.b16 %v82
  %v1298 = vunpack.c.l.b16 %v83
  %v1299 = vunpack.c.h.b16 %v83
  %v1300 = vunpack.c.l.b16 %v84
  %v1301 = vunpack.c.h.b16 %v84
  %v1302 = vunpack.c.l.b16 %v85
  %v1303 = vunpack.c.h.b16 %v85
  %v1304 = vunpack.c.l.b16 %v86
  %v1305 = vunpack.c.h.b16 %v86
  %v1306 = vunpack.c.l.b16 %v87
  %v1307 = vunpack.c.h.b16 %v87
  %v1308 = vunpack.c.l.b16 %v88
  %v1309 = vunpack.c.h.b16 %v88
  %v1310 = vunpack.c.l.b16 %v89
  %v1311 = vunpack.c.h.b16 %v89
  %v1312 = vunpack.c.l.b16 %v90
  %v1313 = vunpack.c.h.b16 %v90
  %v1314 = vunpack.c.l.b16 %v91
  %v1315 = vunpack.c.h.b16 %v91
  %v1316 = vunpack.c.l.b16 %v92
  %v1317 = vunpack.c.h.b16 %v92
  %v1318 = vunpack.c.l.b16 %v93
  %v1319 = vunpack.c.h.b16 %v93
  %v1320 = vunpack.c.l.b16 %v94
  %v1321 = vunpack.c.h.b16 %v94
  %v1322 = vunpack.c.l.b16 %v95
  %v1323 = vunpack.c.h.b16 %v95
  %v1324 = vunpack.c.l.b16 %v96
  %v1325 = vunpack.c.h.b16 %v96
  %v1326 = vunpack.c.l.b16 %v97
  %v1327 = vunpack.c.h.b16 %v97
  %v1328 = vunpack.c.l.b16 %v98
  %v1329 = vunpack.c.h.b16 %v98
  %v1330 = vunpack.c.l.b16 %v99
  %v1331 = vunpack.c.h.b16 %v99
  %v1332 = vunpack.c.l.b16 %v100
  %v1333 = vunpack.c.h.b16 %v100
  %v1334 = vunpack.c.l.b16 %v101
  %v1335 = vunpack.c.h.b16 %v101
  %v1336 = vunpack.c.l.b16 %v102
  %v1337 = vunpack.c.h.b16 %v102
  %v1338 = vunpack.c.l.b16 %v103
  %v1339 = vunpack.c.h.b16 %v103
  %v1340 = vunpack.c.l.b16 %v104
  %v1341 = vunpack.c.h.b16 %v104
  %v1342 = vunpack.c.l.b16 %v105
  %v1343 = vunpack.c.h.b16 %v105
  %v1344 = vunpack.c.l.b16 %v106
  %v1345 = vunpack.c.h.b16 %v106
  %v1346 = vunpack.c.l.b16 %v107
  %v1347 = vunpack.c.h.b16 %v107
  %v1348 = vunpack.c.l.b16 %v108
  %v1349 = vunpack.c.h.b16 %v108
  %v1350 = vunpack.c.l.b16 %v109
  %v1351 = vunpack.c.h.b16 %v109
  %v1352 = vunpack.c.l.b16 %v110
  %v1353 = vunpack.c.h.b16 %v110
  %v1354 = vunpack.c.l.b16 %v111
  %v1355 = vunpack.c.h.b16 %v111
  %v1356 = vunpack.c.l.b16 %v112
  %v1357 = vunpack.c.h.b16 %v112
  %v1358 = vunpack.c.l.b16 %v113
  %v1359 = vunpack.c.h.b16 %v113
  %v1360 = vunpack.c.l.b16 %v114
  %v1361 = vunpack.c.h.b16 %v114
  %v1362 = vunpack.c.l.b16 %v115
  %v1363 = vunpack.c.h.b16 %v115
  %v1364 = vunpack.c.l.b16 %v116
  %v1365 = vunpack.c.h.b16 %v116
  %v1366 = vunpack.c.l.b16 %v117
  %v1367 = vunpack.c.h.b16 %v117
  %v1368 = vunpack.c.l.b16 %v118
  %v1369 = vunpack.c.h.b16 %v118
  %v1370 = vunpack.c.l.b16 %v119
  %v1371 = vunpack.c.h.b16 %v119
  %v1372 = vunpack.c.l.b16 %v120
  %v1373 = vunpack.c.h.b16 %v120
  %v1374 = vunpack.c.l.b16 %v121
  %v1375 = vunpack.c.h.b16 %v121
  %v1376 = vunpack.c.l.b16 %v122
  %v1377 = vunpack.c.h.b16 %v122
  %v1378 = vunpack.c.l.b16 %v123
  %v1379 = vunpack.c.h.b16 %v123
  %v1380 = vunpack.c.l.b16 %v124
  %v1381 = vunpack.c.h.b16 %v124
  %v1382 = vunpack.c.l.b16 %v125
  %v1383 = vunpack.c.h.b16 %v125
  %v1384 = vunpack.c.l.b16 %v126
  %v1385 = vunpack.c.h.b16 %v126
  %v1386 = vunpack.c.l.b16 %v127
  %v1387 = vunpack.c.h.b16 %v127
  %v1388 = vunpack.c.l.b16 %v128
  %v1389 = vunpack.c.h.b16 %v128
  %v1390 = vunpack.c.l.b16 %v129
  %v1391 = vunpack.c.h.b16 %v129
  %v1392 = vunpack.c.l.b16 %v130
  %v1393 = vunpack.c.h.b16 %v130
  %v1394 = vunpack.c.l.b16 %v131
  %v1395 = vunpack.c.h.b16 %v131
  %v1396 = vunpack.c.l.b16 %v132
  %v1397 = vunpack.c.h.b16 %v132
  %v1398 = vunpack.c.l.b16 %v133
  %v1399 = vunpack.c.h.b16 %v133
  %v1400 = vunpack.c.l.b16 %v134
  %v1401 = vunpack.c.h.b16 %v134
  %v1402 = vunpack.c.l.b16 %v135
  %v1403 = vunpack.c.h.b16 %v135
  %v1404 = vunpack.c.l.b16 %v136
  %v1405 = vunpack.c.h.b16 %v136
  %v1406 = vunpack.c.l.b16 %v137
  %v1407 = vunpack.c.h.b16 %v137
  %v1408 = vunpack.c.l.b16 %v138
  %v1409 = vunpack.c.h.b16 %v138
  %v1410 = vunpack.c.l.b16 %v139
  %v1411 = vunpack.c.h.b16 %v139
  %v1412 = vunpack.c.l.b16 %v140
  %v1413 = vunpack.c.h.b16 %v140
  %v1414 = vunpack.c.l.b16 %v141
  %v1415 = vunpack.c.h.b16 %v141
  %v1416 = vunpack.c.l.b16 %v142
  %v1417 = vunpack.c.h.b16 %v142
  %v1418 = vunpack.c.l.b16 %v143
  %v1419 = vunpack.c.h.b16 %v143
  %v1420 = vunpack.c.l.b16 %v144
  %v1421 = vunpack.c.h.b16 %v144
  %v1422 = vunpack.c.l.b16 %v145
  %v1423 = vunpack.c.h.b16 %v145
  %v1424 = vunpack.c.l.b16 %v146
  %v1425 = vunpack.c.h.b16 %v146
  %v1426 = vunpack.c.l.b16 %v147
  %v1427 = vunpack.c.h.b16 %v147
  %v1428 = vunpack.c.l.b16 %v148
  %v1429 = vunpack.c.h.b16 %v148
  %v1430 = vunpack.c.l.b16 %v149
  %v1431 = vunpack.c.h.b16 %v149
  %v1432 = vunpack.c.l.b16 %v150
  %v1433 = vunpack.c.h.b16 %v150
  %v1434 = vunpack.c.l.b16 %v151
  %v1435 = vunpack.c.h.b16 %v151
  %v1436 = vunpack.c.l.b16 %v152
  %v1437 = vunpack.c.h.b16 %v152
  %v1438 = vunpack.c.l.b16 %v153
  %v1439 = vunpack.c.h.b16 %v153
  %v1440 = vunpack.c.l.b16 %v154
  %v1441 = vunpack.c.h.b16 %v154
  %v1442 = vunpack.c.l.b16 %v155
  %v1443 = vunpack.c.h.b16 %v155
  %v1444 = vunpack.c.l.b16 %v156
  %v1445 = vunpack.c.h.b16 %v156
  %v1446 = vunpack.c.l.b16 %v157
  %v1447 = vunpack.c.h.b16 %v157
  %v1448 = vunpack.c.l.b16 %v158
  %v1449 = vunpack.c.h.b16 %v158
  %v1450 = vunpack.c.l.b16 %v159
  %v1451 = vunpack.c.h.b16 %v159
  %v1452 = vunpack.c.l.b16 %v160
  %v1453 = vunpack.c.h.b16 %v160
  %v1454 = vunpack.c.l.b16 %v161
  %v1455 = vunpack.c.h.b16 %v161
  %v1456 = vunpack.c.l.b16 %v162
  %v1457 = vunpack.c.h.b16 %v162
  %v1458 = vunpack.c.l.b16 %v163
  %v1459 = vunpack.c.h.b16 %v163
  %v1460 = vunpack.c.l.b16 %v164
  %v1461 = vunpack.c.h.b16 %v164
  %v1462 = vunpack.c.l.b16 %v165
  %v1463 = vunpack.c.h.b16 %v165
  %v1464 = vunpack.c.l.b16 %v166
  %v1465 = vunpack.c.h.b16 %v166
  %v1466 = vunpack.c.l.b16 %v167
  %v1467 = vunpack.c.h.b16 %v167
  %v1468 = vunpack.c.l.b16 %v168
  %v1469 = vunpack.c.h.b16 %v168
  %v1470 = vunpack.c.l.b16 %v169
  %v1471 = vunpack.c.h.b16 %v169
  %v1472 = vunpack.c.l.b16 %v170
  %v1473 = vunpack.c.h.b16 %v170
  %v1474 = vunpack.c.l.b16 %v171
  %v1475 = vunpack.c.h.b16 %v171
  %v1476 = vunpack.c.l.b16 %v172
  %v1477 = vunpack.c.h.b16 %v172
  %v1478 = vunpack.c.l.b16 %v173
  %v1479 = vunpack.c.h.b16 %v173
  %v1480 = vunpack.c.l.b16 %v174
  %v1481 = vunpack.c.h.b16 %v174
  %v1482 = vunpack.c.l.b16 %v175
  %v1483 = vunpack.c.h.b16 %v175
  %v1484 = vunpack.c.l.b16 %v176
  %v1485 = vunpack.c.h.b16 %v176
  %v1486 = vunpack.c.l.b16 %v177
  %v1487 = vunpack.c.h.b16 %v177
  %v1488 = vunpack.c.l.b16 %v178
  %v1489 = vunpack.c.h.b16 %v178
  %v1490 = vunpack.c.l.b16 %v179
  %v1491 = vunpack.c.h.b16 %v179
  %v1492 = vunpack.c.l.b16 %v180
  %v1493 = vunpack.c.h.b16 %v180
  %v1494 = vunpack.c.l.b16 %v181
  %v1495 = vunpack.c.h.b16 %v181
  %v1496 = vunpack.c.l.b16 %v182
  %v1497 = vunpack.c.h.b16 %v182
  %v1498 = vunpack.c.l.b16 %v183
  %v1499 = vunpack.c.h.b16 %v183
  %v1500 = vunpack.c.l.b16 %v184
  %v1501 = vunpack.c.h.b16 %v184
  %v1502 = vunpack.c.l.b16 %v185
  %v1503 = vunpack.c.h.b16 %v185
  %v1504 = vunpack.c.l.b16 %v186
  %v1505 = vunpack.c.h.b16 %v186
  %v1506 = vunpack.c.l.b16 %v187
  %v1507 = vunpack.c.h.b16 %v187
  %v1508 = vunpack.c.l.b16 %v188
  %v1509 = vunpack.c.h.b16 %v188
  %v1510 = vunpack.c.l.b16 %v189
  %v1511 = vunpack.c.h.b16 %v189
  %v1512 = vunpack.c.l.b16 %v190
  %v1513 = vunpack.c.h.b16 %v190
  %v1514 = vunpack.c.l.b16 %v191
  %v1515 = vunpack.c.h.b16 %v191
  %v1516 = vunpack.c.l.b16 %v192
  %v1517 = vunpack.c.h.b16 %v192
  %v1518 = vunpack.c.l.b16 %v193
  %v1519 = vunpack.c.h.b16 %v193
  %v1520 = vunpack.c.l.b16 %v194
  %v1521 = vunpack.c.h.b16 %v194
  %v1522 = vunpack.c.l.b16 %v195
  %v1523 = vunpack.c.h.b16 %v195
  %v1524 = vunpack.c.l.b16 %v196
  %v1525 = vunpack.c.h.b16 %v196
  %v1526 = vunpack.c.l.b16 %v197
  %v1527 = vunpack.c.h.b16 %v197
  %v1528 = vunpack.c.l.b16 %v198
  %v1529 = vunpack.c.h.b16 %v198
  %v1530 = vunpack.c.l.b16 %v199
  %v1531 = vunpack.c.h.b16 %v199
  %v1532 = vunpack.c.l.b16 %v200
  %v1533 = vunpack.c.h.b16 %v200
  %v1534 = vunpack.c.l.b16 %v201
  %v1535 = vunpack.c.h.b16 %v201
  %v1536 = vunpack.c.l.b16 %v202
  %v1537 = vunpack.c.h.b16 %v202
  %v1538 = vunpack.c.l.b16 %v203
  %v1539 = vunpack.c.h.b16 %v203
  %v1540 = vunpack.c.l.b16 %v204
  %v1541 = vunpack.c.h.b16 %v204
  %v1542 = vunpack.c.l.b16 %v205
  %v1543 = vunpack.c.h.b16 %v205
  %v1544 = vunpack.c.l.b16 %v206
  %v1545 = vunpack.c.h.b16 %v206
  %v1546 = vunpack.c.l.b16 %v207
  %v1547 = vunpack.c.h.b16 %v207
  %v1548 = vunpack.c.l.b16 %v208
  %v1549 = vunpack.c.h.b16 %v208
  %v1550 = vunpack.c.l.b16 %v209
  %v1551 = vunpack.c.h.b16 %v209
  %v1552 = vunpack.c.l.b16 %v210
  %v1553 = vunpack.c.h.b16 %v210
  %v1554 = vunpack.c.l.b16 %v211
  %v1555 = vunpack.c.h.b16 %v211
  %v1556 = vunpack.c.l.b16 %v212
  %v1557 = vunpack.c.h.b16 %v212
  %v1558 = vunpack.c.l.b16 %v213
  %v1559 = vunpack.c.h.b16 %v213
  %v1560 = vunpack.c.l.b16 %v214
  %v1561 = vunpack.c.h.b16 %v214
  %v1562 = vunpack.c.l.b16 %v215
  %v1563 = vunpack.c.h.b16 %v215
  %v1564 = vunpack.c.l.b16 %v216
  %v1565 = vunpack.c.h.b16 %v216
  %v1566 = vunpack.c.l.b16 %v217
  %v1567 = vunpack.c.h.b16 %v217
  %v1568 = vunpack.c.l.b16 %v218
  %v1569 = vunpack.c.h.b16 %v218
  %v1570 = vunpack.c.l.b16 %v219
  %v1571 = vunpack.c.h.b16 %v219
  %v1572 = vunpack.c.l.b16 %v220
  %v1573 = vunpack.c.h.b16 %v220
  %v1574 = vunpack.c.l.b16 %v221
  %v1575 = vunpack.c.h.b16 %v221
  %v1576 = vunpack.c.l.b16 %v222
  %v1577 = vunpack.c.h.b16 %v222
  %v1578 = vunpack.c.l.b16 %v223
  %v1579 = vunpack.c.h.b16 %v223
  %v1580 = vunpack.c.l.b16 %v224
  %v1581 = vunpack.c.h.b16 %v224
  %v1582 = vunpack.c.l.b16 %v225
  %v1583 = vunpack.c.h.b16 %v225
  %v1584 = vunpack.c.l.b16 %v226
  %v1585 = vunpack.c.h.b16 %v226
  %v1586 = vunpack.c.l.b16 %v227
  %v1587 = vunpack.c.h.b16 %v227
  %v1588 = vunpack.c.l.b16 %v228
  %v1589 = vunpack.c.h.b16 %v228
  %v1590 = vunpack.c.l.b16 %v229
  %v1591 = vunpack.c.h.b16 %v229
  %v1592 = vunpack.c.l.b16 %v230
  %v1593 = vunpack.c.h.b16 %v230
  %v1594 = vunpack.c.l.b16 %v231
  %v1595 = vunpack.c.h.b16 %v231
  %v1596 = vunpack.c.l.b16 %v232
  %v1597 = vunpack.c.h.b16 %v232
  %v1598 = vunpack.c.l.b16 %v233
  %v1599 = vunpack.c.h.b16 %v233
  %v1600 = vunpack.c.l.b16 %v234
  %v1601 = vunpack.c.h.b16 %v234
  %v1602 = vunpack.c.l.b16 %v235
  %v1603 = vunpack.c.h.b16 %v235
  %v1604 = vunpack.c.l.b16 %v236
  %v1605 = vunpack.c.h.b16 %v236
  %v1606 = vunpack.c.l.b16 %v237
  %v1607 = vunpack.c.h.b16 %v237
  %v1608 = vunpack.c.l.b16 %v238
  %v1609 = vunpack.c.h.b16 %v238
  %v1610 = vunpack.c.l.b16 %v239
  %v1611 = vunpack.c.h.b16 %v239
  %v1612 = vunpack.c.l.b16 %v240
  %v1613 = vunpack.c.h.b16 %v240
  %v1614 = vunpack.c.l.b16 %v241
  %v1615 = vunpack.c.h.b16 %v241
  %v1616 = vunpack.c.l.b16 %v242
  %v1617 = vunpack.c.h.b16 %v242
  %v1618 = vunpack.c.l.b16 %v243
  %v1619 = vunpack.c.h.b16 %v243
  %v1620 = vunpack.c.l.b16 %v244
  %v1621 = vunpack.c.h.b16 %v244
  %v1622 = vunpack.c.l.b16 %v245
  %v1623 = vunpack.c.h.b16 %v245
  %v1624 = vunpack.c.l.b16 %v246
  %v1625 = vunpack.c.h.b16 %v246
  %v1626 = vunpack.c.l.b16 %v247
  %v1627 = vunpack.c.h.b16 %v247
  %v1628 = vunpack.c.l.b16 %v248
  %v1629 = vunpack.c.h.b16 %v248
  %v1630 = vunpack.c.l.b16 %v249
  %v1631 = vunpack.c.h.b16 %v249
  %v1632 = vunpack.c.l.b16 %v250
  %v1633 = vunpack.c.h.b16 %v250
  %v1634 = vunpack.c.l.b16 %v251
  %v1635 = vunpack.c.h.b16 %v251
  %v1636 = vunpack.c.l.b16 %v252
  %v1637 = vunpack.c.h.b16 %v252
  %v1638 = vunpack.c.l.b16 %v253
  %v1639 = vunpack.c.h.b16 %v253
  %v1640 = vunpack.c.l.b16 %v254
  %v1641 = vunpack.c.h.b16 %v254
  %v1642 = vunpack.c.l.b16 %v255
  %v1643 = vunpack.c.h.b16 %v255
  %v1644 = vunpack.c.l.b16 %v256
  %v1645 = vunpack.c.h.b16 %v256
  %v1646 = vunpack.c.l.b16 %v257
  %v1647 = vunpack.c.h.b16 %v257
  %v1648 = vunpack.c.l.b16 %v258
  %v1649 = vunpack.c.h.b16 %v258
  %v1650 = vunpack.c.l.b16 %v259
  %v1651 = vunpack.c.h.b16 %v259
  %v1652 = vunpack.c.l.b16 %v260
  %v1653 = vunpack.c.h.b16 %v260
  %v1654 = vunpack.c.l.b16 %v261
  %v1655 = vunpack.c.h.b16 %v261
  %v1656 = vunpack.c.l.b16 %v262
  %v1657 = vunpack.c.h.b16 %v262
  %v1658 = vunpack.c.l.b16 %v263
  %v1659 = vunpack.c.h.b16 %v263
  %v1660 = vunpack.c.l.b16 %v264
  %v1661 = vunpack.c.h.b16 %v264
  %v1662 = vunpack.c.l.b16 %v265
  %v1663 = vunpack.c.h.b16 %v265
  %v1664 = vunpack.c.l.b16 %v266
  %v1665 = vunpack.c.h.b16 %v266
  %v1666 = vunpack.c.l.b16 %v267
  %v1667 = vunpack.c.h.b16 %v267
  %v1668 = vunpack.c.l.b16 %v268
  %v1669 = vunpack.c.h.b16 %v268
  %v1670 = vunpack.c.l.b16 %v269
  %v1671 = vunpack.c.h.b16 %v269
  %v1672 = vunpack.c.l.b16 %v270
  %v1673 = vunpack.c.h.b16 %v270
  %v1674 = vunpack.c.l.b16 %v271
  %v1675 = vunpack.c.h.b16 %v271
  %v1676 = vunpack.c.l.b16 %v272
  %v1677 = vunpack.c.h.b16 %v272
  %v1678 = vunpack.c.l.b16 %v273
  %v1679 = vunpack.c.h.b16 %v273
  %v1680 = vunpack.c.l.b16 %v274
  %v1681 = vunpack.c.h.b16 %v274
  %v1682 = vunpack.c.l.b16 %v275
  %v1683 = vunpack.c.h.b16 %v275
  %v1684 = vunpack.c.l.b16 %v276
  %v1685 = vunpack.c.h.b16 %v276
  %v1686 = vunpack.c.l.b16 %v277
  %v1687 = vunpack.c.h.b16 %v277
  %v1688 = vunpack.c.l.b16 %v278
  %v1689 = vunpack.c.h.b16 %v278
  %v1690 = vunpack.c.l.b16 %v279
  %v1691 = vunpack.c.h.b16 %v279
  %v1692 = vunpack.c.l.b16 %v280
  %v1693 = vunpack.c.h.b16 %v280
  %v1694 = vunpack.c.l.b16 %v281
  %v1695 = vunpack.c.h.b16 %v281
  %v1696 = vunpack.c.l.b16 %v282
  %v1697 = vunpack.c.h.b16 %v282
  %v1698 = vunpack.c.l.b16 %v283
  %v1699 = vunpack.c.h.b16 %v283
  %v1700 = vunpack.c.l.b16 %v284
  %v1701 = vunpack.c.h.b16 %v284
  %v1702 = vunpack.c.l.b16 %v285
  %v1703 = vunpack.c.h.b16 %v285
  %v1704 = vunpack.c.l.b16 %v286
  %v1705 = vunpack.c.h.b16 %v286
  %v1706 = vunpack.c.l.b16 %v287
  %v1707 = vunpack.c.h.b16 %v287
  %v1708 = vunpack.c.l.b16 %v288
  %v1709 = vunpack.c.h.b16 %v288
  %v1710 = vunpack.c.l.b16 %v289
  %v1711 = vunpack.c.h.b16 %v289
  %v1712 = vunpack.c.l.b16 %v290
  %v1713 = vunpack.c.h.b16 %v290
  %v1714 = vunpack.c.l.b16 %v291
  %v1715 = vunpack.c.h.b16 %v291
  %v1716 = vunpack.c.l.b16 %v292
  %v1717 = vunpack.c.h.b16 %v292
  %v1718 = vunpack.c.l.b16 %v293
  %v1719 = vunpack.c.h.b16 %v293
  %v1720 = vunpack.c.l.b16 %v294
  %v1721 = vunpack.c.h.b16 %v294
  %v1722 = vunpack.c.l.b16 %v295
  %v1723 = vunpack.c.h.b16 %v295
  %v1724 = vunpack.c.l.b16 %v296
  %v1725 = vunpack.c.h.b16 %v296
  %v1726 = vunpack.c.l.b16 %v297
  %v1727 = vunpack.c.h.b16 %v297
  %v1728 = vunpack.c.l.b16 %v298
  %v1729 = vunpack.c.h.b16 %v298
  %v1730 = vunpack.c.l.b16 %v299
  %v1731 = vunpack.c.h.b16 %v299
  %v1732 = vunpack.c.l.b16 %v300
  %v1733 = vunpack.c.h.b16 %v300
  %v1734 = vunpack.c.l.b16 %v301
  %v1735 = vunpack.c.h.b16 %v301
  %v1736 = vunpack.c.l.b16 %v302
  %v1737 = vunpack.c.h.b16 %v302
  %v1738 = vunpack.c.l.b16 %v303
  %v1739 = vunpack.c.h.b16 %v303
  %v1740 = vunpack.c.l.b16 %v304
  %v1741 = vunpack.c.h.b16 %v304
  %v1742 = vunpack.c.l.b16 %v305
  %v1743 = vunpack.c.h.b16 %v305
  %v1744 = vunpack.c.l.b16 %v306
  %v1745 = vunpack.c.h.b16 %v306
  %v1746 = vunpack.c.l.b16 %v307
  %v1747 = vunpack.c.h.b16 %v307
  %v1748 = vunpack.c.l.b16 %v308
  %v1749 = vunpack.c.h.b16 %v308
  %v1750 = vunpack.c.l.b16 %v309
  %v1751 = vunpack.c.h.b16 %v309
  %v1752 = vunpack.c.l.b16 %v310
  %v1753 = vunpack.c.h.b16 %v310
  %v1754 = vunpack.c.l.b16 %v311
  %v1755 = vunpack.c.h.b16 %v311
  %v1756 = vunpack.c.l.b16 %v312
  %v1757 = vunpack.c.h.b16 %v312
  %v1758 = vunpack.c.l.b16 %v313
  %v1759 = vunpack.c.h.b16 %v313
  %v1760 = vunpack.c.l.b16 %v314
  %v1761 = vunpack.c.h.b16 %v314
  %v1762 = vpack.c.b16 %v1222, %v1186
  %v1763 = vpack.c.b16 %v1223, %v1187
  %v1764 = vpack.c.b16 %v1224, %v1188
  %v1765 = vpack.c.b16 %v1225, %v1189
  %v1766 = vpack.c.b16 %v1226, %v1190
  %v1767 = vpack.c.b16 %v1227, %v1191
  %v1768 = vpack.c.b16 %v1228, %v1192
  %v1769 = vpack.c.b16 %v1229, %v1193
  %v1770 = vpack.c.b16 %v1230, %v1194
  %v1771 = vpack.c.b16 %v1231, %v1195
  %v1772 = vpack.c.b16 %v1232, %v1196
  %v1773 = vpack.c.b16 %v1233, %v1197
  %v1774 = vpack.c.b16 %v1234, %v1198
  %v1775 = vpack.c.b16 %v1235, %v1199
  %v1776 = vpack.c.b16 %v1236, %v1200
  %v1777 = vpack.c.b16 %v1237, %v1201
  %v1778 = vpack.c.b16 %v1238, %v1202
  %v1779 = vpack.c.b16 %v1239, %v1203
  %v1780 = vpack.c.b16 %v1240, %v1204
  %v1781 = vpack.c.b16 %v1241, %v1205
  %v1782 = vpack.c.b16 %v1242, %v1206
  %v1783 = vpack.c.b16 %v1243, %v1207
  %v1784 = vpack.c.b16 %v1244, %v1208
  %v1785 = vpack.c.b16 %v1245, %v1209
  %v1786 = vpack.c.b16 %v1246, %v1210
  %v1787 = vpack.c.b16 %v1247, %v1211
  %v1788 = vpack.c.b16 %v1248, %v1212
  %v1789 = vpack.c.b16 %v1249, %v1213
  %v1790 = vpack.c.b16 %v1250, %v1214
  %v1791 = vpack.c.b16 %v1251, %v1215
  %v1792 = vpack.c.b16 %v1252, %v1216
  %v1793 = vpack.c.b16 %v1253, %v1217
  %v1794 = vpack.c.b16 %v1254, %v1218
  %v1795 = vpack.c.b16 %v1255, %v1219
  %v1796 = vpack.c.b16 %v1256, %v1220
  %v1797 = vpack.c.b16 %v1257, %v1221
  %v1798 = vpack.c.b16 %v1294, %v1258
  %v1799 = vpack.c.b16 %v1295, %v1259
  %v1800 = vpack.c.b16 %v1296, %v1260
  %v1801 = vpack.c.b16 %v1297, %v1261
  %v1802 = vpack.c.b16 %v1298, %v1262
  %v1803 = vpack.c.b16 %v1299, %v1263
  %v1804 = vpack.c.b16 %v1300, %v1264
  %v1805 = vpack.c.b16 %v1301, %v1265
  %v1806 = vpack.c.b16 %v1302, %v1266
  %v1807 = vpack.c.b16 %v1303, %v1267
  %v1808 = vpack.c.b16 %v1304, %v1268
  %v1809 = vpack.c.b16 %v1305, %v1269
  %v1810 = vpack.c.b16 %v1306, %v1270
  %v1811 = vpack.c.b16 %v1307, %v1271
  %v1812 = vpack.c.b16 %v1308, %v1272
  %v1813 = vpack.c.b16 %v1309, %v1273
  %v1814 = vpack.c.b16 %v1310, %v1274
  %v1815 = vpack.c.b16 %v1311, %v1275
  %v1816 = vpack.c.b16 %v1312, %v1276
  %v1817 = vpack.c.b16 %v1313, %v1277
  %v1818 = vpack.c.b16 %v1314, %v1278
  %v1819 = vpack.c.b16 %v1315, %v1279
  %v1820 = vpack.c.b16 %v1316, %v1280
  %v1821 = vpack.c.b16 %v1317, %v1281
  %v1822 = vpack.c.b16 %v1318, %v1282
  %v1823 = vpack.c.b16 %v1319, %v1283
  %v1824 = vpack.c.b16 %v1320, %v1284
  %v1825 = vpack.c.b16 %v1321, %v1285
  %v1826 = vpack.c.b16 %v1322, %v1286
  %v1827 = vpack.c.b16 %v1323, %v1287
  %v1828 = vpack.c.b16 %v1324, %v1288
  %v1829 = vpack.c.b16 %v1325, %v1289
  %v1830 = vpack.c.b16 %v1326, %v1290
  %v1831 = vpack.c.b16 %v1327, %v1291
  %v1832 = vpack.c.b16 %v1328, %v1292
  %v1833 = vpack.c.b16 %v1329, %v1293
  %v1834 = vpack.c.b16 %v1366, %v1330
  %v1835 = vpack.c.b16 %v1367, %v1331
  %v1836 = vpack.c.b16 %v1368, %v1332
  %v1837 = vpack.c.b16 %v1369, %v1333
  %v1838 = vpack.c.b16 %v1370, %v1334
  %v1839 = vpack.c.b16 %v1371, %v1335
  %v1840 = vpack.c.b16 %v1372, %v1336
  %v1841 = vpack.c.b16 %v1373, %v1337
  %v1842 = vpack.c.b16 %v1374, %v1338
  %v1843 = vpack.c.b16 %v1375, %v1339
  %v1844 = vpack.c.b16 %v1376, %v1340
  %v1845 = vpack.c.b16 %v1377, %v1341
  %v1846 = vpack.c.b16 %v1378, %v1342
  %v1847 = vpack.c.b16 %v1379, %v1343
  %v1848 = vpack.c.b16 %v1380, %v1344
  %v1849 = vpack.c.b16 %v1381, %v1345
  %v1850 = vpack.c.b16 %v1382, %v1346
  %v1851 = vpack.c.b16 %v1383, %v1347
  %v1852 = vpack.c.b16 %v1384, %v1348
  %v1853 = vpack.c.b16 %v1385, %v1349
  %v1854 = vpack.c.b16 %v1386, %v1350
  %v1855 = vpack.c.b16 %v1387, %v1351
  %v1856 = vpack.c.b16 %v1388, %v1352
  %v1857 = vpack.c.b16 %v1389, %v1353
  %v1858 = vpack.c.b16 %v1390, %v1354
  %v1859 = vpack.c.b16 %v1391, %v1355
  %v1860 = vpack.c.b16 %v1392, %v1356
  %v1861 = vpack.c.b16 %v1393, %v1357
  %v1862 = vpack.c.b16 %v1394, %v1358
  %v1863 = vpack.c.b16 %v1395, %v1359
  %v1864 = vpack.c.b16 %v1396, %v1360
  %v1865 = vpack.c.b16 %v1397, %v1361
  %v1866 = vpack.c.b16 %v1398, %v1362
  %v1867 = vpack.c.b16 %v1399, %v1363
  %v1868 = vpack.c.b16 %v1400, %v1364
  %v1869 = vpack.c.b16 %v1401, %v1365
  %v1870 = vpack.c.b16 %v1438, %v1402
  %v1871 = vpack.c.b16 %v1439, %v1403
  %v1872 = vpack.c.b16 %v1440, %v1404
  %v1873 = vpack.c.b16 %v1441, %v1405
  %v1874 = vpack.c.b16 %v1442, %v1406
  %v1875 = vpack.c.b16 %v1443, %v1407
  %v1876 = vpack.c.b16 %v1444, %v1408
  %v1877 = vpack.c.b16 %v1445, %v1409
  %v1878 = vpack.c.b16 %v1446, %v1410
  %v1879 = vpack.c.b16 %v1447, %v1411
  %v1880 = vpack.c.b16 %v1448, %v1412
  %v1881 = vpack.c.b16 %v1449, %v1413
  %v1882 = vpack.c.b16 %v1450, %v1414
  %v1883 = vpack.c.b16 %v1451, %v1415
  %v1884 = vpack.c.b16 %v1452, %v1416
  %v1885 = vpack.c.b16 %v1453, %v1417
  %v1886 = vpack.c.b16 %v1454, %v1418
  %v1887 = vpack.c.b16 %v1455, %v1419
  %v1888 = vpack.c.b16 %v1456, %v1420
  %v1889 = vpack.c.b16 %v1457, %v1421
  %v1890 = vpack.c.b16 %v1458, %v1422
  %v1891 = vpack.c.b16 %v1459, %v1423
  %v1892 = vpack.c.b16 %v1460, %v1424
  %v1893 = vpack.c.b16 %v1461, %v1425
  %v1894 = vpack.c.b16 %v1462, %v1426
  %v1895 = vpack.c.b16 %v1463, %v1427
  %v1896 = vpack.c.b16 %v1464, %v1428
  %v1897 = vpack.c.b16 %v1465, %v1429
  %v1898 = vpack.c.b16 %v1466, %v1430
  %v1899 = vpack.c.b16 %v1467, %v1431
  %v1900 = vpack.c.b16 %v1468, %v1432
  %v1901 = vpack.c.b16 %v1469, %v1433
  %v1902 = vpack.c.b16 %v1470, %v1434
  %v1903 = vpack.c.b16 %v1471, %v1435
  %v1904 = vpack.c.b16 %v1472, %v1436
  %v1905 = vpack.c.b16 %v1473, %v1437
  %v1906 = vpack.c.b16 %v1510, %v1474
  %v1907 = vpack.c.b16 %v1511, %v1475
  %v1908 = vpack.c.b16 %v1512, %v1476
  %v1909 = vpack.c.b16 %v1513, %v1477
  %v1910 = vpack.c.b16 %v1514, %v1478
  %v1911 = vpack.c.b16 %v1515, %v1479
  %v1912 = vpack.c.b16 %v1516, %v1480
  %v1913 = vpack.c.b16 %v1517, %v1481
  %v1914 = vpack.c.b16 %v1518, %v1482
  %v1915 = vpack.c.b16 %v1519, %v1483
  %v1916 = vpack.c.b16 %v1520, %v1484
  %v1917 = vpack.c.b16 %v1521, %v1485
  %v1918 = vpack.c.b16 %v1522, %v1486
  %v1919 = vpack.c.b16 %v1523, %v1487
  %v1920 = vpack.c.b16 %v1524, %v1488
  %v1921 = vpack.c.b16 %v1525, %v1489
  %v1922 = vpack.c.b16 %v1526, %v1490
  %v1923 = vpack.c.b16 %v1527, %v1491
  %v1924 = vpack.c.b16 %v1528, %v1492
  %v1925 = vpack.c.b16 %v1529, %v1493
  %v1926 = vpack.c.b16 %v1530, %v1494
  %v1927 = vpack.c.b16 %v1531, %v1495
  %v1928 = vpack.c.b16 %v1532, %v1496
  %v1929 = vpack.c.b16 %v1533, %v1497
  %v1930 = vpack.c.b16 %v1534, %v1498
  %v1931 = vpack.c.b16 %v1535, %v1499
  %v1932 = vpack.c.b16 %v1536, %v1500
  %v1933 = vpack.c.b16 %v1537, %v1501
  %v1934 = vpack.c.b16 %v1538, %v1502
  %v1935 = vpack.c.b16 %v1539, %v1503
  %v1936 = vpack.c.b16 %v1540, %v1504
  %v1937 = vpack.c.b16 %v1541, %v1505
  %v1938 = vpack.c.b16 %v1542, %v1506
  %v1939 = vpack.c.b16 %v1543, %v1507
  %v1940 = vpack.c.b16 %v1544, %v1508
  %v1941 = vpack.c.b16 %v1545, %v1509
  %v1942 = vpack.c.b16 %v1582, %v1546
  %v1943 = vpack.c.b16 %v1583, %v1547
  %v1944 = vpack.c.b16 %v1584, %v1548
  %v1945 = vpack.c.b16 %v1585, %v1549
  %v1946 = vpack.c.b16 %v1586, %v1550
  %v1947 = vpack.c.b16 %v1587, %v1551
  %v1948 = vpack.c.b16 %v1588, %v1552
  %v1949 = vpack.c.b16 %v1589, %v1553
  %v1950 = vpack.c.b16 %v1590, %v1554
  %v1951 = vpack.c.b16 %v1591, %v1555
  %v1952 = vpack.c.b16 %v1592, %v1556
  %v1953 = vpack.c.b16 %v1593, %v1557
  %v1954 = vpack.c.b16 %v1594, %v1558
  %v1955 = vpack.c.b16 %v1595, %v1559
  %v1956 = vpack.c.b16 %v1596, %v1560
  %v1957 = vpack.c.b16 %v1597, %v1561
  %v1958 = vpack.c.b16 %v1598, %v1562
  %v1959 = vpack.c.b16 %v1599, %v1563
  %v1960 = vpack.c.b16 %v1600, %v1564
  %v1961 = vpack.c.b16 %v1601, %v1565
  %v1962 = vpack.c.b16 %v1602, %v1566
  %v1963 = vpack.c.b16 %v1603, %v1567
  %v1964 = vpack.c.b16 %v1604, %v1568
  %v1965 = vpack.c.b16 %v1605, %v1569
  %v1966 = vpack.c.b16 %v1606, %v1570
  %v1967 = vpack.c.b16 %v1607, %v1571
  %v1968 = vpack.c.b16 %v1608, %v1572
  %v1969 = vpack.c.b16 %v1609, %v1573
  %v1970 = vpack.c.b16 %v1610, %v1574
  %v1971 = vpack.c.b16 %v1611, %v1575
  %v1972 = vpack.c.b16 %v1612, %v1576
  %v1973 = vpack.c.b16 %v1613, %v1577
  %v1974 = vpack.c.b16 %v1614, %v1578
  %v1975 = vpack.c.b16 %v1615, %v1579
  %v1976 = vpack.c.b16 %v1616, %v1580
  %v1977 = vpack.c.b16 %v1617, %v1581
  %v1978 = vpack.c.b16 %v1654, %v1618
  %v1979 = vpack.c.b16 %v1655, %v1619
  %v1980 = vpack.c.b16 %v1656, %v1620
  %v1981 = vpack.c.b16 %v1657, %v1621
  %v1982 = vpack.c.b16 %v1658, %v1622
  %v1983 = vpack.c.b16 %v1659, %v1623
  %v1984 = vpack.c.b16 %v1660, %v1624
  %v1985 = vpack.c.b16 %v1661, %v1625
  %v1986 = vpack.c.b16 %v1662, %v1626
  %v1987 = vpack.c.b16 %v1663, %v1627
  %v1988 = vpack.c.b16 %v1664, %v1628
  %v1989 = vpack.c.b16 %v1665, %v1629
  %v1990 = vpack.c.b16 %v1666, %v1630
  %v1991 = vpack.c.b16 %v1667, %v1631
  %v1992 = vpack.c.b16 %v1668, %v1632
  %v1993 = vpack.c.b16 %v1669, %v1633
  %v1994 = vpack.c.b16 %v1670, %v1634
  %v1995 = vpack.c.b16 %v1671, %v1635
  %v1996 = vpack.c.b16 %v1672, %v1636
  %v1997 = vpack.c.b16 %v1673, %v1637
  %v1998 = vpack.c.b16 %v1674, %v1638
  %v1999 = vpack.c.b16 %v1675, %v1639
  %v2000 = vpack.c.b16 %v1676, %v1640
  %v2001 = vpack.c.b16 %v1677, %v1641
  %v2002 = vpack.c.b16 %v1678, %v1642
  %v2003 = vpack.c.b16 %v1679, %v1643
  %v2004 = vpack.c.b16 %v1680, %v1644
  %v2005 = vpack.c.b16 %v1681, %v1645
  %v2006 = vpack.c.b16 %v1682, %v1646
  %v2007 = vpack.c.b16 %v1683, %v1647
  %v2008 = vpack.c.b16 %v1684, %v1648
  %v2009 = vpack.c.b16 %v1685, %v1649
  %v2010 = vpack.c.b16 %v1686, %v1650
  %v2011 = vpack.c.b16 %v1687, %v1651
  %v2012 = vpack.c.b16 %v1688, %v1652
  %v2013 = vpack.c.b16 %v1689, %v1653
  %v2014 = vpack.c.b16 %v1726, %v1690
  %v2015 = vpack.c.b16 %v1727, %v1691
  %v2016 = vpack.c.b16 %v1728, %v1692
  %v2017 = vpack.c.b16 %v1729, %v1693
  %v2018 = vpack.c.b16 %v1730, %v1694
  %v2019 = vpack.c.b16 %v1731, %v1695
  %v2020 = vpack.c.b16 %v1732, %v1696
  %v2021 = vpack.c.b16 %v1733, %v1697
  %v2022 = vpack.c.b16 %v1734, %v1698
  %v2023 = vpack.c.b16 %v1735, %v1699
  %v2024 = vpack.c.b16 %v1736, %v1700
  %v2025 = vpack.c.b16 %v1737, %v1701
  %v2026 = vpack.c.b16 %v1738, %v1702
  %v2027 = vpack.c.b16 %v1739, %v1703
  %v2028 = vpack.c.b16 %v1740, %v1704
  %v2029 = vpack.c.b16 %v1741, %v1705
  %v2030 = vpack.c.b16 %v1742, %v1706
  %v2031 = vpack.c.b16 %v1743, %v1707
  %v2032 = vpack.c.b16 %v1744, %v1708
  %v2033 = vpack.c.b16 %v1745, %v1709
  %v2034 = vpack.c.b16 %v1746, %v1710
  %v2035 = vpack.c.b16 %v1747, %v1711
  %v2036 = vpack.c.b16 %v1748, %v1712
  %v2037 = vpack.c.b16 %v1749, %v1713
  %v2038 = vpack.c.b16 %v1750, %v1714
  %v2039 = vpack.c.b16 %v1751, %v1715
  %v2040 = vpack.c.b16 %v1752, %v1716
  %v2041 = vpack.c.b16 %v1753, %v1717
  %v2042 = vpack.c.b16 %v1754, %v1718
  %v2043 = vpack.c.b16 %v1755, %v1719
  %v2044 = vpack.c.b16 %v1756, %v1720
  %v2045 = vpack.c.b16 %v1757, %v1721
  %v2046 = vpack.c.b16 %v1758, %v1722
  %v2047 = vpack.c.b16 %v1759, %v1723
  %v2048 = vpack.c.b16 %v1760, %v1724
  %v2049 = vpack.c.b16 %v1761, %v1725
  %v2914 = vunpack.c.l.b16 %v315
  %v2915 = vunpack.c.l.b16 %v316
  %v2916 = vunpack.c.l.b16 %v317
  %v2917 = vunpack.c.l.b16 %v318
  %v2918 = vunpack.c.l.b16 %v319
  %v2919 = vunpack.c.l.b16 %v320
  %v2920 = vunpack.c.l.b16 %v321
  %v2921 = vunpack.c.l.b16 %v322
  %v2922 = vunpack.c.l.b16 %v323
  %v2923 = vunpack.c.l.b16 %v324
  %v2924 = vunpack.c.l.b16 %v325
  %v2925 = vunpack.c.l.b16 %v326
  %v2926 = vunpack.c.l.b16 %v327
  %v2927 = vunpack.c.l.b16 %v328
  %v2928 = vunpack.c.l.b16 %v329
  %v2929 = vunpack.c.l.b16 %v330
  %v2930 = vunpack.c.l.b16 %v331
  %v2931 = vunpack.c.l.b16 %v332
  %v2932 = vunpack.c.l.b16 %v333
  %v2933 = vunpack.c.l.b16 %v334
  %v2934 = vunpack.c.l.b16 %v335
  %v2935 = vunpack.c.l.b16 %v336
  %v2936 = vunpack.c.l.b16 %v337
  %v2937 = vunpack.c.l.b16 %v338
  %v2938 = vunpack.c.l.b16 %v339
  %v2939 = vunpack.c.l.b16 %v340
  %v2940 = vunpack.c.l.b16 %v341
  %v2941 = vunpack.c.l.b16 %v342
  %v2942 = vunpack.c.l.b16 %v343
  %v2943 = vunpack.c.l.b16 %v344
  %v2944 = vunpack.c.l.b16 %v345
  %v2945 = vunpack.c.l.b16 %v346
  %v2946 = vunpack.c.l.b16 %v347
  %v2947 = vunpack.c.l.b16 %v348
  %v2948 = vunpack.c.l.b16 %v349
  %v2949 = vunpack.c.l.b16 %v350
  %v2950 = vunpack.c.l.b16 %v351
  %v2951 = vunpack.c.l.b16 %v352
  %v2952 = vunpack.c.l.b16 %v353
  %v2953 = vunpack.c.l.b16 %v354
  %v2954 = vunpack.c.l.b16 %v355
  %v2955 = vunpack.c.l.b16 %v356
  %v2956 = vunpack.c.l.b16 %v357
  %v2957 = vunpack.c.l.b16 %v358
  %v2958 = vunpack.c.l.b16 %v359
  %v2959 = vunpack.c.l.b16 %v360
  %v2960 = vunpack.c.l.b16 %v361
  %v2961 = vunpack.c.l.b16 %v362
  %v2962 = vunpack.c.l.b16 %v363
  %v2963 = vunpack.c.l.b16 %v364
  %v2964 = vunpack.c.l.b16 %v365
  %v2965 = vunpack.c.l.b16 %v366
  %v2966 = vunpack.c.l.b16 %v367
  %v2967 = vunpack.c.l.b16 %v368
  %v2968 = vunpack.c.l.b16 %v369
  %v2969 = vunpack.c.l.b16 %v370
  %v2970 = vunpack.c.l.b16 %v371
  %v2971 = vunpack.c.l.b16 %v372
  %v2972 = vunpack.c.l.b16 %v373
  %v2973 = vunpack.c.l.b16 %v374
  %v2974 = vunpack.c.l.b16 %v375
  %v2975 = vunpack.c.l.b16 %v376
  %v2976 = vunpack.c.l.b16 %v377
  %v2977 = vunpack.c.l.b16 %v378
  %v2978 = vunpack.c.l.b16 %v379
  %v2979 = vunpack.c.l.b16 %v380
  %v2980 = vunpack.c.l.b16 %v381
  %v2981 = vunpack.c.l.b16 %v382
  %v2982 = vunpack.c.l.b16 %v383
  %v2983 = vunpack.c.l.b16 %v384
  %v2984 = vunpack.c.l.b16 %v385
  %v2985 = vunpack.c.l.b16 %v386
  %v2986 = vunpack.c.l.b16 %v387
  %v2987 = vunpack.c.l.b16 %v388
  %v2988 = vunpack.c.l.b16 %v389
  %v2989 = vunpack.c.l.b16 %v390
  %v2990 = vunpack.c.l.b16 %v391
  %v2991 = vunpack.c.l.b16 %v392
  %v2992 = vunpack.c.l.b16 %v393
  %v2993 = vunpack.c.l.b16 %v394
  %v2994 = vunpack.c.l.b16 %v395
  %v2995 = vunpack.c.l.b16 %v396
  %v2996 = vunpack.c.l.b16 %v397
  %v2997 = vunpack.c.l.b16 %v398
  %v2998 = vunpack.c.l.b16 %v399
  %v2999 = vunpack.c.l.b16 %v400
  %v3000 = vunpack.c.l.b16 %v401
  %v3001 = vunpack.c.l.b16 %v402
  %v3002 = vunpack.c.l.b16 %v403
  %v3003 = vunpack.c.l.b16 %v404
  %v3004 = vunpack.c.l.b16 %v405
  %v3005 = vunpack.c.l.b16 %v406
  %v3006 = vunpack.c.l.b16 %v407
  %v3007 = vunpack.c.l.b16 %v408
  %v3008 = vunpack.c.l.b16 %v409
  %v3009 = vunpack.c.l.b16 %v410
  %v3010 = vunpack.c.l.b16 %v411
  %v3011 = vunpack.c.l.b16 %v412
  %v3012 = vunpack.c.l.b16 %v413
  %v3013 = vunpack.c.l.b16 %v414
  %v3014 = vunpack.c.l.b16 %v415
  %v3015 = vunpack.c.l.b16 %v416
  %v3016 = vunpack.c.l.b16 %v417
  %v3017 = vunpack.c.l.b16 %v418
  %v3018 = vunpack.c.l.b16 %v419
  %v3019 = vunpack.c.l.b16 %v420
  %v3020 = vunpack.c.l.b16 %v421
  %v3021 = vunpack.c.l.b16 %v422
  %v3022 = vunpack.c.l.b16 %v423
  %v3023 = vunpack.c.l.b16 %v424
  %v3024 = vunpack.c.l.b16 %v425
  %v3025 = vunpack.c.l.b16 %v426
  %v3026 = vunpack.c.l.b16 %v427
  %v3027 = vunpack.c.l.b16 %v428
  %v3028 = vunpack.c.l.b16 %v429
  %v3029 = vunpack.c.l.b16 %v430
  %v3030 = vunpack.c.l.b16 %v431
  %v3031 = vunpack.c.l.b16 %v432
  %v3032 = vunpack.c.l.b16 %v433
  %v3033 = vunpack.c.l.b16 %v434
  %v3034 = vunpack.c.l.b16 %v435
  %v3035 = vunpack.c.l.b16 %v436
  %v3036 = vunpack.c.l.b16 %v437
  %v3037 = vunpack.c.l.b16 %v438
  %v3038 = vunpack.c.l.b16 %v439
  %v3039 = vunpack.c.l.b16 %v440
  %v3040 = vunpack.c.l.b16 %v441
  %v3041 = vunpack.c.l.b16 %v442
  %v3042 = vunpack.c.l.b16 %v443
  %v3043 = vunpack.c.l.b16 %v444
  %v3044 = vunpack.c.l.b16 %v445
  %v3045 = vunpack.c.l.b16 %v446
  %v3046 = vunpack.c.l.b16 %v447
  %v3047 = vunpack.c.l.b16 %v448
  %v3048 = vunpack.c.l.b16 %v449
  %v3049 = vunpack.c.l.b16 %v450
  %v3050 = vunpack.c.l.b16 %v451
  %v3051 = vunpack.c.l.b16 %v452
  %v3052 = vunpack.c.l.b16 %v453
  %v3053 = vunpack.c.l.b16 %v454
  %v3054 = vunpack.c.l.b16 %v455
  %v3055 = vunpack.c.l.b16 %v456
  %v3056 = vunpack.c.l.b16 %v457
  %v3057 = vunpack.c.l.b16 %v458
  %v3058 = vunpack.c.l.b16 %v459
  %v3059 = vunpack.c.l.b16 %v460
  %v3060 = vunpack.c.l.b16 %v461
  %v3061 = vunpack.c.l.b16 %v462
  %v3062 = vunpack.c.l.b16 %v463
  %v3063 = vunpack.c.l.b16 %v464
  %v3064 = vunpack.c.l.b16 %v465
  %v3065 = vunpack.c.l.b16 %v466
  %v3066 = vunpack.c.l.b16 %v467
  %v3067 = vunpack.c.l.b16 %v468
  %v3068 = vunpack.c.l.b16 %v469
  %v3069 = vunpack.c.l.b16 %v470
  %v3070 = vunpack.c.l.b16 %v471
  %v3071 = vunpack.c.l.b16 %v472
  %v3072 = vunpack.c.l.b16 %v473
  %v3073 = vunpack.c.l.b16 %v474
  %v3074 = vunpack.c.l.b16 %v475
  %v3075 = vunpack.c.l.b16 %v476
  %v3076 = vunpack.c.l.b16 %v477
  %v3077 = vunpack.c.l.b16 %v478
  %v3078 = vunpack.c.l.b16 %v479
  %v3079 = vunpack.c.l.b16 %v480
  %v3080 = vunpack.c.l.b16 %v481
  %v3081 = vunpack.c.l.b16 %v482
  %v3082 = vunpack.c.l.b16 %v483
  %v3083 = vunpack.c.l.b16 %v484
  %v3084 = vunpack.c.l.b16 %v485
  %v3085 = vunpack.c.l.b16 %v486
  %v3086 = vunpack.c.l.b16 %v487
  %v3087 = vunpack.c.l.b16 %v488
  %v3088 = vunpack.c.l.b16 %v489
  %v3089 = vunpack.c.l.b16 %v490
  %v3090 = vunpack.c.l.b16 %v491
  %v3091 = vunpack.c.l.b16 %v492
  %v3092 = vunpack.c.l.b16 %v493
  %v3093 = vunpack.c.l.b16 %v494
  %v3094 = vunpack.c.l.b16 %v495
  %v3095 = vunpack.c.l.b16 %v496
  %v3096 = vunpack.c.l.b16 %v497
  %v3097 = vunpack.c.l.b16 %v498
  %v3098 = vunpack.c.l.b16 %v499
  %v3099 = vunpack.c.l.b16 %v500
  %v3100 = vunpack.c.l.b16 %v501
  %v3101 = vunpack.c.l.b16 %v502
  %v3102 = vunpack.c.l.b16 %v503
  %v3103 = vunpack.c.l.b16 %v504
  %v3104 = vunpack.c.l.b16 %v505
  %v3105 = vunpack.c.l.b16 %v506
  %v3106 = vunpack.c.l.b16 %v507
  %v3107 = vunpack.c.l.b16 %v508
  %v3108 = vunpack.c.l.b16 %v509
  %v3109 = vunpack.c.l.b16 %v510
  %v3110 = vunpack.c.l.b16 %v511
  %v3111 = vunpack.c.l.b16 %v512
  %v3112 = vunpack.c.l.b16 %v513
  %v3113 = vunpack.c.l.b16 %v514
  %v3114 = vunpack.c.l.b16 %v515
  %v3115 = vunpack.c.l.b16 %v516
  %v3116 = vunpack.c.l.b16 %v517
  %v3117 = vunpack.c.l.b16 %v518
  %v3118 = vunpack.c.l.b16 %v519
  %v3119 = vunpack.c.l.b16 %v520
  %v3120 = vunpack.c.l.b16 %v521
  %v3121 = vunpack.c.l.b16 %v522
  %v3122 = vunpack.c.l.b16 %v523
  %v3123 = vunpack.c.l.b16 %v524
  %v3124 = vunpack.c.l.b16 %v525
  %v3125 = vunpack.c.l.b16 %v526
  %v3126 = vunpack.c.l.b16 %v527
  %v3127 = vunpack.c.l.b16 %v528
  %v3128 = vunpack.c.l.b16 %v529
  %v3129 = vunpack.c.l.b16 %v530
  %v3130 = vunpack.c.l.b16 %v531
  %v3131 = vunpack.c.l.b16 %v532
  %v3132 = vunpack.c.l.b16 %v533
  %v3133 = vunpack.c.l.b16 %v534
  %v3134 = vunpack.c.l.b16 %v535
  %v3135 = vunpack.c.l.b16 %v536
  %v3136 = vunpack.c.l.b16 %v537
  %v3137 = vunpack.c.l.b16 %v538
  %v3138 = vunpack.c.l.b16 %v539
  %v3139 = vunpack.c.l.b16 %v540
  %v3140 = vunpack.c.l.b16 %v541
  %v3141 = vunpack.c.l.b16 %v542
  %v3142 = vunpack.c.l.b16 %v543
  %v3143 = vunpack.c.l.b16 %v544
  %v3144 = vunpack.c.l.b16 %v545
  %v3145 = vunpack.c.l.b16 %v546
  %v3146 = vunpack.c.l.b16 %v547
  %v3147 = vunpack.c.l.b16 %v548
  %v3148 = vunpack.c.l.b16 %v549
  %v3149 = vunpack.c.l.b16 %v550
  %v3150 = vunpack.c.l.b16 %v551
  %v3151 = vunpack.c.l.b16 %v552
  %v3152 = vunpack.c.l.b16 %v553
  %v3153 = vunpack.c.l.b16 %v554
  %v3154 = vunpack.c.l.b16 %v555
  %v3155 = vunpack.c.l.b16 %v556
  %v3156 = vunpack.c.l.b16 %v557
  %v3157 = vunpack.c.l.b16 %v558
  %v3158 = vunpack.c.l.b16 %v559
  %v3159 = vunpack.c.l.b16 %v560
  %v3160 = vunpack.c.l.b16 %v561
  %v3161 = vunpack.c.l.b16 %v562
  %v3162 = vunpack.c.l.b16 %v563
  %v3163 = vunpack.c.l.b16 %v564
  %v3164 = vunpack.c.l.b16 %v565
  %v3165 = vunpack.c.l.b16 %v566
  %v3166 = vunpack.c.l.b16 %v567
  %v3167 = vunpack.c.l.b16 %v568
  %v3168 = vunpack.c.l.b16 %v569
  %v3169 = vunpack.c.l.b16 %v570
  %v3170 = vunpack.c.l.b16 %v571
  %v3171 = vunpack.c.l.b16 %v572
  %v3172 = vunpack.c.l.b16 %v573
  %v3173 = vunpack.c.l.b16 %v574
  %v3174 = vunpack.c.l.b16 %v575
  %v3175 = vunpack.c.l.b16 %v576
  %v3176 = vunpack.c.l.b16 %v577
  %v3177 = vunpack.c.l.b16 %v578
  %v3178 = vunpack.c.l.b16 %v579
  %v3179 = vunpack.c.l.b16 %v580
  %v3180 = vunpack.c.l.b16 %v581
  %v3181 = vunpack.c.l.b16 %v582
  %v3182 = vunpack.c.l.b16 %v583
  %v3183 = vunpack.c.l.b16 %v584
  %v3184 = vunpack.c.l.b16 %v585
  %v3185 = vunpack.c.l.b16 %v586
  %v3186 = vunpack.c.l.b16 %v587
  %v3187 = vunpack.c.l.b16 %v588
  %v3188 = vunpack.c.l.b16 %v589
  %v3189 = vunpack.c.l.b16 %v590
  %v3190 = vunpack.c.l.b16 %v591
  %v3191 = vunpack.c.l.b16 %v592
  %v3192 = vunpack.c.l.b16 %v593
  %v3193 = vunpack.c.l.b16 %v594
  %v3194 = vunpack.c.l.b16 %v595
  %v3195 = vunpack.c.l.b16 %v596
  %v3196 = vunpack.c.l.b16 %v597
  %v3197 = vunpack.c.l.b16 %v598
  %v3198 = vunpack.c.l.b16 %v599
  %v3199 = vunpack.c.l.b16 %v600
  %v3200 = vunpack.c.l.b16 %v601
  %v3201 = vunpack.c.l.b16 %v602
  %v3202 = vunpack.c.l.b16 %v603
  %v3203 = vunpack.c.l.b16 %v604
  %v3204 = vunpack.c.l.b16 %v605
  %v3205 = vunpack.c.l.b16 %v606
  %v3206 = vunpack.c.l.b16 %v607
  %v3207 = vunpack.c.l.b16 %v608
  %v3208 = vunpack.c.l.b16 %v609
  %v3209 = vunpack.c.l.b16 %v610
  %v3210 = vunpack.c.l.b16 %v611
  %v3211 = vunpack.c.l.b16 %v612
  %v3212 = vunpack.c.l.b16 %v613
  %v3213 = vunpack.c.l.b16 %v614
  %v3214 = vunpack.c.l.b16 %v615
  %v3215 = vunpack.c.l.b16 %v616
  %v3216 = vunpack.c.l.b16 %v617
  %v3217 = vunpack.c.l.b16 %v618
  %v3218 = vunpack.c.l.b16 %v619
  %v3219 = vunpack.c.l.b16 %v620
  %v3220 = vunpack.c.l.b16 %v621
  %v3221 = vunpack.c.l.b16 %v622
  %v3222 = vunpack.c.l.b16 %v623
  %v3223 = vunpack.c.l.b16 %v624
  %v3224 = vunpack.c.l.b16 %v625
  %v3225 = vunpack.c.l.b16 %v626
  %v3226 = vunpack.c.l.b16 %v627
  %v3227 = vunpack.c.l.b16 %v628
  %v3228 = vunpack.c.l.b16 %v629
  %v3229 = vunpack.c.l.b16 %v630
  %v3230 = vunpack.c.l.b16 %v631
  %v3231 = vunpack.c.l.b16 %v632
  %v3232 = vunpack.c.l.b16 %v633
  %v3233 = vunpack.c.l.b16 %v634
  %v3234 = vunpack.c.l.b16 %v635
  %v3235 = vunpack.c.l.b16 %v636
  %v3236 = vunpack.c.l.b16 %v637
  %v3237 = vunpack.c.l.b16 %v638
  %v3238 = vunpack.c.l.b16 %v639
  %v3239 = vunpack.c.l.b16 %v640
  %v3240 = vunpack.c.l.b16 %v641
  %v3241 = vunpack.c.l.b16 %v642
  %v3242 = vunpack.c.l.b16 %v643
  %v3243 = vunpack.c.l.b16 %v644
  %v3244 = vunpack.c.l.b16 %v645
  %v3245 = vunpack.c.l.b16 %v646
  %v3246 = vunpack.c.l.b16 %v647
  %v3247 = vunpack.c.l.b16 %v648
  %v3248 = vunpack.c.l.b16 %v649
  %v3249 = vunpack.c.l.b16 %v650
  %v3250 = vunpack.c.l.b16 %v651
  %v3251 = vunpack.c.l.b16 %v652
  %v3252 = vunpack.c.l.b16 %v653
  %v3253 = vunpack.c.l.b16 %v654
  %v3254 = vunpack.c.l.b16 %v655
  %v3255 = vunpack.c.l.b16 %v656
  %v3256 = vunpack.c.l.b16 %v657
  %v3257 = vunpack.c.l.b16 %v658
  %v3258 = vunpack.c.l.b16 %v659
  %v3259 = vunpack.c.l.b16 %v660
  %v3260 = vunpack.c.l.b16 %v661
  %v3261 = vunpack.c.l.b16 %v662
  %v3262 = vunpack.c.l.b16 %v663
  %v3263 = vunpack.c.l.b16 %v664
  %v3264 = vunpack.c.l.b16 %v665
  %v3265 = vunpack.c.l.b16 %v666
  %v3266 = vunpack.c.l.b16 %v667
  %v3267 = vunpack.c.l.b16 %v668
  %v3268 = vunpack.c.l.b16 %v669
  %v3269 = vunpack.c.l.b16 %v670
  %v3270 = vunpack.c.l.b16 %v671
  %v3271 = vunpack.c.l.b16 %v672
  %v3272 = vunpack.c.l.b16 %v673
  %v3273 = vunpack.c.l.b16 %v674
  %v3274 = vunpack.c.l.b16 %v675
  %v3275 = vunpack.c.l.b16 %v676
  %v3276 = vunpack.c.l.b16 %v677
  %v3277 = vunpack.c.l.b16 %v678
  %v3278 = vunpack.c.l.b16 %v679
  %v3279 = vunpack.c.l.b16 %v680
  %v3280 = vunpack.c.l.b16 %v681
  %v3281 = vunpack.c.l.b16 %v682
  %v3282 = vunpack.c.l.b16 %v683
  %v3283 = vunpack.c.l.b16 %v684
  %v3284 = vunpack.c.l.b16 %v685
  %v3285 = vunpack.c.l.b16 %v686
  %v3286 = vunpack.c.l.b16 %v687
  %v3287 = vunpack.c.l.b16 %v688
  %v3288 = vunpack.c.l.b16 %v689
  %v3289 = vunpack.c.l.b16 %v690
  %v3290 = vunpack.c.l.b16 %v691
  %v3291 = vunpack.c.l.b16 %v692
  %v3292 = vunpack.c.l.b16 %v693
  %v3293 = vunpack.c.l.b16 %v694
  %v3294 = vunpack.c.l.b16 %v695
  %v3295 = vunpack.c.l.b16 %v696
  %v3296 = vunpack.c.l.b16 %v697
  %v3297 = vunpack.c.l.b16 %v698
  %v3298 = vunpack.c.l.b16 %v699
  %v3299 = vunpack.c.l.b16 %v700
  %v3300 = vunpack.c.l.b16 %v701
  %v3301 = vunpack.c.l.b16 %v702
  %v3302 = vunpack.c.l.b16 %v703
  %v3303 = vunpack.c.l.b16 %v704
  %v3304 = vunpack.c.l.b16 %v705
  %v3305 = vunpack.c.l.b16 %v706
  %v3306 = vunpack.c.l.b16 %v707
  %v3307 = vunpack.c.l.b16 %v708
  %v3308 = vunpack.c.l.b16 %v709
  %v3309 = vunpack.c.l.b16 %v710
  %v3310 = vunpack.c.l.b16 %v711
  %v3311 = vunpack.c.l.b16 %v712
  %v3312 = vunpack.c.l.b16 %v713
  %v3313 = vunpack.c.l.b16 %v714
  %v3314 = vunpack.c.l.b16 %v715
  %v3315 = vunpack.c.l.b16 %v716
  %v3316 = vunpack.c.l.b16 %v717
  %v3317 = vunpack.c.l.b16 %v718
  %v3318 = vunpack.c.l.b16 %v719
  %v3319 = vunpack.c.l.b16 %v720
  %v3320 = vunpack.c.l.b16 %v721
  %v3321 = vunpack.c.l.b16 %v722
  %v3322 = vunpack.c.l.b16 %v723
  %v3323 = vunpack.c.l.b16 %v724
  %v3324 = vunpack.c.l.b16 %v725
  %v3325 = vunpack.c.l.b16 %v726
  %v3326 = vunpack.c.l.b16 %v727
  %v3327 = vunpack.c.l.b16 %v728
  %v3328 = vunpack.c.l.b16 %v729
  %v3329 = vunpack.c.l.b16 %v730
  %v3330 = vunpack.c.l.b16 %v731
  %v3331 = vunpack.c.l.b16 %v732
  %v3332 = vunpack.c.l.b16 %v733
  %v3333 = vunpack.c.l.b16 %v734
  %v3334 = vunpack.c.l.b16 %v735
  %v3335 = vunpack.c.l.b16 %v736
  %v3336 = vunpack.c.l.b16 %v737
  %v3337 = vunpack.c.l.b16 %v738
  %v3338 = vunpack.c.l.b16 %v739
  %v3339 = vunpack.c.l.b16 %v740
  %v3340 = vunpack.c.l.b16 %v741
  %v3341 = vunpack.c.l.b16 %v742
  %v3342 = vunpack.c.l.b16 %v743
  %v3343 = vunpack.c.l.b16 %v744
  %v3344 = vunpack.c.l.b16 %v745
  %v3345 = vunpack.c.l.b16 %v746
  %v3346 = vunpack.c.l.b16 %v747
  %v3347 = vunpack.c.l.b16 %v748
  %v3348 = vunpack.c.l.b16 %v749
  %v3349 = vunpack.c.l.b16 %v750
  %v3350 = vunpack.c.l.b16 %v751
  %v3351 = vunpack.c.l.b16 %v752
  %v3352 = vunpack.c.l.b16 %v753
  %v3353 = vunpack.c.l.b16 %v754
  %v3354 = vunpack.c.l.b16 %v755
  %v3355 = vunpack.c.l.b16 %v756
  %v3356 = vunpack.c.l.b16 %v757
  %v3357 = vunpack.c.l.b16 %v758
  %v3358 = vunpack.c.l.b16 %v759
  %v3359 = vunpack.c.l.b16 %v760
  %v3360 = vunpack.c.l.b16 %v761
  %v3361 = vunpack.c.l.b16 %v762
  %v3362 = vunpack.c.l.b16 %v763
  %v3363 = vunpack.c.l.b16 %v764
  %v3364 = vunpack.c.l.b16 %v765
  %v3365 = vunpack.c.l.b16 %v766
  %v3366 = vunpack.c.l.b16 %v767
  %v3367 = vunpack.c.l.b16 %v768
  %v3368 = vunpack.c.l.b16 %v769
  %v3369 = vunpack.c.l.b16 %v770
  %v3370 = vunpack.c.l.b16 %v771
  %v3371 = vunpack.c.l.b16 %v772
  %v3372 = vunpack.c.l.b16 %v773
  %v3373 = vunpack.c.l.b16 %v774
  %v3374 = vunpack.c.l.b16 %v775
  %v3375 = vunpack.c.l.b16 %v776
  %v3376 = vunpack.c.l.b16 %v777
  %v3377 = vunpack.c.l.b16 %v778
  %v3378 = vunpack.c.l.b16 %v779
  %v3379 = vunpack.c.l.b16 %v780
  %v3380 = vunpack.c.l.b16 %v781
  %v3381 = vunpack.c.l.b16 %v782
  %v3382 = vunpack.c.l.b16 %v783
  %v3383 = vunpack.c.l.b16 %v784
  %v3384 = vunpack.c.l.b16 %v785
  %v3385 = vunpack.c.l.b16 %v786
  %v3386 = vunpack.c.l.b16 %v787
  %v3387 = vunpack.c.l.b16 %v788
  %v3388 = vunpack.c.l.b16 %v789
  %v3389 = vunpack.c.l.b16 %v790
  %v3390 = vunpack.c.l.b16 %v791
  %v3391 = vunpack.c.l.b16 %v792
  %v3392 = vunpack.c.l.b16 %v793
  %v3393 = vunpack.c.l.b16 %v794
  %v3394 = vunpack.c.l.b16 %v795
  %v3395 = vunpack.c.l.b16 %v796
  %v3396 = vunpack.c.l.b16 %v797
  %v3397 = vunpack.c.l.b16 %v798
  %v3398 = vunpack.c.l.b16 %v799
  %v3399 = vunpack.c.l.b16 %v800
  %v3400 = vunpack.c.l.b16 %v801
  %v3401 = vunpack.c.l.b16 %v802
  %v3402 = vunpack.c.l.b16 %v803
  %v3403 = vunpack.c.l.b16 %v804
  %v3404 = vunpack.c.l.b16 %v805
  %v3405 = vunpack.c.l.b16 %v806
  %v3406 = vunpack.c.l.b16 %v807
  %v3407 = vunpack.c.l.b16 %v808
  %v3408 = vunpack.c.l.b16 %v809
  %v3409 = vunpack.c.l.b16 %v810
  %v3410 = vunpack.c.l.b16 %v811
  %v3411 = vunpack.c.l.b16 %v812
  %v3412 = vunpack.c.l.b16 %v813
  %v3413 = vunpack.c.l.b16 %v814
  %v3414 = vunpack.c.l.b16 %v815
  %v3415 = vunpack.c.l.b16 %v816
  %v3416 = vunpack.c.l.b16 %v817
  %v3417 = vunpack.c.l.b16 %v818
  %v3418 = vunpack.c.l.b16 %v819
  %v3419 = vunpack.c.l.b16 %v820
  %v3420 = vunpack.c.l.b16 %v821
  %v3421 = vunpack.c.l.b16 %v822
  %v3422 = vunpack.c.l.b16 %v823
  %v3423 = vunpack.c.l.b16 %v824
  %v3424 = vunpack.c.l.b16 %v825
  %v3425 = vunpack.c.l.b16 %v826
  %v3426 = vunpack.c.l.b16 %v827
  %v3427 = vunpack.c.l.b16 %v828
  %v3428 = vunpack.c.l.b16 %v829
  %v3429 = vunpack.c.l.b16 %v830
  %v3430 = vunpack.c.l.b16 %v831
  %v3431 = vunpack.c.l.b16 %v832
  %v3432 = vunpack.c.l.b16 %v833
  %v3433 = vunpack.c.l.b16 %v834
  %v3434 = vunpack.c.l.b16 %v835
  %v3435 = vunpack.c.l.b16 %v836
  %v3436 = vunpack.c.l.b16 %v837
  %v3437 = vunpack.c.l.b16 %v838
  %v3438 = vunpack.c.l.b16 %v839
  %v3439 = vunpack.c.l.b16 %v840
  %v3440 = vunpack.c.l.b16 %v841
  %v3441 = vunpack.c.l.b16 %v842
  %v3442 = vunpack.c.l.b16 %v843
  %v3443 = vunpack.c.l.b16 %v844
  %v3444 = vunpack.c.l.b16 %v845
  %v3445 = vunpack.c.l.b16 %v846
  %v3446 = vunpack.c.l.b16 %v847
  %v3447 = vunpack.c.l.b16 %v848
  %v3448 = vunpack.c.l.b16 %v849
  %v3449 = vunpack.c.l.b16 %v850
  %v3450 = vunpack.c.l.b16 %v851
  %v3451 = vunpack.c.l.b16 %v852
  %v3452 = vunpack.c.l.b16 %v853
  %v3453 = vunpack.c.l.b16 %v854
  %v3454 = vunpack.c.l.b16 %v855
  %v3455 = vunpack.c.l.b16 %v856
  %v3456 = vunpack.c.l.b16 %v857
  %v3457 = vunpack.c.l.b16 %v858
  %v3458 = vunpack.c.l.b16 %v859
  %v3459 = vunpack.c.l.b16 %v860
  %v3460 = vunpack.c.l.b16 %v861
  %v3461 = vunpack.c.l.b16 %v862
  %v3462 = vunpack.c.l.b16 %v863
  %v3463 = vunpack.c.l.b16 %v864
  %v3464 = vunpack.c.l.b16 %v865
  %v3465 = vunpack.c.l.b16 %v866
  %v3466 = vunpack.c.l.b16 %v867
  %v3467 = vunpack.c.l.b16 %v868
  %v3468 = vunpack.c.l.b16 %v869
  %v3469 = vunpack.c.l.b16 %v870
  %v3470 = vunpack.c.l.b16 %v871
  %v3471 = vunpack.c.l.b16 %v872
  %v3472 = vunpack.c.l.b16 %v873
  %v3473 = vunpack.c.l.b16 %v874
  %v3474 = vunpack.c.l.b16 %v875
  %v3475 = vunpack.c.l.b16 %v876
  %v3476 = vunpack.c.l.b16 %v877
  %v3477 = vunpack.c.l.b16 %v878
  %v3478 = vunpack.c.l.b16 %v879
  %v3479 = vunpack.c.l.b16 %v880
  %v3480 = vunpack.c.l.b16 %v881
  %v3481 = vunpack.c.l.b16 %v882
  %v3482 = vunpack.c.l.b16 %v883
  %v3483 = vunpack.c.l.b16 %v884
  %v3484 = vunpack.c.l.b16 %v885
  %v3485 = vunpack.c.l.b16 %v886
  %v3486 = vunpack.c.l.b16 %v887
  %v3487 = vunpack.c.l.b16 %v888
  %v3488 = vunpack.c.l.b16 %v889
  %v3489 = vunpack.c.l.b16 %v890
  %v3490 = vpack.c.b16 %v2915, %v2914
  %v3491 = vpack.c.b16 %v2917, %v2916
  %v3492 = vpack.c.b16 %v2919, %v2918
  %v3493 = vpack.c.b16 %v2921, %v2920
  %v3494 = vpack.c.b16 %v2923, %v2922
  %v3495 = vpack.c.b16 %v2925, %v2924
  %v3496 = vpack.c.b16 %v2927, %v2926
  %v3497 = vpack.c.b16 %v2929, %v2928
  %v3498 = vpack.c.b16 %v2931, %v2930
  %v3499 = vpack.c.b16 %v2933, %v2932
  %v3500 = vpack.c.b16 %v2935, %v2934
  %v3501 = vpack.c.b16 %v2937, %v2936
  %v3502 = vpack.c.b16 %v2939, %v2938
  %v3503 = vpack.c.b16 %v2941, %v2940
  %v3504 = vpack.c.b16 %v2943, %v2942
  %v3505 = vpack.c.b16 %v2945, %v2944
  %v3506 = vpack.c.b16 %v2947, %v2946
  %v3507 = vpack.c.b16 %v2949, %v2948
  %v3508 = vpack.c.b16 %v2951, %v2950
  %v3509 = vpack.c.b16 %v2953, %v2952
  %v3510 = vpack.c.b16 %v2955, %v2954
  %v3511 = vpack.c.b16 %v2957, %v2956
  %v3512 = vpack.c.b16 %v2959, %v2958
  %v3513 = vpack.c.b16 %v2961, %v2960
  %v3514 = vpack.c.b16 %v2963, %v2962
  %v3515 = vpack.c.b16 %v2965, %v2964
  %v3516 = vpack.c.b16 %v2967, %v2966
  %v3517 = vpack.c.b16 %v2969, %v2968
  %v3518 = vpack.c.b16 %v2971, %v2970
  %v3519 = vpack.c.b16 %v2973, %v2972
  %v3520 = vpack.c.b16 %v2975, %v2974
  %v3521 = vpack.c.b16 %v2977, %v2976
  %v3522 = vpack.c.b16 %v2979, %v2978
  %v3523 = vpack.c.b16 %v2981, %v2980
  %v3524 = vpack.c.b16 %v2983, %v2982
  %v3525 = vpack.c.b16 %v2985, %v2984
  %v3526 = vpack.c.b16 %v2987, %v2986
  %v3527 = vpack.c.b16 %v2989, %v2988
  %v3528 = vpack.c.b16 %v2991, %v2990
  %v3529 = vpack.c.b16 %v2993, %v2992
  %v3530 = vpack.c.b16 %v2995, %v2994
  %v3531 = vpack.c.b16 %v2997, %v2996
  %v3532 = vpack.c.b16 %v2999, %v2998
  %v3533 = vpack.c.b16 %v3001, %v3000
  %v3534 = vpack.c.b16 %v3003, %v3002
  %v3535 = vpack.c.b16 %v3005, %v3004
  %v3536 = vpack.c.b16 %v3007, %v3006
  %v3537 = vpack.c.b16 %v3009, %v3008
  %v3538 = vpack.c.b16 %v3011, %v3010
  %v3539 = vpack.c.b16 %v3013, %v3012
  %v3540 = vpack.c.b16 %v3015, %v3014
  %v3541 = vpack.c.b16 %v3017, %v3016
  %v3542 = vpack.c.b16 %v3019, %v3018
  %v3543 = vpack.c.b16 %v3021, %v3020
  %v3544 = vpack.c.b16 %v3023, %v3022
  %v3545 = vpack.c.b16 %v3025, %v3024
  %v3546 = vpack.c.b16 %v3027, %v3026
  %v3547 = vpack.c.b16 %v3029, %v3028
  %v3548 = vpack.c.b16 %v3031, %v3030
  %v3549 = vpack.c.b16 %v3033, %v3032
  %v3550 = vpack.c.b16 %v3035, %v3034
  %v3551 = vpack.c.b16 %v3037, %v3036
  %v3552 = vpack.c.b16 %v3039, %v3038
  %v3553 = vpack.c.b16 %v3041, %v3040
  %v3554 = vpack.c.b16 %v3043, %v3042
  %v3555 = vpack.c.b16 %v3045, %v3044
  %v3556 = vpack.c.b16 %v3047, %v3046
  %v3557 = vpack.c.b16 %v3049, %v3048
  %v3558 = vpack.c.b16 %v3051, %v3050
  %v3559 = vpack.c.b16 %v3053, %v3052
  %v3560 = vpack.c.b16 %v3055, %v3054
  %v3561 = vpack.c.b16 %v3057, %v3056
  %v3562 = vpack.c.b16 %v3059, %v3058
  %v3563 = vpack.c.b16 %v3061, %v3060
  %v3564 = vpack.c.b16 %v3063, %v3062
  %v3565 = vpack.c.b16 %v3065, %v3064
  %v3566 = vpack.c.b16 %v3067, %v3066
  %v3567 = vpack.c.b16 %v3069, %v3068
  %v3568 = vpack.c.b16 %v3071, %v3070
  %v3569 = vpack.c.b16 %v3073, %v3072
  %v3570 = vpack.c.b16 %v3075, %v3074
  %v3571 = vpack.c.b16 %v3077, %v3076
  %v3572 = vpack.c.b16 %v3079, %v3078
  %v3573 = vpack.c.b16 %v3081, %v3080
  %v3574 = vpack.c.b16 %v3083, %v3082
  %v3575 = vpack.c.b16 %v3085, %v3084
  %v3576 = vpack.c.b16 %v3087, %v3086
  %v3577 = vpack.c.b16 %v3089, %v3088
  %v3578 = vpack.c.b16 %v3091, %v3090
  %v3579 = vpack.c.b16 %v3093, %v3092
  %v3580 = vpack.c.b16 %v3095, %v3094
  %v3581 = vpack.c.b16 %v3097, %v3096
  %v3582 = vpack.c.b16 %v3099, %v3098
  %v3583 = vpack.c.b16 %v3101, %v3100
  %v3584 = vpack.c.b16 %v3103, %v3102
  %v3585 = vpack.c.b16 %v3105, %v3104
  %v3586 = vpack.c.b16 %v3107, %v3106
  %v3587 = vpack.c.b16 %v3109, %v3108
  %v3588 = vpack.c.b16 %v3111, %v3110
  %v3589 = vpack.c.b16 %v3113, %v3112
  %v3590 = vpack.c.b16 %v3115, %v3114
  %v3591 = vpack.c.b16 %v3117, %v3116
  %v3592 = vpack.c.b16 %v3119, %v3118
  %v3593 = vpack.c.b16 %v3121, %v3120
  %v3594 = vpack.c.b16 %v3123, %v3122
  %v3595 = vpack.c.b16 %v3125, %v3124
  %v3596 = vpack.c.b16 %v3127, %v3126
  %v3597 = vpack.c.b16 %v3129, %v3128
  %v3598 = vpack.c.b16 %v3131, %v3130
  %v3599 = vpack.c.b16 %v3133, %v3132
  %v3600 = vpack.c.b16 %v3135, %v3134
  %v3601 = vpack.c.b16 %v3137, %v3136
  %v3602 = vpack.c.b16 %v3139, %v3138
  %v3603 = vpack.c.b16 %v3141, %v3140
  %v3604 = vpack.c.b16 %v3143, %v3142
  %v3605 = vpack.c.b16 %v3145, %v3144
  %v3606 = vpack.c.b16 %v3147, %v3146
  %v3607 = vpack.c.b16 %v3149, %v3148
  %v3608 = vpack.c.b16 %v3151, %v3150
  %v3609 = vpack.c.b16 %v3153, %v3152
  %v3610 = vpack.c.b16 %v3155, %v3154
  %v3611 = vpack.c.b16 %v3157, %v3156
  %v3612 = vpack.c.b16 %v3159, %v3158
  %v3613 = vpack.c.b16 %v3161, %v3160
  %v3614 = vpack.c.b16 %v3163, %v3162
  %v3615 = vpack.c.b16 %v3165, %v3164
  %v3616 = vpack.c.b16 %v3167, %v3166
  %v3617 = vpack.c.b16 %v3169, %v3168
  %v3618 = vpack.c.b16 %v3171, %v3170
  %v3619 = vpack.c.b16 %v3173, %v3172
  %v3620 = vpack.c.b16 %v3175, %v3174
  %v3621 = vpack.c.b16 %v3177, %v3176
  %v3622 = vpack.c.b16 %v3179, %v3178
  %v3623 = vpack.c.b16 %v3181, %v3180
  %v3624 = vpack.c.b16 %v3183, %v3182
  %v3625 = vpack.c.b16 %v3185, %v3184
  %v3626 = vpack.c.b16 %v3187, %v3186
  %v3627 = vpack.c.b16 %v3189, %v3188
  %v3628 = vpack.c.b16 %v3191, %v3190
  %v3629 = vpack.c.b16 %v3193, %v3192
  %v3630 = vpack.c.b16 %v3195, %v3194
  %v3631 = vpack.c.b16 %v3197, %v3196
  %v3632 = vpack.c.b16 %v3199, %v3198
  %v3633 = vpack.c.b16 %v3201, %v3200
  %v3634 = vpack.c.b16 %v3203, %v3202
  %v3635 = vpack.c.b16 %v3205, %v3204
  %v3636 = vpack.c.b16 %v3207, %v3206
  %v3637 = vpack.c.b16 %v3209, %v3208
  %v3638 = vpack.c.b16 %v3211, %v3210
  %v3639 = vpack.c.b16 %v3213, %v3212
  %v3640 = vpack.c.b16 %v3215, %v3214
  %v3641 = vpack.c.b16 %v3217, %v3216
  %v3642 = vpack.c.b16 %v3219, %v3218
  %v3643 = vpack.c.b16 %v3221, %v3220
  %v3644 = vpack.c.b16 %v3223, %v3222
  %v3645 = vpack.c.b16 %v3225, %v3224
  %v3646 = vpack.c.b16 %v3227, %v3226
  %v3647 = vpack.c.b16 %v3229, %v3228
  %v3648 = vpack.c.b16 %v3231, %v3230
  %v3649 = vpack.c.b16 %v3233, %v3232
  %v3650 = vpack.c.b16 %v3235, %v3234
  %v3651 = vpack.c.b16 %v3237, %v3236
  %v3652 = vpack.c.b16 %v3239, %v3238
  %v3653 = vpack.c.b16 %v3241, %v3240
  %v3654 = vpack.c.b16 %v3243, %v3242
  %v3655 = vpack.c.b16 %v3245, %v3244
  %v3656 = vpack.c.b16 %v3247, %v3246
  %v3657 = vpack.c.b16 %v3249, %v3248
  %v3658 = vpack.c.b16 %v3251, %v3250
  %v3659 = vpack.c.b16 %v3253, %v3252
  %v3660 = vpack.c.b16 %v3255, %v3254
  %v3661 = vpack.c.b16 %v3257, %v3256
  %v3662 = vpack.c.b16 %v3259, %v3258
  %v3663 = vpack.c.b16 %v3261, %v3260
  %v3664 = vpack.c.b16 %v3263, %v3262
  %v3665 = vpack.c.b16 %v3265, %v3264
  %v3666 = vpack.c.b16 %v3267, %v3266
  %v3667 = vpack.c.b16 %v3269, %v3268
  %v3668 = vpack.c.b16 %v3271, %v3270
  %v3669 = vpack.c.b16 %v3273, %v3272
  %v3670 = vpack.c.b16 %v3275, %v3274
  %v3671 = vpack.c.b16 %v3277, %v3276
  %v3672 = vpack.c.b16 %v3279, %v3278
  %v3673 = vpack.c.b16 %v3281, %v3280
  %v3674 = vpack.c.b16 %v3283, %v3282
  %v3675 = vpack.c.b16 %v3285, %v3284
  %v3676 = vpack.c.b16 %v3287, %v3286
  %v3677 = vpack.c.b16 %v3289, %v3288
  %v3678 = vpack.c.b16 %v3291, %v3290
  %v3679 = vpack.c.b16 %v3293, %v3292
  %v3680 = vpack.c.b16 %v3295, %v3294
  %v3681 = vpack.c.b16 %v3297, %v3296
  %v3682 = vpack.c.b16 %v3299, %v3298
  %v3683 = vpack.c.b16 %v3301, %v3300
  %v3684 = vpack.c.b16 %v3303, %v3302
  %v3685 = vpack.c.b16 %v3305, %v3304
  %v3686 = vpack.c.b16 %v3307, %v3306
  %v3687 = vpack.c.b16 %v3309, %v3308
  %v3688 = vpack.c.b16 %v3311, %v3310
  %v3689 = vpack.c.b16 %v3313, %v3312
  %v3690 = vpack.c.b16 %v3315, %v3314
  %v3691 = vpack.c.b16 %v3317, %v3316
  %v3692 = vpack.c.b16 %v3319, %v3318
  %v3693 = vpack.c.b16 %v3321, %v3320
  %v3694 = vpack.c.b16 %v3323, %v3322
  %v3695 = vpack.c.b16 %v3325, %v3324
  %v3696 = vpack.c.b16 %v3327, %v3326
  %v3697 = vpack.c.b16 %v3329, %v3328
  %v3698 = vpack.c.b16 %v3331, %v3330
  %v3699 = vpack.c.b16 %v3333, %v3332
  %v3700 = vpack.c.b16 %v3335, %v3334
  %v3701 = vpack.c.b16 %v3337, %v3336
  %v3702 = vpack.c.b16 %v3339, %v3338
  %v3703 = vpack.c.b16 %v3341, %v3340
  %v3704 = vpack.c.b16 %v3343, %v3342
  %v3705 = vpack.c.b16 %v3345, %v3344
  %v3706 = vpack.c.b16 %v3347, %v3346
  %v3707 = vpack.c.b16 %v3349, %v3348
  %v3708 = vpack.c.b16 %v3351, %v3350
  %v3709 = vpack.c.b16 %v3353, %v3352
  %v3710 = vpack.c.b16 %v3355, %v3354
  %v3711 = vpack.c.b16 %v3357, %v3356
  %v3712 = vpack.c.b16 %v3359, %v3358
  %v3713 = vpack.c.b16 %v3361, %v3360
  %v3714 = vpack.c.b16 %v3363, %v3362
  %v3715 = vpack.c.b16 %v3365, %v3364
  %v3716 = vpack.c.b16 %v3367, %v3366
  %v3717 = vpack.c.b16 %v3369, %v3368
  %v3718 = vpack.c.b16 %v3371, %v3370
  %v3719 = vpack.c.b16 %v3373, %v3372
  %v3720 = vpack.c.b16 %v3375, %v3374
  %v3721 = vpack.c.b16 %v3377, %v3376
  %v3722 = vpack.c.b16 %v3379, %v3378
  %v3723 = vpack.c.b16 %v3381, %v3380
  %v3724 = vpack.c.b16 %v3383, %v3382
  %v3725 = vpack.c.b16 %v3385, %v3384
  %v3726 = vpack.c.b16 %v3387, %v3386
  %v3727 = vpack.c.b16 %v3389, %v3388
  %v3728 = vpack.c.b16 %v3391, %v3390
  %v3729 = vpack.c.b16 %v3393, %v3392
  %v3730 = vpack.c.b16 %v3395, %v3394
  %v3731 = vpack.c.b16 %v3397, %v3396
  %v3732 = vpack.c.b16 %v3399, %v3398
  %v3733 = vpack.c.b16 %v3401, %v3400
  %v3734 = vpack.c.b16 %v3403, %v3402
  %v3735 = vpack.c.b16 %v3405, %v3404
  %v3736 = vpack.c.b16 %v3407, %v3406
  %v3737 = vpack.c.b16 %v3409, %v3408
  %v3738 = vpack.c.b16 %v3411, %v3410
  %v3739 = vpack.c.b16 %v3413, %v3412
  %v3740 = vpack.c.b16 %v3415, %v3414
  %v3741 = vpack.c.b16 %v3417, %v3416
  %v3742 = vpack.c.b16 %v3419, %v3418
  %v3743 = vpack.c.b16 %v3421, %v3420
  %v3744 = vpack.c.b16 %v3423, %v3422
  %v3745 = vpack.c.b16 %v3425, %v3424
  %v3746 = vpack.c.b16 %v3427, %v3426
  %v3747 = vpack.c.b16 %v3429, %v3428
  %v3748 = vpack.c.b16 %v3431, %v3430
  %v3749 = vpack.c.b16 %v3433, %v3432
  %v3750 = vpack.c.b16 %v3435, %v3434
  %v3751 = vpack.c.b16 %v3437, %v3436
  %v3752 = vpack.c.b16 %v3439, %v3438
  %v3753 = vpack.c.b16 %v3441, %v3440
  %v3754 = vpack.c.b16 %v3443, %v3442
  %v3755 = vpack.c.b16 %v3445, %v3444
  %v3756 = vpack.c.b16 %v3447, %v3446
  %v3757 = vpack.c.b16 %v3449, %v3448
  %v3758 = vpack.c.b16 %v3451, %v3450
  %v3759 = vpack.c.b16 %v3453, %v3452
  %v3760 = vpack.c.b16 %v3455, %v3454
  %v3761 = vpack.c.b16 %v3457, %v3456
  %v3762 = vpack.c.b16 %v3459, %v3458
  %v3763 = vpack.c.b16 %v3461, %v3460
  %v3764 = vpack.c.b16 %v3463, %v3462
  %v3765 = vpack.c.b16 %v3465, %v3464
  %v3766 = vpack.c.b16 %v3467, %v3466
  %v3767 = vpack.c.b16 %v3469, %v3468
  %v3768 = vpack.c.b16 %v3471, %v3470
  %v3769 = vpack.c.b16 %v3473, %v3472
  %v3770 = vpack.c.b16 %v3475, %v3474
  %v3771 = vpack.c.b16 %v3477, %v3476
  %v3772 = vpack.c.b16 %v3479, %v3478
  %v3773 = vpack.c.b16 %v3481, %v3480
  %v3774 = vpack.c.b16 %v3483, %v3482
  %v3775 = vpack.c.b16 %v3485, %v3484
  %v3776 = vpack.c.b16 %v3487, %v3486
  %v3777 = vpack.c.b16 %v3489, %v3488
  %4066 = vmatprep.subr.bf16.mxu0 0
  %4067 = vmatpush1.bf16.msra.mxu0 %v3490
  %4068 = vmatprep.subr.bf16.mxu0 0
  %4069 = vmatpush1.bf16.msra.mxu0 %v3491
  %4070 = vmatprep.subr.bf16.mxu0 0
  %4071 = vmatpush1.bf16.msra.mxu0 %v3492
  %4072 = vmatprep.subr.bf16.mxu0 0
  %4073 = vmatpush1.bf16.msra.mxu0 %v3493
  %4074 = vmatprep.subr.bf16.mxu0 0
  %4075 = vmatpush1.bf16.msra.mxu0 %v3494
  %4076 = vmatprep.subr.bf16.mxu0 0
  %4077 = vmatpush1.bf16.msra.mxu0 %v3495
  %4078 = vmatprep.subr.bf16.mxu0 0
  %4079 = vmatpush1.bf16.msra.mxu0 %v3496
  %4080 = vmatprep.subr.bf16.mxu0 0
  %4081 = vmatpush1.bf16.msra.mxu0 %v3497
  %4082 = vmatprep.subr.bf16.mxu0 0
  %4083 = vmatpush1.bf16.msra.mxu0 %v3498
  %4084 = vmatprep.subr.bf16.mxu0 0
  %4085 = vmatpush1.bf16.msra.mxu0 %v3499
  %4086 = vmatprep.subr.bf16.mxu0 0
  %4087 = vmatpush1.bf16.msra.mxu0 %v3500
  %4088 = vmatprep.subr.bf16.mxu0 0
  %4089 = vmatpush1.bf16.msra.mxu0 %v3501
  %4090 = vmatprep.subr.bf16.mxu0 0
  %4091 = vmatpush1.bf16.msra.mxu0 %v3502
  %4092 = vmatprep.subr.bf16.mxu0 0
  %4093 = vmatpush1.bf16.msra.mxu0 %v3503
  %4094 = vmatprep.subr.bf16.mxu0 0
  %4095 = vmatpush1.bf16.msra.mxu0 %v3504
  %4096 = vmatprep.subr.bf16.mxu0 0
  %4097 = vmatpush1.bf16.msra.mxu0 %v3505
  %4098 = vmatprep.mubr.bf16.mxu0 %v1763
  %4099 = vmatmul.mubr.bf16.gmra.mrb[0].mxu0 %v1762
  %v4100 = vpop.f32.mrb[0].mxu0
  %v4101 = vadd.f32 %v896, %v4100
  %v4102 = vpop.f32.mrb[0].mxu0
  %v4103 = vpop.f32.mrb[0].mxu0
  %v4104 = vadd.f32 %v896, %v4103
  %v4105 = vpop.f32.mrb[0].mxu0
  %4106 = vmatprep.mubr.bf16.mxu0 %v1799
  %4107 = vmatmul.mubr.bf16.gmra.mrb[0].mxu0 %v1798
  %v4108 = vpop.f32.mrb[0].mxu0
  %v4109 = vadd.f32 %v896, %v4108
  %v4110 = vpop.f32.mrb[0].mxu0
  %v4111 = vpop.f32.mrb[0].mxu0
  %v4112 = vadd.f32 %v896, %v4111
  %v4113 = vpop.f32.mrb[0].mxu0
  %4114 = vmatprep.mubr.bf16.mxu0 %v1835
  %4115 = vmatmul.mubr.bf16.gmra.mrb[0].mxu0 %v1834
  %v4116 = vpop.f32.mrb[0].mxu0
  %v4117 = vadd.f32 %v896, %v4116
  %v4118 = vpop.f32.mrb[0].mxu0
  %v4119 = vpop.f32.mrb[0].mxu0
  %v4120 = vadd.f32 %v896, %v4119
  %v4121 = vpop.f32.mrb[0].mxu0
  %4122 = vmatprep.mubr.bf16.mxu0 %v1871
  %4123 = vmatmul.mubr.bf16.gmra.mrb[0].mxu0 %v1870
  %v4124 = vpop.f32.mrb[0].mxu0
  %v4125 = vadd.f32 %v896, %v4124
  %v4126 = vpop.f32.mrb[0].mxu0
  %v4127 = vpop.f32.mrb[0].mxu0
  %v4128 = vadd.f32 %v896, %v4127
  %v4129 = vpop.f32.mrb[0].mxu0
  %4130 = vmatprep.mubr.bf16.mxu0 %v1907
  %4131 = vmatmul.mubr.bf16.gmra.mrb[0].mxu0 %v1906
  %v4132 = vpop.f32.mrb[0].mxu0
  %v4133 = vadd.f32 %v896, %v4132
  %v4134 = vpop.f32.mrb[0].mxu0
  %v4135 = vpop.f32.mrb[0].mxu0
  %v4136 = vadd.f32 %v896, %v4135
  %v4137 = vpop.f32.mrb[0].mxu0
  %4138 = vmatprep.mubr.bf16.mxu0 %v1943
  %4139 = vmatmul.mubr.bf16.gmra.mrb[0].mxu0 %v1942
  %v4140 = vpop.f32.mrb[0].mxu0
  %v4141 = vadd.f32 %v896, %v4140
  %v4142 = vpop.f32.mrb[0].mxu0
  %v4143 = vpop.f32.mrb[0].mxu0
  %v4144 = vadd.f32 %v896, %v4143
  %v4145 = vpop.f32.mrb[0].mxu0
  %4146 = vmatprep.mubr.bf16.mxu0 %v1979
  %4147 = vmatmul.mubr.bf16.gmra.mrb[0].mxu0 %v1978
  %v4148 = vpop.f32.mrb[0].mxu0
  %v4149 = vadd.f32 %v896, %v4148
  %v4150 = vpop.f32.mrb[0].mxu0
  %v4151 = vpop.f32.mrb[0].mxu0
  %v4152 = vadd.f32 %v896, %v4151
  %v4153 = vpop.f32.mrb[0].mxu0
  %4154 = vmatprep.mubr.bf16.mxu0 %v2015
  %4155 = vmatmul.mubr.bf16.gmra.mrb[0].mxu0 %v2014
  %v4156 = vpop.f32.mrb[0].mxu0
  %v4157 = vadd.f32 %v896, %v4156
  %v4158 = vpop.f32.mrb[0].mxu0
  %v4159 = vpop.f32.mrb[0].mxu0
  %v4160 = vadd.f32 %v896, %v4159
  %v4161 = vpop.f32.mrb[0].mxu0
  %4162 = vdwg.mxu0
  %4163 = vmatprep.subr.bf16.mxu0 0
  %4164 = vmatpush1.bf16.msra.mxu0 %v3506
  %4165 = vmatprep.subr.bf16.mxu0 0
  %4166 = vmatpush1.bf16.msra.mxu0 %v3507
  %4167 = vmatprep.subr.bf16.mxu0 0
  %4168 = vmatpush1.bf16.msra.mxu0 %v3508
  %4169 = vmatprep.subr.bf16.mxu0 0
  %4170 = vmatpush1.bf16.msra.mxu0 %v3509
  %4171 = vmatprep.subr.bf16.mxu0 0
  %4172 = vmatpush1.bf16.msra.mxu0 %v3510
  %4173 = vmatprep.subr.bf16.mxu0 0
  %4174 = vmatpush1.bf16.msra.mxu0 %v3511
  %4175 = vmatprep.subr.bf16.mxu0 0
  %4176 = vmatpush1.bf16.msra.mxu0 %v3512
  %4177 = vmatprep.subr.bf16.mxu0 0
  %4178 = vmatpush1.bf16.msra.mxu0 %v3513
  %4179 = vmatprep.subr.bf16.mxu0 0
  %4180 = vmatpush1.bf16.msra.mxu0 %v3514
  %4181 = vmatprep.subr.bf16.mxu0 0
  %4182 = vmatpush1.bf16.msra.mxu0 %v3515
  %4183 = vmatprep.subr.bf16.mxu0 0
  %4184 = vmatpush1.bf16.msra.mxu0 %v3516
  %4185 = vmatprep.subr.bf16.mxu0 0
  %4186 = vmatpush1.bf16.msra.mxu0 %v3517
  %4187 = vmatprep.subr.bf16.mxu0 0
  %4188 = vmatpush1.bf16.msra.mxu0 %v3518
  %4189 = vmatprep.subr.bf16.mxu0 0
  %4190 = vmatpush1.bf16.msra.mxu0 %v3519
  %4191 = vmatprep.subr.bf16.mxu0 0
  %4192 = vmatpush1.bf16.msra.mxu0 %v3520
  %4193 = vmatprep.subr.bf16.mxu0 0
  %4194 = vmatpush1.bf16.msra.mxu0 %v3521
  %4195 = vmatprep.mubr.bf16.mxu0 %v1765
  %4196 = vmatmul.mubr.bf16.gmra.mrb[0].mxu0 %v1764
  %v4197 = vpop.f32.mrb[0].mxu0
  %v4198 = vadd.f32 %v4101, %v4197
  %v4199 = vpop.f32.mrb[0].mxu0
  %v4200 = vpop.f32.mrb[0].mxu0
  %v4201 = vadd.f32 %v4104, %v4200
  %v4202 = vpop.f32.mrb[0].mxu0
  %4203 = vmatprep.mubr.bf16.mxu0 %v1801
  %4204 = vmatmul.mubr.bf16.gmra.mrb[0].mxu0 %v1800
  %v4205 = vpop.f32.mrb[0].mxu0
  %v4206 = vadd.f32 %v4109, %v4205
  %v4207 = vpop.f32.mrb[0].mxu0
  %v4208 = vpop.f32.mrb[0].mxu0
  %v4209 = vadd.f32 %v4112, %v4208
  %v4210 = vpop.f32.mrb[0].mxu0
  %4211 = vmatprep.mubr.bf16.mxu0 %v1837
  %4212 = vmatmul.mubr.bf16.gmra.mrb[0].mxu0 %v1836
  %v4213 = vpop.f32.mrb[0].mxu0
  %v4214 = vadd.f32 %v4117, %v4213
  %v4215 = vpop.f32.mrb[0].mxu0
  %v4216 = vpop.f32.mrb[0].mxu0
  %v4217 = vadd.f32 %v4120, %v4216
  %v4218 = vpop.f32.mrb[0].mxu0
  %4219 = vmatprep.mubr.bf16.mxu0 %v1873
  %4220 = vmatmul.mubr.bf16.gmra.mrb[0].mxu0 %v1872
  %v4221 = vpop.f32.mrb[0].mxu0
  %v4222 = vadd.f32 %v4125, %v4221
  %v4223 = vpop.f32.mrb[0].mxu0
  %v4224 = vpop.f32.mrb[0].mxu0
  %v4225 = vadd.f32 %v4128, %v4224
  %v4226 = vpop.f32.mrb[0].mxu0
  %4227 = vmatprep.mubr.bf16.mxu0 %v1909
  %4228 = vmatmul.mubr.bf16.gmra.mrb[0].mxu0 %v1908
  %v4229 = vpop.f32.mrb[0].mxu0
  %v4230 = vadd.f32 %v4133, %v4229
  %v4231 = vpop.f32.mrb[0].mxu0
  %v4232 = vpop.f32.mrb[0].mxu0
  %v4233 = vadd.f32 %v4136, %v4232
  %v4234 = vpop.f32.mrb[0].mxu0
  %4235 = vmatprep.mubr.bf16.mxu0 %v1945
  %4236 = vmatmul.mubr.bf16.gmra.mrb[0].mxu0 %v1944
  %v4237 = vpop.f32.mrb[0].mxu0
  %v4238 = vadd.f32 %v4141, %v4237
  %v4239 = vpop.f32.mrb[0].mxu0
  %v4240 = vpop.f32.mrb[0].mxu0
  %v4241 = vadd.f32 %v4144, %v4240
  %v4242 = vpop.f32.mrb[0].mxu0
  %4243 = vmatprep.mubr.bf16.mxu0 %v1981
  %4244 = vmatmul.mubr.bf16.gmra.mrb[0].mxu0 %v1980
  %v4245 = vpop.f32.mrb[0].mxu0
  %v4246 = vadd.f32 %v4149, %v4245
  %v4247 = vpop.f32.mrb[0].mxu0
  %v4248 = vpop.f32.mrb[0].mxu0
  %v4249 = vadd.f32 %v4152, %v4248
  %v4250 = vpop.f32.mrb[0].mxu0
  %4251 = vmatprep.mubr.bf16.mxu0 %v2017
  %4252 = vmatmul.mubr.bf16.gmra.mrb[0].mxu0 %v2016
  %v4253 = vpop.f32.mrb[0].mxu0
  %v4254 = vadd.f32 %v4157, %v4253
  %v4255 = vpop.f32.mrb[0].mxu0
  %v4256 = vpop.f32.mrb[0].mxu0
  %v4257 = vadd.f32 %v4160, %v4256
  %v4258 = vpop.f32.mrb[0].mxu0
  %4259 = vdwg.mxu0
  %4260 = vmatprep.subr.bf16.mxu0 0
  %4261 = vmatpush1.bf16.msra.mxu0 %v3522
  %4262 = vmatprep.subr.bf16.mxu0 0
  %4263 = vmatpush1.bf16.msra.mxu0 %v3523
  %4264 = vmatprep.subr.bf16.mxu0 0
  %4265 = vmatpush1.bf16.msra.mxu0 %v3524
  %4266 = vmatprep.subr.bf16.mxu0 0
  %4267 = vmatpush1.bf16.msra.mxu0 %v3525
  %4268 = vmatprep.subr.bf16.mxu0 0
  %4269 = vmatpush1.bf16.msra.mxu0 %v3526
  %4270 = vmatprep.subr.bf16.mxu0 0
  %4271 = vmatpush1.bf16.msra.mxu0 %v3527
  %4272 = vmatprep.subr.bf16.mxu0 0
  %4273 = vmatpush1.bf16.msra.mxu0 %v3528
  %4274 = vmatprep.subr.bf16.mxu0 0
  %4275 = vmatpush1.bf16.msra.mxu0 %v3529
  %4276 = vmatprep.subr.bf16.mxu0 0
  %4277 = vmatpush1.bf16.msra.mxu0 %v3530
  %4278 = vmatprep.subr.bf16.mxu0 0
  %4279 = vmatpush1.bf16.msra.mxu0 %v3531
  %4280 = vmatprep.subr.bf16.mxu0 0
  %4281 = vmatpush1.bf16.msra.mxu0 %v3532
  %4282 = vmatprep.subr.bf16.mxu0 0
  %4283 = vmatpush1.bf16.msra.mxu0 %v3533
  %4284 = vmatprep.subr.bf16.mxu0 0
  %4285 = vmatpush1.bf16.msra.mxu0 %v3534
  %4286 = vmatprep.subr.bf16.mxu0 0
  %4287 = vmatpush1.bf16.msra.mxu0 %v3535
  %4288 = vmatprep.subr.bf16.mxu0 0
  %4289 = vmatpush1.bf16.msra.mxu0 %v3536
  %4290 = vmatprep.subr.bf16.mxu0 0
  %4291 = vmatpush1.bf16.msra.mxu0 %v3537
  %4292 = vmatprep.mubr.bf16.mxu0 %v1767
  %4293 = vmatmul.mubr.bf16.gmra.mrb[0].mxu0 %v1766
  %v4294 = vpop.f32.mrb[0].mxu0
  %v4295 = vadd.f32 %v4198, %v4294
  %v4296 = vpop.f32.mrb[0].mxu0
  %v4297 = vpop.f32.mrb[0].mxu0
  %v4298 = vadd.f32 %v4201, %v4297
  %v4299 = vpop.f32.mrb[0].mxu0
  %4300 = vmatprep.mubr.bf16.mxu0 %v1803
  %4301 = vmatmul.mubr.bf16.gmra.mrb[0].mxu0 %v1802
  %v4302 = vpop.f32.mrb[0].mxu0
  %v4303 = vadd.f32 %v4206, %v4302
  %v4304 = vpop.f32.mrb[0].mxu0
  %v4305 = vpop.f32.mrb[0].mxu0
  %v4306 = vadd.f32 %v4209, %v4305
  %v4307 = vpop.f32.mrb[0].mxu0
  %4308 = vmatprep.mubr.bf16.mxu0 %v1839
  %4309 = vmatmul.mubr.bf16.gmra.mrb[0].mxu0 %v1838
  %v4310 = vpop.f32.mrb[0].mxu0
  %v4311 = vadd.f32 %v4214, %v4310
  %v4312 = vpop.f32.mrb[0].mxu0
  %v4313 = vpop.f32.mrb[0].mxu0
  %v4314 = vadd.f32 %v4217, %v4313
  %v4315 = vpop.f32.mrb[0].mxu0
  %4316 = vmatprep.mubr.bf16.mxu0 %v1875
  %4317 = vmatmul.mubr.bf16.gmra.mrb[0].mxu0 %v1874
  %v4318 = vpop.f32.mrb[0].mxu0
  %v4319 = vadd.f32 %v4222, %v4318
  %v4320 = vpop.f32.mrb[0].mxu0
  %v4321 = vpop.f32.mrb[0].mxu0
  %v4322 = vadd.f32 %v4225, %v4321
  %v4323 = vpop.f32.mrb[0].mxu0
  %4324 = vmatprep.mubr.bf16.mxu0 %v1911
  %4325 = vmatmul.mubr.bf16.gmra.mrb[0].mxu0 %v1910
  %v4326 = vpop.f32.mrb[0].mxu0
  %v4327 = vadd.f32 %v4230, %v4326
  %v4328 = vpop.f32.mrb[0].mxu0
  %v4329 = vpop.f32.mrb[0].mxu0
  %v4330 = vadd.f32 %v4233, %v4329
  %v4331 = vpop.f32.mrb[0].mxu0
  %4332 = vmatprep.mubr.bf16.mxu0 %v1947
  %4333 = vmatmul.mubr.bf16.gmra.mrb[0].mxu0 %v1946
  %v4334 = vpop.f32.mrb[0].mxu0
  %v4335 = vadd.f32 %v4238, %v4334
  %v4336 = vpop.f32.mrb[0].mxu0
  %v4337 = vpop.f32.mrb[0].mxu0
  %v4338 = vadd.f32 %v4241, %v4337
  %v4339 = vpop.f32.mrb[0].mxu0
  %4340 = vmatprep.mubr.bf16.mxu0 %v1983
  %4341 = vmatmul.mubr.bf16.gmra.mrb[0].mxu0 %v1982
  %v4342 = vpop.f32.mrb[0].mxu0
  %v4343 = vadd.f32 %v4246, %v4342
  %v4344 = vpop.f32.mrb[0].mxu0
  %v4345 = vpop.f32.mrb[0].mxu0
  %v4346 = vadd.f32 %v4249, %v4345
  %v4347 = vpop.f32.mrb[0].mxu0
  %4348 = vmatprep.mubr.bf16.mxu0 %v2019
  %4349 = vmatmul.mubr.bf16.gmra.mrb[0].mxu0 %v2018
  %v4350 = vpop.f32.mrb[0].mxu0
  %v4351 = vadd.f32 %v4254, %v4350
  %v4352 = vpop.f32.mrb[0].mxu0
  %v4353 = vpop.f32.mrb[0].mxu0
  %v4354 = vadd.f32 %v4257, %v4353
  %v4355 = vpop.f32.mrb[0].mxu0
  %4356 = vdwg.mxu0
  %4357 = vmatprep.subr.bf16.mxu0 0
  %4358 = vmatpush1.bf16.msra.mxu0 %v3538
  %4359 = vmatprep.subr.bf16.mxu0 0
  %4360 = vmatpush1.bf16.msra.mxu0 %v3539
  %4361 = vmatprep.subr.bf16.mxu0 0
  %4362 = vmatpush1.bf16.msra.mxu0 %v3540
  %4363 = vmatprep.subr.bf16.mxu0 0
  %4364 = vmatpush1.bf16.msra.mxu0 %v3541
  %4365 = vmatprep.subr.bf16.mxu0 0
  %4366 = vmatpush1.bf16.msra.mxu0 %v3542
  %4367 = vmatprep.subr.bf16.mxu0 0
  %4368 = vmatpush1.bf16.msra.mxu0 %v3543
  %4369 = vmatprep.subr.bf16.mxu0 0
  %4370 = vmatpush1.bf16.msra.mxu0 %v3544
  %4371 = vmatprep.subr.bf16.mxu0 0
  %4372 = vmatpush1.bf16.msra.mxu0 %v3545
  %4373 = vmatprep.subr.bf16.mxu0 0
  %4374 = vmatpush1.bf16.msra.mxu0 %v3546
  %4375 = vmatprep.subr.bf16.mxu0 0
  %4376 = vmatpush1.bf16.msra.mxu0 %v3547
  %4377 = vmatprep.subr.bf16.mxu0 0
  %4378 = vmatpush1.bf16.msra.mxu0 %v3548
  %4379 = vmatprep.subr.bf16.mxu0 0
  %4380 = vmatpush1.bf16.msra.mxu0 %v3549
  %4381 = vmatprep.subr.bf16.mxu0 0
  %4382 = vmatpush1.bf16.msra.mxu0 %v3550
  %4383 = vmatprep.subr.bf16.mxu0 0
  %4384 = vmatpush1.bf16.msra.mxu0 %v3551
  %4385 = vmatprep.subr.bf16.mxu0 0
  %4386 = vmatpush1.bf16.msra.mxu0 %v3552
  %4387 = vmatprep.subr.bf16.mxu0 0
  %4388 = vmatpush1.bf16.msra.mxu0 %v3553
  %4389 = vmatprep.mubr.bf16.mxu0 %v1769
  %4390 = vmatmul.mubr.bf16.gmra.mrb[0].mxu0 %v1768
  %v4391 = vpop.f32.mrb[0].mxu0
  %v4392 = vadd.f32 %v4295, %v4391
  %v4393 = vpop.f32.mrb[0].mxu0
  %v4394 = vpop.f32.mrb[0].mxu0
  %v4395 = vadd.f32 %v4298, %v4394
  %v4396 = vpop.f32.mrb[0].mxu0
  %4397 = vmatprep.mubr.bf16.mxu0 %v1805
  %4398 = vmatmul.mubr.bf16.gmra.mrb[0].mxu0 %v1804
  %v4399 = vpop.f32.mrb[0].mxu0
  %v4400 = vadd.f32 %v4303, %v4399
  %v4401 = vpop.f32.mrb[0].mxu0
  %v4402 = vpop.f32.mrb[0].mxu0
  %v4403 = vadd.f32 %v4306, %v4402
  %v4404 = vpop.f32.mrb[0].mxu0
  %4405 = vmatprep.mubr.bf16.mxu0 %v1841
  %4406 = vmatmul.mubr.bf16.gmra.mrb[0].mxu0 %v1840
  %v4407 = vpop.f32.mrb[0].mxu0
  %v4408 = vadd.f32 %v4311, %v4407
  %v4409 = vpop.f32.mrb[0].mxu0
  %v4410 = vpop.f32.mrb[0].mxu0
  %v4411 = vadd.f32 %v4314, %v4410
  %v4412 = vpop.f32.mrb[0].mxu0
  %4413 = vmatprep.mubr.bf16.mxu0 %v1877
  %4414 = vmatmul.mubr.bf16.gmra.mrb[0].mxu0 %v1876
  %v4415 = vpop.f32.mrb[0].mxu0
  %v4416 = vadd.f32 %v4319, %v4415
  %v4417 = vpop.f32.mrb[0].mxu0
  %v4418 = vpop.f32.mrb[0].mxu0
  %v4419 = vadd.f32 %v4322, %v4418
  %v4420 = vpop.f32.mrb[0].mxu0
  %4421 = vmatprep.mubr.bf16.mxu0 %v1913
  %4422 = vmatmul.mubr.bf16.gmra.mrb[0].mxu0 %v1912
  %v4423 = vpop.f32.mrb[0].mxu0
  %v4424 = vadd.f32 %v4327, %v4423
  %v4425 = vpop.f32.mrb[0].mxu0
  %v4426 = vpop.f32.mrb[0].mxu0
  %v4427 = vadd.f32 %v4330, %v4426
  %v4428 = vpop.f32.mrb[0].mxu0
  %4429 = vmatprep.mubr.bf16.mxu0 %v1949
  %4430 = vmatmul.mubr.bf16.gmra.mrb[0].mxu0 %v1948
  %v4431 = vpop.f32.mrb[0].mxu0
  %v4432 = vadd.f32 %v4335, %v4431
  %v4433 = vpop.f32.mrb[0].mxu0
  %v4434 = vpop.f32.mrb[0].mxu0
  %v4435 = vadd.f32 %v4338, %v4434
  %v4436 = vpop.f32.mrb[0].mxu0
  %4437 = vmatprep.mubr.bf16.mxu0 %v1985
  %4438 = vmatmul.mubr.bf16.gmra.mrb[0].mxu0 %v1984
  %v4439 = vpop.f32.mrb[0].mxu0
  %v4440 = vadd.f32 %v4343, %v4439
  %v4441 = vpop.f32.mrb[0].mxu0
  %v4442 = vpop.f32.mrb[0].mxu0
  %v4443 = vadd.f32 %v4346, %v4442
  %v4444 = vpop.f32.mrb[0].mxu0
  %4445 = vmatprep.mubr.bf16.mxu0 %v2021
  %4446 = vmatmul.mubr.bf16.gmra.mrb[0].mxu0 %v2020
  %v4447 = vpop.f32.mrb[0].mxu0
  %v4448 = vadd.f32 %v4351, %v4447
  %v4449 = vpop.f32.mrb[0].mxu0
  %v4450 = vpop.f32.mrb[0].mxu0
  %v4451 = vadd.f32 %v4354, %v4450
  %v4452 = vpop.f32.mrb[0].mxu0
  %4453 = vdwg.mxu0
  %4454 = vmatprep.subr.bf16.mxu0 0
  %4455 = vmatpush1.bf16.msra.mxu0 %v3554
  %4456 = vmatprep.subr.bf16.mxu0 0
  %4457 = vmatpush1.bf16.msra.mxu0 %v3555
  %4458 = vmatprep.subr.bf16.mxu0 0
  %4459 = vmatpush1.bf16.msra.mxu0 %v3556
  %4460 = vmatprep.subr.bf16.mxu0 0
  %4461 = vmatpush1.bf16.msra.mxu0 %v3557
  %4462 = vmatprep.subr.bf16.mxu0 0
  %4463 = vmatpush1.bf16.msra.mxu0 %v3558
  %4464 = vmatprep.subr.bf16.mxu0 0
  %4465 = vmatpush1.bf16.msra.mxu0 %v3559
  %4466 = vmatprep.subr.bf16.mxu0 0
  %4467 = vmatpush1.bf16.msra.mxu0 %v3560
  %4468 = vmatprep.subr.bf16.mxu0 0
  %4469 = vmatpush1.bf16.msra.mxu0 %v3561
  %4470 = vmatprep.subr.bf16.mxu0 0
  %4471 = vmatpush1.bf16.msra.mxu0 %v3562
  %4472 = vmatprep.subr.bf16.mxu0 0
  %4473 = vmatpush1.bf16.msra.mxu0 %v3563
  %4474 = vmatprep.subr.bf16.mxu0 0
  %4475 = vmatpush1.bf16.msra.mxu0 %v3564
  %4476 = vmatprep.subr.bf16.mxu0 0
  %4477 = vmatpush1.bf16.msra.mxu0 %v3565
  %4478 = vmatprep.subr.bf16.mxu0 0
  %4479 = vmatpush1.bf16.msra.mxu0 %v3566
  %4480 = vmatprep.subr.bf16.mxu0 0
  %4481 = vmatpush1.bf16.msra.mxu0 %v3567
  %4482 = vmatprep.subr.bf16.mxu0 0
  %4483 = vmatpush1.bf16.msra.mxu0 %v3568
  %4484 = vmatprep.subr.bf16.mxu0 0
  %4485 = vmatpush1.bf16.msra.mxu0 %v3569
  %4486 = vmatprep.mubr.bf16.mxu0 %v1771
  %4487 = vmatmul.mubr.bf16.gmra.mrb[0].mxu0 %v1770
  %v4488 = vpop.f32.mrb[0].mxu0
  %v4489 = vadd.f32 %v4392, %v4488
  %v4490 = vpop.f32.mrb[0].mxu0
  %v4491 = vpop.f32.mrb[0].mxu0
  %v4492 = vadd.f32 %v4395, %v4491
  %v4493 = vpop.f32.mrb[0].mxu0
  %4494 = vmatprep.mubr.bf16.mxu0 %v1807
  %4495 = vmatmul.mubr.bf16.gmra.mrb[0].mxu0 %v1806
  %v4496 = vpop.f32.mrb[0].mxu0
  %v4497 = vadd.f32 %v4400, %v4496
  %v4498 = vpop.f32.mrb[0].mxu0
  %v4499 = vpop.f32.mrb[0].mxu0
  %v4500 = vadd.f32 %v4403, %v4499
  %v4501 = vpop.f32.mrb[0].mxu0
  %4502 = vmatprep.mubr.bf16.mxu0 %v1843
  %4503 = vmatmul.mubr.bf16.gmra.mrb[0].mxu0 %v1842
  %v4504 = vpop.f32.mrb[0].mxu0
  %v4505 = vadd.f32 %v4408, %v4504
  %v4506 = vpop.f32.mrb[0].mxu0
  %v4507 = vpop.f32.mrb[0].mxu0
  %v4508 = vadd.f32 %v4411, %v4507
  %v4509 = vpop.f32.mrb[0].mxu0
  %4510 = vmatprep.mubr.bf16.mxu0 %v1879
  %4511 = vmatmul.mubr.bf16.gmra.mrb[0].mxu0 %v1878
  %v4512 = vpop.f32.mrb[0].mxu0
  %v4513 = vadd.f32 %v4416, %v4512
  %v4514 = vpop.f32.mrb[0].mxu0
  %v4515 = vpop.f32.mrb[0].mxu0
  %v4516 = vadd.f32 %v4419, %v4515
  %v4517 = vpop.f32.mrb[0].mxu0
  %4518 = vmatprep.mubr.bf16.mxu0 %v1915
  %4519 = vmatmul.mubr.bf16.gmra.mrb[0].mxu0 %v1914
  %v4520 = vpop.f32.mrb[0].mxu0
  %v4521 = vadd.f32 %v4424, %v4520
  %v4522 = vpop.f32.mrb[0].mxu0
  %v4523 = vpop.f32.mrb[0].mxu0
  %v4524 = vadd.f32 %v4427, %v4523
  %v4525 = vpop.f32.mrb[0].mxu0
  %4526 = vmatprep.mubr.bf16.mxu0 %v1951
  %4527 = vmatmul.mubr.bf16.gmra.mrb[0].mxu0 %v1950
  %v4528 = vpop.f32.mrb[0].mxu0
  %v4529 = vadd.f32 %v4432, %v4528
  %v4530 = vpop.f32.mrb[0].mxu0
  %v4531 = vpop.f32.mrb[0].mxu0
  %v4532 = vadd.f32 %v4435, %v4531
  %v4533 = vpop.f32.mrb[0].mxu0
  %4534 = vmatprep.mubr.bf16.mxu0 %v1987
  %4535 = vmatmul.mubr.bf16.gmra.mrb[0].mxu0 %v1986
  %v4536 = vpop.f32.mrb[0].mxu0
  %v4537 = vadd.f32 %v4440, %v4536
  %v4538 = vpop.f32.mrb[0].mxu0
  %v4539 = vpop.f32.mrb[0].mxu0
  %v4540 = vadd.f32 %v4443, %v4539
  %v4541 = vpop.f32.mrb[0].mxu0
  %4542 = vmatprep.mubr.bf16.mxu0 %v2023
  %4543 = vmatmul.mubr.bf16.gmra.mrb[0].mxu0 %v2022
  %v4544 = vpop.f32.mrb[0].mxu0
  %v4545 = vadd.f32 %v4448, %v4544
  %v4546 = vpop.f32.mrb[0].mxu0
  %v4547 = vpop.f32.mrb[0].mxu0
  %v4548 = vadd.f32 %v4451, %v4547
  %v4549 = vpop.f32.mrb[0].mxu0
  %4550 = vdwg.mxu0
  %4551 = vmatprep.subr.bf16.mxu0 0
  %4552 = vmatpush1.bf16.msra.mxu0 %v3570
  %4553 = vmatprep.subr.bf16.mxu0 0
  %4554 = vmatpush1.bf16.msra.mxu0 %v3571
  %4555 = vmatprep.subr.bf16.mxu0 0
  %4556 = vmatpush1.bf16.msra.mxu0 %v3572
  %4557 = vmatprep.subr.bf16.mxu0 0
  %4558 = vmatpush1.bf16.msra.mxu0 %v3573
  %4559 = vmatprep.subr.bf16.mxu0 0
  %4560 = vmatpush1.bf16.msra.mxu0 %v3574
  %4561 = vmatprep.subr.bf16.mxu0 0
  %4562 = vmatpush1.bf16.msra.mxu0 %v3575
  %4563 = vmatprep.subr.bf16.mxu0 0
  %4564 = vmatpush1.bf16.msra.mxu0 %v3576
  %4565 = vmatprep.subr.bf16.mxu0 0
  %4566 = vmatpush1.bf16.msra.mxu0 %v3577
  %4567 = vmatprep.subr.bf16.mxu0 0
  %4568 = vmatpush1.bf16.msra.mxu0 %v3578
  %4569 = vmatprep.subr.bf16.mxu0 0
  %4570 = vmatpush1.bf16.msra.mxu0 %v3579
  %4571 = vmatprep.subr.bf16.mxu0 0
  %4572 = vmatpush1.bf16.msra.mxu0 %v3580
  %4573 = vmatprep.subr.bf16.mxu0 0
  %4574 = vmatpush1.bf16.msra.mxu0 %v3581
  %4575 = vmatprep.subr.bf16.mxu0 0
  %4576 = vmatpush1.bf16.msra.mxu0 %v3582
  %4577 = vmatprep.subr.bf16.mxu0 0
  %4578 = vmatpush1.bf16.msra.mxu0 %v3583
  %4579 = vmatprep.subr.bf16.mxu0 0
  %4580 = vmatpush1.bf16.msra.mxu0 %v3584
  %4581 = vmatprep.subr.bf16.mxu0 0
  %4582 = vmatpush1.bf16.msra.mxu0 %v3585
  %4583 = vmatprep.mubr.bf16.mxu0 %v1773
  %4584 = vmatmul.mubr.bf16.gmra.mrb[0].mxu0 %v1772
  %v4585 = vpop.f32.mrb[0].mxu0
  %v4586 = vadd.f32 %v4489, %v4585
  %v4587 = vpop.f32.mrb[0].mxu0
  %v4588 = vpop.f32.mrb[0].mxu0
  %v4589 = vadd.f32 %v4492, %v4588
  %v4590 = vpop.f32.mrb[0].mxu0
  %4591 = vmatprep.mubr.bf16.mxu0 %v1809
  %4592 = vmatmul.mubr.bf16.gmra.mrb[0].mxu0 %v1808
  %v4593 = vpop.f32.mrb[0].mxu0
  %v4594 = vadd.f32 %v4497, %v4593
  %v4595 = vpop.f32.mrb[0].mxu0
  %v4596 = vpop.f32.mrb[0].mxu0
  %v4597 = vadd.f32 %v4500, %v4596
  %v4598 = vpop.f32.mrb[0].mxu0
  %4599 = vmatprep.mubr.bf16.mxu0 %v1845
  %4600 = vmatmul.mubr.bf16.gmra.mrb[0].mxu0 %v1844
  %v4601 = vpop.f32.mrb[0].mxu0
  %v4602 = vadd.f32 %v4505, %v4601
  %v4603 = vpop.f32.mrb[0].mxu0
  %v4604 = vpop.f32.mrb[0].mxu0
  %v4605 = vadd.f32 %v4508, %v4604
  %v4606 = vpop.f32.mrb[0].mxu0
  %4607 = vmatprep.mubr.bf16.mxu0 %v1881
  %4608 = vmatmul.mubr.bf16.gmra.mrb[0].mxu0 %v1880
  %v4609 = vpop.f32.mrb[0].mxu0
  %v4610 = vadd.f32 %v4513, %v4609
  %v4611 = vpop.f32.mrb[0].mxu0
  %v4612 = vpop.f32.mrb[0].mxu0
  %v4613 = vadd.f32 %v4516, %v4612
  %v4614 = vpop.f32.mrb[0].mxu0
  %4615 = vmatprep.mubr.bf16.mxu0 %v1917
  %4616 = vmatmul.mubr.bf16.gmra.mrb[0].mxu0 %v1916
  %v4617 = vpop.f32.mrb[0].mxu0
  %v4618 = vadd.f32 %v4521, %v4617
  %v4619 = vpop.f32.mrb[0].mxu0
  %v4620 = vpop.f32.mrb[0].mxu0
  %v4621 = vadd.f32 %v4524, %v4620
  %v4622 = vpop.f32.mrb[0].mxu0
  %4623 = vmatprep.mubr.bf16.mxu0 %v1953
  %4624 = vmatmul.mubr.bf16.gmra.mrb[0].mxu0 %v1952
  %v4625 = vpop.f32.mrb[0].mxu0
  %v4626 = vadd.f32 %v4529, %v4625
  %v4627 = vpop.f32.mrb[0].mxu0
  %v4628 = vpop.f32.mrb[0].mxu0
  %v4629 = vadd.f32 %v4532, %v4628
  %v4630 = vpop.f32.mrb[0].mxu0
  %4631 = vmatprep.mubr.bf16.mxu0 %v1989
  %4632 = vmatmul.mubr.bf16.gmra.mrb[0].mxu0 %v1988
  %v4633 = vpop.f32.mrb[0].mxu0
  %v4634 = vadd.f32 %v4537, %v4633
  %v4635 = vpop.f32.mrb[0].mxu0
  %v4636 = vpop.f32.mrb[0].mxu0
  %v4637 = vadd.f32 %v4540, %v4636
  %v4638 = vpop.f32.mrb[0].mxu0
  %4639 = vmatprep.mubr.bf16.mxu0 %v2025
  %4640 = vmatmul.mubr.bf16.gmra.mrb[0].mxu0 %v2024
  %v4641 = vpop.f32.mrb[0].mxu0
  %v4642 = vadd.f32 %v4545, %v4641
  %v4643 = vpop.f32.mrb[0].mxu0
  %v4644 = vpop.f32.mrb[0].mxu0
  %v4645 = vadd.f32 %v4548, %v4644
  %v4646 = vpop.f32.mrb[0].mxu0
  %4647 = vdwg.mxu0
  %4648 = vmatprep.subr.bf16.mxu0 0
  %4649 = vmatpush1.bf16.msra.mxu0 %v3586
  %4650 = vmatprep.subr.bf16.mxu0 0
  %4651 = vmatpush1.bf16.msra.mxu0 %v3587
  %4652 = vmatprep.subr.bf16.mxu0 0
  %4653 = vmatpush1.bf16.msra.mxu0 %v3588
  %4654 = vmatprep.subr.bf16.mxu0 0
  %4655 = vmatpush1.bf16.msra.mxu0 %v3589
  %4656 = vmatprep.subr.bf16.mxu0 0
  %4657 = vmatpush1.bf16.msra.mxu0 %v3590
  %4658 = vmatprep.subr.bf16.mxu0 0
  %4659 = vmatpush1.bf16.msra.mxu0 %v3591
  %4660 = vmatprep.subr.bf16.mxu0 0
  %4661 = vmatpush1.bf16.msra.mxu0 %v3592
  %4662 = vmatprep.subr.bf16.mxu0 0
  %4663 = vmatpush1.bf16.msra.mxu0 %v3593
  %4664 = vmatprep.subr.bf16.mxu0 0
  %4665 = vmatpush1.bf16.msra.mxu0 %v3594
  %4666 = vmatprep.subr.bf16.mxu0 0
  %4667 = vmatpush1.bf16.msra.mxu0 %v3595
  %4668 = vmatprep.subr.bf16.mxu0 0
  %4669 = vmatpush1.bf16.msra.mxu0 %v3596
  %4670 = vmatprep.subr.bf16.mxu0 0
  %4671 = vmatpush1.bf16.msra.mxu0 %v3597
  %4672 = vmatprep.subr.bf16.mxu0 0
  %4673 = vmatpush1.bf16.msra.mxu0 %v3598
  %4674 = vmatprep.subr.bf16.mxu0 0
  %4675 = vmatpush1.bf16.msra.mxu0 %v3599
  %4676 = vmatprep.subr.bf16.mxu0 0
  %4677 = vmatpush1.bf16.msra.mxu0 %v3600
  %4678 = vmatprep.subr.bf16.mxu0 0
  %4679 = vmatpush1.bf16.msra.mxu0 %v3601
  %4680 = vmatprep.mubr.bf16.mxu0 %v1775
  %4681 = vmatmul.mubr.bf16.gmra.mrb[0].mxu0 %v1774
  %v4682 = vpop.f32.mrb[0].mxu0
  %v4683 = vadd.f32 %v4586, %v4682
  %v4684 = vpop.f32.mrb[0].mxu0
  %v4685 = vpop.f32.mrb[0].mxu0
  %v4686 = vadd.f32 %v4589, %v4685
  %v4687 = vpop.f32.mrb[0].mxu0
  %4688 = vmatprep.mubr.bf16.mxu0 %v1811
  %4689 = vmatmul.mubr.bf16.gmra.mrb[0].mxu0 %v1810
  %v4690 = vpop.f32.mrb[0].mxu0
  %v4691 = vadd.f32 %v4594, %v4690
  %v4692 = vpop.f32.mrb[0].mxu0
  %v4693 = vpop.f32.mrb[0].mxu0
  %v4694 = vadd.f32 %v4597, %v4693
  %v4695 = vpop.f32.mrb[0].mxu0
  %4696 = vmatprep.mubr.bf16.mxu0 %v1847
  %4697 = vmatmul.mubr.bf16.gmra.mrb[0].mxu0 %v1846
  %v4698 = vpop.f32.mrb[0].mxu0
  %v4699 = vadd.f32 %v4602, %v4698
  %v4700 = vpop.f32.mrb[0].mxu0
  %v4701 = vpop.f32.mrb[0].mxu0
  %v4702 = vadd.f32 %v4605, %v4701
  %v4703 = vpop.f32.mrb[0].mxu0
  %4704 = vmatprep.mubr.bf16.mxu0 %v1883
  %4705 = vmatmul.mubr.bf16.gmra.mrb[0].mxu0 %v1882
  %v4706 = vpop.f32.mrb[0].mxu0
  %v4707 = vadd.f32 %v4610, %v4706
  %v4708 = vpop.f32.mrb[0].mxu0
  %v4709 = vpop.f32.mrb[0].mxu0
  %v4710 = vadd.f32 %v4613, %v4709
  %v4711 = vpop.f32.mrb[0].mxu0
  %4712 = vmatprep.mubr.bf16.mxu0 %v1919
  %4713 = vmatmul.mubr.bf16.gmra.mrb[0].mxu0 %v1918
  %v4714 = vpop.f32.mrb[0].mxu0
  %v4715 = vadd.f32 %v4618, %v4714
  %v4716 = vpop.f32.mrb[0].mxu0
  %v4717 = vpop.f32.mrb[0].mxu0
  %v4718 = vadd.f32 %v4621, %v4717
  %v4719 = vpop.f32.mrb[0].mxu0
  %4720 = vmatprep.mubr.bf16.mxu0 %v1955
  %4721 = vmatmul.mubr.bf16.gmra.mrb[0].mxu0 %v1954
  %v4722 = vpop.f32.mrb[0].mxu0
  %v4723 = vadd.f32 %v4626, %v4722
  %v4724 = vpop.f32.mrb[0].mxu0
  %v4725 = vpop.f32.mrb[0].mxu0
  %v4726 = vadd.f32 %v4629, %v4725
  %v4727 = vpop.f32.mrb[0].mxu0
  %4728 = vmatprep.mubr.bf16.mxu0 %v1991
  %4729 = vmatmul.mubr.bf16.gmra.mrb[0].mxu0 %v1990
  %v4730 = vpop.f32.mrb[0].mxu0
  %v4731 = vadd.f32 %v4634, %v4730
  %v4732 = vpop.f32.mrb[0].mxu0
  %v4733 = vpop.f32.mrb[0].mxu0
  %v4734 = vadd.f32 %v4637, %v4733
  %v4735 = vpop.f32.mrb[0].mxu0
  %4736 = vmatprep.mubr.bf16.mxu0 %v2027
  %4737 = vmatmul.mubr.bf16.gmra.mrb[0].mxu0 %v2026
  %v4738 = vpop.f32.mrb[0].mxu0
  %v4739 = vadd.f32 %v4642, %v4738
  %v4740 = vpop.f32.mrb[0].mxu0
  %v4741 = vpop.f32.mrb[0].mxu0
  %v4742 = vadd.f32 %v4645, %v4741
  %v4743 = vpop.f32.mrb[0].mxu0
  %4744 = vdwg.mxu0
  %4745 = vmatprep.subr.bf16.mxu0 0
  %4746 = vmatpush1.bf16.msra.mxu0 %v3602
  %4747 = vmatprep.subr.bf16.mxu0 0
  %4748 = vmatpush1.bf16.msra.mxu0 %v3603
  %4749 = vmatprep.subr.bf16.mxu0 0
  %4750 = vmatpush1.bf16.msra.mxu0 %v3604
  %4751 = vmatprep.subr.bf16.mxu0 0
  %4752 = vmatpush1.bf16.msra.mxu0 %v3605
  %4753 = vmatprep.subr.bf16.mxu0 0
  %4754 = vmatpush1.bf16.msra.mxu0 %v3606
  %4755 = vmatprep.subr.bf16.mxu0 0
  %4756 = vmatpush1.bf16.msra.mxu0 %v3607
  %4757 = vmatprep.subr.bf16.mxu0 0
  %4758 = vmatpush1.bf16.msra.mxu0 %v3608
  %4759 = vmatprep.subr.bf16.mxu0 0
  %4760 = vmatpush1.bf16.msra.mxu0 %v3609
  %4761 = vmatprep.subr.bf16.mxu0 0
  %4762 = vmatpush1.bf16.msra.mxu0 %v3610
  %4763 = vmatprep.subr.bf16.mxu0 0
  %4764 = vmatpush1.bf16.msra.mxu0 %v3611
  %4765 = vmatprep.subr.bf16.mxu0 0
  %4766 = vmatpush1.bf16.msra.mxu0 %v3612
  %4767 = vmatprep.subr.bf16.mxu0 0
  %4768 = vmatpush1.bf16.msra.mxu0 %v3613
  %4769 = vmatprep.subr.bf16.mxu0 0
  %4770 = vmatpush1.bf16.msra.mxu0 %v3614
  %4771 = vmatprep.subr.bf16.mxu0 0
  %4772 = vmatpush1.bf16.msra.mxu0 %v3615
  %4773 = vmatprep.subr.bf16.mxu0 0
  %4774 = vmatpush1.bf16.msra.mxu0 %v3616
  %4775 = vmatprep.subr.bf16.mxu0 0
  %4776 = vmatpush1.bf16.msra.mxu0 %v3617
  %4777 = vmatprep.mubr.bf16.mxu0 %v1777
  %4778 = vmatmul.mubr.bf16.gmra.mrb[0].mxu0 %v1776
  %v4779 = vpop.f32.mrb[0].mxu0
  %v4780 = vadd.f32 %v4683, %v4779
  %v4781 = vpop.f32.mrb[0].mxu0
  %v4782 = vpop.f32.mrb[0].mxu0
  %v4783 = vadd.f32 %v4686, %v4782
  %v4784 = vpop.f32.mrb[0].mxu0
  %4785 = vmatprep.mubr.bf16.mxu0 %v1813
  %4786 = vmatmul.mubr.bf16.gmra.mrb[0].mxu0 %v1812
  %v4787 = vpop.f32.mrb[0].mxu0
  %v4788 = vadd.f32 %v4691, %v4787
  %v4789 = vpop.f32.mrb[0].mxu0
  %v4790 = vpop.f32.mrb[0].mxu0
  %v4791 = vadd.f32 %v4694, %v4790
  %v4792 = vpop.f32.mrb[0].mxu0
  %4793 = vmatprep.mubr.bf16.mxu0 %v1849
  %4794 = vmatmul.mubr.bf16.gmra.mrb[0].mxu0 %v1848
  %v4795 = vpop.f32.mrb[0].mxu0
  %v4796 = vadd.f32 %v4699, %v4795
  %v4797 = vpop.f32.mrb[0].mxu0
  %v4798 = vpop.f32.mrb[0].mxu0
  %v4799 = vadd.f32 %v4702, %v4798
  %v4800 = vpop.f32.mrb[0].mxu0
  %4801 = vmatprep.mubr.bf16.mxu0 %v1885
  %4802 = vmatmul.mubr.bf16.gmra.mrb[0].mxu0 %v1884
  %v4803 = vpop.f32.mrb[0].mxu0
  %v4804 = vadd.f32 %v4707, %v4803
  %v4805 = vpop.f32.mrb[0].mxu0
  %v4806 = vpop.f32.mrb[0].mxu0
  %v4807 = vadd.f32 %v4710, %v4806
  %v4808 = vpop.f32.mrb[0].mxu0
  %4809 = vmatprep.mubr.bf16.mxu0 %v1921
  %4810 = vmatmul.mubr.bf16.gmra.mrb[0].mxu0 %v1920
  %v4811 = vpop.f32.mrb[0].mxu0
  %v4812 = vadd.f32 %v4715, %v4811
  %v4813 = vpop.f32.mrb[0].mxu0
  %v4814 = vpop.f32.mrb[0].mxu0
  %v4815 = vadd.f32 %v4718, %v4814
  %v4816 = vpop.f32.mrb[0].mxu0
  %4817 = vmatprep.mubr.bf16.mxu0 %v1957
  %4818 = vmatmul.mubr.bf16.gmra.mrb[0].mxu0 %v1956
  %v4819 = vpop.f32.mrb[0].mxu0
  %v4820 = vadd.f32 %v4723, %v4819
  %v4821 = vpop.f32.mrb[0].mxu0
  %v4822 = vpop.f32.mrb[0].mxu0
  %v4823 = vadd.f32 %v4726, %v4822
  %v4824 = vpop.f32.mrb[0].mxu0
  %4825 = vmatprep.mubr.bf16.mxu0 %v1993
  %4826 = vmatmul.mubr.bf16.gmra.mrb[0].mxu0 %v1992
  %v4827 = vpop.f32.mrb[0].mxu0
  %v4828 = vadd.f32 %v4731, %v4827
  %v4829 = vpop.f32.mrb[0].mxu0
  %v4830 = vpop.f32.mrb[0].mxu0
  %v4831 = vadd.f32 %v4734, %v4830
  %v4832 = vpop.f32.mrb[0].mxu0
  %4833 = vmatprep.mubr.bf16.mxu0 %v2029
  %4834 = vmatmul.mubr.bf16.gmra.mrb[0].mxu0 %v2028
  %v4835 = vpop.f32.mrb[0].mxu0
  %v4836 = vadd.f32 %v4739, %v4835
  %v4837 = vpop.f32.mrb[0].mxu0
  %v4838 = vpop.f32.mrb[0].mxu0
  %v4839 = vadd.f32 %v4742, %v4838
  %v4840 = vpop.f32.mrb[0].mxu0
  %4841 = vdwg.mxu0
  %4842 = vmatprep.subr.bf16.mxu0 0
  %4843 = vmatpush1.bf16.msra.mxu0 %v3618
  %4844 = vmatprep.subr.bf16.mxu0 0
  %4845 = vmatpush1.bf16.msra.mxu0 %v3619
  %4846 = vmatprep.subr.bf16.mxu0 0
  %4847 = vmatpush1.bf16.msra.mxu0 %v3620
  %4848 = vmatprep.subr.bf16.mxu0 0
  %4849 = vmatpush1.bf16.msra.mxu0 %v3621
  %4850 = vmatprep.subr.bf16.mxu0 0
  %4851 = vmatpush1.bf16.msra.mxu0 %v3622
  %4852 = vmatprep.subr.bf16.mxu0 0
  %4853 = vmatpush1.bf16.msra.mxu0 %v3623
  %4854 = vmatprep.subr.bf16.mxu0 0
  %4855 = vmatpush1.bf16.msra.mxu0 %v3624
  %4856 = vmatprep.subr.bf16.mxu0 0
  %4857 = vmatpush1.bf16.msra.mxu0 %v3625
  %4858 = vmatprep.subr.bf16.mxu0 0
  %4859 = vmatpush1.bf16.msra.mxu0 %v3626
  %4860 = vmatprep.subr.bf16.mxu0 0
  %4861 = vmatpush1.bf16.msra.mxu0 %v3627
  %4862 = vmatprep.subr.bf16.mxu0 0
  %4863 = vmatpush1.bf16.msra.mxu0 %v3628
  %4864 = vmatprep.subr.bf16.mxu0 0
  %4865 = vmatpush1.bf16.msra.mxu0 %v3629
  %4866 = vmatprep.subr.bf16.mxu0 0
  %4867 = vmatpush1.bf16.msra.mxu0 %v3630
  %4868 = vmatprep.subr.bf16.mxu0 0
  %4869 = vmatpush1.bf16.msra.mxu0 %v3631
  %4870 = vmatprep.subr.bf16.mxu0 0
  %4871 = vmatpush1.bf16.msra.mxu0 %v3632
  %4872 = vmatprep.subr.bf16.mxu0 0
  %4873 = vmatpush1.bf16.msra.mxu0 %v3633
  %4874 = vmatprep.mubr.bf16.mxu0 %v1779
  %4875 = vmatmul.mubr.bf16.gmra.mrb[0].mxu0 %v1778
  %v4876 = vpop.f32.mrb[0].mxu0
  %v4877 = vadd.f32 %v4780, %v4876
  %v4878 = vpop.f32.mrb[0].mxu0
  %v4879 = vpop.f32.mrb[0].mxu0
  %v4880 = vadd.f32 %v4783, %v4879
  %v4881 = vpop.f32.mrb[0].mxu0
  %4882 = vmatprep.mubr.bf16.mxu0 %v1815
  %4883 = vmatmul.mubr.bf16.gmra.mrb[0].mxu0 %v1814
  %v4884 = vpop.f32.mrb[0].mxu0
  %v4885 = vadd.f32 %v4788, %v4884
  %v4886 = vpop.f32.mrb[0].mxu0
  %v4887 = vpop.f32.mrb[0].mxu0
  %v4888 = vadd.f32 %v4791, %v4887
  %v4889 = vpop.f32.mrb[0].mxu0
  %4890 = vmatprep.mubr.bf16.mxu0 %v1851
  %4891 = vmatmul.mubr.bf16.gmra.mrb[0].mxu0 %v1850
  %v4892 = vpop.f32.mrb[0].mxu0
  %v4893 = vadd.f32 %v4796, %v4892
  %v4894 = vpop.f32.mrb[0].mxu0
  %v4895 = vpop.f32.mrb[0].mxu0
  %v4896 = vadd.f32 %v4799, %v4895
  %v4897 = vpop.f32.mrb[0].mxu0
  %4898 = vmatprep.mubr.bf16.mxu0 %v1887
  %4899 = vmatmul.mubr.bf16.gmra.mrb[0].mxu0 %v1886
  %v4900 = vpop.f32.mrb[0].mxu0
  %v4901 = vadd.f32 %v4804, %v4900
  %v4902 = vpop.f32.mrb[0].mxu0
  %v4903 = vpop.f32.mrb[0].mxu0
  %v4904 = vadd.f32 %v4807, %v4903
  %v4905 = vpop.f32.mrb[0].mxu0
  %4906 = vmatprep.mubr.bf16.mxu0 %v1923
  %4907 = vmatmul.mubr.bf16.gmra.mrb[0].mxu0 %v1922
  %v4908 = vpop.f32.mrb[0].mxu0
  %v4909 = vadd.f32 %v4812, %v4908
  %v4910 = vpop.f32.mrb[0].mxu0
  %v4911 = vpop.f32.mrb[0].mxu0
  %v4912 = vadd.f32 %v4815, %v4911
  %v4913 = vpop.f32.mrb[0].mxu0
  %4914 = vmatprep.mubr.bf16.mxu0 %v1959
  %4915 = vmatmul.mubr.bf16.gmra.mrb[0].mxu0 %v1958
  %v4916 = vpop.f32.mrb[0].mxu0
  %v4917 = vadd.f32 %v4820, %v4916
  %v4918 = vpop.f32.mrb[0].mxu0
  %v4919 = vpop.f32.mrb[0].mxu0
  %v4920 = vadd.f32 %v4823, %v4919
  %v4921 = vpop.f32.mrb[0].mxu0
  %4922 = vmatprep.mubr.bf16.mxu0 %v1995
  %4923 = vmatmul.mubr.bf16.gmra.mrb[0].mxu0 %v1994
  %v4924 = vpop.f32.mrb[0].mxu0
  %v4925 = vadd.f32 %v4828, %v4924
  %v4926 = vpop.f32.mrb[0].mxu0
  %v4927 = vpop.f32.mrb[0].mxu0
  %v4928 = vadd.f32 %v4831, %v4927
  %v4929 = vpop.f32.mrb[0].mxu0
  %4930 = vmatprep.mubr.bf16.mxu0 %v2031
  %4931 = vmatmul.mubr.bf16.gmra.mrb[0].mxu0 %v2030
  %v4932 = vpop.f32.mrb[0].mxu0
  %v4933 = vadd.f32 %v4836, %v4932
  %v4934 = vpop.f32.mrb[0].mxu0
  %v4935 = vpop.f32.mrb[0].mxu0
  %v4936 = vadd.f32 %v4839, %v4935
  %v4937 = vpop.f32.mrb[0].mxu0
  %4938 = vdwg.mxu0
  %4939 = vmatprep.subr.bf16.mxu0 0
  %4940 = vmatpush1.bf16.msra.mxu0 %v3634
  %4941 = vmatprep.subr.bf16.mxu0 0
  %4942 = vmatpush1.bf16.msra.mxu0 %v3635
  %4943 = vmatprep.subr.bf16.mxu0 0
  %4944 = vmatpush1.bf16.msra.mxu0 %v3636
  %4945 = vmatprep.subr.bf16.mxu0 0
  %4946 = vmatpush1.bf16.msra.mxu0 %v3637
  %4947 = vmatprep.subr.bf16.mxu0 0
  %4948 = vmatpush1.bf16.msra.mxu0 %v3638
  %4949 = vmatprep.subr.bf16.mxu0 0
  %4950 = vmatpush1.bf16.msra.mxu0 %v3639
  %4951 = vmatprep.subr.bf16.mxu0 0
  %4952 = vmatpush1.bf16.msra.mxu0 %v3640
  %4953 = vmatprep.subr.bf16.mxu0 0
  %4954 = vmatpush1.bf16.msra.mxu0 %v3641
  %4955 = vmatprep.subr.bf16.mxu0 0
  %4956 = vmatpush1.bf16.msra.mxu0 %v3642
  %4957 = vmatprep.subr.bf16.mxu0 0
  %4958 = vmatpush1.bf16.msra.mxu0 %v3643
  %4959 = vmatprep.subr.bf16.mxu0 0
  %4960 = vmatpush1.bf16.msra.mxu0 %v3644
  %4961 = vmatprep.subr.bf16.mxu0 0
  %4962 = vmatpush1.bf16.msra.mxu0 %v3645
  %4963 = vmatprep.subr.bf16.mxu0 0
  %4964 = vmatpush1.bf16.msra.mxu0 %v3646
  %4965 = vmatprep.subr.bf16.mxu0 0
  %4966 = vmatpush1.bf16.msra.mxu0 %v3647
  %4967 = vmatprep.subr.bf16.mxu0 0
  %4968 = vmatpush1.bf16.msra.mxu0 %v3648
  %4969 = vmatprep.subr.bf16.mxu0 0
  %4970 = vmatpush1.bf16.msra.mxu0 %v3649
  %4971 = vmatprep.mubr.bf16.mxu0 %v1781
  %4972 = vmatmul.mubr.bf16.gmra.mrb[0].mxu0 %v1780
  %v4973 = vpop.f32.mrb[0].mxu0
  %v4974 = vadd.f32 %v4877, %v4973
  %v4975 = vpop.f32.mrb[0].mxu0
  %v4976 = vpop.f32.mrb[0].mxu0
  %v4977 = vadd.f32 %v4880, %v4976
  %v4978 = vpop.f32.mrb[0].mxu0
  %4979 = vmatprep.mubr.bf16.mxu0 %v1817
  %4980 = vmatmul.mubr.bf16.gmra.mrb[0].mxu0 %v1816
  %v4981 = vpop.f32.mrb[0].mxu0
  %v4982 = vadd.f32 %v4885, %v4981
  %v4983 = vpop.f32.mrb[0].mxu0
  %v4984 = vpop.f32.mrb[0].mxu0
  %v4985 = vadd.f32 %v4888, %v4984
  %v4986 = vpop.f32.mrb[0].mxu0
  %4987 = vmatprep.mubr.bf16.mxu0 %v1853
  %4988 = vmatmul.mubr.bf16.gmra.mrb[0].mxu0 %v1852
  %v4989 = vpop.f32.mrb[0].mxu0
  %v4990 = vadd.f32 %v4893, %v4989
  %v4991 = vpop.f32.mrb[0].mxu0
  %v4992 = vpop.f32.mrb[0].mxu0
  %v4993 = vadd.f32 %v4896, %v4992
  %v4994 = vpop.f32.mrb[0].mxu0
  %4995 = vmatprep.mubr.bf16.mxu0 %v1889
  %4996 = vmatmul.mubr.bf16.gmra.mrb[0].mxu0 %v1888
  %v4997 = vpop.f32.mrb[0].mxu0
  %v4998 = vadd.f32 %v4901, %v4997
  %v4999 = vpop.f32.mrb[0].mxu0
  %v5000 = vpop.f32.mrb[0].mxu0
  %v5001 = vadd.f32 %v4904, %v5000
  %v5002 = vpop.f32.mrb[0].mxu0
  %5003 = vmatprep.mubr.bf16.mxu0 %v1925
  %5004 = vmatmul.mubr.bf16.gmra.mrb[0].mxu0 %v1924
  %v5005 = vpop.f32.mrb[0].mxu0
  %v5006 = vadd.f32 %v4909, %v5005
  %v5007 = vpop.f32.mrb[0].mxu0
  %v5008 = vpop.f32.mrb[0].mxu0
  %v5009 = vadd.f32 %v4912, %v5008
  %v5010 = vpop.f32.mrb[0].mxu0
  %5011 = vmatprep.mubr.bf16.mxu0 %v1961
  %5012 = vmatmul.mubr.bf16.gmra.mrb[0].mxu0 %v1960
  %v5013 = vpop.f32.mrb[0].mxu0
  %v5014 = vadd.f32 %v4917, %v5013
  %v5015 = vpop.f32.mrb[0].mxu0
  %v5016 = vpop.f32.mrb[0].mxu0
  %v5017 = vadd.f32 %v4920, %v5016
  %v5018 = vpop.f32.mrb[0].mxu0
  %5019 = vmatprep.mubr.bf16.mxu0 %v1997
  %5020 = vmatmul.mubr.bf16.gmra.mrb[0].mxu0 %v1996
  %v5021 = vpop.f32.mrb[0].mxu0
  %v5022 = vadd.f32 %v4925, %v5021
  %v5023 = vpop.f32.mrb[0].mxu0
  %v5024 = vpop.f32.mrb[0].mxu0
  %v5025 = vadd.f32 %v4928, %v5024
  %v5026 = vpop.f32.mrb[0].mxu0
  %5027 = vmatprep.mubr.bf16.mxu0 %v2033
  %5028 = vmatmul.mubr.bf16.gmra.mrb[0].mxu0 %v2032
  %v5029 = vpop.f32.mrb[0].mxu0
  %v5030 = vadd.f32 %v4933, %v5029
  %v5031 = vpop.f32.mrb[0].mxu0
  %v5032 = vpop.f32.mrb[0].mxu0
  %v5033 = vadd.f32 %v4936, %v5032
  %v5034 = vpop.f32.mrb[0].mxu0
  %5035 = vdwg.mxu0
  %5036 = vmatprep.subr.bf16.mxu0 0
  %5037 = vmatpush1.bf16.msra.mxu0 %v3650
  %5038 = vmatprep.subr.bf16.mxu0 0
  %5039 = vmatpush1.bf16.msra.mxu0 %v3651
  %5040 = vmatprep.subr.bf16.mxu0 0
  %5041 = vmatpush1.bf16.msra.mxu0 %v3652
  %5042 = vmatprep.subr.bf16.mxu0 0
  %5043 = vmatpush1.bf16.msra.mxu0 %v3653
  %5044 = vmatprep.subr.bf16.mxu0 0
  %5045 = vmatpush1.bf16.msra.mxu0 %v3654
  %5046 = vmatprep.subr.bf16.mxu0 0
  %5047 = vmatpush1.bf16.msra.mxu0 %v3655
  %5048 = vmatprep.subr.bf16.mxu0 0
  %5049 = vmatpush1.bf16.msra.mxu0 %v3656
  %5050 = vmatprep.subr.bf16.mxu0 0
  %5051 = vmatpush1.bf16.msra.mxu0 %v3657
  %5052 = vmatprep.subr.bf16.mxu0 0
  %5053 = vmatpush1.bf16.msra.mxu0 %v3658
  %5054 = vmatprep.subr.bf16.mxu0 0
  %5055 = vmatpush1.bf16.msra.mxu0 %v3659
  %5056 = vmatprep.subr.bf16.mxu0 0
  %5057 = vmatpush1.bf16.msra.mxu0 %v3660
  %5058 = vmatprep.subr.bf16.mxu0 0
  %5059 = vmatpush1.bf16.msra.mxu0 %v3661
  %5060 = vmatprep.subr.bf16.mxu0 0
  %5061 = vmatpush1.bf16.msra.mxu0 %v3662
  %5062 = vmatprep.subr.bf16.mxu0 0
  %5063 = vmatpush1.bf16.msra.mxu0 %v3663
  %5064 = vmatprep.subr.bf16.mxu0 0
  %5065 = vmatpush1.bf16.msra.mxu0 %v3664
  %5066 = vmatprep.subr.bf16.mxu0 0
  %5067 = vmatpush1.bf16.msra.mxu0 %v3665
  %5068 = vmatprep.mubr.bf16.mxu0 %v1783
  %5069 = vmatmul.mubr.bf16.gmra.mrb[0].mxu0 %v1782
  %v5070 = vpop.f32.mrb[0].mxu0
  %v5071 = vadd.f32 %v4974, %v5070
  %v5072 = vpop.f32.mrb[0].mxu0
  %v5073 = vpop.f32.mrb[0].mxu0
  %v5074 = vadd.f32 %v4977, %v5073
  %v5075 = vpop.f32.mrb[0].mxu0
  %5076 = vmatprep.mubr.bf16.mxu0 %v1819
  %5077 = vmatmul.mubr.bf16.gmra.mrb[0].mxu0 %v1818
  %v5078 = vpop.f32.mrb[0].mxu0
  %v5079 = vadd.f32 %v4982, %v5078
  %v5080 = vpop.f32.mrb[0].mxu0
  %v5081 = vpop.f32.mrb[0].mxu0
  %v5082 = vadd.f32 %v4985, %v5081
  %v5083 = vpop.f32.mrb[0].mxu0
  %5084 = vmatprep.mubr.bf16.mxu0 %v1855
  %5085 = vmatmul.mubr.bf16.gmra.mrb[0].mxu0 %v1854
  %v5086 = vpop.f32.mrb[0].mxu0
  %v5087 = vadd.f32 %v4990, %v5086
  %v5088 = vpop.f32.mrb[0].mxu0
  %v5089 = vpop.f32.mrb[0].mxu0
  %v5090 = vadd.f32 %v4993, %v5089
  %v5091 = vpop.f32.mrb[0].mxu0
  %5092 = vmatprep.mubr.bf16.mxu0 %v1891
  %5093 = vmatmul.mubr.bf16.gmra.mrb[0].mxu0 %v1890
  %v5094 = vpop.f32.mrb[0].mxu0
  %v5095 = vadd.f32 %v4998, %v5094
  %v5096 = vpop.f32.mrb[0].mxu0
  %v5097 = vpop.f32.mrb[0].mxu0
  %v5098 = vadd.f32 %v5001, %v5097
  %v5099 = vpop.f32.mrb[0].mxu0
  %5100 = vmatprep.mubr.bf16.mxu0 %v1927
  %5101 = vmatmul.mubr.bf16.gmra.mrb[0].mxu0 %v1926
  %v5102 = vpop.f32.mrb[0].mxu0
  %v5103 = vadd.f32 %v5006, %v5102
  %v5104 = vpop.f32.mrb[0].mxu0
  %v5105 = vpop.f32.mrb[0].mxu0
  %v5106 = vadd.f32 %v5009, %v5105
  %v5107 = vpop.f32.mrb[0].mxu0
  %5108 = vmatprep.mubr.bf16.mxu0 %v1963
  %5109 = vmatmul.mubr.bf16.gmra.mrb[0].mxu0 %v1962
  %v5110 = vpop.f32.mrb[0].mxu0
  %v5111 = vadd.f32 %v5014, %v5110
  %v5112 = vpop.f32.mrb[0].mxu0
  %v5113 = vpop.f32.mrb[0].mxu0
  %v5114 = vadd.f32 %v5017, %v5113
  %v5115 = vpop.f32.mrb[0].mxu0
  %5116 = vmatprep.mubr.bf16.mxu0 %v1999
  %5117 = vmatmul.mubr.bf16.gmra.mrb[0].mxu0 %v1998
  %v5118 = vpop.f32.mrb[0].mxu0
  %v5119 = vadd.f32 %v5022, %v5118
  %v5120 = vpop.f32.mrb[0].mxu0
  %v5121 = vpop.f32.mrb[0].mxu0
  %v5122 = vadd.f32 %v5025, %v5121
  %v5123 = vpop.f32.mrb[0].mxu0
  %5124 = vmatprep.mubr.bf16.mxu0 %v2035
  %5125 = vmatmul.mubr.bf16.gmra.mrb[0].mxu0 %v2034
  %v5126 = vpop.f32.mrb[0].mxu0
  %v5127 = vadd.f32 %v5030, %v5126
  %v5128 = vpop.f32.mrb[0].mxu0
  %v5129 = vpop.f32.mrb[0].mxu0
  %v5130 = vadd.f32 %v5033, %v5129
  %v5131 = vpop.f32.mrb[0].mxu0
  %5132 = vdwg.mxu0
  %5133 = vmatprep.subr.bf16.mxu0 0
  %5134 = vmatpush1.bf16.msra.mxu0 %v3666
  %5135 = vmatprep.subr.bf16.mxu0 0
  %5136 = vmatpush1.bf16.msra.mxu0 %v3667
  %5137 = vmatprep.subr.bf16.mxu0 0
  %5138 = vmatpush1.bf16.msra.mxu0 %v3668
  %5139 = vmatprep.subr.bf16.mxu0 0
  %5140 = vmatpush1.bf16.msra.mxu0 %v3669
  %5141 = vmatprep.subr.bf16.mxu0 0
  %5142 = vmatpush1.bf16.msra.mxu0 %v3670
  %5143 = vmatprep.subr.bf16.mxu0 0
  %5144 = vmatpush1.bf16.msra.mxu0 %v3671
  %5145 = vmatprep.subr.bf16.mxu0 0
  %5146 = vmatpush1.bf16.msra.mxu0 %v3672
  %5147 = vmatprep.subr.bf16.mxu0 0
  %5148 = vmatpush1.bf16.msra.mxu0 %v3673
  %5149 = vmatprep.subr.bf16.mxu0 0
  %5150 = vmatpush1.bf16.msra.mxu0 %v3674
  %5151 = vmatprep.subr.bf16.mxu0 0
  %5152 = vmatpush1.bf16.msra.mxu0 %v3675
  %5153 = vmatprep.subr.bf16.mxu0 0
  %5154 = vmatpush1.bf16.msra.mxu0 %v3676
  %5155 = vmatprep.subr.bf16.mxu0 0
  %5156 = vmatpush1.bf16.msra.mxu0 %v3677
  %5157 = vmatprep.subr.bf16.mxu0 0
  %5158 = vmatpush1.bf16.msra.mxu0 %v3678
  %5159 = vmatprep.subr.bf16.mxu0 0
  %5160 = vmatpush1.bf16.msra.mxu0 %v3679
  %5161 = vmatprep.subr.bf16.mxu0 0
  %5162 = vmatpush1.bf16.msra.mxu0 %v3680
  %5163 = vmatprep.subr.bf16.mxu0 0
  %5164 = vmatpush1.bf16.msra.mxu0 %v3681
  %5165 = vmatprep.mubr.bf16.mxu0 %v1785
  %5166 = vmatmul.mubr.bf16.gmra.mrb[0].mxu0 %v1784
  %v5167 = vpop.f32.mrb[0].mxu0
  %v5168 = vadd.f32 %v5071, %v5167
  %v5169 = vpop.f32.mrb[0].mxu0
  %v5170 = vpop.f32.mrb[0].mxu0
  %v5171 = vadd.f32 %v5074, %v5170
  %v5172 = vpop.f32.mrb[0].mxu0
  %5173 = vmatprep.mubr.bf16.mxu0 %v1821
  %5174 = vmatmul.mubr.bf16.gmra.mrb[0].mxu0 %v1820
  %v5175 = vpop.f32.mrb[0].mxu0
  %v5176 = vadd.f32 %v5079, %v5175
  %v5177 = vpop.f32.mrb[0].mxu0
  %v5178 = vpop.f32.mrb[0].mxu0
  %v5179 = vadd.f32 %v5082, %v5178
  %v5180 = vpop.f32.mrb[0].mxu0
  %5181 = vmatprep.mubr.bf16.mxu0 %v1857
  %5182 = vmatmul.mubr.bf16.gmra.mrb[0].mxu0 %v1856
  %v5183 = vpop.f32.mrb[0].mxu0
  %v5184 = vadd.f32 %v5087, %v5183
  %v5185 = vpop.f32.mrb[0].mxu0
  %v5186 = vpop.f32.mrb[0].mxu0
  %v5187 = vadd.f32 %v5090, %v5186
  %v5188 = vpop.f32.mrb[0].mxu0
  %5189 = vmatprep.mubr.bf16.mxu0 %v1893
  %5190 = vmatmul.mubr.bf16.gmra.mrb[0].mxu0 %v1892
  %v5191 = vpop.f32.mrb[0].mxu0
  %v5192 = vadd.f32 %v5095, %v5191
  %v5193 = vpop.f32.mrb[0].mxu0
  %v5194 = vpop.f32.mrb[0].mxu0
  %v5195 = vadd.f32 %v5098, %v5194
  %v5196 = vpop.f32.mrb[0].mxu0
  %5197 = vmatprep.mubr.bf16.mxu0 %v1929
  %5198 = vmatmul.mubr.bf16.gmra.mrb[0].mxu0 %v1928
  %v5199 = vpop.f32.mrb[0].mxu0
  %v5200 = vadd.f32 %v5103, %v5199
  %v5201 = vpop.f32.mrb[0].mxu0
  %v5202 = vpop.f32.mrb[0].mxu0
  %v5203 = vadd.f32 %v5106, %v5202
  %v5204 = vpop.f32.mrb[0].mxu0
  %5205 = vmatprep.mubr.bf16.mxu0 %v1965
  %5206 = vmatmul.mubr.bf16.gmra.mrb[0].mxu0 %v1964
  %v5207 = vpop.f32.mrb[0].mxu0
  %v5208 = vadd.f32 %v5111, %v5207
  %v5209 = vpop.f32.mrb[0].mxu0
  %v5210 = vpop.f32.mrb[0].mxu0
  %v5211 = vadd.f32 %v5114, %v5210
  %v5212 = vpop.f32.mrb[0].mxu0
  %5213 = vmatprep.mubr.bf16.mxu0 %v2001
  %5214 = vmatmul.mubr.bf16.gmra.mrb[0].mxu0 %v2000
  %v5215 = vpop.f32.mrb[0].mxu0
  %v5216 = vadd.f32 %v5119, %v5215
  %v5217 = vpop.f32.mrb[0].mxu0
  %v5218 = vpop.f32.mrb[0].mxu0
  %v5219 = vadd.f32 %v5122, %v5218
  %v5220 = vpop.f32.mrb[0].mxu0
  %5221 = vmatprep.mubr.bf16.mxu0 %v2037
  %5222 = vmatmul.mubr.bf16.gmra.mrb[0].mxu0 %v2036
  %v5223 = vpop.f32.mrb[0].mxu0
  %v5224 = vadd.f32 %v5127, %v5223
  %v5225 = vpop.f32.mrb[0].mxu0
  %v5226 = vpop.f32.mrb[0].mxu0
  %v5227 = vadd.f32 %v5130, %v5226
  %v5228 = vpop.f32.mrb[0].mxu0
  %5229 = vdwg.mxu0
  %5230 = vmatprep.subr.bf16.mxu0 0
  %5231 = vmatpush1.bf16.msra.mxu0 %v3682
  %5232 = vmatprep.subr.bf16.mxu0 0
  %5233 = vmatpush1.bf16.msra.mxu0 %v3683
  %5234 = vmatprep.subr.bf16.mxu0 0
  %5235 = vmatpush1.bf16.msra.mxu0 %v3684
  %5236 = vmatprep.subr.bf16.mxu0 0
  %5237 = vmatpush1.bf16.msra.mxu0 %v3685
  %5238 = vmatprep.subr.bf16.mxu0 0
  %5239 = vmatpush1.bf16.msra.mxu0 %v3686
  %5240 = vmatprep.subr.bf16.mxu0 0
  %5241 = vmatpush1.bf16.msra.mxu0 %v3687
  %5242 = vmatprep.subr.bf16.mxu0 0
  %5243 = vmatpush1.bf16.msra.mxu0 %v3688
  %5244 = vmatprep.subr.bf16.mxu0 0
  %5245 = vmatpush1.bf16.msra.mxu0 %v3689
  %5246 = vmatprep.subr.bf16.mxu0 0
  %5247 = vmatpush1.bf16.msra.mxu0 %v3690
  %5248 = vmatprep.subr.bf16.mxu0 0
  %5249 = vmatpush1.bf16.msra.mxu0 %v3691
  %5250 = vmatprep.subr.bf16.mxu0 0
  %5251 = vmatpush1.bf16.msra.mxu0 %v3692
  %5252 = vmatprep.subr.bf16.mxu0 0
  %5253 = vmatpush1.bf16.msra.mxu0 %v3693
  %5254 = vmatprep.subr.bf16.mxu0 0
  %5255 = vmatpush1.bf16.msra.mxu0 %v3694
  %5256 = vmatprep.subr.bf16.mxu0 0
  %5257 = vmatpush1.bf16.msra.mxu0 %v3695
  %5258 = vmatprep.subr.bf16.mxu0 0
  %5259 = vmatpush1.bf16.msra.mxu0 %v3696
  %5260 = vmatprep.subr.bf16.mxu0 0
  %5261 = vmatpush1.bf16.msra.mxu0 %v3697
  %5262 = vmatprep.mubr.bf16.mxu0 %v1787
  %5263 = vmatmul.mubr.bf16.gmra.mrb[0].mxu0 %v1786
  %v5264 = vpop.f32.mrb[0].mxu0
  %v5265 = vadd.f32 %v5168, %v5264
  %v5266 = vpop.f32.mrb[0].mxu0
  %v5267 = vpop.f32.mrb[0].mxu0
  %v5268 = vadd.f32 %v5171, %v5267
  %v5269 = vpop.f32.mrb[0].mxu0
  %5270 = vmatprep.mubr.bf16.mxu0 %v1823
  %5271 = vmatmul.mubr.bf16.gmra.mrb[0].mxu0 %v1822
  %v5272 = vpop.f32.mrb[0].mxu0
  %v5273 = vadd.f32 %v5176, %v5272
  %v5274 = vpop.f32.mrb[0].mxu0
  %v5275 = vpop.f32.mrb[0].mxu0
  %v5276 = vadd.f32 %v5179, %v5275
  %v5277 = vpop.f32.mrb[0].mxu0
  %5278 = vmatprep.mubr.bf16.mxu0 %v1859
  %5279 = vmatmul.mubr.bf16.gmra.mrb[0].mxu0 %v1858
  %v5280 = vpop.f32.mrb[0].mxu0
  %v5281 = vadd.f32 %v5184, %v5280
  %v5282 = vpop.f32.mrb[0].mxu0
  %v5283 = vpop.f32.mrb[0].mxu0
  %v5284 = vadd.f32 %v5187, %v5283
  %v5285 = vpop.f32.mrb[0].mxu0
  %5286 = vmatprep.mubr.bf16.mxu0 %v1895
  %5287 = vmatmul.mubr.bf16.gmra.mrb[0].mxu0 %v1894
  %v5288 = vpop.f32.mrb[0].mxu0
  %v5289 = vadd.f32 %v5192, %v5288
  %v5290 = vpop.f32.mrb[0].mxu0
  %v5291 = vpop.f32.mrb[0].mxu0
  %v5292 = vadd.f32 %v5195, %v5291
  %v5293 = vpop.f32.mrb[0].mxu0
  %5294 = vmatprep.mubr.bf16.mxu0 %v1931
  %5295 = vmatmul.mubr.bf16.gmra.mrb[0].mxu0 %v1930
  %v5296 = vpop.f32.mrb[0].mxu0
  %v5297 = vadd.f32 %v5200, %v5296
  %v5298 = vpop.f32.mrb[0].mxu0
  %v5299 = vpop.f32.mrb[0].mxu0
  %v5300 = vadd.f32 %v5203, %v5299
  %v5301 = vpop.f32.mrb[0].mxu0
  %5302 = vmatprep.mubr.bf16.mxu0 %v1967
  %5303 = vmatmul.mubr.bf16.gmra.mrb[0].mxu0 %v1966
  %v5304 = vpop.f32.mrb[0].mxu0
  %v5305 = vadd.f32 %v5208, %v5304
  %v5306 = vpop.f32.mrb[0].mxu0
  %v5307 = vpop.f32.mrb[0].mxu0
  %v5308 = vadd.f32 %v5211, %v5307
  %v5309 = vpop.f32.mrb[0].mxu0
  %5310 = vmatprep.mubr.bf16.mxu0 %v2003
  %5311 = vmatmul.mubr.bf16.gmra.mrb[0].mxu0 %v2002
  %v5312 = vpop.f32.mrb[0].mxu0
  %v5313 = vadd.f32 %v5216, %v5312
  %v5314 = vpop.f32.mrb[0].mxu0
  %v5315 = vpop.f32.mrb[0].mxu0
  %v5316 = vadd.f32 %v5219, %v5315
  %v5317 = vpop.f32.mrb[0].mxu0
  %5318 = vmatprep.mubr.bf16.mxu0 %v2039
  %5319 = vmatmul.mubr.bf16.gmra.mrb[0].mxu0 %v2038
  %v5320 = vpop.f32.mrb[0].mxu0
  %v5321 = vadd.f32 %v5224, %v5320
  %v5322 = vpop.f32.mrb[0].mxu0
  %v5323 = vpop.f32.mrb[0].mxu0
  %v5324 = vadd.f32 %v5227, %v5323
  %v5325 = vpop.f32.mrb[0].mxu0
  %5326 = vdwg.mxu0
  %5327 = vmatprep.subr.bf16.mxu0 0
  %5328 = vmatpush1.bf16.msra.mxu0 %v3698
  %5329 = vmatprep.subr.bf16.mxu0 0
  %5330 = vmatpush1.bf16.msra.mxu0 %v3699
  %5331 = vmatprep.subr.bf16.mxu0 0
  %5332 = vmatpush1.bf16.msra.mxu0 %v3700
  %5333 = vmatprep.subr.bf16.mxu0 0
  %5334 = vmatpush1.bf16.msra.mxu0 %v3701
  %5335 = vmatprep.subr.bf16.mxu0 0
  %5336 = vmatpush1.bf16.msra.mxu0 %v3702
  %5337 = vmatprep.subr.bf16.mxu0 0
  %5338 = vmatpush1.bf16.msra.mxu0 %v3703
  %5339 = vmatprep.subr.bf16.mxu0 0
  %5340 = vmatpush1.bf16.msra.mxu0 %v3704
  %5341 = vmatprep.subr.bf16.mxu0 0
  %5342 = vmatpush1.bf16.msra.mxu0 %v3705
  %5343 = vmatprep.subr.bf16.mxu0 0
  %5344 = vmatpush1.bf16.msra.mxu0 %v3706
  %5345 = vmatprep.subr.bf16.mxu0 0
  %5346 = vmatpush1.bf16.msra.mxu0 %v3707
  %5347 = vmatprep.subr.bf16.mxu0 0
  %5348 = vmatpush1.bf16.msra.mxu0 %v3708
  %5349 = vmatprep.subr.bf16.mxu0 0
  %5350 = vmatpush1.bf16.msra.mxu0 %v3709
  %5351 = vmatprep.subr.bf16.mxu0 0
  %5352 = vmatpush1.bf16.msra.mxu0 %v3710
  %5353 = vmatprep.subr.bf16.mxu0 0
  %5354 = vmatpush1.bf16.msra.mxu0 %v3711
  %5355 = vmatprep.subr.bf16.mxu0 0
  %5356 = vmatpush1.bf16.msra.mxu0 %v3712
  %5357 = vmatprep.subr.bf16.mxu0 0
  %5358 = vmatpush1.bf16.msra.mxu0 %v3713
  %5359 = vmatprep.mubr.bf16.mxu0 %v1789
  %5360 = vmatmul.mubr.bf16.gmra.mrb[0].mxu0 %v1788
  %v5361 = vpop.f32.mrb[0].mxu0
  %v5362 = vadd.f32 %v5265, %v5361
  %v5363 = vpop.f32.mrb[0].mxu0
  %v5364 = vpop.f32.mrb[0].mxu0
  %v5365 = vadd.f32 %v5268, %v5364
  %v5366 = vpop.f32.mrb[0].mxu0
  %5367 = vmatprep.mubr.bf16.mxu0 %v1825
  %5368 = vmatmul.mubr.bf16.gmra.mrb[0].mxu0 %v1824
  %v5369 = vpop.f32.mrb[0].mxu0
  %v5370 = vadd.f32 %v5273, %v5369
  %v5371 = vpop.f32.mrb[0].mxu0
  %v5372 = vpop.f32.mrb[0].mxu0
  %v5373 = vadd.f32 %v5276, %v5372
  %v5374 = vpop.f32.mrb[0].mxu0
  %5375 = vmatprep.mubr.bf16.mxu0 %v1861
  %5376 = vmatmul.mubr.bf16.gmra.mrb[0].mxu0 %v1860
  %v5377 = vpop.f32.mrb[0].mxu0
  %v5378 = vadd.f32 %v5281, %v5377
  %v5379 = vpop.f32.mrb[0].mxu0
  %v5380 = vpop.f32.mrb[0].mxu0
  %v5381 = vadd.f32 %v5284, %v5380
  %v5382 = vpop.f32.mrb[0].mxu0
  %5383 = vmatprep.mubr.bf16.mxu0 %v1897
  %5384 = vmatmul.mubr.bf16.gmra.mrb[0].mxu0 %v1896
  %v5385 = vpop.f32.mrb[0].mxu0
  %v5386 = vadd.f32 %v5289, %v5385
  %v5387 = vpop.f32.mrb[0].mxu0
  %v5388 = vpop.f32.mrb[0].mxu0
  %v5389 = vadd.f32 %v5292, %v5388
  %v5390 = vpop.f32.mrb[0].mxu0
  %5391 = vmatprep.mubr.bf16.mxu0 %v1933
  %5392 = vmatmul.mubr.bf16.gmra.mrb[0].mxu0 %v1932
  %v5393 = vpop.f32.mrb[0].mxu0
  %v5394 = vadd.f32 %v5297, %v5393
  %v5395 = vpop.f32.mrb[0].mxu0
  %v5396 = vpop.f32.mrb[0].mxu0
  %v5397 = vadd.f32 %v5300, %v5396
  %v5398 = vpop.f32.mrb[0].mxu0
  %5399 = vmatprep.mubr.bf16.mxu0 %v1969
  %5400 = vmatmul.mubr.bf16.gmra.mrb[0].mxu0 %v1968
  %v5401 = vpop.f32.mrb[0].mxu0
  %v5402 = vadd.f32 %v5305, %v5401
  %v5403 = vpop.f32.mrb[0].mxu0
  %v5404 = vpop.f32.mrb[0].mxu0
  %v5405 = vadd.f32 %v5308, %v5404
  %v5406 = vpop.f32.mrb[0].mxu0
  %5407 = vmatprep.mubr.bf16.mxu0 %v2005
  %5408 = vmatmul.mubr.bf16.gmra.mrb[0].mxu0 %v2004
  %v5409 = vpop.f32.mrb[0].mxu0
  %v5410 = vadd.f32 %v5313, %v5409
  %v5411 = vpop.f32.mrb[0].mxu0
  %v5412 = vpop.f32.mrb[0].mxu0
  %v5413 = vadd.f32 %v5316, %v5412
  %v5414 = vpop.f32.mrb[0].mxu0
  %5415 = vmatprep.mubr.bf16.mxu0 %v2041
  %5416 = vmatmul.mubr.bf16.gmra.mrb[0].mxu0 %v2040
  %v5417 = vpop.f32.mrb[0].mxu0
  %v5418 = vadd.f32 %v5321, %v5417
  %v5419 = vpop.f32.mrb[0].mxu0
  %v5420 = vpop.f32.mrb[0].mxu0
  %v5421 = vadd.f32 %v5324, %v5420
  %v5422 = vpop.f32.mrb[0].mxu0
  %5423 = vdwg.mxu0
  %5424 = vmatprep.subr.bf16.mxu0 0
  %5425 = vmatpush1.bf16.msra.mxu0 %v3714
  %5426 = vmatprep.subr.bf16.mxu0 0
  %5427 = vmatpush1.bf16.msra.mxu0 %v3715
  %5428 = vmatprep.subr.bf16.mxu0 0
  %5429 = vmatpush1.bf16.msra.mxu0 %v3716
  %5430 = vmatprep.subr.bf16.mxu0 0
  %5431 = vmatpush1.bf16.msra.mxu0 %v3717
  %5432 = vmatprep.subr.bf16.mxu0 0
  %5433 = vmatpush1.bf16.msra.mxu0 %v3718
  %5434 = vmatprep.subr.bf16.mxu0 0
  %5435 = vmatpush1.bf16.msra.mxu0 %v3719
  %5436 = vmatprep.subr.bf16.mxu0 0
  %5437 = vmatpush1.bf16.msra.mxu0 %v3720
  %5438 = vmatprep.subr.bf16.mxu0 0
  %5439 = vmatpush1.bf16.msra.mxu0 %v3721
  %5440 = vmatprep.subr.bf16.mxu0 0
  %5441 = vmatpush1.bf16.msra.mxu0 %v3722
  %5442 = vmatprep.subr.bf16.mxu0 0
  %5443 = vmatpush1.bf16.msra.mxu0 %v3723
  %5444 = vmatprep.subr.bf16.mxu0 0
  %5445 = vmatpush1.bf16.msra.mxu0 %v3724
  %5446 = vmatprep.subr.bf16.mxu0 0
  %5447 = vmatpush1.bf16.msra.mxu0 %v3725
  %5448 = vmatprep.subr.bf16.mxu0 0
  %5449 = vmatpush1.bf16.msra.mxu0 %v3726
  %5450 = vmatprep.subr.bf16.mxu0 0
  %5451 = vmatpush1.bf16.msra.mxu0 %v3727
  %5452 = vmatprep.subr.bf16.mxu0 0
  %5453 = vmatpush1.bf16.msra.mxu0 %v3728
  %5454 = vmatprep.subr.bf16.mxu0 0
  %5455 = vmatpush1.bf16.msra.mxu0 %v3729
  %5456 = vmatprep.mubr.bf16.mxu0 %v1791
  %5457 = vmatmul.mubr.bf16.gmra.mrb[0].mxu0 %v1790
  %v5458 = vpop.f32.mrb[0].mxu0
  %v5459 = vadd.f32 %v5362, %v5458
  %v5460 = vpop.f32.mrb[0].mxu0
  %v5461 = vpop.f32.mrb[0].mxu0
  %v5462 = vadd.f32 %v5365, %v5461
  %v5463 = vpop.f32.mrb[0].mxu0
  %5464 = vmatprep.mubr.bf16.mxu0 %v1827
  %5465 = vmatmul.mubr.bf16.gmra.mrb[0].mxu0 %v1826
  %v5466 = vpop.f32.mrb[0].mxu0
  %v5467 = vadd.f32 %v5370, %v5466
  %v5468 = vpop.f32.mrb[0].mxu0
  %v5469 = vpop.f32.mrb[0].mxu0
  %v5470 = vadd.f32 %v5373, %v5469
  %v5471 = vpop.f32.mrb[0].mxu0
  %5472 = vmatprep.mubr.bf16.mxu0 %v1863
  %5473 = vmatmul.mubr.bf16.gmra.mrb[0].mxu0 %v1862
  %v5474 = vpop.f32.mrb[0].mxu0
  %v5475 = vadd.f32 %v5378, %v5474
  %v5476 = vpop.f32.mrb[0].mxu0
  %v5477 = vpop.f32.mrb[0].mxu0
  %v5478 = vadd.f32 %v5381, %v5477
  %v5479 = vpop.f32.mrb[0].mxu0
  %5480 = vmatprep.mubr.bf16.mxu0 %v1899
  %5481 = vmatmul.mubr.bf16.gmra.mrb[0].mxu0 %v1898
  %v5482 = vpop.f32.mrb[0].mxu0
  %v5483 = vadd.f32 %v5386, %v5482
  %v5484 = vpop.f32.mrb[0].mxu0
  %v5485 = vpop.f32.mrb[0].mxu0
  %v5486 = vadd.f32 %v5389, %v5485
  %v5487 = vpop.f32.mrb[0].mxu0
  %5488 = vmatprep.mubr.bf16.mxu0 %v1935
  %5489 = vmatmul.mubr.bf16.gmra.mrb[0].mxu0 %v1934
  %v5490 = vpop.f32.mrb[0].mxu0
  %v5491 = vadd.f32 %v5394, %v5490
  %v5492 = vpop.f32.mrb[0].mxu0
  %v5493 = vpop.f32.mrb[0].mxu0
  %v5494 = vadd.f32 %v5397, %v5493
  %v5495 = vpop.f32.mrb[0].mxu0
  %5496 = vmatprep.mubr.bf16.mxu0 %v1971
  %5497 = vmatmul.mubr.bf16.gmra.mrb[0].mxu0 %v1970
  %v5498 = vpop.f32.mrb[0].mxu0
  %v5499 = vadd.f32 %v5402, %v5498
  %v5500 = vpop.f32.mrb[0].mxu0
  %v5501 = vpop.f32.mrb[0].mxu0
  %v5502 = vadd.f32 %v5405, %v5501
  %v5503 = vpop.f32.mrb[0].mxu0
  %5504 = vmatprep.mubr.bf16.mxu0 %v2007
  %5505 = vmatmul.mubr.bf16.gmra.mrb[0].mxu0 %v2006
  %v5506 = vpop.f32.mrb[0].mxu0
  %v5507 = vadd.f32 %v5410, %v5506
  %v5508 = vpop.f32.mrb[0].mxu0
  %v5509 = vpop.f32.mrb[0].mxu0
  %v5510 = vadd.f32 %v5413, %v5509
  %v5511 = vpop.f32.mrb[0].mxu0
  %5512 = vmatprep.mubr.bf16.mxu0 %v2043
  %5513 = vmatmul.mubr.bf16.gmra.mrb[0].mxu0 %v2042
  %v5514 = vpop.f32.mrb[0].mxu0
  %v5515 = vadd.f32 %v5418, %v5514
  %v5516 = vpop.f32.mrb[0].mxu0
  %v5517 = vpop.f32.mrb[0].mxu0
  %v5518 = vadd.f32 %v5421, %v5517
  %v5519 = vpop.f32.mrb[0].mxu0
  %5520 = vdwg.mxu0
  %5521 = vmatprep.subr.bf16.mxu0 0
  %5522 = vmatpush1.bf16.msra.mxu0 %v3730
  %5523 = vmatprep.subr.bf16.mxu0 0
  %5524 = vmatpush1.bf16.msra.mxu0 %v3731
  %5525 = vmatprep.subr.bf16.mxu0 0
  %5526 = vmatpush1.bf16.msra.mxu0 %v3732
  %5527 = vmatprep.subr.bf16.mxu0 0
  %5528 = vmatpush1.bf16.msra.mxu0 %v3733
  %5529 = vmatprep.subr.bf16.mxu0 0
  %5530 = vmatpush1.bf16.msra.mxu0 %v3734
  %5531 = vmatprep.subr.bf16.mxu0 0
  %5532 = vmatpush1.bf16.msra.mxu0 %v3735
  %5533 = vmatprep.subr.bf16.mxu0 0
  %5534 = vmatpush1.bf16.msra.mxu0 %v3736
  %5535 = vmatprep.subr.bf16.mxu0 0
  %5536 = vmatpush1.bf16.msra.mxu0 %v3737
  %5537 = vmatprep.subr.bf16.mxu0 0
  %5538 = vmatpush1.bf16.msra.mxu0 %v3738
  %5539 = vmatprep.subr.bf16.mxu0 0
  %5540 = vmatpush1.bf16.msra.mxu0 %v3739
  %5541 = vmatprep.subr.bf16.mxu0 0
  %5542 = vmatpush1.bf16.msra.mxu0 %v3740
  %5543 = vmatprep.subr.bf16.mxu0 0
  %5544 = vmatpush1.bf16.msra.mxu0 %v3741
  %5545 = vmatprep.subr.bf16.mxu0 0
  %5546 = vmatpush1.bf16.msra.mxu0 %v3742
  %5547 = vmatprep.subr.bf16.mxu0 0
  %5548 = vmatpush1.bf16.msra.mxu0 %v3743
  %5549 = vmatprep.subr.bf16.mxu0 0
  %5550 = vmatpush1.bf16.msra.mxu0 %v3744
  %5551 = vmatprep.subr.bf16.mxu0 0
  %5552 = vmatpush1.bf16.msra.mxu0 %v3745
  %5553 = vmatprep.mubr.bf16.mxu0 %v1793
  %5554 = vmatmul.mubr.bf16.gmra.mrb[0].mxu0 %v1792
  %v5555 = vpop.f32.mrb[0].mxu0
  %v5556 = vadd.f32 %v5459, %v5555
  %v5557 = vpop.f32.mrb[0].mxu0
  %v5558 = vpop.f32.mrb[0].mxu0
  %v5559 = vadd.f32 %v5462, %v5558
  %v5560 = vpop.f32.mrb[0].mxu0
  %5561 = vmatprep.mubr.bf16.mxu0 %v1829
  %5562 = vmatmul.mubr.bf16.gmra.mrb[0].mxu0 %v1828
  %v5563 = vpop.f32.mrb[0].mxu0
  %v5564 = vadd.f32 %v5467, %v5563
  %v5565 = vpop.f32.mrb[0].mxu0
  %v5566 = vpop.f32.mrb[0].mxu0
  %v5567 = vadd.f32 %v5470, %v5566
  %v5568 = vpop.f32.mrb[0].mxu0
  %5569 = vmatprep.mubr.bf16.mxu0 %v1865
  %5570 = vmatmul.mubr.bf16.gmra.mrb[0].mxu0 %v1864
  %v5571 = vpop.f32.mrb[0].mxu0
  %v5572 = vadd.f32 %v5475, %v5571
  %v5573 = vpop.f32.mrb[0].mxu0
  %v5574 = vpop.f32.mrb[0].mxu0
  %v5575 = vadd.f32 %v5478, %v5574
  %v5576 = vpop.f32.mrb[0].mxu0
  %5577 = vmatprep.mubr.bf16.mxu0 %v1901
  %5578 = vmatmul.mubr.bf16.gmra.mrb[0].mxu0 %v1900
  %v5579 = vpop.f32.mrb[0].mxu0
  %v5580 = vadd.f32 %v5483, %v5579
  %v5581 = vpop.f32.mrb[0].mxu0
  %v5582 = vpop.f32.mrb[0].mxu0
  %v5583 = vadd.f32 %v5486, %v5582
  %v5584 = vpop.f32.mrb[0].mxu0
  %5585 = vmatprep.mubr.bf16.mxu0 %v1937
  %5586 = vmatmul.mubr.bf16.gmra.mrb[0].mxu0 %v1936
  %v5587 = vpop.f32.mrb[0].mxu0
  %v5588 = vadd.f32 %v5491, %v5587
  %v5589 = vpop.f32.mrb[0].mxu0
  %v5590 = vpop.f32.mrb[0].mxu0
  %v5591 = vadd.f32 %v5494, %v5590
  %v5592 = vpop.f32.mrb[0].mxu0
  %5593 = vmatprep.mubr.bf16.mxu0 %v1973
  %5594 = vmatmul.mubr.bf16.gmra.mrb[0].mxu0 %v1972
  %v5595 = vpop.f32.mrb[0].mxu0
  %v5596 = vadd.f32 %v5499, %v5595
  %v5597 = vpop.f32.mrb[0].mxu0
  %v5598 = vpop.f32.mrb[0].mxu0
  %v5599 = vadd.f32 %v5502, %v5598
  %v5600 = vpop.f32.mrb[0].mxu0
  %5601 = vmatprep.mubr.bf16.mxu0 %v2009
  %5602 = vmatmul.mubr.bf16.gmra.mrb[0].mxu0 %v2008
  %v5603 = vpop.f32.mrb[0].mxu0
  %v5604 = vadd.f32 %v5507, %v5603
  %v5605 = vpop.f32.mrb[0].mxu0
  %v5606 = vpop.f32.mrb[0].mxu0
  %v5607 = vadd.f32 %v5510, %v5606
  %v5608 = vpop.f32.mrb[0].mxu0
  %5609 = vmatprep.mubr.bf16.mxu0 %v2045
  %5610 = vmatmul.mubr.bf16.gmra.mrb[0].mxu0 %v2044
  %v5611 = vpop.f32.mrb[0].mxu0
  %v5612 = vadd.f32 %v5515, %v5611
  %v5613 = vpop.f32.mrb[0].mxu0
  %v5614 = vpop.f32.mrb[0].mxu0
  %v5615 = vadd.f32 %v5518, %v5614
  %v5616 = vpop.f32.mrb[0].mxu0
  %5617 = vdwg.mxu0
  %5618 = vmatprep.subr.bf16.mxu0 0
  %5619 = vmatpush1.bf16.msra.mxu0 %v3746
  %5620 = vmatprep.subr.bf16.mxu0 0
  %5621 = vmatpush1.bf16.msra.mxu0 %v3747
  %5622 = vmatprep.subr.bf16.mxu0 0
  %5623 = vmatpush1.bf16.msra.mxu0 %v3748
  %5624 = vmatprep.subr.bf16.mxu0 0
  %5625 = vmatpush1.bf16.msra.mxu0 %v3749
  %5626 = vmatprep.subr.bf16.mxu0 0
  %5627 = vmatpush1.bf16.msra.mxu0 %v3750
  %5628 = vmatprep.subr.bf16.mxu0 0
  %5629 = vmatpush1.bf16.msra.mxu0 %v3751
  %5630 = vmatprep.subr.bf16.mxu0 0
  %5631 = vmatpush1.bf16.msra.mxu0 %v3752
  %5632 = vmatprep.subr.bf16.mxu0 0
  %5633 = vmatpush1.bf16.msra.mxu0 %v3753
  %5634 = vmatprep.subr.bf16.mxu0 0
  %5635 = vmatpush1.bf16.msra.mxu0 %v3754
  %5636 = vmatprep.subr.bf16.mxu0 0
  %5637 = vmatpush1.bf16.msra.mxu0 %v3755
  %5638 = vmatprep.subr.bf16.mxu0 0
  %5639 = vmatpush1.bf16.msra.mxu0 %v3756
  %5640 = vmatprep.subr.bf16.mxu0 0
  %5641 = vmatpush1.bf16.msra.mxu0 %v3757
  %5642 = vmatprep.subr.bf16.mxu0 0
  %5643 = vmatpush1.bf16.msra.mxu0 %v3758
  %5644 = vmatprep.subr.bf16.mxu0 0
  %5645 = vmatpush1.bf16.msra.mxu0 %v3759
  %5646 = vmatprep.subr.bf16.mxu0 0
  %5647 = vmatpush1.bf16.msra.mxu0 %v3760
  %5648 = vmatprep.subr.bf16.mxu0 0
  %5649 = vmatpush1.bf16.msra.mxu0 %v3761
  %5650 = vmatprep.mubr.bf16.mxu0 %v1795
  %5651 = vmatmul.mubr.bf16.gmra.mrb[0].mxu0 %v1794
  %v5652 = vpop.f32.mrb[0].mxu0
  %v5653 = vadd.f32 %v5556, %v5652
  %v5654 = vpop.f32.mrb[0].mxu0
  %v5655 = vpop.f32.mrb[0].mxu0
  %v5656 = vadd.f32 %v5559, %v5655
  %v5657 = vpop.f32.mrb[0].mxu0
  %5658 = vmatprep.mubr.bf16.mxu0 %v1831
  %5659 = vmatmul.mubr.bf16.gmra.mrb[0].mxu0 %v1830
  %v5660 = vpop.f32.mrb[0].mxu0
  %v5661 = vadd.f32 %v5564, %v5660
  %v5662 = vpop.f32.mrb[0].mxu0
  %v5663 = vpop.f32.mrb[0].mxu0
  %v5664 = vadd.f32 %v5567, %v5663
  %v5665 = vpop.f32.mrb[0].mxu0
  %5666 = vmatprep.mubr.bf16.mxu0 %v1867
  %5667 = vmatmul.mubr.bf16.gmra.mrb[0].mxu0 %v1866
  %v5668 = vpop.f32.mrb[0].mxu0
  %v5669 = vadd.f32 %v5572, %v5668
  %v5670 = vpop.f32.mrb[0].mxu0
  %v5671 = vpop.f32.mrb[0].mxu0
  %v5672 = vadd.f32 %v5575, %v5671
  %v5673 = vpop.f32.mrb[0].mxu0
  %5674 = vmatprep.mubr.bf16.mxu0 %v1903
  %5675 = vmatmul.mubr.bf16.gmra.mrb[0].mxu0 %v1902
  %v5676 = vpop.f32.mrb[0].mxu0
  %v5677 = vadd.f32 %v5580, %v5676
  %v5678 = vpop.f32.mrb[0].mxu0
  %v5679 = vpop.f32.mrb[0].mxu0
  %v5680 = vadd.f32 %v5583, %v5679
  %v5681 = vpop.f32.mrb[0].mxu0
  %5682 = vmatprep.mubr.bf16.mxu0 %v1939
  %5683 = vmatmul.mubr.bf16.gmra.mrb[0].mxu0 %v1938
  %v5684 = vpop.f32.mrb[0].mxu0
  %v5685 = vadd.f32 %v5588, %v5684
  %v5686 = vpop.f32.mrb[0].mxu0
  %v5687 = vpop.f32.mrb[0].mxu0
  %v5688 = vadd.f32 %v5591, %v5687
  %v5689 = vpop.f32.mrb[0].mxu0
  %5690 = vmatprep.mubr.bf16.mxu0 %v1975
  %5691 = vmatmul.mubr.bf16.gmra.mrb[0].mxu0 %v1974
  %v5692 = vpop.f32.mrb[0].mxu0
  %v5693 = vadd.f32 %v5596, %v5692
  %v5694 = vpop.f32.mrb[0].mxu0
  %v5695 = vpop.f32.mrb[0].mxu0
  %v5696 = vadd.f32 %v5599, %v5695
  %v5697 = vpop.f32.mrb[0].mxu0
  %5698 = vmatprep.mubr.bf16.mxu0 %v2011
  %5699 = vmatmul.mubr.bf16.gmra.mrb[0].mxu0 %v2010
  %v5700 = vpop.f32.mrb[0].mxu0
  %v5701 = vadd.f32 %v5604, %v5700
  %v5702 = vpop.f32.mrb[0].mxu0
  %v5703 = vpop.f32.mrb[0].mxu0
  %v5704 = vadd.f32 %v5607, %v5703
  %v5705 = vpop.f32.mrb[0].mxu0
  %5706 = vmatprep.mubr.bf16.mxu0 %v2047
  %5707 = vmatmul.mubr.bf16.gmra.mrb[0].mxu0 %v2046
  %v5708 = vpop.f32.mrb[0].mxu0
  %v5709 = vadd.f32 %v5612, %v5708
  %v5710 = vpop.f32.mrb[0].mxu0
  %v5711 = vpop.f32.mrb[0].mxu0
  %v5712 = vadd.f32 %v5615, %v5711
  %v5713 = vpop.f32.mrb[0].mxu0
  %5714 = vdwg.mxu0
  %5715 = vmatprep.subr.bf16.mxu0 0
  %5716 = vmatpush1.bf16.msra.mxu0 %v3762
  %5717 = vmatprep.subr.bf16.mxu0 0
  %5718 = vmatpush1.bf16.msra.mxu0 %v3763
  %5719 = vmatprep.subr.bf16.mxu0 0
  %5720 = vmatpush1.bf16.msra.mxu0 %v3764
  %5721 = vmatprep.subr.bf16.mxu0 0
  %5722 = vmatpush1.bf16.msra.mxu0 %v3765
  %5723 = vmatprep.subr.bf16.mxu0 0
  %5724 = vmatpush1.bf16.msra.mxu0 %v3766
  %5725 = vmatprep.subr.bf16.mxu0 0
  %5726 = vmatpush1.bf16.msra.mxu0 %v3767
  %5727 = vmatprep.subr.bf16.mxu0 0
  %5728 = vmatpush1.bf16.msra.mxu0 %v3768
  %5729 = vmatprep.subr.bf16.mxu0 0
  %5730 = vmatpush1.bf16.msra.mxu0 %v3769
  %5731 = vmatprep.subr.bf16.mxu0 0
  %5732 = vmatpush1.bf16.msra.mxu0 %v3770
  %5733 = vmatprep.subr.bf16.mxu0 0
  %5734 = vmatpush1.bf16.msra.mxu0 %v3771
  %5735 = vmatprep.subr.bf16.mxu0 0
  %5736 = vmatpush1.bf16.msra.mxu0 %v3772
  %5737 = vmatprep.subr.bf16.mxu0 0
  %5738 = vmatpush1.bf16.msra.mxu0 %v3773
  %5739 = vmatprep.subr.bf16.mxu0 0
  %5740 = vmatpush1.bf16.msra.mxu0 %v3774
  %5741 = vmatprep.subr.bf16.mxu0 0
  %5742 = vmatpush1.bf16.msra.mxu0 %v3775
  %5743 = vmatprep.subr.bf16.mxu0 0
  %5744 = vmatpush1.bf16.msra.mxu0 %v3776
  %5745 = vmatprep.subr.bf16.mxu0 0
  %5746 = vmatpush1.bf16.msra.mxu0 %v3777
  %5747 = vmatprep.mubr.bf16.mxu0 %v1797
  %5748 = vmatmul.mubr.bf16.gmra.mrb[0].mxu0 %v1796
  %v5749 = vpop.f32.mrb[0].mxu0
  %v5750 = vadd.f32 %v5653, %v5749
  %v5751 = vpop.f32.mrb[0].mxu0
  %v5752 = vpop.f32.mrb[0].mxu0
  %v5753 = vadd.f32 %v5656, %v5752
  %v5754 = vpop.f32.mrb[0].mxu0
  %5755 = vmatprep.mubr.bf16.mxu0 %v1833
  %5756 = vmatmul.mubr.bf16.gmra.mrb[0].mxu0 %v1832
  %v5757 = vpop.f32.mrb[0].mxu0
  %v5758 = vadd.f32 %v5661, %v5757
  %v5759 = vpop.f32.mrb[0].mxu0
  %v5760 = vpop.f32.mrb[0].mxu0
  %v5761 = vadd.f32 %v5664, %v5760
  %v5762 = vpop.f32.mrb[0].mxu0
  %5763 = vmatprep.mubr.bf16.mxu0 %v1869
  %5764 = vmatmul.mubr.bf16.gmra.mrb[0].mxu0 %v1868
  %v5765 = vpop.f32.mrb[0].mxu0
  %v5766 = vadd.f32 %v5669, %v5765
  %v5767 = vpop.f32.mrb[0].mxu0
  %v5768 = vpop.f32.mrb[0].mxu0
  %v5769 = vadd.f32 %v5672, %v5768
  %v5770 = vpop.f32.mrb[0].mxu0
  %5771 = vmatprep.mubr.bf16.mxu0 %v1905
  %5772 = vmatmul.mubr.bf16.gmra.mrb[0].mxu0 %v1904
  %v5773 = vpop.f32.mrb[0].mxu0
  %v5774 = vadd.f32 %v5677, %v5773
  %v5775 = vpop.f32.mrb[0].mxu0
  %v5776 = vpop.f32.mrb[0].mxu0
  %v5777 = vadd.f32 %v5680, %v5776
  %v5778 = vpop.f32.mrb[0].mxu0
  %5779 = vmatprep.mubr.bf16.mxu0 %v1941
  %5780 = vmatmul.mubr.bf16.gmra.mrb[0].mxu0 %v1940
  %v5781 = vpop.f32.mrb[0].mxu0
  %v5782 = vadd.f32 %v5685, %v5781
  %v5783 = vpop.f32.mrb[0].mxu0
  %v5784 = vpop.f32.mrb[0].mxu0
  %v5785 = vadd.f32 %v5688, %v5784
  %v5786 = vpop.f32.mrb[0].mxu0
  %5787 = vmatprep.mubr.bf16.mxu0 %v1977
  %5788 = vmatmul.mubr.bf16.gmra.mrb[0].mxu0 %v1976
  %v5789 = vpop.f32.mrb[0].mxu0
  %v5790 = vadd.f32 %v5693, %v5789
  %v5791 = vpop.f32.mrb[0].mxu0
  %v5792 = vpop.f32.mrb[0].mxu0
  %v5793 = vadd.f32 %v5696, %v5792
  %v5794 = vpop.f32.mrb[0].mxu0
  %5795 = vmatprep.mubr.bf16.mxu0 %v2013
  %5796 = vmatmul.mubr.bf16.gmra.mrb[0].mxu0 %v2012
  %v5797 = vpop.f32.mrb[0].mxu0
  %v5798 = vadd.f32 %v5701, %v5797
  %v5799 = vpop.f32.mrb[0].mxu0
  %v5800 = vpop.f32.mrb[0].mxu0
  %v5801 = vadd.f32 %v5704, %v5800
  %v5802 = vpop.f32.mrb[0].mxu0
  %5803 = vmatprep.mubr.bf16.mxu0 %v2049
  %5804 = vmatmul.mubr.bf16.gmra.mrb[0].mxu0 %v2048
  %v5805 = vpop.f32.mrb[0].mxu0
  %v5806 = vadd.f32 %v5709, %v5805
  %v5807 = vpop.f32.mrb[0].mxu0
  %v5808 = vpop.f32.mrb[0].mxu0
  %v5809 = vadd.f32 %v5712, %v5808
  %v5810 = vpop.f32.mrb[0].mxu0
  %5811 = vdwg.mxu0
  %v5812 = vld [vmem:[%s6] sm:$0xff]
  %v5813 = vld [vmem:[%s6 + $0x8] sm:$0xff]
  %v5814 = vld [vmem:[%s6 + $0x10] sm:$0xff]
  %v5815 = vld [vmem:[%s6 + $0x18] sm:$0xff]
  %v5816 = vld [vmem:[%s6 + $0x20] sm:$0xff]
  %v5817 = vld [vmem:[%s6 + $0x28] sm:$0xff]
  %v5818 = vld [vmem:[%s6 + $0x30] sm:$0xff]
  %v5819 = vld [vmem:[%s6 + $0x38] sm:$0xff]
  %v5820 = vld [vmem:[%s6 + $0x40] sm:$0xff]
  %v5821 = vld [vmem:[%s6 + $0x48] sm:$0xff]
  %v5822 = vld [vmem:[%s6 + $0x50] sm:$0xff]
  %v5823 = vld [vmem:[%s6 + $0x58] sm:$0xff]
  %v5824 = vld [vmem:[%s6 + $0x60] sm:$0xff]
  %v5825 = vld [vmem:[%s6 + $0x68] sm:$0xff]
  %v5826 = vld [vmem:[%s6 + $0x70] sm:$0xff]
  %v5827 = vld [vmem:[%s6 + $0x78] sm:$0xff]
  %v5828 = vld [vmem:[%s5] sm:$0xff]
  %v5829 = vld [vmem:[%s5 + $0x8] sm:$0xff]
  %v5830 = vld [vmem:[%s5 + $0x10] sm:$0xff]
  %v5831 = vld [vmem:[%s5 + $0x18] sm:$0xff]
  %v5832 = vld [vmem:[%s5 + $0x20] sm:$0xff]
  %v5833 = vld [vmem:[%s5 + $0x28] sm:$0xff]
  %v5834 = vld [vmem:[%s5 + $0x30] sm:$0xff]
  %v5835 = vld [vmem:[%s5 + $0x38] sm:$0xff]
  %v5836 = vld [vmem:[%s5 + $0x40] sm:$0xff]
  %v5837 = vld [vmem:[%s5 + $0x48] sm:$0xff]
  %v5838 = vld [vmem:[%s5 + $0x50] sm:$0xff]
  %v5839 = vld [vmem:[%s5 + $0x58] sm:$0xff]
  %v5840 = vld [vmem:[%s5 + $0x60] sm:$0xff]
  %v5841 = vld [vmem:[%s5 + $0x68] sm:$0xff]
  %v5842 = vld [vmem:[%s5 + $0x70] sm:$0xff]
  %v5843 = vld [vmem:[%s5 + $0x78] sm:$0xff]
  %5844 = vmatprep.subr.mxu0 0.0
  %5845 = vmatpush1.msra.mxu0 %v5828
  %5846 = vmatprep.subr.mxu0 0.0
  %5847 = vmatpush1.msra.mxu0 %v5829
  %5848 = vmatprep.subr.mxu0 0.0
  %5849 = vmatpush1.msra.mxu0 %v5830
  %5850 = vmatprep.subr.mxu0 0.0
  %5851 = vmatpush1.msra.mxu0 %v5831
  %5852 = vmatprep.subr.mxu0 0.0
  %5853 = vmatpush1.msra.mxu0 %v5832
  %5854 = vmatprep.subr.mxu0 0.0
  %5855 = vmatpush1.msra.mxu0 %v5833
  %5856 = vmatprep.subr.mxu0 0.0
  %5857 = vmatpush1.msra.mxu0 %v5834
  %5858 = vmatprep.subr.mxu0 0.0
  %5859 = vmatpush1.msra.mxu0 %v5835
  %5860 = vmatprep.subr.mxu0 0.0
  %5861 = vmatpush1.msra.mxu0 %v5836
  %5862 = vmatprep.subr.mxu0 0.0
  %5863 = vmatpush1.msra.mxu0 %v5837
  %5864 = vmatprep.subr.mxu0 0.0
  %5865 = vmatpush1.msra.mxu0 %v5838
  %5866 = vmatprep.subr.mxu0 0.0
  %5867 = vmatpush1.msra.mxu0 %v5839
  %5868 = vmatprep.subr.mxu0 0.0
  %5869 = vmatpush1.msra.mxu0 %v5840
  %5870 = vmatprep.subr.mxu0 0.0
  %5871 = vmatpush1.msra.mxu0 %v5841
  %5872 = vmatprep.subr.mxu0 0.0
  %5873 = vmatpush1.msra.mxu0 %v5842
  %5874 = vmatprep.subr.mxu0 0.0
  %5875 = vmatpush1.msra.mxu0 %v5843
  %5876 = vmatprep.subr.mxu0 0.0
  %5877 = vmatpush1.msra.mxu0 0.0
  %5878 = vmatprep.subr.mxu0 0.0
  %5879 = vmatpush1.msra.mxu0 0.0
  %5880 = vmatprep.subr.mxu0 0.0
  %5881 = vmatpush1.msra.mxu0 0.0
  %5882 = vmatprep.subr.mxu0 0.0
  %5883 = vmatpush1.msra.mxu0 0.0
  %5884 = vmatprep.subr.mxu0 0.0
  %5885 = vmatpush1.msra.mxu0 0.0
  %5886 = vmatprep.subr.mxu0 0.0
  %5887 = vmatpush1.msra.mxu0 0.0
  %5888 = vmatprep.subr.mxu0 0.0
  %5889 = vmatpush1.msra.mxu0 0.0
  %5890 = vmatprep.subr.mxu0 0.0
  %5891 = vmatpush1.msra.mxu0 0.0
  %5892 = vmatprep.subr.mxu0 0.0
  %5893 = vmatpush1.msra.mxu0 0.0
  %5894 = vmatprep.subr.mxu0 0.0
  %5895 = vmatpush1.msra.mxu0 0.0
  %5896 = vmatprep.subr.mxu0 0.0
  %5897 = vmatpush1.msra.mxu0 0.0
  %5898 = vmatprep.subr.mxu0 0.0
  %5899 = vmatpush1.msra.mxu0 0.0
  %5900 = vmatprep.subr.mxu0 0.0
  %5901 = vmatpush1.msra.mxu0 0.0
  %5902 = vmatprep.subr.mxu0 0.0
  %5903 = vmatpush1.msra.mxu0 0.0
  %5904 = vmatprep.subr.mxu0 0.0
  %5905 = vmatpush1.msra.mxu0 0.0
  %5906 = vmatprep.subr.mxu0 0.0
  %5907 = vmatpush1.msra.mxu0 0.0
  %5908 = vmatprep.mubr.f32.mxu0 0.0
  %5909 = vmatmul.mubr.f32.gmra.mrb[0].mxu0 %v5750
  %v5910 = vpop.f32.mrb[0].mxu0
  %v5911 = vadd.f32 0.0, %v5910
  %v5912 = vpop.f32.mrb[0].mxu0
  %5913 = vmatprep.mubr.f32.mxu0 0.0
  %5914 = vmatmul.mubr.f32.gmra.mrb[0].mxu0 %v5753
  %v5915 = vpop.f32.mrb[0].mxu0
  %v5916 = vadd.f32 0.0, %v5915
  %v5917 = vpop.f32.mrb[0].mxu0
  %5918 = vmatprep.mubr.f32.mxu0 0.0
  %5919 = vmatmul.mubr.f32.gmra.mrb[0].mxu0 %v5758
  %v5920 = vpop.f32.mrb[0].mxu0
  %v5921 = vadd.f32 0.0, %v5920
  %v5922 = vpop.f32.mrb[0].mxu0
  %5923 = vmatprep.mubr.f32.mxu0 0.0
  %5924 = vmatmul.mubr.f32.gmra.mrb[0].mxu0 %v5761
  %v5925 = vpop.f32.mrb[0].mxu0
  %v5926 = vadd.f32 0.0, %v5925
  %v5927 = vpop.f32.mrb[0].mxu0
  %5928 = vmatprep.mubr.f32.mxu0 0.0
  %5929 = vmatmul.mubr.f32.gmra.mrb[0].mxu0 %v5766
  %v5930 = vpop.f32.mrb[0].mxu0
  %v5931 = vadd.f32 0.0, %v5930
  %v5932 = vpop.f32.mrb[0].mxu0
  %5933 = vmatprep.mubr.f32.mxu0 0.0
  %5934 = vmatmul.mubr.f32.gmra.mrb[0].mxu0 %v5769
  %v5935 = vpop.f32.mrb[0].mxu0
  %v5936 = vadd.f32 0.0, %v5935
  %v5937 = vpop.f32.mrb[0].mxu0
  %5938 = vmatprep.mubr.f32.mxu0 0.0
  %5939 = vmatmul.mubr.f32.gmra.mrb[0].mxu0 %v5774
  %v5940 = vpop.f32.mrb[0].mxu0
  %v5941 = vadd.f32 0.0, %v5940
  %v5942 = vpop.f32.mrb[0].mxu0
  %5943 = vmatprep.mubr.f32.mxu0 0.0
  %5944 = vmatmul.mubr.f32.gmra.mrb[0].mxu0 %v5777
  %v5945 = vpop.f32.mrb[0].mxu0
  %v5946 = vadd.f32 0.0, %v5945
  %v5947 = vpop.f32.mrb[0].mxu0
  %5948 = vmatprep.mubr.f32.mxu0 0.0
  %5949 = vmatmul.mubr.f32.gmra.mrb[0].mxu0 %v5782
  %v5950 = vpop.f32.mrb[0].mxu0
  %v5951 = vadd.f32 0.0, %v5950
  %v5952 = vpop.f32.mrb[0].mxu0
  %5953 = vmatprep.mubr.f32.mxu0 0.0
  %5954 = vmatmul.mubr.f32.gmra.mrb[0].mxu0 %v5785
  %v5955 = vpop.f32.mrb[0].mxu0
  %v5956 = vadd.f32 0.0, %v5955
  %v5957 = vpop.f32.mrb[0].mxu0
  %5958 = vmatprep.mubr.f32.mxu0 0.0
  %5959 = vmatmul.mubr.f32.gmra.mrb[0].mxu0 %v5790
  %v5960 = vpop.f32.mrb[0].mxu0
  %v5961 = vadd.f32 0.0, %v5960
  %v5962 = vpop.f32.mrb[0].mxu0
  %5963 = vmatprep.mubr.f32.mxu0 0.0
  %5964 = vmatmul.mubr.f32.gmra.mrb[0].mxu0 %v5793
  %v5965 = vpop.f32.mrb[0].mxu0
  %v5966 = vadd.f32 0.0, %v5965
  %v5967 = vpop.f32.mrb[0].mxu0
  %5968 = vmatprep.mubr.f32.mxu0 0.0
  %5969 = vmatmul.mubr.f32.gmra.mrb[0].mxu0 %v5798
  %v5970 = vpop.f32.mrb[0].mxu0
  %v5971 = vadd.f32 0.0, %v5970
  %v5972 = vpop.f32.mrb[0].mxu0
  %5973 = vmatprep.mubr.f32.mxu0 0.0
  %5974 = vmatmul.mubr.f32.gmra.mrb[0].mxu0 %v5801
  %v5975 = vpop.f32.mrb[0].mxu0
  %v5976 = vadd.f32 0.0, %v5975
  %v5977 = vpop.f32.mrb[0].mxu0
  %5978 = vmatprep.mubr.f32.mxu0 0.0
  %5979 = vmatmul.mubr.f32.gmra.mrb[0].mxu0 %v5806
  %v5980 = vpop.f32.mrb[0].mxu0
  %v5981 = vadd.f32 0.0, %v5980
  %v5982 = vpop.f32.mrb[0].mxu0
  %5983 = vmatprep.mubr.f32.mxu0 0.0
  %5984 = vmatmul.mubr.f32.gmra.mrb[0].mxu0 %v5809
  %v5985 = vpop.f32.mrb[0].mxu0
  %v5986 = vadd.f32 0.0, %v5985
  %v5987 = vpop.f32.mrb[0].mxu0
  %5988 = vdwg.mxu0
  %5989 = vmatprep.subr.mxu0 0.0
  %5990 = vmatpush1.msra.mxu0 %v5911
  %5991 = vmatprep.subr.mxu0 0.0
  %5992 = vmatpush1.msra.mxu0 %v5916
  %5993 = vmatprep.subr.mxu0 0.0
  %5994 = vmatpush1.msra.mxu0 %v5921
  %5995 = vmatprep.subr.mxu0 0.0
  %5996 = vmatpush1.msra.mxu0 %v5926
  %5997 = vmatprep.subr.mxu0 0.0
  %5998 = vmatpush1.msra.mxu0 %v5931
  %5999 = vmatprep.subr.mxu0 0.0
  %6000 = vmatpush1.msra.mxu0 %v5936
  %6001 = vmatprep.subr.mxu0 0.0
  %6002 = vmatpush1.msra.mxu0 %v5941
  %6003 = vmatprep.subr.mxu0 0.0
  %6004 = vmatpush1.msra.mxu0 %v5946
  %6005 = vmatprep.subr.mxu0 0.0
  %6006 = vmatpush1.msra.mxu0 %v5951
  %6007 = vmatprep.subr.mxu0 0.0
  %6008 = vmatpush1.msra.mxu0 %v5956
  %6009 = vmatprep.subr.mxu0 0.0
  %6010 = vmatpush1.msra.mxu0 %v5961
  %6011 = vmatprep.subr.mxu0 0.0
  %6012 = vmatpush1.msra.mxu0 %v5966
  %6013 = vmatprep.subr.mxu0 0.0
  %6014 = vmatpush1.msra.mxu0 %v5971
  %6015 = vmatprep.subr.mxu0 0.0
  %6016 = vmatpush1.msra.mxu0 %v5976
  %6017 = vmatprep.subr.mxu0 0.0
  %6018 = vmatpush1.msra.mxu0 %v5981
  %6019 = vmatprep.subr.mxu0 0.0
  %6020 = vmatpush1.msra.mxu0 %v5986
  %6021 = vmatprep.subr.mxu0 0.0
  %6022 = vmatpush1.msra.mxu0 0.0
  %6023 = vmatprep.subr.mxu0 0.0
  %6024 = vmatpush1.msra.mxu0 0.0
  %6025 = vmatprep.subr.mxu0 0.0
  %6026 = vmatpush1.msra.mxu0 0.0
  %6027 = vmatprep.subr.mxu0 0.0
  %6028 = vmatpush1.msra.mxu0 0.0
  %6029 = vmatprep.subr.mxu0 0.0
  %6030 = vmatpush1.msra.mxu0 0.0
  %6031 = vmatprep.subr.mxu0 0.0
  %6032 = vmatpush1.msra.mxu0 0.0
  %6033 = vmatprep.subr.mxu0 0.0
  %6034 = vmatpush1.msra.mxu0 0.0
  %6035 = vmatprep.subr.mxu0 0.0
  %6036 = vmatpush1.msra.mxu0 0.0
  %6037 = vmatprep.subr.mxu0 0.0
  %6038 = vmatpush1.msra.mxu0 0.0
  %6039 = vmatprep.subr.mxu0 0.0
  %6040 = vmatpush1.msra.mxu0 0.0
  %6041 = vmatprep.subr.mxu0 0.0
  %6042 = vmatpush1.msra.mxu0 0.0
  %6043 = vmatprep.subr.mxu0 0.0
  %6044 = vmatpush1.msra.mxu0 0.0
  %6045 = vmatprep.subr.mxu0 0.0
  %6046 = vmatpush1.msra.mxu0 0.0
  %6047 = vmatprep.subr.mxu0 0.0
  %6048 = vmatpush1.msra.mxu0 0.0
  %6049 = vmatprep.subr.mxu0 0.0
  %6050 = vmatpush1.msra.mxu0 0.0
  %6051 = vmatprep.subr.mxu0 0.0
  %6052 = vmatpush1.msra.mxu0 0.0
  %6053 = vmatprep.mubr.f32.mxu0 0.0
  %6054 = vmatmul.mubr.f32.gmra.mrb[0].mxu0 %v5812
  %v6055 = vpop.f32.mrb[0].mxu0
  %v6056 = vadd.f32 0.0, %v6055
  %v6057 = vpop.f32.mrb[0].mxu0
  %6058 = vmatprep.mubr.f32.mxu0 0.0
  %6059 = vmatmul.mubr.f32.gmra.mrb[0].mxu0 %v5813
  %v6060 = vpop.f32.mrb[0].mxu0
  %v6061 = vadd.f32 0.0, %v6060
  %v6062 = vpop.f32.mrb[0].mxu0
  %6063 = vmatprep.mubr.f32.mxu0 0.0
  %6064 = vmatmul.mubr.f32.gmra.mrb[0].mxu0 %v5814
  %v6065 = vpop.f32.mrb[0].mxu0
  %v6066 = vadd.f32 0.0, %v6065
  %v6067 = vpop.f32.mrb[0].mxu0
  %6068 = vmatprep.mubr.f32.mxu0 0.0
  %6069 = vmatmul.mubr.f32.gmra.mrb[0].mxu0 %v5815
  %v6070 = vpop.f32.mrb[0].mxu0
  %v6071 = vadd.f32 0.0, %v6070
  %v6072 = vpop.f32.mrb[0].mxu0
  %6073 = vmatprep.mubr.f32.mxu0 0.0
  %6074 = vmatmul.mubr.f32.gmra.mrb[0].mxu0 %v5816
  %v6075 = vpop.f32.mrb[0].mxu0
  %v6076 = vadd.f32 0.0, %v6075
  %v6077 = vpop.f32.mrb[0].mxu0
  %6078 = vmatprep.mubr.f32.mxu0 0.0
  %6079 = vmatmul.mubr.f32.gmra.mrb[0].mxu0 %v5817
  %v6080 = vpop.f32.mrb[0].mxu0
  %v6081 = vadd.f32 0.0, %v6080
  %v6082 = vpop.f32.mrb[0].mxu0
  %6083 = vmatprep.mubr.f32.mxu0 0.0
  %6084 = vmatmul.mubr.f32.gmra.mrb[0].mxu0 %v5818
  %v6085 = vpop.f32.mrb[0].mxu0
  %v6086 = vadd.f32 0.0, %v6085
  %v6087 = vpop.f32.mrb[0].mxu0
  %6088 = vmatprep.mubr.f32.mxu0 0.0
  %6089 = vmatmul.mubr.f32.gmra.mrb[0].mxu0 %v5819
  %v6090 = vpop.f32.mrb[0].mxu0
  %v6091 = vadd.f32 0.0, %v6090
  %v6092 = vpop.f32.mrb[0].mxu0
  %6093 = vmatprep.mubr.f32.mxu0 0.0
  %6094 = vmatmul.mubr.f32.gmra.mrb[0].mxu0 %v5820
  %v6095 = vpop.f32.mrb[0].mxu0
  %v6096 = vadd.f32 0.0, %v6095
  %v6097 = vpop.f32.mrb[0].mxu0
  %6098 = vmatprep.mubr.f32.mxu0 0.0
  %6099 = vmatmul.mubr.f32.gmra.mrb[0].mxu0 %v5821
  %v6100 = vpop.f32.mrb[0].mxu0
  %v6101 = vadd.f32 0.0, %v6100
  %v6102 = vpop.f32.mrb[0].mxu0
  %6103 = vmatprep.mubr.f32.mxu0 0.0
  %6104 = vmatmul.mubr.f32.gmra.mrb[0].mxu0 %v5822
  %v6105 = vpop.f32.mrb[0].mxu0
  %v6106 = vadd.f32 0.0, %v6105
  %v6107 = vpop.f32.mrb[0].mxu0
  %6108 = vmatprep.mubr.f32.mxu0 0.0
  %6109 = vmatmul.mubr.f32.gmra.mrb[0].mxu0 %v5823
  %v6110 = vpop.f32.mrb[0].mxu0
  %v6111 = vadd.f32 0.0, %v6110
  %v6112 = vpop.f32.mrb[0].mxu0
  %6113 = vmatprep.mubr.f32.mxu0 0.0
  %6114 = vmatmul.mubr.f32.gmra.mrb[0].mxu0 %v5824
  %v6115 = vpop.f32.mrb[0].mxu0
  %v6116 = vadd.f32 0.0, %v6115
  %v6117 = vpop.f32.mrb[0].mxu0
  %6118 = vmatprep.mubr.f32.mxu0 0.0
  %6119 = vmatmul.mubr.f32.gmra.mrb[0].mxu0 %v5825
  %v6120 = vpop.f32.mrb[0].mxu0
  %v6121 = vadd.f32 0.0, %v6120
  %v6122 = vpop.f32.mrb[0].mxu0
  %6123 = vmatprep.mubr.f32.mxu0 0.0
  %6124 = vmatmul.mubr.f32.gmra.mrb[0].mxu0 %v5826
  %v6125 = vpop.f32.mrb[0].mxu0
  %v6126 = vadd.f32 0.0, %v6125
  %v6127 = vpop.f32.mrb[0].mxu0
  %6128 = vmatprep.mubr.f32.mxu0 0.0
  %6129 = vmatmul.mubr.f32.gmra.mrb[0].mxu0 %v5827
  %v6130 = vpop.f32.mrb[0].mxu0
  %v6131 = vadd.f32 0.0, %v6130
  %v6132 = vpop.f32.mrb[0].mxu0
  %6133 = vdwg.mxu0
  %v6134 = vmul.f32 %v5750, %v5750
  %v6135 = vmul.f32 %v5753, %v5753
  %v6136 = vmul.f32 %v5758, %v5758
  %v6137 = vmul.f32 %v5761, %v5761
  %v6138 = vmul.f32 %v5766, %v5766
  %v6139 = vmul.f32 %v5769, %v5769
  %v6140 = vmul.f32 %v5774, %v5774
  %v6141 = vmul.f32 %v5777, %v5777
  %v6142 = vmul.f32 %v5782, %v5782
  %v6143 = vmul.f32 %v5785, %v5785
  %v6144 = vmul.f32 %v5790, %v5790
  %v6145 = vmul.f32 %v5793, %v5793
  %v6146 = vmul.f32 %v5798, %v5798
  %v6147 = vmul.f32 %v5801, %v5801
  %v6148 = vmul.f32 %v5806, %v5806
  %v6149 = vmul.f32 %v5809, %v5809
  %6150 = vmatprep.subr.mxu0 0.0
  %6151 = vmatpush1.msra.mxu0 %v5828
  %6152 = vmatprep.subr.mxu0 0.0
  %6153 = vmatpush1.msra.mxu0 %v5829
  %6154 = vmatprep.subr.mxu0 0.0
  %6155 = vmatpush1.msra.mxu0 %v5830
  %6156 = vmatprep.subr.mxu0 0.0
  %6157 = vmatpush1.msra.mxu0 %v5831
  %6158 = vmatprep.subr.mxu0 0.0
  %6159 = vmatpush1.msra.mxu0 %v5832
  %6160 = vmatprep.subr.mxu0 0.0
  %6161 = vmatpush1.msra.mxu0 %v5833
  %6162 = vmatprep.subr.mxu0 0.0
  %6163 = vmatpush1.msra.mxu0 %v5834
  %6164 = vmatprep.subr.mxu0 0.0
  %6165 = vmatpush1.msra.mxu0 %v5835
  %6166 = vmatprep.subr.mxu0 0.0
  %6167 = vmatpush1.msra.mxu0 %v5836
  %6168 = vmatprep.subr.mxu0 0.0
  %6169 = vmatpush1.msra.mxu0 %v5837
  %6170 = vmatprep.subr.mxu0 0.0
  %6171 = vmatpush1.msra.mxu0 %v5838
  %6172 = vmatprep.subr.mxu0 0.0
  %6173 = vmatpush1.msra.mxu0 %v5839
  %6174 = vmatprep.subr.mxu0 0.0
  %6175 = vmatpush1.msra.mxu0 %v5840
  %6176 = vmatprep.subr.mxu0 0.0
  %6177 = vmatpush1.msra.mxu0 %v5841
  %6178 = vmatprep.subr.mxu0 0.0
  %6179 = vmatpush1.msra.mxu0 %v5842
  %6180 = vmatprep.subr.mxu0 0.0
  %6181 = vmatpush1.msra.mxu0 %v5843
  %6182 = vmatprep.subr.mxu0 0.0
  %6183 = vmatpush1.msra.mxu0 0.0
  %6184 = vmatprep.subr.mxu0 0.0
  %6185 = vmatpush1.msra.mxu0 0.0
  %6186 = vmatprep.subr.mxu0 0.0
  %6187 = vmatpush1.msra.mxu0 0.0
  %6188 = vmatprep.subr.mxu0 0.0
  %6189 = vmatpush1.msra.mxu0 0.0
  %6190 = vmatprep.subr.mxu0 0.0
  %6191 = vmatpush1.msra.mxu0 0.0
  %6192 = vmatprep.subr.mxu0 0.0
  %6193 = vmatpush1.msra.mxu0 0.0
  %6194 = vmatprep.subr.mxu0 0.0
  %6195 = vmatpush1.msra.mxu0 0.0
  %6196 = vmatprep.subr.mxu0 0.0
  %6197 = vmatpush1.msra.mxu0 0.0
  %6198 = vmatprep.subr.mxu0 0.0
  %6199 = vmatpush1.msra.mxu0 0.0
  %6200 = vmatprep.subr.mxu0 0.0
  %6201 = vmatpush1.msra.mxu0 0.0
  %6202 = vmatprep.subr.mxu0 0.0
  %6203 = vmatpush1.msra.mxu0 0.0
  %6204 = vmatprep.subr.mxu0 0.0
  %6205 = vmatpush1.msra.mxu0 0.0
  %6206 = vmatprep.subr.mxu0 0.0
  %6207 = vmatpush1.msra.mxu0 0.0
  %6208 = vmatprep.subr.mxu0 0.0
  %6209 = vmatpush1.msra.mxu0 0.0
  %6210 = vmatprep.subr.mxu0 0.0
  %6211 = vmatpush1.msra.mxu0 0.0
  %6212 = vmatprep.subr.mxu0 0.0
  %6213 = vmatpush1.msra.mxu0 0.0
  %6214 = vmatprep.mubr.f32.mxu0 0.0
  %6215 = vmatmul.mubr.f32.gmra.mrb[0].mxu0 %v6134
  %v6216 = vpop.f32.mrb[0].mxu0
  %v6217 = vadd.f32 0.0, %v6216
  %v6218 = vpop.f32.mrb[0].mxu0
  %6219 = vmatprep.mubr.f32.mxu0 0.0
  %6220 = vmatmul.mubr.f32.gmra.mrb[0].mxu0 %v6135
  %v6221 = vpop.f32.mrb[0].mxu0
  %v6222 = vadd.f32 0.0, %v6221
  %v6223 = vpop.f32.mrb[0].mxu0
  %6224 = vmatprep.mubr.f32.mxu0 0.0
  %6225 = vmatmul.mubr.f32.gmra.mrb[0].mxu0 %v6136
  %v6226 = vpop.f32.mrb[0].mxu0
  %v6227 = vadd.f32 0.0, %v6226
  %v6228 = vpop.f32.mrb[0].mxu0
  %6229 = vmatprep.mubr.f32.mxu0 0.0
  %6230 = vmatmul.mubr.f32.gmra.mrb[0].mxu0 %v6137
  %v6231 = vpop.f32.mrb[0].mxu0
  %v6232 = vadd.f32 0.0, %v6231
  %v6233 = vpop.f32.mrb[0].mxu0
  %6234 = vmatprep.mubr.f32.mxu0 0.0
  %6235 = vmatmul.mubr.f32.gmra.mrb[0].mxu0 %v6138
  %v6236 = vpop.f32.mrb[0].mxu0
  %v6237 = vadd.f32 0.0, %v6236
  %v6238 = vpop.f32.mrb[0].mxu0
  %6239 = vmatprep.mubr.f32.mxu0 0.0
  %6240 = vmatmul.mubr.f32.gmra.mrb[0].mxu0 %v6139
  %v6241 = vpop.f32.mrb[0].mxu0
  %v6242 = vadd.f32 0.0, %v6241
  %v6243 = vpop.f32.mrb[0].mxu0
  %6244 = vmatprep.mubr.f32.mxu0 0.0
  %6245 = vmatmul.mubr.f32.gmra.mrb[0].mxu0 %v6140
  %v6246 = vpop.f32.mrb[0].mxu0
  %v6247 = vadd.f32 0.0, %v6246
  %v6248 = vpop.f32.mrb[0].mxu0
  %6249 = vmatprep.mubr.f32.mxu0 0.0
  %6250 = vmatmul.mubr.f32.gmra.mrb[0].mxu0 %v6141
  %v6251 = vpop.f32.mrb[0].mxu0
  %v6252 = vadd.f32 0.0, %v6251
  %v6253 = vpop.f32.mrb[0].mxu0
  %6254 = vmatprep.mubr.f32.mxu0 0.0
  %6255 = vmatmul.mubr.f32.gmra.mrb[0].mxu0 %v6142
  %v6256 = vpop.f32.mrb[0].mxu0
  %v6257 = vadd.f32 0.0, %v6256
  %v6258 = vpop.f32.mrb[0].mxu0
  %6259 = vmatprep.mubr.f32.mxu0 0.0
  %6260 = vmatmul.mubr.f32.gmra.mrb[0].mxu0 %v6143
  %v6261 = vpop.f32.mrb[0].mxu0
  %v6262 = vadd.f32 0.0, %v6261
  %v6263 = vpop.f32.mrb[0].mxu0
  %6264 = vmatprep.mubr.f32.mxu0 0.0
  %6265 = vmatmul.mubr.f32.gmra.mrb[0].mxu0 %v6144
  %v6266 = vpop.f32.mrb[0].mxu0
  %v6267 = vadd.f32 0.0, %v6266
  %v6268 = vpop.f32.mrb[0].mxu0
  %6269 = vmatprep.mubr.f32.mxu0 0.0
  %6270 = vmatmul.mubr.f32.gmra.mrb[0].mxu0 %v6145
  %v6271 = vpop.f32.mrb[0].mxu0
  %v6272 = vadd.f32 0.0, %v6271
  %v6273 = vpop.f32.mrb[0].mxu0
  %6274 = vmatprep.mubr.f32.mxu0 0.0
  %6275 = vmatmul.mubr.f32.gmra.mrb[0].mxu0 %v6146
  %v6276 = vpop.f32.mrb[0].mxu0
  %v6277 = vadd.f32 0.0, %v6276
  %v6278 = vpop.f32.mrb[0].mxu0
  %6279 = vmatprep.mubr.f32.mxu0 0.0
  %6280 = vmatmul.mubr.f32.gmra.mrb[0].mxu0 %v6147
  %v6281 = vpop.f32.mrb[0].mxu0
  %v6282 = vadd.f32 0.0, %v6281
  %v6283 = vpop.f32.mrb[0].mxu0
  %6284 = vmatprep.mubr.f32.mxu0 0.0
  %6285 = vmatmul.mubr.f32.gmra.mrb[0].mxu0 %v6148
  %v6286 = vpop.f32.mrb[0].mxu0
  %v6287 = vadd.f32 0.0, %v6286
  %v6288 = vpop.f32.mrb[0].mxu0
  %6289 = vmatprep.mubr.f32.mxu0 0.0
  %6290 = vmatmul.mubr.f32.gmra.mrb[0].mxu0 %v6149
  %v6291 = vpop.f32.mrb[0].mxu0
  %v6292 = vadd.f32 0.0, %v6291
  %v6293 = vpop.f32.mrb[0].mxu0
  %6294 = vdwg.mxu0
  %6295 = vmatprep.subr.mxu0 0.0
  %6296 = vmatpush1.msra.mxu0 %v6217
  %6297 = vmatprep.subr.mxu0 0.0
  %6298 = vmatpush1.msra.mxu0 %v6222
  %6299 = vmatprep.subr.mxu0 0.0
  %6300 = vmatpush1.msra.mxu0 %v6227
  %6301 = vmatprep.subr.mxu0 0.0
  %6302 = vmatpush1.msra.mxu0 %v6232
  %6303 = vmatprep.subr.mxu0 0.0
  %6304 = vmatpush1.msra.mxu0 %v6237
  %6305 = vmatprep.subr.mxu0 0.0
  %6306 = vmatpush1.msra.mxu0 %v6242
  %6307 = vmatprep.subr.mxu0 0.0
  %6308 = vmatpush1.msra.mxu0 %v6247
  %6309 = vmatprep.subr.mxu0 0.0
  %6310 = vmatpush1.msra.mxu0 %v6252
  %6311 = vmatprep.subr.mxu0 0.0
  %6312 = vmatpush1.msra.mxu0 %v6257
  %6313 = vmatprep.subr.mxu0 0.0
  %6314 = vmatpush1.msra.mxu0 %v6262
  %6315 = vmatprep.subr.mxu0 0.0
  %6316 = vmatpush1.msra.mxu0 %v6267
  %6317 = vmatprep.subr.mxu0 0.0
  %6318 = vmatpush1.msra.mxu0 %v6272
  %6319 = vmatprep.subr.mxu0 0.0
  %6320 = vmatpush1.msra.mxu0 %v6277
  %6321 = vmatprep.subr.mxu0 0.0
  %6322 = vmatpush1.msra.mxu0 %v6282
  %6323 = vmatprep.subr.mxu0 0.0
  %6324 = vmatpush1.msra.mxu0 %v6287
  %6325 = vmatprep.subr.mxu0 0.0
  %6326 = vmatpush1.msra.mxu0 %v6292
  %6327 = vmatprep.subr.mxu0 0.0
  %6328 = vmatpush1.msra.mxu0 0.0
  %6329 = vmatprep.subr.mxu0 0.0
  %6330 = vmatpush1.msra.mxu0 0.0
  %6331 = vmatprep.subr.mxu0 0.0
  %6332 = vmatpush1.msra.mxu0 0.0
  %6333 = vmatprep.subr.mxu0 0.0
  %6334 = vmatpush1.msra.mxu0 0.0
  %6335 = vmatprep.subr.mxu0 0.0
  %6336 = vmatpush1.msra.mxu0 0.0
  %6337 = vmatprep.subr.mxu0 0.0
  %6338 = vmatpush1.msra.mxu0 0.0
  %6339 = vmatprep.subr.mxu0 0.0
  %6340 = vmatpush1.msra.mxu0 0.0
  %6341 = vmatprep.subr.mxu0 0.0
  %6342 = vmatpush1.msra.mxu0 0.0
  %6343 = vmatprep.subr.mxu0 0.0
  %6344 = vmatpush1.msra.mxu0 0.0
  %6345 = vmatprep.subr.mxu0 0.0
  %6346 = vmatpush1.msra.mxu0 0.0
  %6347 = vmatprep.subr.mxu0 0.0
  %6348 = vmatpush1.msra.mxu0 0.0
  %6349 = vmatprep.subr.mxu0 0.0
  %6350 = vmatpush1.msra.mxu0 0.0
  %6351 = vmatprep.subr.mxu0 0.0
  %6352 = vmatpush1.msra.mxu0 0.0
  %6353 = vmatprep.subr.mxu0 0.0
  %6354 = vmatpush1.msra.mxu0 0.0
  %6355 = vmatprep.subr.mxu0 0.0
  %6356 = vmatpush1.msra.mxu0 0.0
  %6357 = vmatprep.subr.mxu0 0.0
  %6358 = vmatpush1.msra.mxu0 0.0
  %6359 = vmatprep.mubr.f32.mxu0 0.0
  %6360 = vmatmul.mubr.f32.gmra.mrb[0].mxu0 %v5812
  %v6361 = vpop.f32.mrb[0].mxu0
  %v6362 = vadd.f32 0.0, %v6361
  %v6363 = vpop.f32.mrb[0].mxu0
  %6364 = vmatprep.mubr.f32.mxu0 0.0
  %6365 = vmatmul.mubr.f32.gmra.mrb[0].mxu0 %v5813
  %v6366 = vpop.f32.mrb[0].mxu0
  %v6367 = vadd.f32 0.0, %v6366
  %v6368 = vpop.f32.mrb[0].mxu0
  %6369 = vmatprep.mubr.f32.mxu0 0.0
  %6370 = vmatmul.mubr.f32.gmra.mrb[0].mxu0 %v5814
  %v6371 = vpop.f32.mrb[0].mxu0
  %v6372 = vadd.f32 0.0, %v6371
  %v6373 = vpop.f32.mrb[0].mxu0
  %6374 = vmatprep.mubr.f32.mxu0 0.0
  %6375 = vmatmul.mubr.f32.gmra.mrb[0].mxu0 %v5815
  %v6376 = vpop.f32.mrb[0].mxu0
  %v6377 = vadd.f32 0.0, %v6376
  %v6378 = vpop.f32.mrb[0].mxu0
  %6379 = vmatprep.mubr.f32.mxu0 0.0
  %6380 = vmatmul.mubr.f32.gmra.mrb[0].mxu0 %v5816
  %v6381 = vpop.f32.mrb[0].mxu0
  %v6382 = vadd.f32 0.0, %v6381
  %v6383 = vpop.f32.mrb[0].mxu0
  %6384 = vmatprep.mubr.f32.mxu0 0.0
  %6385 = vmatmul.mubr.f32.gmra.mrb[0].mxu0 %v5817
  %v6386 = vpop.f32.mrb[0].mxu0
  %v6387 = vadd.f32 0.0, %v6386
  %v6388 = vpop.f32.mrb[0].mxu0
  %6389 = vmatprep.mubr.f32.mxu0 0.0
  %6390 = vmatmul.mubr.f32.gmra.mrb[0].mxu0 %v5818
  %v6391 = vpop.f32.mrb[0].mxu0
  %v6392 = vadd.f32 0.0, %v6391
  %v6393 = vpop.f32.mrb[0].mxu0
  %6394 = vmatprep.mubr.f32.mxu0 0.0
  %6395 = vmatmul.mubr.f32.gmra.mrb[0].mxu0 %v5819
  %v6396 = vpop.f32.mrb[0].mxu0
  %v6397 = vadd.f32 0.0, %v6396
  %v6398 = vpop.f32.mrb[0].mxu0
  %6399 = vmatprep.mubr.f32.mxu0 0.0
  %6400 = vmatmul.mubr.f32.gmra.mrb[0].mxu0 %v5820
  %v6401 = vpop.f32.mrb[0].mxu0
  %v6402 = vadd.f32 0.0, %v6401
  %v6403 = vpop.f32.mrb[0].mxu0
  %6404 = vmatprep.mubr.f32.mxu0 0.0
  %6405 = vmatmul.mubr.f32.gmra.mrb[0].mxu0 %v5821
  %v6406 = vpop.f32.mrb[0].mxu0
  %v6407 = vadd.f32 0.0, %v6406
  %v6408 = vpop.f32.mrb[0].mxu0
  %6409 = vmatprep.mubr.f32.mxu0 0.0
  %6410 = vmatmul.mubr.f32.gmra.mrb[0].mxu0 %v5822
  %v6411 = vpop.f32.mrb[0].mxu0
  %v6412 = vadd.f32 0.0, %v6411
  %v6413 = vpop.f32.mrb[0].mxu0
  %6414 = vmatprep.mubr.f32.mxu0 0.0
  %6415 = vmatmul.mubr.f32.gmra.mrb[0].mxu0 %v5823
  %v6416 = vpop.f32.mrb[0].mxu0
  %v6417 = vadd.f32 0.0, %v6416
  %v6418 = vpop.f32.mrb[0].mxu0
  %6419 = vmatprep.mubr.f32.mxu0 0.0
  %6420 = vmatmul.mubr.f32.gmra.mrb[0].mxu0 %v5824
  %v6421 = vpop.f32.mrb[0].mxu0
  %v6422 = vadd.f32 0.0, %v6421
  %v6423 = vpop.f32.mrb[0].mxu0
  %6424 = vmatprep.mubr.f32.mxu0 0.0
  %6425 = vmatmul.mubr.f32.gmra.mrb[0].mxu0 %v5825
  %v6426 = vpop.f32.mrb[0].mxu0
  %v6427 = vadd.f32 0.0, %v6426
  %v6428 = vpop.f32.mrb[0].mxu0
  %6429 = vmatprep.mubr.f32.mxu0 0.0
  %6430 = vmatmul.mubr.f32.gmra.mrb[0].mxu0 %v5826
  %v6431 = vpop.f32.mrb[0].mxu0
  %v6432 = vadd.f32 0.0, %v6431
  %v6433 = vpop.f32.mrb[0].mxu0
  %6434 = vmatprep.mubr.f32.mxu0 0.0
  %6435 = vmatmul.mubr.f32.gmra.mrb[0].mxu0 %v5827
  %v6436 = vpop.f32.mrb[0].mxu0
  %v6437 = vadd.f32 0.0, %v6436
  %v6438 = vpop.f32.mrb[0].mxu0
  %6439 = vdwg.mxu0
  %v6440 = vmul.f32 %v6056, 0.00390625
  %v6441 = vmul.f32 %v6061, 0.00390625
  %v6442 = vmul.f32 %v6066, 0.00390625
  %v6443 = vmul.f32 %v6071, 0.00390625
  %v6444 = vmul.f32 %v6076, 0.00390625
  %v6445 = vmul.f32 %v6081, 0.00390625
  %v6446 = vmul.f32 %v6086, 0.00390625
  %v6447 = vmul.f32 %v6091, 0.00390625
  %v6448 = vmul.f32 %v6096, 0.00390625
  %v6449 = vmul.f32 %v6101, 0.00390625
  %v6450 = vmul.f32 %v6106, 0.00390625
  %v6451 = vmul.f32 %v6111, 0.00390625
  %v6452 = vmul.f32 %v6116, 0.00390625
  %v6453 = vmul.f32 %v6121, 0.00390625
  %v6454 = vmul.f32 %v6126, 0.00390625
  %v6455 = vmul.f32 %v6131, 0.00390625
  %v6456 = vmul.f32 %v6362, 0.00390625
  %v6457 = vmul.f32 %v6367, 0.00390625
  %v6458 = vmul.f32 %v6372, 0.00390625
  %v6459 = vmul.f32 %v6377, 0.00390625
  %v6460 = vmul.f32 %v6382, 0.00390625
  %v6461 = vmul.f32 %v6387, 0.00390625
  %v6462 = vmul.f32 %v6392, 0.00390625
  %v6463 = vmul.f32 %v6397, 0.00390625
  %v6464 = vmul.f32 %v6402, 0.00390625
  %v6465 = vmul.f32 %v6407, 0.00390625
  %v6466 = vmul.f32 %v6412, 0.00390625
  %v6467 = vmul.f32 %v6417, 0.00390625
  %v6468 = vmul.f32 %v6422, 0.00390625
  %v6469 = vmul.f32 %v6427, 0.00390625
  %v6470 = vmul.f32 %v6432, 0.00390625
  %v6471 = vmul.f32 %v6437, 0.00390625
  %v6472 = vmul.f32 %v6440, %v6440
  %v6473 = vmul.f32 %v6441, %v6441
  %v6474 = vmul.f32 %v6442, %v6442
  %v6475 = vmul.f32 %v6443, %v6443
  %v6476 = vmul.f32 %v6444, %v6444
  %v6477 = vmul.f32 %v6445, %v6445
  %v6478 = vmul.f32 %v6446, %v6446
  %v6479 = vmul.f32 %v6447, %v6447
  %v6480 = vmul.f32 %v6448, %v6448
  %v6481 = vmul.f32 %v6449, %v6449
  %v6482 = vmul.f32 %v6450, %v6450
  %v6483 = vmul.f32 %v6451, %v6451
  %v6484 = vmul.f32 %v6452, %v6452
  %v6485 = vmul.f32 %v6453, %v6453
  %v6486 = vmul.f32 %v6454, %v6454
  %v6487 = vmul.f32 %v6455, %v6455
  %v6488 = vsub.f32 %v6456, %v6472
  %v6489 = vsub.f32 %v6457, %v6473
  %v6490 = vsub.f32 %v6458, %v6474
  %v6491 = vsub.f32 %v6459, %v6475
  %v6492 = vsub.f32 %v6460, %v6476
  %v6493 = vsub.f32 %v6461, %v6477
  %v6494 = vsub.f32 %v6462, %v6478
  %v6495 = vsub.f32 %v6463, %v6479
  %v6496 = vsub.f32 %v6464, %v6480
  %v6497 = vsub.f32 %v6465, %v6481
  %v6498 = vsub.f32 %v6466, %v6482
  %v6499 = vsub.f32 %v6467, %v6483
  %v6500 = vsub.f32 %v6468, %v6484
  %v6501 = vsub.f32 %v6469, %v6485
  %v6502 = vsub.f32 %v6470, %v6486
  %v6503 = vsub.f32 %v6471, %v6487
  %v6504 = vmax.f32 %v6488, 0.0
  %v6505 = vmax.f32 %v6489, 0.0
  %v6506 = vmax.f32 %v6490, 0.0
  %v6507 = vmax.f32 %v6491, 0.0
  %v6508 = vmax.f32 %v6492, 0.0
  %v6509 = vmax.f32 %v6493, 0.0
  %v6510 = vmax.f32 %v6494, 0.0
  %v6511 = vmax.f32 %v6495, 0.0
  %v6512 = vmax.f32 %v6496, 0.0
  %v6513 = vmax.f32 %v6497, 0.0
  %v6514 = vmax.f32 %v6498, 0.0
  %v6515 = vmax.f32 %v6499, 0.0
  %v6516 = vmax.f32 %v6500, 0.0
  %v6517 = vmax.f32 %v6501, 0.0
  %v6518 = vmax.f32 %v6502, 0.0
  %v6519 = vmax.f32 %v6503, 0.0
  %v6520 = vsub.f32 %v5750, %v6440
  %v6521 = vsub.f32 %v5753, %v6441
  %v6522 = vsub.f32 %v5758, %v6442
  %v6523 = vsub.f32 %v5761, %v6443
  %v6524 = vsub.f32 %v5766, %v6444
  %v6525 = vsub.f32 %v5769, %v6445
  %v6526 = vsub.f32 %v5774, %v6446
  %v6527 = vsub.f32 %v5777, %v6447
  %v6528 = vsub.f32 %v5782, %v6448
  %v6529 = vsub.f32 %v5785, %v6449
  %v6530 = vsub.f32 %v5790, %v6450
  %v6531 = vsub.f32 %v5793, %v6451
  %v6532 = vsub.f32 %v5798, %v6452
  %v6533 = vsub.f32 %v5801, %v6453
  %v6534 = vsub.f32 %v5806, %v6454
  %v6535 = vsub.f32 %v5809, %v6455
  %v6536 = vadd.f32 %v6504, 1e-05
  %v6537 = vadd.f32 %v6505, 1e-05
  %v6538 = vadd.f32 %v6506, 1e-05
  %v6539 = vadd.f32 %v6507, 1e-05
  %v6540 = vadd.f32 %v6508, 1e-05
  %v6541 = vadd.f32 %v6509, 1e-05
  %v6542 = vadd.f32 %v6510, 1e-05
  %v6543 = vadd.f32 %v6511, 1e-05
  %v6544 = vadd.f32 %v6512, 1e-05
  %v6545 = vadd.f32 %v6513, 1e-05
  %v6546 = vadd.f32 %v6514, 1e-05
  %v6547 = vadd.f32 %v6515, 1e-05
  %v6548 = vadd.f32 %v6516, 1e-05
  %v6549 = vadd.f32 %v6517, 1e-05
  %v6550 = vadd.f32 %v6518, 1e-05
  %v6551 = vadd.f32 %v6519, 1e-05
  %v6552 = vrsqrt.pop %v6536
  %v6553 = vrsqrt.pop %v6537
  %v6554 = vrsqrt.pop %v6538
  %v6555 = vrsqrt.pop %v6539
  %v6556 = vrsqrt.pop %v6540
  %v6557 = vrsqrt.pop %v6541
  %v6558 = vrsqrt.pop %v6542
  %v6559 = vrsqrt.pop %v6543
  %v6560 = vrsqrt.pop %v6544
  %v6561 = vrsqrt.pop %v6545
  %v6562 = vrsqrt.pop %v6546
  %v6563 = vrsqrt.pop %v6547
  %v6564 = vrsqrt.pop %v6548
  %v6565 = vrsqrt.pop %v6549
  %v6566 = vrsqrt.pop %v6550
  %v6567 = vrsqrt.pop %v6551
  %v6568 = vmul.f32 %v6520, %v6552
  %v6569 = vmul.f32 %v6521, %v6553
  %v6570 = vmul.f32 %v6522, %v6554
  %v6571 = vmul.f32 %v6523, %v6555
  %v6572 = vmul.f32 %v6524, %v6556
  %v6573 = vmul.f32 %v6525, %v6557
  %v6574 = vmul.f32 %v6526, %v6558
  %v6575 = vmul.f32 %v6527, %v6559
  %v6576 = vmul.f32 %v6528, %v6560
  %v6577 = vmul.f32 %v6529, %v6561
  %v6578 = vmul.f32 %v6530, %v6562
  %v6579 = vmul.f32 %v6531, %v6563
  %v6580 = vmul.f32 %v6532, %v6564
  %v6581 = vmul.f32 %v6533, %v6565
  %v6582 = vmul.f32 %v6534, %v6566
  %v6583 = vmul.f32 %v6535, %v6567
  %v6584 = vld [vmem:[%s3] sm:$0x1]
  %v6586 = vlaneseq
  %v6587 = vshrl.u32 %v6586, 7
  %v6588 = vsub.s32 0, %v6587
  %v6589 = vrot.slane %v6584, %v6588
  %v6591 = vmul.f32 %v6568, %v6589
  %v6592 = vmul.f32 %v6569, %v6589
  %v6593 = vmul.f32 %v6570, %v6589
  %v6594 = vmul.f32 %v6571, %v6589
  %v6595 = vmul.f32 %v6572, %v6589
  %v6596 = vmul.f32 %v6573, %v6589
  %v6597 = vmul.f32 %v6574, %v6589
  %v6598 = vmul.f32 %v6575, %v6589
  %v6599 = vmul.f32 %v6576, %v6589
  %v6600 = vmul.f32 %v6577, %v6589
  %v6601 = vmul.f32 %v6578, %v6589
  %v6602 = vmul.f32 %v6579, %v6589
  %v6603 = vmul.f32 %v6580, %v6589
  %v6604 = vmul.f32 %v6581, %v6589
  %v6605 = vmul.f32 %v6582, %v6589
  %v6606 = vmul.f32 %v6583, %v6589
  %v6607 = vld [vmem:[%s4] sm:$0x1]
  %v6609 = vlaneseq
  %v6610 = vshrl.u32 %v6609, 7
  %v6611 = vsub.s32 0, %v6610
  %v6612 = vrot.slane %v6607, %v6611
  %v6614 = vadd.f32 %v6591, %v6612
  %v6615 = vadd.f32 %v6592, %v6612
  %v6616 = vadd.f32 %v6593, %v6612
  %v6617 = vadd.f32 %v6594, %v6612
  %v6618 = vadd.f32 %v6595, %v6612
  %v6619 = vadd.f32 %v6596, %v6612
  %v6620 = vadd.f32 %v6597, %v6612
  %v6621 = vadd.f32 %v6598, %v6612
  %v6622 = vadd.f32 %v6599, %v6612
  %v6623 = vadd.f32 %v6600, %v6612
  %v6624 = vadd.f32 %v6601, %v6612
  %v6625 = vadd.f32 %v6602, %v6612
  %v6626 = vadd.f32 %v6603, %v6612
  %v6627 = vadd.f32 %v6604, %v6612
  %v6628 = vadd.f32 %v6605, %v6612
  %v6629 = vadd.f32 %v6606, %v6612
  %v6630 = vmax.f32 %v6614, 0.0
  %v6631 = vmax.f32 %v6615, 0.0
  %v6632 = vmax.f32 %v6616, 0.0
  %v6633 = vmax.f32 %v6617, 0.0
  %v6634 = vmax.f32 %v6618, 0.0
  %v6635 = vmax.f32 %v6619, 0.0
  %v6636 = vmax.f32 %v6620, 0.0
  %v6637 = vmax.f32 %v6621, 0.0
  %v6638 = vmax.f32 %v6622, 0.0
  %v6639 = vmax.f32 %v6623, 0.0
  %v6640 = vmax.f32 %v6624, 0.0
  %v6641 = vmax.f32 %v6625, 0.0
  %v6642 = vmax.f32 %v6626, 0.0
  %v6643 = vmax.f32 %v6627, 0.0
  %v6644 = vmax.f32 %v6628, 0.0
  %v6645 = vmax.f32 %v6629, 0.0
  %6646 = vst [vmem:[%s7] sm:$0xff] %v6630
  %6647 = vst [vmem:[%s7 + $0x8] sm:$0xff] %v6631
  %6648 = vst [vmem:[%s7 + $0x10] sm:$0xff] %v6632
  %6649 = vst [vmem:[%s7 + $0x18] sm:$0xff] %v6633
  %6650 = vst [vmem:[%s7 + $0x20] sm:$0xff] %v6634
  %6651 = vst [vmem:[%s7 + $0x28] sm:$0xff] %v6635
  %6652 = vst [vmem:[%s7 + $0x30] sm:$0xff] %v6636
  %6653 = vst [vmem:[%s7 + $0x38] sm:$0xff] %v6637
  %6654 = vst [vmem:[%s7 + $0x40] sm:$0xff] %v6638
  %6655 = vst [vmem:[%s7 + $0x48] sm:$0xff] %v6639
  %6656 = vst [vmem:[%s7 + $0x50] sm:$0xff] %v6640
  %6657 = vst [vmem:[%s7 + $0x58] sm:$0xff] %v6641
  %6658 = vst [vmem:[%s7 + $0x60] sm:$0xff] %v6642
  %6659 = vst [vmem:[%s7 + $0x68] sm:$0xff] %v6643
  %6660 = vst [vmem:[%s7 + $0x70] sm:$0xff] %v6644
  %6661 = vst [vmem:[%s7 + $0x78] sm:$0xff] %v6645
  // Predicated region
  $region30: #{fushion_forward.5} parent=0 // pred_check
    _
  $region31: #{fushion_forward.5} parent=0 // pred_check_branch
    %6663 = sbr.rel (0) target = $region33
  $region32: #{fushion_forward.5} parent=0 // pred_region
    _
  $region33: #{fushion_forward.5} parent=0 // pred_fallthru
    _
  // Predicated region
  $region34: #{fushion_forward.5} parent=0 // pred_check
    _
  $region35: #{fushion_forward.5} parent=0 // pred_check_branch
    %6665 = sbr.rel (0) target = $region37
  $region36: #{fushion_forward.5} parent=0 // pred_region
    _
  $region37: #{fushion_forward.5} parent=0 // pred_fallthru
    _

// kernel: fushion_forward.6
$region0: #{fushion_forward.6}
  #allocation0 [shape = 'u32[]', space=smem, size = 0x4, offset = 0x4, fixed_abs, tag = 'smem constant byte address 0x4 - core index']
  #allocation1 [shape = 'u32[144,128]{1,0:T(1,128)}', space=vmem, size = 0x12000, scoped, tag = 'internal scratch']
  %s0 = inlined_call_operand.vmem [shape: f32[32,256], index: 0, kind: input, shape index: {}]
  %s1 = inlined_call_operand.vmem [shape: f32[256,256], index: 1, kind: input, shape index: {}]
  %s2 = inlined_call_operand.vmem [shape: f32[256,256], index: 2, kind: input, shape index: {}]
  %s3 = inlined_call_operand.vmem [shape: f32[1,256], index: 3, kind: input, shape index: {}]
  %s4 = inlined_call_operand.vmem [shape: f32[1,256], index: 4, kind: input, shape index: {}]
  %s5 = inlined_call_operand.vmem [shape: f32[32,256], index: 5, kind: output, shape index: {}]
  %s6 = sld [smem:[#allocation0]]
  $region30: #{fushion_forward.6} parent=0
    _
  %s8 = ssub.s32 1, %s6
  %s9 = scalar_select 0, %s8, %s6
  // Predicated region
  $region2: #{fushion_forward.6} parent=0 // pred_check
    _
  $region3: #{fushion_forward.6} parent=0 // pred_check_branch
    %11 = sbr.rel (0) target = $region5
  $region4: #{fushion_forward.6} parent=0 // pred_region
    _
  $region5: #{fushion_forward.6} parent=0 // pred_fallthru
    _
  // Predicated region
  $region6: #{fushion_forward.6} parent=0 // pred_check
    _
  $region7: #{fushion_forward.6} parent=0 // pred_check_branch
    %13 = sbr.rel (0) target = $region9
  $region8: #{fushion_forward.6} parent=0 // pred_region
    _
  $region9: #{fushion_forward.6} parent=0 // pred_fallthru
    _
  // Predicated region
  $region10: #{fushion_forward.6} parent=0 // pred_check
    _
  $region11: #{fushion_forward.6} parent=0 // pred_check_branch
    %15 = sbr.rel (0) target = $region13
  $region12: #{fushion_forward.6} parent=0 // pred_region
    _
  $region13: #{fushion_forward.6} parent=0 // pred_fallthru
    _
  // Predicated region
  $region14: #{fushion_forward.6} parent=0 // pred_check
    _
  $region15: #{fushion_forward.6} parent=0 // pred_check_branch
    %17 = sbr.rel (0) target = $region17
  $region16: #{fushion_forward.6} parent=0 // pred_region
    _
  $region17: #{fushion_forward.6} parent=0 // pred_fallthru
    _
  // Predicated region
  $region18: #{fushion_forward.6} parent=0 // pred_check
    _
  $region19: #{fushion_forward.6} parent=0 // pred_check_branch
    %19 = sbr.rel (0) target = $region21
  $region20: #{fushion_forward.6} parent=0 // pred_region
    _
  $region21: #{fushion_forward.6} parent=0 // pred_fallthru
    _
  %v20 = vld [vmem:[%s0] sm:$0xff]
  %v21 = vld [vmem:[%s0 + $0x8] sm:$0xff]
  %v22 = vld [vmem:[%s0 + $0x10] sm:$0xff]
  %v23 = vld [vmem:[%s0 + $0x18] sm:$0xff]
  %v24 = vld [vmem:[%s0 + $0x20] sm:$0xff]
  %v25 = vld [vmem:[%s0 + $0x28] sm:$0xff]
  %v26 = vld [vmem:[%s0 + $0x30] sm:$0xff]
  %v27 = vld [vmem:[%s0 + $0x38] sm:$0xff]
  %v28 = vld [vmem:[%s1] sm:$0xff]
  %v29 = vld [vmem:[%s1 + $0x8] sm:$0xff]
  %v30 = vld [vmem:[%s1 + $0x10] sm:$0xff]
  %v31 = vld [vmem:[%s1 + $0x18] sm:$0xff]
  %v32 = vld [vmem:[%s1 + $0x20] sm:$0xff]
  %v33 = vld [vmem:[%s1 + $0x28] sm:$0xff]
  %v34 = vld [vmem:[%s1 + $0x30] sm:$0xff]
  %v35 = vld [vmem:[%s1 + $0x38] sm:$0xff]
  %v36 = vld [vmem:[%s1 + $0x40] sm:$0xff]
  %v37 = vld [vmem:[%s1 + $0x48] sm:$0xff]
  %v38 = vld [vmem:[%s1 + $0x50] sm:$0xff]
  %v39 = vld [vmem:[%s1 + $0x58] sm:$0xff]
  %v40 = vld [vmem:[%s1 + $0x60] sm:$0xff]
  %v41 = vld [vmem:[%s1 + $0x68] sm:$0xff]
  %v42 = vld [vmem:[%s1 + $0x70] sm:$0xff]
  %v43 = vld [vmem:[%s1 + $0x78] sm:$0xff]
  %v44 = vld [vmem:[%s1 + $0x80] sm:$0xff]
  %v45 = vld [vmem:[%s1 + $0x88] sm:$0xff]
  %v46 = vld [vmem:[%s1 + $0x90] sm:$0xff]
  %v47 = vld [vmem:[%s1 + $0x98] sm:$0xff]
  %v48 = vld [vmem:[%s1 + $0xa0] sm:$0xff]
  %v49 = vld [vmem:[%s1 + $0xa8] sm:$0xff]
  %v50 = vld [vmem:[%s1 + $0xb0] sm:$0xff]
  %v51 = vld [vmem:[%s1 + $0xb8] sm:$0xff]
  %v52 = vld [vmem:[%s1 + $0xc0] sm:$0xff]
  %v53 = vld [vmem:[%s1 + $0xc8] sm:$0xff]
  %v54 = vld [vmem:[%s1 + $0xd0] sm:$0xff]
  %v55 = vld [vmem:[%s1 + $0xd8] sm:$0xff]
  %v56 = vld [vmem:[%s1 + $0xe0] sm:$0xff]
  %v57 = vld [vmem:[%s1 + $0xe8] sm:$0xff]
  %v58 = vld [vmem:[%s1 + $0xf0] sm:$0xff]
  %v59 = vld [vmem:[%s1 + $0xf8] sm:$0xff]
  %v60 = vld [vmem:[%s1 + $0x100] sm:$0xff]
  %v61 = vld [vmem:[%s1 + $0x108] sm:$0xff]
  %v62 = vld [vmem:[%s1 + $0x110] sm:$0xff]
  %v63 = vld [vmem:[%s1 + $0x118] sm:$0xff]
  %v64 = vld [vmem:[%s1 + $0x120] sm:$0xff]
  %v65 = vld [vmem:[%s1 + $0x128] sm:$0xff]
  %v66 = vld [vmem:[%s1 + $0x130] sm:$0xff]
  %v67 = vld [vmem:[%s1 + $0x138] sm:$0xff]
  %v68 = vld [vmem:[%s1 + $0x140] sm:$0xff]
  %v69 = vld [vmem:[%s1 + $0x148] sm:$0xff]
  %v70 = vld [vmem:[%s1 + $0x150] sm:$0xff]
  %v71 = vld [vmem:[%s1 + $0x158] sm:$0xff]
  %v72 = vld [vmem:[%s1 + $0x160] sm:$0xff]
  %v73 = vld [vmem:[%s1 + $0x168] sm:$0xff]
  %v74 = vld [vmem:[%s1 + $0x170] sm:$0xff]
  %v75 = vld [vmem:[%s1 + $0x178] sm:$0xff]
  %v76 = vld [vmem:[%s1 + $0x180] sm:$0xff]
  %v77 = vld [vmem:[%s1 + $0x188] sm:$0xff]
  %v78 = vld [vmem:[%s1 + $0x190] sm:$0xff]
  %v79 = vld [vmem:[%s1 + $0x198] sm:$0xff]
  %v80 = vld [vmem:[%s1 + $0x1a0] sm:$0xff]
  %v81 = vld [vmem:[%s1 + $0x1a8] sm:$0xff]
  %v82 = vld [vmem:[%s1 + $0x1b0] sm:$0xff]
  %v83 = vld [vmem:[%s1 + $0x1b8] sm:$0xff]
  %v84 = vld [vmem:[%s1 + $0x1c0] sm:$0xff]
  %v85 = vld [vmem:[%s1 + $0x1c8] sm:$0xff]
  %v86 = vld [vmem:[%s1 + $0x1d0] sm:$0xff]
  %v87 = vld [vmem:[%s1 + $0x1d8] sm:$0xff]
  %v88 = vld [vmem:[%s1 + $0x1e0] sm:$0xff]
  %v89 = vld [vmem:[%s1 + $0x1e8] sm:$0xff]
  %v90 = vld [vmem:[%s1 + $0x1f0] sm:$0xff]
  %v91 = vld [vmem:[%s1 + $0x1f8] sm:$0xff]
  %92 = vmatprep.subr.mxu0 %v29
  %93 = vmatpush1.msra.mxu0 %v28
  %94 = vmatprep.subr.mxu0 %v31
  %95 = vmatpush1.msra.mxu0 %v30
  %96 = vmatprep.subr.mxu0 %v33
  %97 = vmatpush1.msra.mxu0 %v32
  %98 = vmatprep.subr.mxu0 %v35
  %99 = vmatpush1.msra.mxu0 %v34
  %100 = vmatprep.subr.mxu0 %v37
  %101 = vmatpush1.msra.mxu0 %v36
  %102 = vmatprep.subr.mxu0 %v39
  %103 = vmatpush1.msra.mxu0 %v38
  %104 = vmatprep.subr.mxu0 %v41
  %105 = vmatpush1.msra.mxu0 %v40
  %106 = vmatprep.subr.mxu0 %v43
  %107 = vmatpush1.msra.mxu0 %v42
  %108 = vmatprep.subr.mxu0 %v45
  %109 = vmatpush1.msra.mxu0 %v44
  %110 = vmatprep.subr.mxu0 %v47
  %111 = vmatpush1.msra.mxu0 %v46
  %112 = vmatprep.subr.mxu0 %v49
  %113 = vmatpush1.msra.mxu0 %v48
  %114 = vmatprep.subr.mxu0 %v51
  %115 = vmatpush1.msra.mxu0 %v50
  %116 = vmatprep.subr.mxu0 %v53
  %117 = vmatpush1.msra.mxu0 %v52
  %118 = vmatprep.subr.mxu0 %v55
  %119 = vmatpush1.msra.mxu0 %v54
  %120 = vmatprep.subr.mxu0 %v57
  %121 = vmatpush1.msra.mxu0 %v56
  %122 = vmatprep.subr.mxu0 %v59
  %123 = vmatpush1.msra.mxu0 %v58
  %124 = vmatprep.subr.mxu0 %v61
  %125 = vmatpush1.msra.mxu0 %v60
  %126 = vmatprep.subr.mxu0 %v63
  %127 = vmatpush1.msra.mxu0 %v62
  %128 = vmatprep.subr.mxu0 %v65
  %129 = vmatpush1.msra.mxu0 %v64
  %130 = vmatprep.subr.mxu0 %v67
  %131 = vmatpush1.msra.mxu0 %v66
  %132 = vmatprep.subr.mxu0 %v69
  %133 = vmatpush1.msra.mxu0 %v68
  %134 = vmatprep.subr.mxu0 %v71
  %135 = vmatpush1.msra.mxu0 %v70
  %136 = vmatprep.subr.mxu0 %v73
  %137 = vmatpush1.msra.mxu0 %v72
  %138 = vmatprep.subr.mxu0 %v75
  %139 = vmatpush1.msra.mxu0 %v74
  %140 = vmatprep.subr.mxu0 %v77
  %141 = vmatpush1.msra.mxu0 %v76
  %142 = vmatprep.subr.mxu0 %v79
  %143 = vmatpush1.msra.mxu0 %v78
  %144 = vmatprep.subr.mxu0 %v81
  %145 = vmatpush1.msra.mxu0 %v80
  %146 = vmatprep.subr.mxu0 %v83
  %147 = vmatpush1.msra.mxu0 %v82
  %148 = vmatprep.subr.mxu0 %v85
  %149 = vmatpush1.msra.mxu0 %v84
  %150 = vmatprep.subr.mxu0 %v87
  %151 = vmatpush1.msra.mxu0 %v86
  %152 = vmatprep.subr.mxu0 %v89
  %153 = vmatpush1.msra.mxu0 %v88
  %154 = vmatprep.subr.mxu0 %v91
  %155 = vmatpush1.msra.mxu0 %v90
  %156 = vmatprep.mubr.f32.mxu0 %v21
  %157 = vmatmul.mubr.f32.gmra.mrb[0].mxu0 %v20
  %v158 = vpop.f32.mrb[0].mxu0
  %v159 = vadd.f32 0.0, %v158
  %v160 = vpop.f32.mrb[0].mxu0
  %v161 = vadd.f32 0.0, %v160
  %162 = vdwg.mxu0
  %v163 = vadd.f32 %v22, %v159
  %v164 = vadd.f32 %v23, %v161
  %v165 = vld [vmem:[%s3] sm:$0x3]
  %v167 = vlaneseq
  %v168 = vshrl.u32 %v167, 7
  %v169 = vsub.s32 0, %v168
  %v170 = vrot.slane %v165, %v169
  %v171 = vlaneseq
  %v172 = vshrl.u32 %v171, 7
  %v173 = vsub.s32 1, %v172
  %v174 = vrot.slane %v165, %v173
  %v177 = vadd.f32 %v163, %v170
  %v178 = vadd.f32 %v164, %v174
  %179 = vmatprep.subr.mxu0 %v29
  %180 = vmatpush1.msra.mxu0 %v28
  %181 = vmatprep.subr.mxu0 %v31
  %182 = vmatpush1.msra.mxu0 %v30
  %183 = vmatprep.subr.mxu0 %v33
  %184 = vmatpush1.msra.mxu0 %v32
  %185 = vmatprep.subr.mxu0 %v35
  %186 = vmatpush1.msra.mxu0 %v34
  %187 = vmatprep.subr.mxu0 %v37
  %188 = vmatpush1.msra.mxu0 %v36
  %189 = vmatprep.subr.mxu0 %v39
  %190 = vmatpush1.msra.mxu0 %v38
  %191 = vmatprep.subr.mxu0 %v41
  %192 = vmatpush1.msra.mxu0 %v40
  %193 = vmatprep.subr.mxu0 %v43
  %194 = vmatpush1.msra.mxu0 %v42
  %195 = vmatprep.subr.mxu0 %v45
  %196 = vmatpush1.msra.mxu0 %v44
  %197 = vmatprep.subr.mxu0 %v47
  %198 = vmatpush1.msra.mxu0 %v46
  %199 = vmatprep.subr.mxu0 %v49
  %200 = vmatpush1.msra.mxu0 %v48
  %201 = vmatprep.subr.mxu0 %v51
  %202 = vmatpush1.msra.mxu0 %v50
  %203 = vmatprep.subr.mxu0 %v53
  %204 = vmatpush1.msra.mxu0 %v52
  %205 = vmatprep.subr.mxu0 %v55
  %206 = vmatpush1.msra.mxu0 %v54
  %207 = vmatprep.subr.mxu0 %v57
  %208 = vmatpush1.msra.mxu0 %v56
  %209 = vmatprep.subr.mxu0 %v59
  %210 = vmatpush1.msra.mxu0 %v58
  %211 = vmatprep.subr.mxu0 %v61
  %212 = vmatpush1.msra.mxu0 %v60
  %213 = vmatprep.subr.mxu0 %v63
  %214 = vmatpush1.msra.mxu0 %v62
  %215 = vmatprep.subr.mxu0 %v65
  %216 = vmatpush1.msra.mxu0 %v64
  %217 = vmatprep.subr.mxu0 %v67
  %218 = vmatpush1.msra.mxu0 %v66
  %219 = vmatprep.subr.mxu0 %v69
  %220 = vmatpush1.msra.mxu0 %v68
  %221 = vmatprep.subr.mxu0 %v71
  %222 = vmatpush1.msra.mxu0 %v70
  %223 = vmatprep.subr.mxu0 %v73
  %224 = vmatpush1.msra.mxu0 %v72
  %225 = vmatprep.subr.mxu0 %v75
  %226 = vmatpush1.msra.mxu0 %v74
  %227 = vmatprep.subr.mxu0 %v77
  %228 = vmatpush1.msra.mxu0 %v76
  %229 = vmatprep.subr.mxu0 %v79
  %230 = vmatpush1.msra.mxu0 %v78
  %231 = vmatprep.subr.mxu0 %v81
  %232 = vmatpush1.msra.mxu0 %v80
  %233 = vmatprep.subr.mxu0 %v83
  %234 = vmatpush1.msra.mxu0 %v82
  %235 = vmatprep.subr.mxu0 %v85
  %236 = vmatpush1.msra.mxu0 %v84
  %237 = vmatprep.subr.mxu0 %v87
  %238 = vmatpush1.msra.mxu0 %v86
  %239 = vmatprep.subr.mxu0 %v89
  %240 = vmatpush1.msra.mxu0 %v88
  %241 = vmatprep.subr.mxu0 %v91
  %242 = vmatpush1.msra.mxu0 %v90
  %243 = vmatprep.mubr.f32.mxu0 %v178
  %244 = vmatmul.mubr.f32.gmra.mrb[0].mxu0 %v177
  %v245 = vpop.f32.mrb[0].mxu0
  %v246 = vadd.f32 0.0, %v245
  %v247 = vpop.f32.mrb[0].mxu0
  %v248 = vadd.f32 0.0, %v247
  %249 = vdwg.mxu0
  %v250 = vadd.f32 %v24, %v246
  %v251 = vadd.f32 %v25, %v248
  %v252 = vadd.f32 %v250, %v170
  %v253 = vadd.f32 %v251, %v174
  %254 = vmatprep.subr.mxu0 %v29
  %255 = vmatpush1.msra.mxu0 %v28
  %256 = vmatprep.subr.mxu0 %v31
  %257 = vmatpush1.msra.mxu0 %v30
  %258 = vmatprep.subr.mxu0 %v33
  %259 = vmatpush1.msra.mxu0 %v32
  %260 = vmatprep.subr.mxu0 %v35
  %261 = vmatpush1.msra.mxu0 %v34
  %262 = vmatprep.subr.mxu0 %v37
  %263 = vmatpush1.msra.mxu0 %v36
  %264 = vmatprep.subr.mxu0 %v39
  %265 = vmatpush1.msra.mxu0 %v38
  %266 = vmatprep.subr.mxu0 %v41
  %267 = vmatpush1.msra.mxu0 %v40
  %268 = vmatprep.subr.mxu0 %v43
  %269 = vmatpush1.msra.mxu0 %v42
  %270 = vmatprep.subr.mxu0 %v45
  %271 = vmatpush1.msra.mxu0 %v44
  %272 = vmatprep.subr.mxu0 %v47
  %273 = vmatpush1.msra.mxu0 %v46
  %274 = vmatprep.subr.mxu0 %v49
  %275 = vmatpush1.msra.mxu0 %v48
  %276 = vmatprep.subr.mxu0 %v51
  %277 = vmatpush1.msra.mxu0 %v50
  %278 = vmatprep.subr.mxu0 %v53
  %279 = vmatpush1.msra.mxu0 %v52
  %280 = vmatprep.subr.mxu0 %v55
  %281 = vmatpush1.msra.mxu0 %v54
  %282 = vmatprep.subr.mxu0 %v57
  %283 = vmatpush1.msra.mxu0 %v56
  %284 = vmatprep.subr.mxu0 %v59
  %285 = vmatpush1.msra.mxu0 %v58
  %286 = vmatprep.subr.mxu0 %v61
  %287 = vmatpush1.msra.mxu0 %v60
  %288 = vmatprep.subr.mxu0 %v63
  %289 = vmatpush1.msra.mxu0 %v62
  %290 = vmatprep.subr.mxu0 %v65
  %291 = vmatpush1.msra.mxu0 %v64
  %292 = vmatprep.subr.mxu0 %v67
  %293 = vmatpush1.msra.mxu0 %v66
  %294 = vmatprep.subr.mxu0 %v69
  %295 = vmatpush1.msra.mxu0 %v68
  %296 = vmatprep.subr.mxu0 %v71
  %297 = vmatpush1.msra.mxu0 %v70
  %298 = vmatprep.subr.mxu0 %v73
  %299 = vmatpush1.msra.mxu0 %v72
  %300 = vmatprep.subr.mxu0 %v75
  %301 = vmatpush1.msra.mxu0 %v74
  %302 = vmatprep.subr.mxu0 %v77
  %303 = vmatpush1.msra.mxu0 %v76
  %304 = vmatprep.subr.mxu0 %v79
  %305 = vmatpush1.msra.mxu0 %v78
  %306 = vmatprep.subr.mxu0 %v81
  %307 = vmatpush1.msra.mxu0 %v80
  %308 = vmatprep.subr.mxu0 %v83
  %309 = vmatpush1.msra.mxu0 %v82
  %310 = vmatprep.subr.mxu0 %v85
  %311 = vmatpush1.msra.mxu0 %v84
  %312 = vmatprep.subr.mxu0 %v87
  %313 = vmatpush1.msra.mxu0 %v86
  %314 = vmatprep.subr.mxu0 %v89
  %315 = vmatpush1.msra.mxu0 %v88
  %316 = vmatprep.subr.mxu0 %v91
  %317 = vmatpush1.msra.mxu0 %v90
  %318 = vmatprep.mubr.f32.mxu0 %v253
  %319 = vmatmul.mubr.f32.gmra.mrb[0].mxu0 %v252
  %v320 = vpop.f32.mrb[0].mxu0
  %v321 = vadd.f32 0.0, %v320
  %v322 = vpop.f32.mrb[0].mxu0
  %v323 = vadd.f32 0.0, %v322
  %324 = vdwg.mxu0
  %v325 = vadd.f32 %v26, %v321
  %v326 = vadd.f32 %v27, %v323
  %v327 = vadd.f32 %v325, %v170
  %v328 = vadd.f32 %v326, %v174
  %v329 = vld [vmem:[%s2] sm:$0xff]
  %v330 = vld [vmem:[%s2 + $0x8] sm:$0xff]
  %v331 = vld [vmem:[%s2 + $0x10] sm:$0xff]
  %v332 = vld [vmem:[%s2 + $0x18] sm:$0xff]
  %v333 = vld [vmem:[%s2 + $0x20] sm:$0xff]
  %v334 = vld [vmem:[%s2 + $0x28] sm:$0xff]
  %v335 = vld [vmem:[%s2 + $0x30] sm:$0xff]
  %v336 = vld [vmem:[%s2 + $0x38] sm:$0xff]
  %v337 = vld [vmem:[%s2 + $0x40] sm:$0xff]
  %v338 = vld [vmem:[%s2 + $0x48] sm:$0xff]
  %v339 = vld [vmem:[%s2 + $0x50] sm:$0xff]
  %v340 = vld [vmem:[%s2 + $0x58] sm:$0xff]
  %v341 = vld [vmem:[%s2 + $0x60] sm:$0xff]
  %v342 = vld [vmem:[%s2 + $0x68] sm:$0xff]
  %v343 = vld [vmem:[%s2 + $0x70] sm:$0xff]
  %v344 = vld [vmem:[%s2 + $0x78] sm:$0xff]
  %v345 = vld [vmem:[%s2 + $0x80] sm:$0xff]
  %v346 = vld [vmem:[%s2 + $0x88] sm:$0xff]
  %v347 = vld [vmem:[%s2 + $0x90] sm:$0xff]
  %v348 = vld [vmem:[%s2 + $0x98] sm:$0xff]
  %v349 = vld [vmem:[%s2 + $0xa0] sm:$0xff]
  %v350 = vld [vmem:[%s2 + $0xa8] sm:$0xff]
  %v351 = vld [vmem:[%s2 + $0xb0] sm:$0xff]
  %v352 = vld [vmem:[%s2 + $0xb8] sm:$0xff]
  %v353 = vld [vmem:[%s2 + $0xc0] sm:$0xff]
  %v354 = vld [vmem:[%s2 + $0xc8] sm:$0xff]
  %v355 = vld [vmem:[%s2 + $0xd0] sm:$0xff]
  %v356 = vld [vmem:[%s2 + $0xd8] sm:$0xff]
  %v357 = vld [vmem:[%s2 + $0xe0] sm:$0xff]
  %v358 = vld [vmem:[%s2 + $0xe8] sm:$0xff]
  %v359 = vld [vmem:[%s2 + $0xf0] sm:$0xff]
  %v360 = vld [vmem:[%s2 + $0xf8] sm:$0xff]
  %v361 = vld [vmem:[%s2 + $0x100] sm:$0xff]
  %v362 = vld [vmem:[%s2 + $0x108] sm:$0xff]
  %v363 = vld [vmem:[%s2 + $0x110] sm:$0xff]
  %v364 = vld [vmem:[%s2 + $0x118] sm:$0xff]
  %v365 = vld [vmem:[%s2 + $0x120] sm:$0xff]
  %v366 = vld [vmem:[%s2 + $0x128] sm:$0xff]
  %v367 = vld [vmem:[%s2 + $0x130] sm:$0xff]
  %v368 = vld [vmem:[%s2 + $0x138] sm:$0xff]
  %v369 = vld [vmem:[%s2 + $0x140] sm:$0xff]
  %v370 = vld [vmem:[%s2 + $0x148] sm:$0xff]
  %v371 = vld [vmem:[%s2 + $0x150] sm:$0xff]
  %v372 = vld [vmem:[%s2 + $0x158] sm:$0xff]
  %v373 = vld [vmem:[%s2 + $0x160] sm:$0xff]
  %v374 = vld [vmem:[%s2 + $0x168] sm:$0xff]
  %v375 = vld [vmem:[%s2 + $0x170] sm:$0xff]
  %v376 = vld [vmem:[%s2 + $0x178] sm:$0xff]
  %v377 = vld [vmem:[%s2 + $0x180] sm:$0xff]
  %v378 = vld [vmem:[%s2 + $0x188] sm:$0xff]
  %v379 = vld [vmem:[%s2 + $0x190] sm:$0xff]
  %v380 = vld [vmem:[%s2 + $0x198] sm:$0xff]
  %v381 = vld [vmem:[%s2 + $0x1a0] sm:$0xff]
  %v382 = vld [vmem:[%s2 + $0x1a8] sm:$0xff]
  %v383 = vld [vmem:[%s2 + $0x1b0] sm:$0xff]
  %v384 = vld [vmem:[%s2 + $0x1b8] sm:$0xff]
  %v385 = vld [vmem:[%s2 + $0x1c0] sm:$0xff]
  %v386 = vld [vmem:[%s2 + $0x1c8] sm:$0xff]
  %v387 = vld [vmem:[%s2 + $0x1d0] sm:$0xff]
  %v388 = vld [vmem:[%s2 + $0x1d8] sm:$0xff]
  %v389 = vld [vmem:[%s2 + $0x1e0] sm:$0xff]
  %v390 = vld [vmem:[%s2 + $0x1e8] sm:$0xff]
  %v391 = vld [vmem:[%s2 + $0x1f0] sm:$0xff]
  %v392 = vld [vmem:[%s2 + $0x1f8] sm:$0xff]
  %393 = vmatprep.subr.mxu0 %v330
  %394 = vmatpush1.msra.mxu0 %v329
  %395 = vmatprep.subr.mxu0 %v332
  %396 = vmatpush1.msra.mxu0 %v331
  %397 = vmatprep.subr.mxu0 %v334
  %398 = vmatpush1.msra.mxu0 %v333
  %399 = vmatprep.subr.mxu0 %v336
  %400 = vmatpush1.msra.mxu0 %v335
  %401 = vmatprep.subr.mxu0 %v338
  %402 = vmatpush1.msra.mxu0 %v337
  %403 = vmatprep.subr.mxu0 %v340
  %404 = vmatpush1.msra.mxu0 %v339
  %405 = vmatprep.subr.mxu0 %v342
  %406 = vmatpush1.msra.mxu0 %v341
  %407 = vmatprep.subr.mxu0 %v344
  %408 = vmatpush1.msra.mxu0 %v343
  %409 = vmatprep.subr.mxu0 %v346
  %410 = vmatpush1.msra.mxu0 %v345
  %411 = vmatprep.subr.mxu0 %v348
  %412 = vmatpush1.msra.mxu0 %v347
  %413 = vmatprep.subr.mxu0 %v350
  %414 = vmatpush1.msra.mxu0 %v349
  %415 = vmatprep.subr.mxu0 %v352
  %416 = vmatpush1.msra.mxu0 %v351
  %417 = vmatprep.subr.mxu0 %v354
  %418 = vmatpush1.msra.mxu0 %v353
  %419 = vmatprep.subr.mxu0 %v356
  %420 = vmatpush1.msra.mxu0 %v355
  %421 = vmatprep.subr.mxu0 %v358
  %422 = vmatpush1.msra.mxu0 %v357
  %423 = vmatprep.subr.mxu0 %v360
  %424 = vmatpush1.msra.mxu0 %v359
  %425 = vmatprep.subr.mxu0 %v362
  %426 = vmatpush1.msra.mxu0 %v361
  %427 = vmatprep.subr.mxu0 %v364
  %428 = vmatpush1.msra.mxu0 %v363
  %429 = vmatprep.subr.mxu0 %v366
  %430 = vmatpush1.msra.mxu0 %v365
  %431 = vmatprep.subr.mxu0 %v368
  %432 = vmatpush1.msra.mxu0 %v367
  %433 = vmatprep.subr.mxu0 %v370
  %434 = vmatpush1.msra.mxu0 %v369
  %435 = vmatprep.subr.mxu0 %v372
  %436 = vmatpush1.msra.mxu0 %v371
  %437 = vmatprep.subr.mxu0 %v374
  %438 = vmatpush1.msra.mxu0 %v373
  %439 = vmatprep.subr.mxu0 %v376
  %440 = vmatpush1.msra.mxu0 %v375
  %441 = vmatprep.subr.mxu0 %v378
  %442 = vmatpush1.msra.mxu0 %v377
  %443 = vmatprep.subr.mxu0 %v380
  %444 = vmatpush1.msra.mxu0 %v379
  %445 = vmatprep.subr.mxu0 %v382
  %446 = vmatpush1.msra.mxu0 %v381
  %447 = vmatprep.subr.mxu0 %v384
  %448 = vmatpush1.msra.mxu0 %v383
  %449 = vmatprep.subr.mxu0 %v386
  %450 = vmatpush1.msra.mxu0 %v385
  %451 = vmatprep.subr.mxu0 %v388
  %452 = vmatpush1.msra.mxu0 %v387
  %453 = vmatprep.subr.mxu0 %v390
  %454 = vmatpush1.msra.mxu0 %v389
  %455 = vmatprep.subr.mxu0 %v392
  %456 = vmatpush1.msra.mxu0 %v391
  %457 = vmatprep.mubr.f32.mxu0 %v328
  %458 = vmatmul.mubr.f32.gmra.mrb[0].mxu0 %v327
  %v459 = vpop.f32.mrb[0].mxu0
  %v460 = vadd.f32 0.0, %v459
  %v461 = vpop.f32.mrb[0].mxu0
  %v462 = vadd.f32 0.0, %v461
  %463 = vdwg.mxu0
  %v464 = vadd.f32 %v252, %v460
  %v465 = vadd.f32 %v253, %v462
  %v466 = vld [vmem:[%s4] sm:$0x3]
  %v468 = vlaneseq
  %v469 = vshrl.u32 %v468, 7
  %v470 = vsub.s32 0, %v469
  %v471 = vrot.slane %v466, %v470
  %v472 = vlaneseq
  %v473 = vshrl.u32 %v472, 7
  %v474 = vsub.s32 1, %v473
  %v475 = vrot.slane %v466, %v474
  %v478 = vadd.f32 %v464, %v471
  %v479 = vadd.f32 %v465, %v475
  %480 = vmatprep.subr.mxu0 %v330
  %481 = vmatpush1.msra.mxu0 %v329
  %482 = vmatprep.subr.mxu0 %v332
  %483 = vmatpush1.msra.mxu0 %v331
  %484 = vmatprep.subr.mxu0 %v334
  %485 = vmatpush1.msra.mxu0 %v333
  %486 = vmatprep.subr.mxu0 %v336
  %487 = vmatpush1.msra.mxu0 %v335
  %488 = vmatprep.subr.mxu0 %v338
  %489 = vmatpush1.msra.mxu0 %v337
  %490 = vmatprep.subr.mxu0 %v340
  %491 = vmatpush1.msra.mxu0 %v339
  %492 = vmatprep.subr.mxu0 %v342
  %493 = vmatpush1.msra.mxu0 %v341
  %494 = vmatprep.subr.mxu0 %v344
  %495 = vmatpush1.msra.mxu0 %v343
  %496 = vmatprep.subr.mxu0 %v346
  %497 = vmatpush1.msra.mxu0 %v345
  %498 = vmatprep.subr.mxu0 %v348
  %499 = vmatpush1.msra.mxu0 %v347
  %500 = vmatprep.subr.mxu0 %v350
  %501 = vmatpush1.msra.mxu0 %v349
  %502 = vmatprep.subr.mxu0 %v352
  %503 = vmatpush1.msra.mxu0 %v351
  %504 = vmatprep.subr.mxu0 %v354
  %505 = vmatpush1.msra.mxu0 %v353
  %506 = vmatprep.subr.mxu0 %v356
  %507 = vmatpush1.msra.mxu0 %v355
  %508 = vmatprep.subr.mxu0 %v358
  %509 = vmatpush1.msra.mxu0 %v357
  %510 = vmatprep.subr.mxu0 %v360
  %511 = vmatpush1.msra.mxu0 %v359
  %512 = vmatprep.subr.mxu0 %v362
  %513 = vmatpush1.msra.mxu0 %v361
  %514 = vmatprep.subr.mxu0 %v364
  %515 = vmatpush1.msra.mxu0 %v363
  %516 = vmatprep.subr.mxu0 %v366
  %517 = vmatpush1.msra.mxu0 %v365
  %518 = vmatprep.subr.mxu0 %v368
  %519 = vmatpush1.msra.mxu0 %v367
  %520 = vmatprep.subr.mxu0 %v370
  %521 = vmatpush1.msra.mxu0 %v369
  %522 = vmatprep.subr.mxu0 %v372
  %523 = vmatpush1.msra.mxu0 %v371
  %524 = vmatprep.subr.mxu0 %v374
  %525 = vmatpush1.msra.mxu0 %v373
  %526 = vmatprep.subr.mxu0 %v376
  %527 = vmatpush1.msra.mxu0 %v375
  %528 = vmatprep.subr.mxu0 %v378
  %529 = vmatpush1.msra.mxu0 %v377
  %530 = vmatprep.subr.mxu0 %v380
  %531 = vmatpush1.msra.mxu0 %v379
  %532 = vmatprep.subr.mxu0 %v382
  %533 = vmatpush1.msra.mxu0 %v381
  %534 = vmatprep.subr.mxu0 %v384
  %535 = vmatpush1.msra.mxu0 %v383
  %536 = vmatprep.subr.mxu0 %v386
  %537 = vmatpush1.msra.mxu0 %v385
  %538 = vmatprep.subr.mxu0 %v388
  %539 = vmatpush1.msra.mxu0 %v387
  %540 = vmatprep.subr.mxu0 %v390
  %541 = vmatpush1.msra.mxu0 %v389
  %542 = vmatprep.subr.mxu0 %v392
  %543 = vmatpush1.msra.mxu0 %v391
  %544 = vmatprep.mubr.f32.mxu0 %v479
  %545 = vmatmul.mubr.f32.gmra.mrb[0].mxu0 %v478
  %v546 = vpop.f32.mrb[0].mxu0
  %v547 = vadd.f32 0.0, %v546
  %v548 = vpop.f32.mrb[0].mxu0
  %v549 = vadd.f32 0.0, %v548
  %550 = vdwg.mxu0
  %v551 = vadd.f32 %v177, %v547
  %v552 = vadd.f32 %v178, %v549
  %v553 = vadd.f32 %v551, %v471
  %v554 = vadd.f32 %v552, %v475
  %555 = vst [vmem:[%s5] sm:$0xff] %v20
  %556 = vst [vmem:[%s5 + $0x8] sm:$0xff] %v21
  %557 = vst [vmem:[%s5 + $0x10] sm:$0xff] %v553
  %558 = vst [vmem:[%s5 + $0x18] sm:$0xff] %v554
  %559 = vst [vmem:[%s5 + $0x20] sm:$0xff] %v478
  %560 = vst [vmem:[%s5 + $0x28] sm:$0xff] %v479
  %561 = vst [vmem:[%s5 + $0x30] sm:$0xff] %v327
  %562 = vst [vmem:[%s5 + $0x38] sm:$0xff] %v328
  // Predicated region
  $region22: #{fushion_forward.6} parent=0 // pred_check
    _
  $region23: #{fushion_forward.6} parent=0 // pred_check_branch
    %564 = sbr.rel (0) target = $region25
  $region24: #{fushion_forward.6} parent=0 // pred_region
    _
  $region25: #{fushion_forward.6} parent=0 // pred_fallthru
    _
  // Predicated region
  $region26: #{fushion_forward.6} parent=0 // pred_check
    _
  $region27: #{fushion_forward.6} parent=0 // pred_check_branch
    %566 = sbr.rel (0) target = $region29
  $region28: #{fushion_forward.6} parent=0 // pred_region
    _
  $region29: #{fushion_forward.6} parent=0 // pred_fallthru
    _

// kernel: tile.18
$region0: #{tile.18}
  #allocation0 [shape = 's32[1]{0}', space=sflag, size = 0x4, scoped, tag = 'scoped memory for tile.18']
  %s0 = inlined_call_operand.vmem [shape: f32[8], index: 0, kind: input, shape index: {}]
  %s1 = inlined_call_operand.vmem [shape: f32[8,8], index: 1, kind: output, shape index: {}]
  // Predicated region
  $region2: #{tile.18} parent=0 // pred_check
    _
  $region3: #{tile.18} parent=0 // pred_check_branch
    %3 = sbr.rel (0) target = $region5
  $region4: #{tile.18} parent=0 // pred_region
    _
  $region5: #{tile.18} parent=0 // pred_fallthru
    _
  %v4 = vld [vmem:[%s0] ss:$0 sm:$0xff]
  %5 = vst [vmem:[%s1] sm:$0xff] %v4

// kernel: squeeze.23
$region0: #{squeeze.23}
  %s0 = inlined_call_operand.vmem [shape: f32[8,64], index: 0, kind: input, shape index: {}]
  %s1 = inlined_call_operand.hbm [shape: f32[2,4,8,8], index: 1, kind: output, shape index: {}]
  $region1: #{squeeze.23} parent=0
    #allocation0 [shape = 'u8[32768]{0}', space=vmem, size = 0x8000, scoped, tag = 'operand span for operand 1']
    #allocation1 [shape = 's32[1]{0}', space=sflag, size = 0x4, scoped, tag = 'scoped memory for squeeze.23']
    %2 = vsyncpa [#allocation1], 0
    %v3 = vld [vmem:[%s0] sm:$0xff]
    %vm4 = vcmask 64512
    %5 = vst.msk [vmem:[#allocation0] ss:$8 sm:$0xf] %vm4, %v3
    %6 = vst.msk [vmem:[#allocation0] ss:$8 sm:$0xf0] %vm4, %v3
    %v7 = vld [vmem:[%s0] sm:$0xff]
    %8 = vrot.lane.b32.xlu0 %v7, 120
    %v9 = vpop.permute.xlu0 %8
    %vm10 = vcmask 64512
    %s11 = scalar_lea.vmem [#allocation0], 1
    %12 = vst.msk [vmem:[%s11] ss:$8 sm:$0xf] %vm10, %v9
    %s13 = scalar_lea.vmem [#allocation0], 1
    %14 = vst.msk [vmem:[%s13] ss:$8 sm:$0xf0] %vm10, %v9
    %v15 = vld [vmem:[%s0] sm:$0xff]
    %16 = vrot.lane.b32.xlu0 %v15, 112
    %v17 = vpop.permute.xlu0 %16
    %vm18 = vcmask 64512
    %s19 = scalar_lea.vmem [#allocation0], 2
    %20 = vst.msk [vmem:[%s19] ss:$8 sm:$0xf] %vm18, %v17
    %s21 = scalar_lea.vmem [#allocation0], 2
    %22 = vst.msk [vmem:[%s21] ss:$8 sm:$0xf0] %vm18, %v17
    %v23 = vld [vmem:[%s0] sm:$0xff]
    %24 = vrot.lane.b32.xlu0 %v23, 104
    %v25 = vpop.permute.xlu0 %24
    %vm26 = vcmask 64512
    %s27 = scalar_lea.vmem [#allocation0], 3
    %28 = vst.msk [vmem:[%s27] ss:$8 sm:$0xf] %vm26, %v25
    %s29 = scalar_lea.vmem [#allocation0], 3
    %30 = vst.msk [vmem:[%s29] ss:$8 sm:$0xf0] %vm26, %v25
    %v31 = vld [vmem:[%s0] sm:$0xff]
    %32 = vrot.lane.b32.xlu0 %v31, 96
    %v33 = vpop.permute.xlu0 %32
    %vm34 = vcmask 64512
    %s35 = scalar_lea.vmem [#allocation0], 4
    %36 = vst.msk [vmem:[%s35] ss:$8 sm:$0xf] %vm34, %v33
    %s37 = scalar_lea.vmem [#allocation0], 4
    %38 = vst.msk [vmem:[%s37] ss:$8 sm:$0xf0] %vm34, %v33
    %v39 = vld [vmem:[%s0] sm:$0xff]
    %40 = vrot.lane.b32.xlu0 %v39, 88
    %v41 = vpop.permute.xlu0 %40
    %vm42 = vcmask 64512
    %s43 = scalar_lea.vmem [#allocation0], 5
    %44 = vst.msk [vmem:[%s43] ss:$8 sm:$0xf] %vm42, %v41
    %s45 = scalar_lea.vmem [#allocation0], 5
    %46 = vst.msk [vmem:[%s45] ss:$8 sm:$0xf0] %vm42, %v41
    %v47 = vld [vmem:[%s0] sm:$0xff]
    %48 = vrot.lane.b32.xlu0 %v47, 80
    %v49 = vpop.permute.xlu0 %48
    %vm50 = vcmask 64512
    %s51 = scalar_lea.vmem [#allocation0], 6
    %52 = vst.msk [vmem:[%s51] ss:$8 sm:$0xf] %vm50, %v49
    %s53 = scalar_lea.vmem [#allocation0], 6
    %54 = vst.msk [vmem:[%s53] ss:$8 sm:$0xf0] %vm50, %v49
    %v55 = vld [vmem:[%s0] sm:$0xff]
    %56 = vrot.lane.b32.xlu0 %v55, 72
    %v57 = vpop.permute.xlu0 %56
    %vm58 = vcmask 64512
    %s59 = scalar_lea.vmem [#allocation0], 7
    %60 = vst.msk [vmem:[%s59] ss:$8 sm:$0xf] %vm58, %v57
    %s61 = scalar_lea.vmem [#allocation0], 7
    %62 = vst.msk [vmem:[%s61] ss:$8 sm:$0xf0] %vm58, %v57
    %s64 = ssub.s32 1024, 1024
    %65 = vsyncadd [#allocation1], %s64
    %s67 = sshll.u32 [#allocation0], 4
    %s68 = int_to_ptr.vmem [resolvable:$true] %s67
    %70 = dma.vmem_to_hbm [thread:$0]  %s68, 1024, %s1, [#allocation1]
    %71 = dma.done [#allocation1], 1024
    %72 = vsyncpa [#allocation1], 1

// kernel: fushion_forward.7
$region0: #{fushion_forward.7}
  #allocation0 [shape = 'u32[]', space=smem, size = 0x4, offset = 0x4, fixed_abs, tag = 'smem constant byte address 0x4 - core index']
  #allocation1 [shape = 'u32[144,128]{1,0:T(1,128)}', space=vmem, size = 0x12000, scoped, tag = 'internal scratch']
  %s0 = inlined_call_operand.vmem [shape: f32[64,256], index: 0, kind: input, shape index: {}]
  %s1 = inlined_call_operand.vmem [shape: f32[64,256], index: 1, kind: input, shape index: {}]
  %s2 = inlined_call_operand.vmem [shape: f32[64,1], index: 2, kind: input, shape index: {}]
  %s3 = inlined_call_operand.vmem [shape: f32[256,64], index: 3, kind: input, shape index: {}]
  %s4 = inlined_call_operand.vmem [shape: f32[2,64], index: 4, kind: input, shape index: {}]
  %s5 = inlined_call_operand.vmem [shape: f32[64,64], index: 5, kind: output, shape index: {0}]
  %s6 = inlined_call_operand.vmem [shape: f32[64,2], index: 6, kind: output, shape index: {1}]
  %7 = xla_tuple %s5, %s6
  %s8 = sld [smem:[#allocation0]]
  $region38: #{fushion_forward.7} parent=0
    _
  %s10 = ssub.s32 1, %s8
  %s11 = scalar_select 0, %s10, %s8
  // Predicated region
  $region2: #{fushion_forward.7} parent=0 // pred_check
    _
  $region3: #{fushion_forward.7} parent=0 // pred_check_branch
    %13 = sbr.rel (0) target = $region5
  $region4: #{fushion_forward.7} parent=0 // pred_region
    _
  $region5: #{fushion_forward.7} parent=0 // pred_fallthru
    _
  // Predicated region
  $region6: #{fushion_forward.7} parent=0 // pred_check
    _
  $region7: #{fushion_forward.7} parent=0 // pred_check_branch
    %15 = sbr.rel (0) target = $region9
  $region8: #{fushion_forward.7} parent=0 // pred_region
    _
  $region9: #{fushion_forward.7} parent=0 // pred_fallthru
    _
  // Predicated region
  $region10: #{fushion_forward.7} parent=0 // pred_check
    _
  $region11: #{fushion_forward.7} parent=0 // pred_check_branch
    %17 = sbr.rel (0) target = $region13
  $region12: #{fushion_forward.7} parent=0 // pred_region
    _
  $region13: #{fushion_forward.7} parent=0 // pred_fallthru
    _
  // Predicated region
  $region14: #{fushion_forward.7} parent=0 // pred_check
    _
  $region15: #{fushion_forward.7} parent=0 // pred_check_branch
    %19 = sbr.rel (0) target = $region17
  $region16: #{fushion_forward.7} parent=0 // pred_region
    _
  $region17: #{fushion_forward.7} parent=0 // pred_fallthru
    _
  // Predicated region
  $region18: #{fushion_forward.7} parent=0 // pred_check
    _
  $region19: #{fushion_forward.7} parent=0 // pred_check_branch
    %21 = sbr.rel (0) target = $region21
  $region20: #{fushion_forward.7} parent=0 // pred_region
    _
  $region21: #{fushion_forward.7} parent=0 // pred_fallthru
    _
  %v22 = vld [vmem:[%s0] sm:$0xff]
  %v23 = vld [vmem:[%s0 + $0x8] sm:$0xff]
  %v24 = vld [vmem:[%s0 + $0x10] sm:$0xff]
  %v25 = vld [vmem:[%s0 + $0x18] sm:$0xff]
  %v26 = vld [vmem:[%s0 + $0x20] sm:$0xff]
  %v27 = vld [vmem:[%s0 + $0x28] sm:$0xff]
  %v28 = vld [vmem:[%s0 + $0x30] sm:$0xff]
  %v29 = vld [vmem:[%s0 + $0x38] sm:$0xff]
  %v30 = vld [vmem:[%s0 + $0x40] sm:$0xff]
  %v31 = vld [vmem:[%s0 + $0x48] sm:$0xff]
  %v32 = vld [vmem:[%s0 + $0x50] sm:$0xff]
  %v33 = vld [vmem:[%s0 + $0x58] sm:$0xff]
  %v34 = vld [vmem:[%s0 + $0x60] sm:$0xff]
  %v35 = vld [vmem:[%s0 + $0x68] sm:$0xff]
  %v36 = vld [vmem:[%s0 + $0x70] sm:$0xff]
  %v37 = vld [vmem:[%s0 + $0x78] sm:$0xff]
  %v38 = vld [vmem:[%s1] sm:$0xff]
  %v39 = vld [vmem:[%s1 + $0x8] sm:$0xff]
  %v40 = vld [vmem:[%s1 + $0x10] sm:$0xff]
  %v41 = vld [vmem:[%s1 + $0x18] sm:$0xff]
  %v42 = vld [vmem:[%s1 + $0x20] sm:$0xff]
  %v43 = vld [vmem:[%s1 + $0x28] sm:$0xff]
  %v44 = vld [vmem:[%s1 + $0x30] sm:$0xff]
  %v45 = vld [vmem:[%s1 + $0x38] sm:$0xff]
  %v46 = vld [vmem:[%s1 + $0x40] sm:$0xff]
  %v47 = vld [vmem:[%s1 + $0x48] sm:$0xff]
  %v48 = vld [vmem:[%s1 + $0x50] sm:$0xff]
  %v49 = vld [vmem:[%s1 + $0x58] sm:$0xff]
  %v50 = vld [vmem:[%s1 + $0x60] sm:$0xff]
  %v51 = vld [vmem:[%s1 + $0x68] sm:$0xff]
  %v52 = vld [vmem:[%s1 + $0x70] sm:$0xff]
  %v53 = vld [vmem:[%s1 + $0x78] sm:$0xff]
  %v54 = vmul.f32 %v22, %v38
  %v55 = vmul.f32 %v23, %v39
  %v56 = vmul.f32 %v24, %v40
  %v57 = vmul.f32 %v25, %v41
  %v58 = vmul.f32 %v26, %v42
  %v59 = vmul.f32 %v27, %v43
  %v60 = vmul.f32 %v28, %v44
  %v61 = vmul.f32 %v29, %v45
  %v62 = vmul.f32 %v30, %v46
  %v63 = vmul.f32 %v31, %v47
  %v64 = vmul.f32 %v32, %v48
  %v65 = vmul.f32 %v33, %v49
  %v66 = vmul.f32 %v34, %v50
  %v67 = vmul.f32 %v35, %v51
  %v68 = vmul.f32 %v36, %v52
  %v69 = vmul.f32 %v37, %v53
  %v70 = vld [vmem:[%s3] sm:$0xff]
  %v71 = vld [vmem:[%s3 + $0x8] sm:$0xff]
  %v72 = vld [vmem:[%s3 + $0x10] sm:$0xff]
  %v73 = vld [vmem:[%s3 + $0x18] sm:$0xff]
  %v74 = vld [vmem:[%s3 + $0x20] sm:$0xff]
  %v75 = vld [vmem:[%s3 + $0x28] sm:$0xff]
  %v76 = vld [vmem:[%s3 + $0x30] sm:$0xff]
  %v77 = vld [vmem:[%s3 + $0x38] sm:$0xff]
  %v78 = vld [vmem:[%s3 + $0x40] sm:$0xff]
  %v79 = vld [vmem:[%s3 + $0x48] sm:$0xff]
  %v80 = vld [vmem:[%s3 + $0x50] sm:$0xff]
  %v81 = vld [vmem:[%s3 + $0x58] sm:$0xff]
  %v82 = vld [vmem:[%s3 + $0x60] sm:$0xff]
  %v83 = vld [vmem:[%s3 + $0x68] sm:$0xff]
  %v84 = vld [vmem:[%s3 + $0x70] sm:$0xff]
  %v85 = vld [vmem:[%s3 + $0x78] sm:$0xff]
  %v86 = vld [vmem:[%s3 + $0x80] sm:$0xff]
  %v87 = vld [vmem:[%s3 + $0x88] sm:$0xff]
  %v88 = vld [vmem:[%s3 + $0x90] sm:$0xff]
  %v89 = vld [vmem:[%s3 + $0x98] sm:$0xff]
  %v90 = vld [vmem:[%s3 + $0xa0] sm:$0xff]
  %v91 = vld [vmem:[%s3 + $0xa8] sm:$0xff]
  %v92 = vld [vmem:[%s3 + $0xb0] sm:$0xff]
  %v93 = vld [vmem:[%s3 + $0xb8] sm:$0xff]
  %v94 = vld [vmem:[%s3 + $0xc0] sm:$0xff]
  %v95 = vld [vmem:[%s3 + $0xc8] sm:$0xff]
  %v96 = vld [vmem:[%s3 + $0xd0] sm:$0xff]
  %v97 = vld [vmem:[%s3 + $0xd8] sm:$0xff]
  %v98 = vld [vmem:[%s3 + $0xe0] sm:$0xff]
  %v99 = vld [vmem:[%s3 + $0xe8] sm:$0xff]
  %v100 = vld [vmem:[%s3 + $0xf0] sm:$0xff]
  %v101 = vld [vmem:[%s3 + $0xf8] sm:$0xff]
  %v102 = vld [vmem:[%s2] sm:$0xff]
  %v103 = vld [vmem:[%s2 + $0x8] sm:$0xff]
  %v104 = vld [vmem:[%s2 + $0x10] sm:$0xff]
  %v105 = vld [vmem:[%s2 + $0x18] sm:$0xff]
  %v106 = vld [vmem:[%s2 + $0x20] sm:$0xff]
  %v107 = vld [vmem:[%s2 + $0x28] sm:$0xff]
  %v108 = vld [vmem:[%s2 + $0x30] sm:$0xff]
  %v109 = vld [vmem:[%s2 + $0x38] sm:$0xff]
  %111 = vset.pattern.permute.xlu0 0
  %112 = vperm.xlu0 %111, %v102
  %v113 = vpop.permute.xlu0 %112
  %116 = vset.pattern.permute.xlu0 0
  %117 = vperm.xlu0 %116, %v103
  %v118 = vpop.permute.xlu0 %117
  %121 = vset.pattern.permute.xlu0 0
  %122 = vperm.xlu0 %121, %v104
  %v123 = vpop.permute.xlu0 %122
  %126 = vset.pattern.permute.xlu0 0
  %127 = vperm.xlu0 %126, %v105
  %v128 = vpop.permute.xlu0 %127
  %131 = vset.pattern.permute.xlu0 0
  %132 = vperm.xlu0 %131, %v106
  %v133 = vpop.permute.xlu0 %132
  %136 = vset.pattern.permute.xlu0 0
  %137 = vperm.xlu0 %136, %v107
  %v138 = vpop.permute.xlu0 %137
  %141 = vset.pattern.permute.xlu0 0
  %142 = vperm.xlu0 %141, %v108
  %v143 = vpop.permute.xlu0 %142
  %146 = vset.pattern.permute.xlu0 0
  %147 = vperm.xlu0 %146, %v109
  %v148 = vpop.permute.xlu0 %147
  %150 = vmatprep.subr.mxu0 0.0
  %151 = vmatpush1.msra.mxu0 %v70
  %152 = vmatprep.subr.mxu0 0.0
  %153 = vmatpush1.msra.mxu0 %v71
  %154 = vmatprep.subr.mxu0 0.0
  %155 = vmatpush1.msra.mxu0 %v72
  %156 = vmatprep.subr.mxu0 0.0
  %157 = vmatpush1.msra.mxu0 %v73
  %158 = vmatprep.subr.mxu0 0.0
  %159 = vmatpush1.msra.mxu0 %v74
  %160 = vmatprep.subr.mxu0 0.0
  %161 = vmatpush1.msra.mxu0 %v75
  %162 = vmatprep.subr.mxu0 0.0
  %163 = vmatpush1.msra.mxu0 %v76
  %164 = vmatprep.subr.mxu0 0.0
  %165 = vmatpush1.msra.mxu0 %v77
  %166 = vmatprep.subr.mxu0 0.0
  %167 = vmatpush1.msra.mxu0 %v78
  %168 = vmatprep.subr.mxu0 0.0
  %169 = vmatpush1.msra.mxu0 %v79
  %170 = vmatprep.subr.mxu0 0.0
  %171 = vmatpush1.msra.mxu0 %v80
  %172 = vmatprep.subr.mxu0 0.0
  %173 = vmatpush1.msra.mxu0 %v81
  %174 = vmatprep.subr.mxu0 0.0
  %175 = vmatpush1.msra.mxu0 %v82
  %176 = vmatprep.subr.mxu0 0.0
  %177 = vmatpush1.msra.mxu0 %v83
  %178 = vmatprep.subr.mxu0 0.0
  %179 = vmatpush1.msra.mxu0 %v84
  %180 = vmatprep.subr.mxu0 0.0
  %181 = vmatpush1.msra.mxu0 %v85
  %182 = vmatprep.subr.mxu0 0.0
  %183 = vmatpush1.msra.mxu0 %v86
  %184 = vmatprep.subr.mxu0 0.0
  %185 = vmatpush1.msra.mxu0 %v87
  %186 = vmatprep.subr.mxu0 0.0
  %187 = vmatpush1.msra.mxu0 %v88
  %188 = vmatprep.subr.mxu0 0.0
  %189 = vmatpush1.msra.mxu0 %v89
  %190 = vmatprep.subr.mxu0 0.0
  %191 = vmatpush1.msra.mxu0 %v90
  %192 = vmatprep.subr.mxu0 0.0
  %193 = vmatpush1.msra.mxu0 %v91
  %194 = vmatprep.subr.mxu0 0.0
  %195 = vmatpush1.msra.mxu0 %v92
  %196 = vmatprep.subr.mxu0 0.0
  %197 = vmatpush1.msra.mxu0 %v93
  %198 = vmatprep.subr.mxu0 0.0
  %199 = vmatpush1.msra.mxu0 %v94
  %200 = vmatprep.subr.mxu0 0.0
  %201 = vmatpush1.msra.mxu0 %v95
  %202 = vmatprep.subr.mxu0 0.0
  %203 = vmatpush1.msra.mxu0 %v96
  %204 = vmatprep.subr.mxu0 0.0
  %205 = vmatpush1.msra.mxu0 %v97
  %206 = vmatprep.subr.mxu0 0.0
  %207 = vmatpush1.msra.mxu0 %v98
  %208 = vmatprep.subr.mxu0 0.0
  %209 = vmatpush1.msra.mxu0 %v99
  %210 = vmatprep.subr.mxu0 0.0
  %211 = vmatpush1.msra.mxu0 %v100
  %212 = vmatprep.subr.mxu0 0.0
  %213 = vmatpush1.msra.mxu0 %v101
  %214 = vmatprep.mubr.f32.mxu0 %v55
  %215 = vmatmul.mubr.f32.gmra.mrb[0].mxu0 %v54
  %v216 = vpop.f32.mrb[0].mxu0
  %v217 = vadd.f32 %v113, %v216
  %v218 = vpop.f32.mrb[0].mxu0
  %219 = vmatprep.mubr.f32.mxu0 %v57
  %220 = vmatmul.mubr.f32.gmra.mrb[0].mxu0 %v56
  %v221 = vpop.f32.mrb[0].mxu0
  %v222 = vadd.f32 %v118, %v221
  %v223 = vpop.f32.mrb[0].mxu0
  %224 = vmatprep.mubr.f32.mxu0 %v59
  %225 = vmatmul.mubr.f32.gmra.mrb[0].mxu0 %v58
  %v226 = vpop.f32.mrb[0].mxu0
  %v227 = vadd.f32 %v123, %v226
  %v228 = vpop.f32.mrb[0].mxu0
  %229 = vmatprep.mubr.f32.mxu0 %v61
  %230 = vmatmul.mubr.f32.gmra.mrb[0].mxu0 %v60
  %v231 = vpop.f32.mrb[0].mxu0
  %v232 = vadd.f32 %v128, %v231
  %v233 = vpop.f32.mrb[0].mxu0
  %234 = vmatprep.mubr.f32.mxu0 %v63
  %235 = vmatmul.mubr.f32.gmra.mrb[0].mxu0 %v62
  %v236 = vpop.f32.mrb[0].mxu0
  %v237 = vadd.f32 %v133, %v236
  %v238 = vpop.f32.mrb[0].mxu0
  %239 = vmatprep.mubr.f32.mxu0 %v65
  %240 = vmatmul.mubr.f32.gmra.mrb[0].mxu0 %v64
  %v241 = vpop.f32.mrb[0].mxu0
  %v242 = vadd.f32 %v138, %v241
  %v243 = vpop.f32.mrb[0].mxu0
  %244 = vmatprep.mubr.f32.mxu0 %v67
  %245 = vmatmul.mubr.f32.gmra.mrb[0].mxu0 %v66
  %v246 = vpop.f32.mrb[0].mxu0
  %v247 = vadd.f32 %v143, %v246
  %v248 = vpop.f32.mrb[0].mxu0
  %249 = vmatprep.mubr.f32.mxu0 %v69
  %250 = vmatmul.mubr.f32.gmra.mrb[0].mxu0 %v68
  %v251 = vpop.f32.mrb[0].mxu0
  %v252 = vadd.f32 %v148, %v251
  %v253 = vpop.f32.mrb[0].mxu0
  %254 = vdwg.mxu0
  %vm255 = vcmask 523264
  %v256 = vsel %vm255, %v217, -inf
  %257 = vmax.xlane.f32.xlu0 %v256
  %v258 = vpop.xlane.xlu0 %257
  %v259 = vsel %vm255, %v222, -inf
  %260 = vmax.xlane.f32.xlu0 %v259
  %v261 = vpop.xlane.xlu0 %260
  %v262 = vsel %vm255, %v227, -inf
  %263 = vmax.xlane.f32.xlu0 %v262
  %v264 = vpop.xlane.xlu0 %263
  %v265 = vsel %vm255, %v232, -inf
  %266 = vmax.xlane.f32.xlu0 %v265
  %v267 = vpop.xlane.xlu0 %266
  %v268 = vsel %vm255, %v237, -inf
  %269 = vmax.xlane.f32.xlu0 %v268
  %v270 = vpop.xlane.xlu0 %269
  %v271 = vsel %vm255, %v242, -inf
  %272 = vmax.xlane.f32.xlu0 %v271
  %v273 = vpop.xlane.xlu0 %272
  %v274 = vsel %vm255, %v247, -inf
  %275 = vmax.xlane.f32.xlu0 %v274
  %v276 = vpop.xlane.xlu0 %275
  %v277 = vsel %vm255, %v252, -inf
  %278 = vmax.xlane.f32.xlu0 %v277
  %v279 = vpop.xlane.xlu0 %278
  %v280 = vsub.f32 %v217, %v258
  %v281 = vsub.f32 %v222, %v261
  %v282 = vsub.f32 %v227, %v264
  %v283 = vsub.f32 %v232, %v267
  %v284 = vsub.f32 %v237, %v270
  %v285 = vsub.f32 %v242, %v273
  %v286 = vsub.f32 %v247, %v276
  %v287 = vsub.f32 %v252, %v279
  %v288 = vmul.f32 %v280, 1.442695
  %v289 = vpow.pop %v288
  %v290 = vmul.f32 %v281, 1.442695
  %v291 = vpow.pop %v290
  %v292 = vmul.f32 %v282, 1.442695
  %v293 = vpow.pop %v292
  %v294 = vmul.f32 %v283, 1.442695
  %v295 = vpow.pop %v294
  %v296 = vmul.f32 %v284, 1.442695
  %v297 = vpow.pop %v296
  %v298 = vmul.f32 %v285, 1.442695
  %v299 = vpow.pop %v298
  %v300 = vmul.f32 %v286, 1.442695
  %v301 = vpow.pop %v300
  %v302 = vmul.f32 %v287, 1.442695
  %v303 = vpow.pop %v302
  %v304 = vsel %vm255, %v289, 0.0
  %305 = vadd.xlane.f32.xlu0 %v304
  %v306 = vpop.xlane.xlu0 %305
  %v307 = vsel %vm255, %v291, 0.0
  %308 = vadd.xlane.f32.xlu0 %v307
  %v309 = vpop.xlane.xlu0 %308
  %v310 = vsel %vm255, %v293, 0.0
  %311 = vadd.xlane.f32.xlu0 %v310
  %v312 = vpop.xlane.xlu0 %311
  %v313 = vsel %vm255, %v295, 0.0
  %314 = vadd.xlane.f32.xlu0 %v313
  %v315 = vpop.xlane.xlu0 %314
  %v316 = vsel %vm255, %v297, 0.0
  %317 = vadd.xlane.f32.xlu0 %v316
  %v318 = vpop.xlane.xlu0 %317
  %v319 = vsel %vm255, %v299, 0.0
  %320 = vadd.xlane.f32.xlu0 %v319
  %v321 = vpop.xlane.xlu0 %320
  %v322 = vsel %vm255, %v301, 0.0
  %323 = vadd.xlane.f32.xlu0 %v322
  %v324 = vpop.xlane.xlu0 %323
  %v325 = vsel %vm255, %v303, 0.0
  %326 = vadd.xlane.f32.xlu0 %v325
  %v327 = vpop.xlane.xlu0 %326
  %v328 = vrcp.pop %v306
  %v329 = vmul.f32 %v289, %v328
  %v330 = vrcp.pop %v309
  %v331 = vmul.f32 %v291, %v330
  %v332 = vrcp.pop %v312
  %v333 = vmul.f32 %v293, %v332
  %v334 = vrcp.pop %v315
  %v335 = vmul.f32 %v295, %v334
  %v336 = vrcp.pop %v318
  %v337 = vmul.f32 %v297, %v336
  %v338 = vrcp.pop %v321
  %v339 = vmul.f32 %v299, %v338
  %v340 = vrcp.pop %v324
  %v341 = vmul.f32 %v301, %v340
  %v342 = vrcp.pop %v327
  %v343 = vmul.f32 %v303, %v342
  %v344 = vld [vmem:[%s4] sm:$0x1]
  %v345 = vlaneseq
  %v346 = vshrl.u32 %v345, 7
  %v347 = vsub.s32 0, %v346
  %v348 = vrot.slane %v344, %v347
  %v349 = vmul.f32 %v329, %v348
  %v350 = vmul.f32 %v331, %v348
  %v351 = vmul.f32 %v333, %v348
  %v352 = vmul.f32 %v335, %v348
  %v353 = vmul.f32 %v337, %v348
  %v354 = vmul.f32 %v339, %v348
  %v355 = vmul.f32 %v341, %v348
  %v356 = vmul.f32 %v343, %v348
  %v357 = vsel %vm255, %v349, 0.0
  %358 = vadd.xlane.f32.xlu0 %v357
  %v359 = vpop.xlane.xlu0 %358
  %v360 = vsel %vm255, %v350, 0.0
  %361 = vadd.xlane.f32.xlu0 %v360
  %v362 = vpop.xlane.xlu0 %361
  %v363 = vsel %vm255, %v351, 0.0
  %364 = vadd.xlane.f32.xlu0 %v363
  %v365 = vpop.xlane.xlu0 %364
  %v366 = vsel %vm255, %v352, 0.0
  %367 = vadd.xlane.f32.xlu0 %v366
  %v368 = vpop.xlane.xlu0 %367
  %v369 = vsel %vm255, %v353, 0.0
  %370 = vadd.xlane.f32.xlu0 %v369
  %v371 = vpop.xlane.xlu0 %370
  %v372 = vsel %vm255, %v354, 0.0
  %373 = vadd.xlane.f32.xlu0 %v372
  %v374 = vpop.xlane.xlu0 %373
  %v375 = vsel %vm255, %v355, 0.0
  %376 = vadd.xlane.f32.xlu0 %v375
  %v377 = vpop.xlane.xlu0 %376
  %v378 = vsel %vm255, %v356, 0.0
  %379 = vadd.xlane.f32.xlu0 %v378
  %v380 = vpop.xlane.xlu0 %379
  %v381 = vld [vmem:[%s4 + $0x1] sm:$0x1]
  %v382 = vlaneseq
  %v383 = vshrl.u32 %v382, 7
  %v384 = vsub.s32 0, %v383
  %v385 = vrot.slane %v381, %v384
  %v386 = vmul.f32 %v329, %v385
  %v387 = vmul.f32 %v331, %v385
  %v388 = vmul.f32 %v333, %v385
  %v389 = vmul.f32 %v335, %v385
  %v390 = vmul.f32 %v337, %v385
  %v391 = vmul.f32 %v339, %v385
  %v392 = vmul.f32 %v341, %v385
  %v393 = vmul.f32 %v343, %v385
  %v394 = vsel %vm255, %v386, 0.0
  %395 = vadd.xlane.f32.xlu0 %v394
  %v396 = vpop.xlane.xlu0 %395
  %v397 = vsel %vm255, %v387, 0.0
  %398 = vadd.xlane.f32.xlu0 %v397
  %v399 = vpop.xlane.xlu0 %398
  %v400 = vsel %vm255, %v388, 0.0
  %401 = vadd.xlane.f32.xlu0 %v400
  %v402 = vpop.xlane.xlu0 %401
  %v403 = vsel %vm255, %v389, 0.0
  %404 = vadd.xlane.f32.xlu0 %v403
  %v405 = vpop.xlane.xlu0 %404
  %v406 = vsel %vm255, %v390, 0.0
  %407 = vadd.xlane.f32.xlu0 %v406
  %v408 = vpop.xlane.xlu0 %407
  %v409 = vsel %vm255, %v391, 0.0
  %410 = vadd.xlane.f32.xlu0 %v409
  %v411 = vpop.xlane.xlu0 %410
  %v412 = vsel %vm255, %v392, 0.0
  %413 = vadd.xlane.f32.xlu0 %v412
  %v414 = vpop.xlane.xlu0 %413
  %v415 = vsel %vm255, %v393, 0.0
  %416 = vadd.xlane.f32.xlu0 %v415
  %v417 = vpop.xlane.xlu0 %416
  %418 = vst.msk [vmem:[%s5] sm:$0xff] %vm255, %v329
  %419 = vst.msk [vmem:[%s5 + $0x8] sm:$0xff] %vm255, %v331
  %420 = vst.msk [vmem:[%s5 + $0x10] sm:$0xff] %vm255, %v333
  %421 = vst.msk [vmem:[%s5 + $0x18] sm:$0xff] %vm255, %v335
  %422 = vst.msk [vmem:[%s5 + $0x20] sm:$0xff] %vm255, %v337
  %423 = vst.msk [vmem:[%s5 + $0x28] sm:$0xff] %vm255, %v339
  %424 = vst.msk [vmem:[%s5 + $0x30] sm:$0xff] %vm255, %v341
  %425 = vst.msk [vmem:[%s5 + $0x38] sm:$0xff] %vm255, %v343
  %vm426 = vcmask 7168
  %v427 = vsel %vm426, %v359, %v396
  %v428 = vsel %vm426, %v362, %v399
  %v429 = vsel %vm426, %v365, %v402
  %v430 = vsel %vm426, %v368, %v405
  %v431 = vsel %vm426, %v371, %v408
  %v432 = vsel %vm426, %v374, %v411
  %v433 = vsel %vm426, %v377, %v414
  %v434 = vsel %vm426, %v380, %v417
  %vm435 = vcmask 15360
  %436 = vst.msk [vmem:[%s6] sm:$0xff] %vm435, %v427
  %437 = vst.msk [vmem:[%s6 + $0x8] sm:$0xff] %vm435, %v428
  %438 = vst.msk [vmem:[%s6 + $0x10] sm:$0xff] %vm435, %v429
  %439 = vst.msk [vmem:[%s6 + $0x18] sm:$0xff] %vm435, %v430
  %440 = vst.msk [vmem:[%s6 + $0x20] sm:$0xff] %vm435, %v431
  %441 = vst.msk [vmem:[%s6 + $0x28] sm:$0xff] %vm435, %v432
  %442 = vst.msk [vmem:[%s6 + $0x30] sm:$0xff] %vm435, %v433
  %443 = vst.msk [vmem:[%s6 + $0x38] sm:$0xff] %vm435, %v434
  // Predicated region
  $region22: #{fushion_forward.7} parent=0 // pred_check
    _
  $region23: #{fushion_forward.7} parent=0 // pred_check_branch
    %445 = sbr.rel (0) target = $region25
  $region24: #{fushion_forward.7} parent=0 // pred_region
    _
  $region25: #{fushion_forward.7} parent=0 // pred_fallthru
    _
  // Predicated region
  $region26: #{fushion_forward.7} parent=0 // pred_check
    _
  $region27: #{fushion_forward.7} parent=0 // pred_check_branch
    %447 = sbr.rel (0) target = $region29
  $region28: #{fushion_forward.7} parent=0 // pred_region
    _
  $region29: #{fushion_forward.7} parent=0 // pred_fallthru
    _
  // Predicated region
  $region30: #{fushion_forward.7} parent=0 // pred_check
    _
  $region31: #{fushion_forward.7} parent=0 // pred_check_branch
    %449 = sbr.rel (0) target = $region33
  $region32: #{fushion_forward.7} parent=0 // pred_region
    _
  $region33: #{fushion_forward.7} parent=0 // pred_fallthru
    _
  // Predicated region
  $region34: #{fushion_forward.7} parent=0 // pred_check
    _
  $region35: #{fushion_forward.7} parent=0 // pred_check_branch
    %451 = sbr.rel (0) target = $region37
  $region36: #{fushion_forward.7} parent=0 // pred_region
    _
  $region37: #{fushion_forward.7} parent=0 // pred_fallthru
    _

</llo_original>
